<compile_context>
chip_gen: v6e
topology: v6e:2x2x1
jax: 0.10.0
libtpu: 0.0.40
codegen_flags: <defaults>
</compile_context>

<pallas_src>
import functools

import jax
import jax.numpy as jnp
from jax.experimental import pallas as pl
from jax.experimental.pallas import tpu as pltpu

K = 50
XSZ = 20000          # real module input width; the example below uses a smaller width,
                     # the kernel tiles + pads XSZ so the real size runs unchanged.
H1, H2 = 200, 100
H1P, H2P = 256, 128  # lane-padded hidden sizes (zero padding -> exact semantics)
HEADP = 128          # 2*K = 100 head columns padded to one lane-dense 128-wide output


def _infnet_kernel(x_ref, wc_ref, bc_ref, wb_ref, bb_ref, wh_ref, bh_ref,
                   out_ref, acc_ref, *, xsz_tile):
    k = pl.program_id(1)

    @pl.when(k == 0)
    def _():
        acc_ref[...] = jnp.zeros_like(acc_ref)

    # Layer C partial product over this XSZ tile (bf16 x bf16 -> f32 MXU accumulate).
    # wc is fully VMEM-resident (fetched from HBM once); slice the k-th row block.
    row0 = pl.multiple_of(k * xsz_tile, xsz_tile)
    acc_ref[...] += jnp.dot(x_ref[...], wc_ref[pl.ds(row0, xsz_tile), :],
                            preferred_element_type=jnp.float32)

    @pl.when(k == pl.num_programs(1) - 1)
    def _():
        # layer C bias + ReLU
        h1 = jnp.maximum(acc_ref[...] + bc_ref[...], 0.0)
        # layer B + ReLU
        h2 = jnp.dot(h1.astype(jnp.bfloat16), wb_ref[...],
                     preferred_element_type=jnp.float32)
        h2 = jnp.maximum(h2 + bb_ref[...], 0.0)
        # fused heads: columns [0,K) -> mu (A), [K,2K) -> softplus(s) (S), rest padding
        heads = jnp.dot(h2.astype(jnp.bfloat16), wh_ref[...],
                        preferred_element_type=jnp.float32) + bh_ref[...]
        col = jax.lax.broadcasted_iota(jnp.int32, heads.shape, 1)
        is_sd = (col >= K) & (col < 2 * K)
        # numerically stable softplus: max(x,0) + log1p(exp(-|x|))
        sp = jnp.maximum(heads, 0.0) + jnp.log1p(jnp.exp(-jnp.abs(heads)))
        out_ref[...] = jnp.where(is_sd, sp, heads).astype(out_ref.dtype)


def pack_params(params, xsz_tile=2048):
    """Pad hidden dims to lane multiples, fuse the A/S heads, cast weights to bf16."""
    xsz = params["wc"].shape[0]
    xszp = pl.cdiv(xsz, xsz_tile) * xsz_tile

    def padw(w, rows, cols):
        return jnp.pad(w, ((0, rows - w.shape[0]), (0, cols - w.shape[1])))

    wc = padw(params["wc"], xszp, H1P).astype(jnp.bfloat16)          # [XSZP, H1P]
    bc = padw(params["bc"], 1, H1P)                                   # [1, H1P] f32
    wb = padw(params["wb"], H1P, H2P).astype(jnp.bfloat16)            # [H1P, H2P]
    bb = padw(params["bb"], 1, H2P)                                   # [1, H2P] f32
    wh = jnp.concatenate([params["wa"], params["ws"]], axis=1)        # [H2, 2K]
    wh = padw(wh, H2P, HEADP).astype(jnp.bfloat16)                    # [H2P, 128]
    bh = padw(jnp.concatenate([params["ba"], params["bs"]], axis=1), 1, HEADP)
    return dict(wc=wc, bc=bc, wb=wb, bb=bb, wh=wh, bh=bh)


@functools.partial(jax.jit, static_argnames=("batch_tile", "xsz_tile"))
def infnet_forward(x, packed, batch_tile=512, xsz_tile=2048):
    """x: [B, xsz] (ideally already bf16 + aligned).  Returns (mu, sd), each [B, K]."""
    B, xs = x.shape
    xszp = packed["wc"].shape[0]
    assert xszp % xsz_tile == 0 and xszp >= xs
    bp = pl.cdiv(B, batch_tile) * batch_tile

    # Producer should hand us bf16 activations; only touch x if it is not already in
    # that form (avoids a wasted full HBM pass over the dominant x stream).
    xp = x if x.dtype == jnp.bfloat16 else x.astype(jnp.bfloat16)
    if bp != B or xszp != xs:
        xp = jnp.pad(xp, ((0, bp - B), (0, xszp - xs)))

    grid = (bp // batch_tile, xszp // xsz_tile)

    # Whole-array VMEM residents: fetched from HBM once, single buffer (no pipelining).
    def resident():
        return pl.BlockSpec(memory_space=pltpu.MemorySpace.VMEM)

    cost = pl.CostEstimate(
        flops=2 * bp * (xszp * H1P + H1P * H2P + H2P * HEADP),
        transcendentals=2 * bp * HEADP,
        bytes_accessed=(int(xp.size) * xp.dtype.itemsize
                        + sum(int(v.size) * v.dtype.itemsize for v in packed.values())
                        + bp * HEADP * 4),
    )

    out = pl.pallas_call(
        functools.partial(_infnet_kernel, xsz_tile=xsz_tile),
        out_shape=jax.ShapeDtypeStruct((bp, HEADP), jnp.float32),
        grid_spec=pltpu.PrefetchScalarGridSpec(
            num_scalar_prefetch=0,
            grid=grid,
            in_specs=[
                pl.BlockSpec((batch_tile, xsz_tile), lambda i, k: (i, k)),  # x (pipelined)
                resident(),   # wc  [XSZP, H1P]
                resident(),   # bc  [1, H1P]
                resident(),   # wb  [H1P, H2P]
                resident(),   # bb  [1, H2P]
                resident(),   # wh  [H2P, HEADP]
                resident(),   # bh  [1, HEADP]
            ],
            out_specs=pl.BlockSpec((batch_tile, HEADP), lambda i, k: (i, 0)),
            scratch_shapes=[pltpu.VMEM((batch_tile, H1P), jnp.float32)],
        ),
        compiler_params=pltpu.CompilerParams(
            dimension_semantics=("parallel", "arbitrary"),
            vmem_limit_bytes=48 * 1024 * 1024,   # raise v5e 16 MiB default; < v7x 64 MiB
        ),
        cost_estimate=cost,
    )(xp, packed["wc"], packed["bc"], packed["wb"], packed["bb"],
      packed["wh"], packed["bh"])

    return out[:B, :K], out[:B, K:2 * K]


def init_params(key, xsz=XSZ):
    """Deterministic init mimicking PyTorch Linear default (U[-1/sqrt(fan_in), +])."""
    def linear(k, fan_in, fan_out):
        kw, kb = jax.random.split(k)
        bound = 1.0 / jnp.sqrt(fan_in)
        w = jax.random.uniform(kw, (fan_in, fan_out), jnp.float32, -bound, bound)
        b = jax.random.uniform(kb, (1, fan_out), jnp.float32, -bound, bound)
        return w, b

    kc, kb_, ka, ks = jax.random.split(key, 4)
    wc, bc = linear(kc, xsz, H1)
    wb, bb = linear(kb_, H1, H2)
    wa, ba = linear(ka, H2, K)
    ws, bs = linear(ks, H2, K)
    return dict(wc=wc, bc=bc, wb=wb, bb=bb, wa=wa, ba=ba, ws=ws, bs=bs)


def reference_forward(x, packed):
    """Pure-JAX reference using the same bf16 operands / f32 accumulation."""
    xszp = packed["wc"].shape[0]
    xb = x.astype(jnp.bfloat16)
    if xb.shape[1] != xszp:
        xb = jnp.pad(xb, ((0, 0), (0, xszp - xb.shape[1])))
    h1 = jnp.maximum(
        jnp.dot(xb, packed["wc"], preferred_element_type=jnp.float32) + packed["bc"], 0.0)
    h2 = jnp.maximum(
        jnp.dot(h1.astype(jnp.bfloat16), packed["wb"],
                preferred_element_type=jnp.float32) + packed["bb"], 0.0)
    heads = jnp.dot(h2.astype(jnp.bfloat16), packed["wh"],
                    preferred_element_type=jnp.float32) + packed["bh"]
    return heads[:, :K], jax.nn.softplus(heads[:, K:2 * K])


if __name__ == "__main__":
    key = jax.random.PRNGKey(0)
    kx, kp = jax.random.split(key)

    # Small self-contained example: 2 batch tiles (feeds both v7x TensorCores) and
    # 2 XSZ reduction tiles.  The real XSZ=20000 runs through the same kernel unchanged.
    B, xsz_example = 1024, 4096
    batch_tile, xsz_tile = 512, 2048

    # Producer emits bf16, already aligned -> no wrapper-side pad/cast HBM pass over x.
    x = jax.random.normal(kx, (B, xsz_example), jnp.bfloat16)
    params = init_params(kp, xsz_example)
    packed = pack_params(params, xsz_tile=xsz_tile)

    mu, sd = infnet_forward(x, packed, batch_tile=batch_tile, xsz_tile=xsz_tile)
    jax.block_until_ready((mu, sd))

    mu_ref, sd_ref = reference_forward(x, packed)
    assert mu.shape == (B, K) and sd.shape == (B, K)
    assert jnp.allclose(mu, mu_ref, atol=2e-3, rtol=2e-3)
    assert jnp.allclose(sd, sd_ref, atol=2e-3, rtol=2e-3)
    assert bool(jnp.all(sd > 0.0))   # softplus output must be positive
    print("KERNEL_OK")
</pallas_src>

<mosaic_0001>
module attributes {stable_mosaic.version = 11 : i64} {
  func.func @_infnet_kernel(%arg0: i32, %arg1: i32, %arg2: memref<512x2048xbf16, #tpu.memory_space<vmem>>, %arg3: memref<4096x256xbf16, #tpu.memory_space<vmem>>, %arg4: memref<1x256xf32, #tpu.memory_space<vmem>>, %arg5: memref<256x128xbf16, #tpu.memory_space<vmem>>, %arg6: memref<1x128xf32, #tpu.memory_space<vmem>>, %arg7: memref<128x128xbf16, #tpu.memory_space<vmem>>, %arg8: memref<1x128xf32, #tpu.memory_space<vmem>>, %arg9: memref<512x128xf32, #tpu.memory_space<vmem>>, %arg10: memref<512x256xf32, #tpu.memory_space<vmem>>) attributes {dimension_semantics = [#tpu.dimension_semantics<parallel>, #tpu.dimension_semantics<arbitrary>], iteration_bounds = array<i64: 2, 2>, scalar_prefetch = 0 : i64, scratch_operands = 1 : i64, tpu.core_type = #tpu.core_type<tc>, window_params = [{transform_indices = @transform_0, window_bounds = array<i64: 512, 2048>}, {pipeline_mode = #tpu.pipeline_mode<synchronous>, transform_indices = @transform_1, window_bounds = array<i64: 4096, 256>}, {pipeline_mode = #tpu.pipeline_mode<synchronous>, transform_indices = @transform_2, window_bounds = array<i64: 1, 256>}, {pipeline_mode = #tpu.pipeline_mode<synchronous>, transform_indices = @transform_3, window_bounds = array<i64: 256, 128>}, {pipeline_mode = #tpu.pipeline_mode<synchronous>, transform_indices = @transform_4, window_bounds = array<i64: 1, 128>}, {pipeline_mode = #tpu.pipeline_mode<synchronous>, transform_indices = @transform_5, window_bounds = array<i64: 128, 128>}, {pipeline_mode = #tpu.pipeline_mode<synchronous>, transform_indices = @transform_6, window_bounds = array<i64: 1, 128>}, {transform_indices = @transform_7, window_bounds = array<i64: 512, 128>}]} {
    %c0_i32 = arith.constant 0 : i32
    %0 = arith.cmpi eq, %arg1, %c0_i32 : i32
    %1 = arith.extui %0 : i1 to i32
    %c0_i32_0 = arith.constant 0 : i32
    %2 = arith.cmpi ne, %1, %c0_i32_0 : i32
    scf.if %2 {
      %cst_8 = arith.constant 0.000000e+00 : f32
      %15 = vector.broadcast %cst_8 : f32 to vector<512x256xf32>
      %c0_9 = arith.constant 0 : index
      %c0_10 = arith.constant 0 : index
      %16 = vector.load %arg10[%c0_9, %c0_10] : memref<512x256xf32, #tpu.memory_space<vmem>>, vector<512x256xf32>
      tpu.vector_store %arg10[%c0_9, %c0_10], %15 {strides = array<i32>} : memref<512x256xf32, #tpu.memory_space<vmem>>, vector<512x256xf32>,
    } else {
    }
    %c2048_i32 = arith.constant 2048 : i32
    %3 = arith.muli %arg1, %c2048_i32 : i32
    %4 = tpu.assume_multiple %3, 2048 : i32
    %c0 = arith.constant 0 : index
    %c0_1 = arith.constant 0 : index
    %5 = vector.load %arg10[%c0, %c0_1] : memref<512x256xf32, #tpu.memory_space<vmem>>, vector<512x256xf32>
    %c0_2 = arith.constant 0 : index
    %c0_3 = arith.constant 0 : index
    %6 = vector.load %arg2[%c0_2, %c0_3] : memref<512x2048xbf16, #tpu.memory_space<vmem>>, vector<512x2048xbf16>
    %7 = arith.index_cast %4 : i32 to index
    %c0_4 = arith.constant 0 : index
    %8 = vector.load %arg3[%7, %c0_4] : memref<4096x256xbf16, #tpu.memory_space<vmem>>, vector<2048x256xbf16>
    %cst = arith.constant dense<0.000000e+00> : vector<512x256xf32>
    %9 = tpu.matmul %6, %8, %cst {dimension_numbers = #tpu.dot_dimension_numbers<[1], [0], [0], [1], [0, 0, 1, 1], [], []>} : vector<512x2048xbf16>, vector<2048x256xbf16>, vector<512x256xf32> -> vector<512x256xf32>
    %10 = arith.addf %5, %9 : vector<512x256xf32>
    %c0_5 = arith.constant 0 : index
    %c0_6 = arith.constant 0 : index
    %11 = vector.load %arg10[%c0_5, %c0_6] : memref<512x256xf32, #tpu.memory_space<vmem>>, vector<512x256xf32>
    tpu.vector_store %arg10[%c0_5, %c0_6], %10 {strides = array<i32>} : memref<512x256xf32, #tpu.memory_space<vmem>>, vector<512x256xf32>,
    %c1_i32 = arith.constant 1 : i32
    %12 = arith.cmpi eq, %arg1, %c1_i32 : i32
    %13 = arith.extui %12 : i1 to i32
    %c0_i32_7 = arith.constant 0 : i32
    %14 = arith.cmpi ne, %13, %c0_i32_7 : i32
    scf.if %14 {
      %c0_8 = arith.constant 0 : index
      %c0_9 = arith.constant 0 : index
      %15 = vector.load %arg10[%c0_8, %c0_9] : memref<512x256xf32, #tpu.memory_space<vmem>>, vector<512x256xf32>
      %c0_10 = arith.constant 0 : index
      %c0_11 = arith.constant 0 : index
      %16 = vector.load %arg4[%c0_10, %c0_11] : memref<1x256xf32, #tpu.memory_space<vmem>>, vector<1x256xf32>
      %17 = vector.broadcast %16 : vector<1x256xf32> to vector<512x256xf32>
      %18 = arith.addf %15, %17 : vector<512x256xf32>
      %cst_12 = arith.constant 0.000000e+00 : f32
      %19 = vector.broadcast %cst_12 : f32 to vector<512x256xf32>
      %20 = arith.maximumf %18, %19 : vector<512x256xf32>
      %21 = arith.truncf %20 : vector<512x256xf32> to vector<512x256xbf16>
      %c0_13 = arith.constant 0 : index
      %c0_14 = arith.constant 0 : index
      %22 = vector.load %arg5[%c0_13, %c0_14] : memref<256x128xbf16, #tpu.memory_space<vmem>>, vector<256x128xbf16>
      %cst_15 = arith.constant dense<0.000000e+00> : vector<512x128xf32>
      %23 = tpu.matmul %21, %22, %cst_15 {dimension_numbers = #tpu.dot_dimension_numbers<[1], [0], [0], [1], [0, 0, 1, 1], [], []>} : vector<512x256xbf16>, vector<256x128xbf16>, vector<512x128xf32> -> vector<512x128xf32>
      %c0_16 = arith.constant 0 : index
      %c0_17 = arith.constant 0 : index
      %24 = vector.load %arg6[%c0_16, %c0_17] : memref<1x128xf32, #tpu.memory_space<vmem>>, vector<1x128xf32>
      %25 = vector.broadcast %24 : vector<1x128xf32> to vector<512x128xf32>
      %26 = arith.addf %23, %25 : vector<512x128xf32>
      %cst_18 = arith.constant 0.000000e+00 : f32
      %27 = vector.broadcast %cst_18 : f32 to vector<512x128xf32>
      %28 = arith.maximumf %26, %27 : vector<512x128xf32>
      %29 = arith.truncf %28 : vector<512x128xf32> to vector<512x128xbf16>
      %c0_19 = arith.constant 0 : index
      %c0_20 = arith.constant 0 : index
      %30 = vector.load %arg7[%c0_19, %c0_20] : memref<128x128xbf16, #tpu.memory_space<vmem>>, vector<128x128xbf16>
      %cst_21 = arith.constant dense<0.000000e+00> : vector<512x128xf32>
      %31 = tpu.matmul %29, %30, %cst_21 {dimension_numbers = #tpu.dot_dimension_numbers<[1], [0], [0], [1], [0, 0, 1, 1], [], []>} : vector<512x128xbf16>, vector<128x128xbf16>, vector<512x128xf32> -> vector<512x128xf32>
      %c0_22 = arith.constant 0 : index
      %c0_23 = arith.constant 0 : index
      %32 = vector.load %arg8[%c0_22, %c0_23] : memref<1x128xf32, #tpu.memory_space<vmem>>, vector<1x128xf32>
      %33 = vector.broadcast %32 : vector<1x128xf32> to vector<512x128xf32>
      %34 = arith.addf %31, %33 : vector<512x128xf32>
      %35 = tpu.iota {dimensions = array<i32: 1>} : vector<512x128xi32>
      %c50_i32 = arith.constant 50 : i32
      %36 = vector.broadcast %c50_i32 : i32 to vector<512x128xi32>
      %37 = arith.cmpi sge, %35, %36 : vector<512x128xi32>
      %c100_i32 = arith.constant 100 : i32
      %38 = vector.broadcast %c100_i32 : i32 to vector<512x128xi32>
      %39 = arith.cmpi slt, %35, %38 : vector<512x128xi32>
      %40 = arith.andi %37, %39 : vector<512x128xi1>
      %cst_24 = arith.constant 0.000000e+00 : f32
      %41 = vector.broadcast %cst_24 : f32 to vector<512x128xf32>
      %42 = arith.maximumf %34, %41 : vector<512x128xf32>
      %43 = math.absf %34 : vector<512x128xf32>
      %cst_25 = arith.constant 0.000000e+00 : f32
      %44 = vector.broadcast %cst_25 : f32 to vector<512x128xf32>
      %45 = arith.subf %44, %43 : vector<512x128xf32>
      %46 = math.exp %45 : vector<512x128xf32>
      %47 = math.log1p %46 : vector<512x128xf32>
      %48 = arith.addf %42, %47 : vector<512x128xf32>
      %49 = arith.select %40, %48, %34 : vector<512x128xi1>, vector<512x128xf32>
      %c0_26 = arith.constant 0 : index
      %c0_27 = arith.constant 0 : index
      %50 = vector.load %arg9[%c0_26, %c0_27] : memref<512x128xf32, #tpu.memory_space<vmem>>, vector<512x128xf32>
      tpu.vector_store %arg9[%c0_26, %c0_27], %49 {strides = array<i32>} : memref<512x128xf32, #tpu.memory_space<vmem>>, vector<512x128xf32>,
    } else {
    }
    return
  }
  func.func @transform_0(%arg0: i32, %arg1: i32) -> (i32, i32) {
    %c0_i32 = arith.constant 0 : i32
    return %arg0, %arg1 : i32, i32
  }
  func.func @transform_1(%arg0: i32, %arg1: i32) -> (i32, i32) {
    %c0_i32 = arith.constant 0 : i32
    %c0_i32_0 = arith.constant 0 : i32
    %c0_i32_1 = arith.constant 0 : i32
    return %c0_i32, %c0_i32_0 : i32, i32
  }
  func.func @transform_2(%arg0: i32, %arg1: i32) -> (i32, i32) {
    %c0_i32 = arith.constant 0 : i32
    %c0_i32_0 = arith.constant 0 : i32
    %c0_i32_1 = arith.constant 0 : i32
    return %c0_i32, %c0_i32_0 : i32, i32
  }
  func.func @transform_3(%arg0: i32, %arg1: i32) -> (i32, i32) {
    %c0_i32 = arith.constant 0 : i32
    %c0_i32_0 = arith.constant 0 : i32
    %c0_i32_1 = arith.constant 0 : i32
    return %c0_i32, %c0_i32_0 : i32, i32
  }
  func.func @transform_4(%arg0: i32, %arg1: i32) -> (i32, i32) {
    %c0_i32 = arith.constant 0 : i32
    %c0_i32_0 = arith.constant 0 : i32
    %c0_i32_1 = arith.constant 0 : i32
    return %c0_i32, %c0_i32_0 : i32, i32
  }
  func.func @transform_5(%arg0: i32, %arg1: i32) -> (i32, i32) {
    %c0_i32 = arith.constant 0 : i32
    %c0_i32_0 = arith.constant 0 : i32
    %c0_i32_1 = arith.constant 0 : i32
    return %c0_i32, %c0_i32_0 : i32, i32
  }
  func.func @transform_6(%arg0: i32, %arg1: i32) -> (i32, i32) {
    %c0_i32 = arith.constant 0 : i32
    %c0_i32_0 = arith.constant 0 : i32
    %c0_i32_1 = arith.constant 0 : i32
    return %c0_i32, %c0_i32_0 : i32, i32
  }
  func.func @transform_7(%arg0: i32, %arg1: i32) -> (i32, i32) {
    %c0_i32 = arith.constant 0 : i32
    %c0_i32_0 = arith.constant 0 : i32
    return %arg0, %c0_i32 : i32, i32
  }
}

</mosaic_0001>

<llo_original>
// kernel: infnet_forward.1
$region0: #{infnet_forward.1}
  #allocation0 [shape = 'u32[]', space=smem, size = 0x4, offset = 0x4, fixed_abs, tag = 'smem constant byte address 0x4 - core index']
  #allocation1 [shape = 'u32[144,128]{1,0:T(1,128)}', space=vmem, size = 0x12000, scoped, tag = 'internal scratch']
  #allocation2 [shape = 'f32[512,256]{1,0:T(8,128)}', space=vmem, size = 0x80000, scoped, tag = 'scratch operand']
  %s0 = inlined_call_operand.hbm [shape: bf16[1024,4096], index: 0, kind: input, shape index: {}]
  %s1 = inlined_call_operand.hbm [shape: bf16[4096,256], index: 1, kind: input, shape index: {}]
  %s2 = inlined_call_operand.hbm [shape: f32[1,256], index: 2, kind: input, shape index: {}]
  %s3 = inlined_call_operand.hbm [shape: bf16[256,128], index: 3, kind: input, shape index: {}]
  %s4 = inlined_call_operand.hbm [shape: f32[1,128], index: 4, kind: input, shape index: {}]
  %s5 = inlined_call_operand.hbm [shape: bf16[128,128], index: 5, kind: input, shape index: {}]
  %s6 = inlined_call_operand.hbm [shape: f32[1,128], index: 6, kind: input, shape index: {}]
  %s7 = inlined_call_operand.vmem [shape: f32[1024,128], index: 7, kind: output, shape index: {}]
  %s8 = sld [smem:[#allocation0]]
  $region97: #{infnet_forward.1} parent=0
    _
  %s10 = ssub.s32 1, %s8
  %s11 = scalar_select 0, %s10, %s8
  $region1: #{infnet_forward.1} parent=0
    #allocation3 [shape = 'u8[4194304]{0}', space=vmem, size = 0x400000, scoped, tag = 'input window, operand 0']
    #allocation4 [shape = 's32[2]{0}', space=sflag, size = 0x8, scoped, tag = 'scoped memory for infnet_forward.1']
    #allocation5 [shape = 'u8[2097152]{0}', space=vmem, size = 0x200000, scoped, tag = 'input window, operand 1, single buffered']
    #allocation6 [shape = 's32[1]{0}', space=sflag, size = 0x4, scoped, tag = 'scoped memory for infnet_forward.1']
    #allocation7 [shape = 'u8[1024]{0}', space=vmem, size = 0x400, scoped, tag = 'input window, operand 2, single buffered']
    #allocation8 [shape = 'u8[65536]{0}', space=vmem, size = 0x10000, scoped, tag = 'input window, operand 3, single buffered']
    #allocation9 [shape = 's32[1]{0}', space=sflag, size = 0x4, scoped, tag = 'scoped memory for infnet_forward.1']
    #allocation10 [shape = 'u8[512]{0}', space=vmem, size = 0x400, scoped, tag = 'input window, operand 4, single buffered']
    #allocation11 [shape = 'u8[32768]{0}', space=vmem, size = 0x8000, scoped, tag = 'input window, operand 5, single buffered']
    #allocation12 [shape = 's32[1]{0}', space=sflag, size = 0x4, scoped, tag = 'scoped memory for infnet_forward.1']
    #allocation13 [shape = 'u8[512]{0}', space=vmem, size = 0x400, scoped, tag = 'input window, operand 6, single buffered']
    %12 = vsyncpa [#allocation4], 0
    %s13 = scalar_lea.sflag [#allocation4], 1
    %14 = vsyncpa %s13, 0
    %15 = vsyncpa [#allocation6], 0
    %16 = vsyncpa [#allocation9], 0
    %17 = vsyncpa [#allocation12], 0
    loop: start=0, step=1, limit=6
    $region2: #{infnet_forward.1} parent=1 // loop_pre_header
      _
    $region3: #{infnet_forward.1} parent=1 // loop_header
      %s19 = sphi 0, %s23
      %p20 = scmp.ge.s32.totalorder %s19, 6
      %s26 = sphi 0, %s38
      %s27 = sphi 0, %s34
      %s28 = sphi 0, %s26
      %s29 = sphi 0, %s27
      %s30 = sphi 0, %s28
      %s31 = sphi 0, %s29
      %s43 = sphi 0, %s45
      %s46 = sphi 0, %s43
      %s47 = sphi 0, %s46
      %s63 = sphi 0, %s47
      %s67 = sphi 0, %s67
      %s69 = sphi 0, %s67
      %s70 = sphi 0, %s69
      %s84 = sphi 0, %s70
      %s88 = sphi 0, %s88
      %s90 = sphi 0, %s88
      %s91 = sphi 0, %s90
      %s105 = sphi 0, %s91
      %s109 = sphi 0, %s109
      %s111 = sphi 0, %s109
      %s112 = sphi 0, %s111
      %s126 = sphi 0, %s112
      %s130 = sphi 0, %s130
      %s132 = sphi 0, %s130
      %s133 = sphi 0, %s132
      %s147 = sphi 0, %s133
      %s151 = sphi 0, %s151
      %s153 = sphi 0, %s151
      %s154 = sphi 0, %s153
      %s168 = sphi 0, %s154
      %s172 = sphi 0, %s172
      %s174 = sphi 0, %s172
      %s175 = sphi 0, %s174
      %s189 = sphi 0, %s175
      %s195 = sphi 0, %s197
      %s198 = sphi 0, %s195
      %s199 = sphi 0, %s198
      %s215 = sphi 0, %s199
    $region4: #{infnet_forward.1} parent=1 // loop_header_branch
      %22 = sbr.rel (%p20) target = $region8
    $region5: #{infnet_forward.1} parent=1 // loop_body
      %s24 = ssub.s32 %s19, 1
      %s25 = ssub.s32 %s19, 2
      %s32 = sadd.s32 1, %s27
      %p33 = scmp.ge.s32.totalorder %s32, 2
      %s34 = scalar_select %p33, 0, %s32
      %s35 = sadd.s32 1, %s26
      %s36 = scalar_select %p33, %s35, %s26
      %p37 = scmp.ge.s32.totalorder %s36, 2
      %s38 = scalar_select %p37, 0, %s36
      %s39 = ssub.s32 %s26, %s38
      %s40 = ssub.s32 %s27, %s34
      %s41 = sor.u32 %s39, %s40
      %p42 = scmp.eq.s32.totalorder %s41, 0
      %s44 = sadd.s32 %s43, 1
      %s45 = scalar_select %p42, %s43, %s44
      %p48 = pneg %p42
      %p49 = scmp.eq.s32.totalorder %s19, 3
      %p50 = por %p48, %p49
      %p51 = scmp.ne.s32.totalorder %s43, %s46
      %p52 = scmp.eq.s32.totalorder %s19, 0
      %p53 = por %p51, %p52
      %p54 = scmp.ne.s32.totalorder %s43, %s46
      %p55 = scmp.eq.s32.totalorder %s24, 3
      %p56 = por %p54, %p55
      %p57 = scmp.ne.s32.totalorder %s46, %s47
      %p58 = scmp.eq.s32.totalorder %s24, 0
      %p59 = por %p57, %p58
      %p60 = scmp.ne.s32.totalorder %s46, %s47
      %p61 = scmp.eq.s32.totalorder %s25, 3
      %p62 = por %p60, %p61
      %p64 = scmp.ne.s32.totalorder %s47, %s63
      %p65 = scmp.eq.s32.totalorder %s25, 0
      %p66 = por %p64, %p65
      %s68 = sadd.s32 %s67, 1
      %p71 = scmp.eq.s32.totalorder %s19, 3
      %p72 = scmp.ne.s32.totalorder %s67, %s69
      %p73 = scmp.eq.s32.totalorder %s19, 0
      %p74 = por %p72, %p73
      %p75 = scmp.ne.s32.totalorder %s67, %s69
      %p76 = scmp.eq.s32.totalorder %s24, 3
      %p77 = por %p75, %p76
      %p78 = scmp.ne.s32.totalorder %s69, %s70
      %p79 = scmp.eq.s32.totalorder %s24, 0
      %p80 = por %p78, %p79
      %p81 = scmp.ne.s32.totalorder %s69, %s70
      %p82 = scmp.eq.s32.totalorder %s25, 3
      %p83 = por %p81, %p82
      %p85 = scmp.ne.s32.totalorder %s70, %s84
      %p86 = scmp.eq.s32.totalorder %s25, 0
      %p87 = por %p85, %p86
      %s89 = sadd.s32 %s88, 1
      %p92 = scmp.eq.s32.totalorder %s19, 3
      %p93 = scmp.ne.s32.totalorder %s88, %s90
      %p94 = scmp.eq.s32.totalorder %s19, 0
      %p95 = por %p93, %p94
      %p96 = scmp.ne.s32.totalorder %s88, %s90
      %p97 = scmp.eq.s32.totalorder %s24, 3
      %p98 = por %p96, %p97
      %p99 = scmp.ne.s32.totalorder %s90, %s91
      %p100 = scmp.eq.s32.totalorder %s24, 0
      %p101 = por %p99, %p100
      %p102 = scmp.ne.s32.totalorder %s90, %s91
      %p103 = scmp.eq.s32.totalorder %s25, 3
      %p104 = por %p102, %p103
      %p106 = scmp.ne.s32.totalorder %s91, %s105
      %p107 = scmp.eq.s32.totalorder %s25, 0
      %p108 = por %p106, %p107
      %s110 = sadd.s32 %s109, 1
      %p113 = scmp.eq.s32.totalorder %s19, 3
      %p114 = scmp.ne.s32.totalorder %s109, %s111
      %p115 = scmp.eq.s32.totalorder %s19, 0
      %p116 = por %p114, %p115
      %p117 = scmp.ne.s32.totalorder %s109, %s111
      %p118 = scmp.eq.s32.totalorder %s24, 3
      %p119 = por %p117, %p118
      %p120 = scmp.ne.s32.totalorder %s111, %s112
      %p121 = scmp.eq.s32.totalorder %s24, 0
      %p122 = por %p120, %p121
      %p123 = scmp.ne.s32.totalorder %s111, %s112
      %p124 = scmp.eq.s32.totalorder %s25, 3
      %p125 = por %p123, %p124
      %p127 = scmp.ne.s32.totalorder %s112, %s126
      %p128 = scmp.eq.s32.totalorder %s25, 0
      %p129 = por %p127, %p128
      %s131 = sadd.s32 %s130, 1
      %p134 = scmp.eq.s32.totalorder %s19, 3
      %p135 = scmp.ne.s32.totalorder %s130, %s132
      %p136 = scmp.eq.s32.totalorder %s19, 0
      %p137 = por %p135, %p136
      %p138 = scmp.ne.s32.totalorder %s130, %s132
      %p139 = scmp.eq.s32.totalorder %s24, 3
      %p140 = por %p138, %p139
      %p141 = scmp.ne.s32.totalorder %s132, %s133
      %p142 = scmp.eq.s32.totalorder %s24, 0
      %p143 = por %p141, %p142
      %p144 = scmp.ne.s32.totalorder %s132, %s133
      %p145 = scmp.eq.s32.totalorder %s25, 3
      %p146 = por %p144, %p145
      %p148 = scmp.ne.s32.totalorder %s133, %s147
      %p149 = scmp.eq.s32.totalorder %s25, 0
      %p150 = por %p148, %p149
      %s152 = sadd.s32 %s151, 1
      %p155 = scmp.eq.s32.totalorder %s19, 3
      %p156 = scmp.ne.s32.totalorder %s151, %s153
      %p157 = scmp.eq.s32.totalorder %s19, 0
      %p158 = por %p156, %p157
      %p159 = scmp.ne.s32.totalorder %s151, %s153
      %p160 = scmp.eq.s32.totalorder %s24, 3
      %p161 = por %p159, %p160
      %p162 = scmp.ne.s32.totalorder %s153, %s154
      %p163 = scmp.eq.s32.totalorder %s24, 0
      %p164 = por %p162, %p163
      %p165 = scmp.ne.s32.totalorder %s153, %s154
      %p166 = scmp.eq.s32.totalorder %s25, 3
      %p167 = por %p165, %p166
      %p169 = scmp.ne.s32.totalorder %s154, %s168
      %p170 = scmp.eq.s32.totalorder %s25, 0
      %p171 = por %p169, %p170
      %s173 = sadd.s32 %s172, 1
      %p176 = scmp.eq.s32.totalorder %s19, 3
      %p177 = scmp.ne.s32.totalorder %s172, %s174
      %p178 = scmp.eq.s32.totalorder %s19, 0
      %p179 = por %p177, %p178
      %p180 = scmp.ne.s32.totalorder %s172, %s174
      %p181 = scmp.eq.s32.totalorder %s24, 3
      %p182 = por %p180, %p181
      %p183 = scmp.ne.s32.totalorder %s174, %s175
      %p184 = scmp.eq.s32.totalorder %s24, 0
      %p185 = por %p183, %p184
      %p186 = scmp.ne.s32.totalorder %s174, %s175
      %p187 = scmp.eq.s32.totalorder %s25, 3
      %p188 = por %p186, %p187
      %p190 = scmp.ne.s32.totalorder %s175, %s189
      %p191 = scmp.eq.s32.totalorder %s25, 0
      %p192 = por %p190, %p191
      %s193 = ssub.s32 %s26, %s38
      %p194 = scmp.eq.s32.totalorder %s193, 0
      %s196 = sadd.s32 %s195, 1
      %s197 = scalar_select %p194, %s195, %s196
      %p200 = pneg %p194
      %p201 = scmp.eq.s32.totalorder %s19, 3
      %p202 = por %p200, %p201
      %p203 = scmp.ne.s32.totalorder %s195, %s198
      %p204 = scmp.eq.s32.totalorder %s19, 0
      %p205 = por %p203, %p204
      %p206 = scmp.ne.s32.totalorder %s195, %s198
      %p207 = scmp.eq.s32.totalorder %s24, 3
      %p208 = por %p206, %p207
      %p209 = scmp.ne.s32.totalorder %s198, %s199
      %p210 = scmp.eq.s32.totalorder %s24, 0
      %p211 = por %p209, %p210
      %p212 = scmp.ne.s32.totalorder %s198, %s199
      %p213 = scmp.eq.s32.totalorder %s25, 3
      %p214 = por %p212, %p213
      %p216 = scmp.ne.s32.totalorder %s199, %s215
      %p217 = scmp.eq.s32.totalorder %s25, 0
      %p218 = por %p216, %p217
      %p219 = scmp.le.s32.totalorder 1, %s19
      %p220 = scmp.lt.s32.totalorder %s19, 5
      %p221 = pnand %p219, %p220
      %p222 = pneg %p221
      // Predicated region
      $region9: #{infnet_forward.1} parent=5 // pred_check
        _
      $region10: #{infnet_forward.1} parent=5 // pred_check_branch
        %224 = sbr.rel (%p221) target = $region12
      $region11: #{infnet_forward.1} parent=5 // pred_region
        %s225 = ssub.s32 %s19, 1
        // Predicated region
        $region13: #{infnet_forward.1} parent=11 // pred_check
          %p226 = pneg %p80
        $region14: #{infnet_forward.1} parent=11 // pred_check_branch
          %228 = sbr.rel (%p226) target = $region16
        $region15: #{infnet_forward.1} parent=11 // pred_region
          %s230 = ssub.s32 65536, 65536
          %231 = vsyncadd [#allocation6], %s230
          %s232 = sshll.u32 [#allocation5], 4
          %s233 = int_to_ptr.vmem [resolvable:$true] %s232
          %238 = dma.hbm_to_vmem [thread:$0]  %s1, 65536, %s233, [#allocation6], 128, 128, 8
        $region16: #{infnet_forward.1} parent=11 // pred_fallthru
          _
        // Predicated region
        $region17: #{infnet_forward.1} parent=11 // pred_check
          %p239 = pneg %p101
        $region18: #{infnet_forward.1} parent=11 // pred_check_branch
          %241 = sbr.rel (%p239) target = $region20
        $region19: #{infnet_forward.1} parent=11 // pred_region
          %s243 = ssub.s32 32, 32
          %244 = vsyncadd [#allocation6], %s243
          %s246 = sshll.u32 [#allocation7], 4
          %s247 = int_to_ptr.vmem [resolvable:$true] %s246
          %249 = dma.hbm_to_vmem [thread:$0]  %s2, 32, %s247, [#allocation6]
        $region20: #{infnet_forward.1} parent=11 // pred_fallthru
          _
        // Predicated region
        $region21: #{infnet_forward.1} parent=11 // pred_check
          %p250 = pneg %p122
        $region22: #{infnet_forward.1} parent=11 // pred_check_branch
          %252 = sbr.rel (%p250) target = $region24
        $region23: #{infnet_forward.1} parent=11 // pred_region
          %s254 = ssub.s32 2048, 2048
          %255 = vsyncadd [#allocation9], %s254
          %s256 = sshll.u32 [#allocation8], 4
          %s257 = int_to_ptr.vmem [resolvable:$true] %s256
          %262 = dma.hbm_to_vmem [thread:$0]  %s3, 2048, %s257, [#allocation9], 64, 64, 4
        $region24: #{infnet_forward.1} parent=11 // pred_fallthru
          _
        // Predicated region
        $region25: #{infnet_forward.1} parent=11 // pred_check
          %p263 = pneg %p143
        $region26: #{infnet_forward.1} parent=11 // pred_check_branch
          %265 = sbr.rel (%p263) target = $region28
        $region27: #{infnet_forward.1} parent=11 // pred_region
          %s267 = ssub.s32 16, 16
          %268 = vsyncadd [#allocation9], %s267
          %s270 = sshll.u32 [#allocation10], 4
          %s271 = int_to_ptr.vmem [resolvable:$true] %s270
          %273 = dma.hbm_to_vmem [thread:$0]  %s4, 16, %s271, [#allocation9]
        $region28: #{infnet_forward.1} parent=11 // pred_fallthru
          _
        // Predicated region
        $region29: #{infnet_forward.1} parent=11 // pred_check
          %p274 = pneg %p164
        $region30: #{infnet_forward.1} parent=11 // pred_check_branch
          %276 = sbr.rel (%p274) target = $region32
        $region31: #{infnet_forward.1} parent=11 // pred_region
          %s278 = ssub.s32 1024, 1024
          %279 = vsyncadd [#allocation12], %s278
          %s280 = sshll.u32 [#allocation11], 4
          %s281 = int_to_ptr.vmem [resolvable:$true] %s280
          %286 = dma.hbm_to_vmem [thread:$0]  %s5, 1024, %s281, [#allocation12], 64, 64, 4
        $region32: #{infnet_forward.1} parent=11 // pred_fallthru
          _
        // Predicated region
        $region33: #{infnet_forward.1} parent=11 // pred_check
          %p287 = pneg %p185
        $region34: #{infnet_forward.1} parent=11 // pred_check_branch
          %289 = sbr.rel (%p287) target = $region36
        $region35: #{infnet_forward.1} parent=11 // pred_region
          %s291 = ssub.s32 16, 16
          %292 = vsyncadd [#allocation12], %s291
          %s294 = sshll.u32 [#allocation13], 4
          %s295 = int_to_ptr.vmem [resolvable:$true] %s294
          %297 = dma.hbm_to_vmem [thread:$0]  %s6, 16, %s295, [#allocation12]
        $region36: #{infnet_forward.1} parent=11 // pred_fallthru
          _
      $region12: #{infnet_forward.1} parent=5 // pred_fallthru
        _
      %p298 = scmp.lt.s32.totalorder %s19, 4
      // Predicated region
      $region37: #{infnet_forward.1} parent=5 // pred_check
        %p299 = pneg %p298
      $region38: #{infnet_forward.1} parent=5 // pred_check_branch
        %301 = sbr.rel (%p299) target = $region40
      $region39: #{infnet_forward.1} parent=5 // pred_region
        // Predicated region
        $region41: #{infnet_forward.1} parent=39 // pred_check
          %p302 = pneg %p53
        $region42: #{infnet_forward.1} parent=39 // pred_check_branch
          %304 = sbr.rel (%p302) target = $region44
        $region43: #{infnet_forward.1} parent=39 // pred_region
          %s305 = sand.u32 %s43, 1
          %s306 = scalar_lea.sflag [#allocation4], %s305
          %s307 = sand.u32 %s43, 1
          %s308 = smul.addr %s307, 4096
          %s309 = scalar_lea.vmem [#allocation3], %s308
          %s310 = smul.u32 64, %s26
          %s311 = smul.u32 16, %s27
          %s313 = ssub.s32 65536, 65536
          %314 = vsyncadd %s306, %s313
          %s315 = smul.addr %s310, 32
          %s316 = sadd.s32 %s311, %s315
          %s317 = smul.addr %s316, 64
          %s318 = scalar_lea.hbm %s0, %s317
          %s319 = sshll.u32 %s309, 4
          %s320 = int_to_ptr.vmem [resolvable:$true] %s319
          %325 = dma.hbm_to_vmem [thread:$0]  %s318, 65536, %s320, %s306, 2048, 1024, 64
        $region44: #{infnet_forward.1} parent=39 // pred_fallthru
          _
      $region40: #{infnet_forward.1} parent=5 // pred_fallthru
        _
      %p326 = scmp.le.s32.totalorder 1, %s19
      %p327 = scmp.lt.s32.totalorder %s19, 5
      %p328 = pnand %p326, %p327
      %p329 = pneg %p328
      // Predicated region
      $region45: #{infnet_forward.1} parent=5 // pred_check
        _
      $region46: #{infnet_forward.1} parent=5 // pred_check_branch
        %331 = sbr.rel (%p328) target = $region48
      $region47: #{infnet_forward.1} parent=5 // pred_region
        %s332 = ssub.s32 %s19, 1
        %s333 = sand.u32 %s46, 1
        %s334 = scalar_lea.sflag [#allocation4], %s333
        %s335 = sand.u32 %s46, 1
        %s336 = smul.addr %s335, 4096
        %s337 = scalar_lea.vmem [#allocation3], %s336
        // Predicated region
        $region49: #{infnet_forward.1} parent=47 // pred_check
          %p338 = pneg %p59
        $region50: #{infnet_forward.1} parent=47 // pred_check_branch
          %340 = sbr.rel (%p338) target = $region52
        $region51: #{infnet_forward.1} parent=47 // pred_region
          %341 = dma.done %s334, 65536
        $region52: #{infnet_forward.1} parent=47 // pred_fallthru
          _
        // Predicated region
        $region53: #{infnet_forward.1} parent=47 // pred_check
          %p342 = pneg %p80
        $region54: #{infnet_forward.1} parent=47 // pred_check_branch
          %344 = sbr.rel (%p342) target = $region56
        $region55: #{infnet_forward.1} parent=47 // pred_region
          %345 = dma.done [#allocation6], 65536
        $region56: #{infnet_forward.1} parent=47 // pred_fallthru
          _
        // Predicated region
        $region57: #{infnet_forward.1} parent=47 // pred_check
          %p346 = pneg %p101
        $region58: #{infnet_forward.1} parent=47 // pred_check_branch
          %348 = sbr.rel (%p346) target = $region60
        $region59: #{infnet_forward.1} parent=47 // pred_region
          %349 = dma.done [#allocation6], 32
        $region60: #{infnet_forward.1} parent=47 // pred_fallthru
          _
        // Predicated region
        $region61: #{infnet_forward.1} parent=47 // pred_check
          %p350 = pneg %p122
        $region62: #{infnet_forward.1} parent=47 // pred_check_branch
          %352 = sbr.rel (%p350) target = $region64
        $region63: #{infnet_forward.1} parent=47 // pred_region
          %353 = dma.done [#allocation9], 2048
        $region64: #{infnet_forward.1} parent=47 // pred_fallthru
          _
        // Predicated region
        $region65: #{infnet_forward.1} parent=47 // pred_check
          %p354 = pneg %p143
        $region66: #{infnet_forward.1} parent=47 // pred_check_branch
          %356 = sbr.rel (%p354) target = $region68
        $region67: #{infnet_forward.1} parent=47 // pred_region
          %357 = dma.done [#allocation9], 16
        $region68: #{infnet_forward.1} parent=47 // pred_fallthru
          _
        // Predicated region
        $region69: #{infnet_forward.1} parent=47 // pred_check
          %p358 = pneg %p164
        $region70: #{infnet_forward.1} parent=47 // pred_check_branch
          %360 = sbr.rel (%p358) target = $region72
        $region71: #{infnet_forward.1} parent=47 // pred_region
          %361 = dma.done [#allocation12], 1024
        $region72: #{infnet_forward.1} parent=47 // pred_fallthru
          _
        // Predicated region
        $region73: #{infnet_forward.1} parent=47 // pred_check
          %p362 = pneg %p185
        $region74: #{infnet_forward.1} parent=47 // pred_check_branch
          %364 = sbr.rel (%p362) target = $region76
        $region75: #{infnet_forward.1} parent=47 // pred_region
          %365 = dma.done [#allocation12], 16
        $region76: #{infnet_forward.1} parent=47 // pred_fallthru
          _
        %s366 = sand.u32 %s46, 1
        %s367 = scalar_lea.sflag [#allocation4], %s366
        %s368 = sand.u32 %s46, 1
        %s369 = smul.addr %s368, 4096
        %s370 = scalar_lea.vmem [#allocation3], %s369
        %p371 = pneg %p59
        %p372 = pneg %p56
        %p373 = pneg %p80
        %p374 = pneg %p77
        %p375 = pneg %p101
        %p376 = pneg %p98
        %p377 = pneg %p122
        %p378 = pneg %p119
        %p379 = pneg %p143
        %p380 = pneg %p140
        %p381 = pneg %p164
        %p382 = pneg %p161
        %p383 = pneg %p185
        %p384 = pneg %p182
        %p385 = pneg %p211
        %p386 = pneg %p208
        %s387 = smul.u32 64, %s28
        %p388 = scmp.lt.s32.totalorder %s387, 127
        %s389 = scalar_select %p388, %s387, 127
        %s390 = smul.addr %s389, 8
        %s391 = scalar_lea.vmem %s7, %s390
        %s392 = smul.u32 64, %s28
        %s393 = smul.u32 16, %s29
        %s394 = smul.u32 64, %s28
        %p395 = scmp.lt.s32.totalorder %s394, 127
        %s396 = scalar_select %p395, %s394, 127
        %s397 = smul.addr %s396, 8
        %s398 = scalar_lea.vmem %s7, %s397
        %s399 = smul.u32 64, %s28
        %p401 = scmp.eq.s32.totalorder %s29, 0
        // Predicated region
        $region77: #{infnet_forward.1} parent=47 // pred_check
          %p402 = pneg %p401
        $region78: #{infnet_forward.1} parent=47 // pred_check_branch
          %404 = sbr.rel (%p402) target = $region80
        $region79: #{infnet_forward.1} parent=47 // pred_region
          %405 = vst [vmem:[#allocation2] sm:$0xff] 0.0
          %406 = vst [vmem:[#allocation2 + $0x8] sm:$0xff] 0.0
          %407 = vst [vmem:[#allocation2 + $0x10] sm:$0xff] 0.0
          %408 = vst [vmem:[#allocation2 + $0x18] sm:$0xff] 0.0
          %409 = vst [vmem:[#allocation2 + $0x20] sm:$0xff] 0.0
          %410 = vst [vmem:[#allocation2 + $0x28] sm:$0xff] 0.0
          %411 = vst [vmem:[#allocation2 + $0x30] sm:$0xff] 0.0
          %412 = vst [vmem:[#allocation2 + $0x38] sm:$0xff] 0.0
          %413 = vst [vmem:[#allocation2 + $0x40] sm:$0xff] 0.0
          %414 = vst [vmem:[#allocation2 + $0x48] sm:$0xff] 0.0
          %415 = vst [vmem:[#allocation2 + $0x50] sm:$0xff] 0.0
          %416 = vst [vmem:[#allocation2 + $0x58] sm:$0xff] 0.0
          %417 = vst [vmem:[#allocation2 + $0x60] sm:$0xff] 0.0
          %418 = vst [vmem:[#allocation2 + $0x68] sm:$0xff] 0.0
          %419 = vst [vmem:[#allocation2 + $0x70] sm:$0xff] 0.0
          %420 = vst [vmem:[#allocation2 + $0x78] sm:$0xff] 0.0
          %421 = vst [vmem:[#allocation2 + $0x80] sm:$0xff] 0.0
          %422 = vst [vmem:[#allocation2 + $0x88] sm:$0xff] 0.0
          %423 = vst [vmem:[#allocation2 + $0x90] sm:$0xff] 0.0
          %424 = vst [vmem:[#allocation2 + $0x98] sm:$0xff] 0.0
          %425 = vst [vmem:[#allocation2 + $0xa0] sm:$0xff] 0.0
          %426 = vst [vmem:[#allocation2 + $0xa8] sm:$0xff] 0.0
          %427 = vst [vmem:[#allocation2 + $0xb0] sm:$0xff] 0.0
          %428 = vst [vmem:[#allocation2 + $0xb8] sm:$0xff] 0.0
          %429 = vst [vmem:[#allocation2 + $0xc0] sm:$0xff] 0.0
          %430 = vst [vmem:[#allocation2 + $0xc8] sm:$0xff] 0.0
          %431 = vst [vmem:[#allocation2 + $0xd0] sm:$0xff] 0.0
          %432 = vst [vmem:[#allocation2 + $0xd8] sm:$0xff] 0.0
          %433 = vst [vmem:[#allocation2 + $0xe0] sm:$0xff] 0.0
          %434 = vst [vmem:[#allocation2 + $0xe8] sm:$0xff] 0.0
          %435 = vst [vmem:[#allocation2 + $0xf0] sm:$0xff] 0.0
          %436 = vst [vmem:[#allocation2 + $0xf8] sm:$0xff] 0.0
          %437 = vst [vmem:[#allocation2 + $0x100] sm:$0xff] 0.0
          %438 = vst [vmem:[#allocation2 + $0x108] sm:$0xff] 0.0
          %439 = vst [vmem:[#allocation2 + $0x110] sm:$0xff] 0.0
          %440 = vst [vmem:[#allocation2 + $0x118] sm:$0xff] 0.0
          %441 = vst [vmem:[#allocation2 + $0x120] sm:$0xff] 0.0
          %442 = vst [vmem:[#allocation2 + $0x128] sm:$0xff] 0.0
          %443 = vst [vmem:[#allocation2 + $0x130] sm:$0xff] 0.0
          %444 = vst [vmem:[#allocation2 + $0x138] sm:$0xff] 0.0
          %445 = vst [vmem:[#allocation2 + $0x140] sm:$0xff] 0.0
          %446 = vst [vmem:[#allocation2 + $0x148] sm:$0xff] 0.0
          %447 = vst [vmem:[#allocation2 + $0x150] sm:$0xff] 0.0
          %448 = vst [vmem:[#allocation2 + $0x158] sm:$0xff] 0.0
          %449 = vst [vmem:[#allocation2 + $0x160] sm:$0xff] 0.0
          %450 = vst [vmem:[#allocation2 + $0x168] sm:$0xff] 0.0
          %451 = vst [vmem:[#allocation2 + $0x170] sm:$0xff] 0.0
          %452 = vst [vmem:[#allocation2 + $0x178] sm:$0xff] 0.0
          %453 = vst [vmem:[#allocation2 + $0x180] sm:$0xff] 0.0
          %454 = vst [vmem:[#allocation2 + $0x188] sm:$0xff] 0.0
          %455 = vst [vmem:[#allocation2 + $0x190] sm:$0xff] 0.0
          %456 = vst [vmem:[#allocation2 + $0x198] sm:$0xff] 0.0
          %457 = vst [vmem:[#allocation2 + $0x1a0] sm:$0xff] 0.0
          %458 = vst [vmem:[#allocation2 + $0x1a8] sm:$0xff] 0.0
          %459 = vst [vmem:[#allocation2 + $0x1b0] sm:$0xff] 0.0
          %460 = vst [vmem:[#allocation2 + $0x1b8] sm:$0xff] 0.0
          %461 = vst [vmem:[#allocation2 + $0x1c0] sm:$0xff] 0.0
          %462 = vst [vmem:[#allocation2 + $0x1c8] sm:$0xff] 0.0
          %463 = vst [vmem:[#allocation2 + $0x1d0] sm:$0xff] 0.0
          %464 = vst [vmem:[#allocation2 + $0x1d8] sm:$0xff] 0.0
          %465 = vst [vmem:[#allocation2 + $0x1e0] sm:$0xff] 0.0
          %466 = vst [vmem:[#allocation2 + $0x1e8] sm:$0xff] 0.0
          %467 = vst [vmem:[#allocation2 + $0x1f0] sm:$0xff] 0.0
          %468 = vst [vmem:[#allocation2 + $0x1f8] sm:$0xff] 0.0
          %469 = vst [vmem:[#allocation2 + $0x200] sm:$0xff] 0.0
          %470 = vst [vmem:[#allocation2 + $0x208] sm:$0xff] 0.0
          %471 = vst [vmem:[#allocation2 + $0x210] sm:$0xff] 0.0
          %472 = vst [vmem:[#allocation2 + $0x218] sm:$0xff] 0.0
          %473 = vst [vmem:[#allocation2 + $0x220] sm:$0xff] 0.0
          %474 = vst [vmem:[#allocation2 + $0x228] sm:$0xff] 0.0
          %475 = vst [vmem:[#allocation2 + $0x230] sm:$0xff] 0.0
          %476 = vst [vmem:[#allocation2 + $0x238] sm:$0xff] 0.0
          %477 = vst [vmem:[#allocation2 + $0x240] sm:$0xff] 0.0
          %478 = vst [vmem:[#allocation2 + $0x248] sm:$0xff] 0.0
          %479 = vst [vmem:[#allocation2 + $0x250] sm:$0xff] 0.0
          %480 = vst [vmem:[#allocation2 + $0x258] sm:$0xff] 0.0
          %481 = vst [vmem:[#allocation2 + $0x260] sm:$0xff] 0.0
          %482 = vst [vmem:[#allocation2 + $0x268] sm:$0xff] 0.0
          %483 = vst [vmem:[#allocation2 + $0x270] sm:$0xff] 0.0
          %484 = vst [vmem:[#allocation2 + $0x278] sm:$0xff] 0.0
          %485 = vst [vmem:[#allocation2 + $0x280] sm:$0xff] 0.0
          %486 = vst [vmem:[#allocation2 + $0x288] sm:$0xff] 0.0
          %487 = vst [vmem:[#allocation2 + $0x290] sm:$0xff] 0.0
          %488 = vst [vmem:[#allocation2 + $0x298] sm:$0xff] 0.0
          %489 = vst [vmem:[#allocation2 + $0x2a0] sm:$0xff] 0.0
          %490 = vst [vmem:[#allocation2 + $0x2a8] sm:$0xff] 0.0
          %491 = vst [vmem:[#allocation2 + $0x2b0] sm:$0xff] 0.0
          %492 = vst [vmem:[#allocation2 + $0x2b8] sm:$0xff] 0.0
          %493 = vst [vmem:[#allocation2 + $0x2c0] sm:$0xff] 0.0
          %494 = vst [vmem:[#allocation2 + $0x2c8] sm:$0xff] 0.0
          %495 = vst [vmem:[#allocation2 + $0x2d0] sm:$0xff] 0.0
          %496 = vst [vmem:[#allocation2 + $0x2d8] sm:$0xff] 0.0
          %497 = vst [vmem:[#allocation2 + $0x2e0] sm:$0xff] 0.0
          %498 = vst [vmem:[#allocation2 + $0x2e8] sm:$0xff] 0.0
          %499 = vst [vmem:[#allocation2 + $0x2f0] sm:$0xff] 0.0
          %500 = vst [vmem:[#allocation2 + $0x2f8] sm:$0xff] 0.0
          %501 = vst [vmem:[#allocation2 + $0x300] sm:$0xff] 0.0
          %502 = vst [vmem:[#allocation2 + $0x308] sm:$0xff] 0.0
          %503 = vst [vmem:[#allocation2 + $0x310] sm:$0xff] 0.0
          %504 = vst [vmem:[#allocation2 + $0x318] sm:$0xff] 0.0
          %505 = vst [vmem:[#allocation2 + $0x320] sm:$0xff] 0.0
          %506 = vst [vmem:[#allocation2 + $0x328] sm:$0xff] 0.0
          %507 = vst [vmem:[#allocation2 + $0x330] sm:$0xff] 0.0
          %508 = vst [vmem:[#allocation2 + $0x338] sm:$0xff] 0.0
          %509 = vst [vmem:[#allocation2 + $0x340] sm:$0xff] 0.0
          %510 = vst [vmem:[#allocation2 + $0x348] sm:$0xff] 0.0
          %511 = vst [vmem:[#allocation2 + $0x350] sm:$0xff] 0.0
          %512 = vst [vmem:[#allocation2 + $0x358] sm:$0xff] 0.0
          %513 = vst [vmem:[#allocation2 + $0x360] sm:$0xff] 0.0
          %514 = vst [vmem:[#allocation2 + $0x368] sm:$0xff] 0.0
          %515 = vst [vmem:[#allocation2 + $0x370] sm:$0xff] 0.0
          %516 = vst [vmem:[#allocation2 + $0x378] sm:$0xff] 0.0
          %517 = vst [vmem:[#allocation2 + $0x380] sm:$0xff] 0.0
          %518 = vst [vmem:[#allocation2 + $0x388] sm:$0xff] 0.0
          %519 = vst [vmem:[#allocation2 + $0x390] sm:$0xff] 0.0
          %520 = vst [vmem:[#allocation2 + $0x398] sm:$0xff] 0.0
          %521 = vst [vmem:[#allocation2 + $0x3a0] sm:$0xff] 0.0
          %522 = vst [vmem:[#allocation2 + $0x3a8] sm:$0xff] 0.0
          %523 = vst [vmem:[#allocation2 + $0x3b0] sm:$0xff] 0.0
          %524 = vst [vmem:[#allocation2 + $0x3b8] sm:$0xff] 0.0
          %525 = vst [vmem:[#allocation2 + $0x3c0] sm:$0xff] 0.0
          %526 = vst [vmem:[#allocation2 + $0x3c8] sm:$0xff] 0.0
          %527 = vst [vmem:[#allocation2 + $0x3d0] sm:$0xff] 0.0
          %528 = vst [vmem:[#allocation2 + $0x3d8] sm:$0xff] 0.0
          %529 = vst [vmem:[#allocation2 + $0x3e0] sm:$0xff] 0.0
          %530 = vst [vmem:[#allocation2 + $0x3e8] sm:$0xff] 0.0
          %531 = vst [vmem:[#allocation2 + $0x3f0] sm:$0xff] 0.0
          %532 = vst [vmem:[#allocation2 + $0x3f8] sm:$0xff] 0.0
        $region80: #{infnet_forward.1} parent=47 // pred_fallthru
          _
        %s533 = smul.u32 %s29, 2048
        %v534 = vld [vmem:[#allocation2] sm:$0xff]
        %v535 = vld [vmem:[#allocation2 + $0x8] sm:$0xff]
        %v536 = vld [vmem:[#allocation2 + $0x10] sm:$0xff]
        %v537 = vld [vmem:[#allocation2 + $0x18] sm:$0xff]
        %v538 = vld [vmem:[#allocation2 + $0x20] sm:$0xff]
        %v539 = vld [vmem:[#allocation2 + $0x28] sm:$0xff]
        %v540 = vld [vmem:[#allocation2 + $0x30] sm:$0xff]
        %v541 = vld [vmem:[#allocation2 + $0x38] sm:$0xff]
        %v542 = vld [vmem:[#allocation2 + $0x40] sm:$0xff]
        %v543 = vld [vmem:[#allocation2 + $0x48] sm:$0xff]
        %v544 = vld [vmem:[#allocation2 + $0x50] sm:$0xff]
        %v545 = vld [vmem:[#allocation2 + $0x58] sm:$0xff]
        %v546 = vld [vmem:[#allocation2 + $0x60] sm:$0xff]
        %v547 = vld [vmem:[#allocation2 + $0x68] sm:$0xff]
        %v548 = vld [vmem:[#allocation2 + $0x70] sm:$0xff]
        %v549 = vld [vmem:[#allocation2 + $0x78] sm:$0xff]
        %v550 = vld [vmem:[#allocation2 + $0x80] sm:$0xff]
        %v551 = vld [vmem:[#allocation2 + $0x88] sm:$0xff]
        %v552 = vld [vmem:[#allocation2 + $0x90] sm:$0xff]
        %v553 = vld [vmem:[#allocation2 + $0x98] sm:$0xff]
        %v554 = vld [vmem:[#allocation2 + $0xa0] sm:$0xff]
        %v555 = vld [vmem:[#allocation2 + $0xa8] sm:$0xff]
        %v556 = vld [vmem:[#allocation2 + $0xb0] sm:$0xff]
        %v557 = vld [vmem:[#allocation2 + $0xb8] sm:$0xff]
        %v558 = vld [vmem:[#allocation2 + $0xc0] sm:$0xff]
        %v559 = vld [vmem:[#allocation2 + $0xc8] sm:$0xff]
        %v560 = vld [vmem:[#allocation2 + $0xd0] sm:$0xff]
        %v561 = vld [vmem:[#allocation2 + $0xd8] sm:$0xff]
        %v562 = vld [vmem:[#allocation2 + $0xe0] sm:$0xff]
        %v563 = vld [vmem:[#allocation2 + $0xe8] sm:$0xff]
        %v564 = vld [vmem:[#allocation2 + $0xf0] sm:$0xff]
        %v565 = vld [vmem:[#allocation2 + $0xf8] sm:$0xff]
        %v566 = vld [vmem:[#allocation2 + $0x100] sm:$0xff]
        %v567 = vld [vmem:[#allocation2 + $0x108] sm:$0xff]
        %v568 = vld [vmem:[#allocation2 + $0x110] sm:$0xff]
        %v569 = vld [vmem:[#allocation2 + $0x118] sm:$0xff]
        %v570 = vld [vmem:[#allocation2 + $0x120] sm:$0xff]
        %v571 = vld [vmem:[#allocation2 + $0x128] sm:$0xff]
        %v572 = vld [vmem:[#allocation2 + $0x130] sm:$0xff]
        %v573 = vld [vmem:[#allocation2 + $0x138] sm:$0xff]
        %v574 = vld [vmem:[#allocation2 + $0x140] sm:$0xff]
        %v575 = vld [vmem:[#allocation2 + $0x148] sm:$0xff]
        %v576 = vld [vmem:[#allocation2 + $0x150] sm:$0xff]
        %v577 = vld [vmem:[#allocation2 + $0x158] sm:$0xff]
        %v578 = vld [vmem:[#allocation2 + $0x160] sm:$0xff]
        %v579 = vld [vmem:[#allocation2 + $0x168] sm:$0xff]
        %v580 = vld [vmem:[#allocation2 + $0x170] sm:$0xff]
        %v581 = vld [vmem:[#allocation2 + $0x178] sm:$0xff]
        %v582 = vld [vmem:[#allocation2 + $0x180] sm:$0xff]
        %v583 = vld [vmem:[#allocation2 + $0x188] sm:$0xff]
        %v584 = vld [vmem:[#allocation2 + $0x190] sm:$0xff]
        %v585 = vld [vmem:[#allocation2 + $0x198] sm:$0xff]
        %v586 = vld [vmem:[#allocation2 + $0x1a0] sm:$0xff]
        %v587 = vld [vmem:[#allocation2 + $0x1a8] sm:$0xff]
        %v588 = vld [vmem:[#allocation2 + $0x1b0] sm:$0xff]
        %v589 = vld [vmem:[#allocation2 + $0x1b8] sm:$0xff]
        %v590 = vld [vmem:[#allocation2 + $0x1c0] sm:$0xff]
        %v591 = vld [vmem:[#allocation2 + $0x1c8] sm:$0xff]
        %v592 = vld [vmem:[#allocation2 + $0x1d0] sm:$0xff]
        %v593 = vld [vmem:[#allocation2 + $0x1d8] sm:$0xff]
        %v594 = vld [vmem:[#allocation2 + $0x1e0] sm:$0xff]
        %v595 = vld [vmem:[#allocation2 + $0x1e8] sm:$0xff]
        %v596 = vld [vmem:[#allocation2 + $0x1f0] sm:$0xff]
        %v597 = vld [vmem:[#allocation2 + $0x1f8] sm:$0xff]
        %v598 = vld [vmem:[#allocation2 + $0x200] sm:$0xff]
        %v599 = vld [vmem:[#allocation2 + $0x208] sm:$0xff]
        %v600 = vld [vmem:[#allocation2 + $0x210] sm:$0xff]
        %v601 = vld [vmem:[#allocation2 + $0x218] sm:$0xff]
        %v602 = vld [vmem:[#allocation2 + $0x220] sm:$0xff]
        %v603 = vld [vmem:[#allocation2 + $0x228] sm:$0xff]
        %v604 = vld [vmem:[#allocation2 + $0x230] sm:$0xff]
        %v605 = vld [vmem:[#allocation2 + $0x238] sm:$0xff]
        %v606 = vld [vmem:[#allocation2 + $0x240] sm:$0xff]
        %v607 = vld [vmem:[#allocation2 + $0x248] sm:$0xff]
        %v608 = vld [vmem:[#allocation2 + $0x250] sm:$0xff]
        %v609 = vld [vmem:[#allocation2 + $0x258] sm:$0xff]
        %v610 = vld [vmem:[#allocation2 + $0x260] sm:$0xff]
        %v611 = vld [vmem:[#allocation2 + $0x268] sm:$0xff]
        %v612 = vld [vmem:[#allocation2 + $0x270] sm:$0xff]
        %v613 = vld [vmem:[#allocation2 + $0x278] sm:$0xff]
        %v614 = vld [vmem:[#allocation2 + $0x280] sm:$0xff]
        %v615 = vld [vmem:[#allocation2 + $0x288] sm:$0xff]
        %v616 = vld [vmem:[#allocation2 + $0x290] sm:$0xff]
        %v617 = vld [vmem:[#allocation2 + $0x298] sm:$0xff]
        %v618 = vld [vmem:[#allocation2 + $0x2a0] sm:$0xff]
        %v619 = vld [vmem:[#allocation2 + $0x2a8] sm:$0xff]
        %v620 = vld [vmem:[#allocation2 + $0x2b0] sm:$0xff]
        %v621 = vld [vmem:[#allocation2 + $0x2b8] sm:$0xff]
        %v622 = vld [vmem:[#allocation2 + $0x2c0] sm:$0xff]
        %v623 = vld [vmem:[#allocation2 + $0x2c8] sm:$0xff]
        %v624 = vld [vmem:[#allocation2 + $0x2d0] sm:$0xff]
        %v625 = vld [vmem:[#allocation2 + $0x2d8] sm:$0xff]
        %v626 = vld [vmem:[#allocation2 + $0x2e0] sm:$0xff]
        %v627 = vld [vmem:[#allocation2 + $0x2e8] sm:$0xff]
        %v628 = vld [vmem:[#allocation2 + $0x2f0] sm:$0xff]
        %v629 = vld [vmem:[#allocation2 + $0x2f8] sm:$0xff]
        %v630 = vld [vmem:[#allocation2 + $0x300] sm:$0xff]
        %v631 = vld [vmem:[#allocation2 + $0x308] sm:$0xff]
        %v632 = vld [vmem:[#allocation2 + $0x310] sm:$0xff]
        %v633 = vld [vmem:[#allocation2 + $0x318] sm:$0xff]
        %v634 = vld [vmem:[#allocation2 + $0x320] sm:$0xff]
        %v635 = vld [vmem:[#allocation2 + $0x328] sm:$0xff]
        %v636 = vld [vmem:[#allocation2 + $0x330] sm:$0xff]
        %v637 = vld [vmem:[#allocation2 + $0x338] sm:$0xff]
        %v638 = vld [vmem:[#allocation2 + $0x340] sm:$0xff]
        %v639 = vld [vmem:[#allocation2 + $0x348] sm:$0xff]
        %v640 = vld [vmem:[#allocation2 + $0x350] sm:$0xff]
        %v641 = vld [vmem:[#allocation2 + $0x358] sm:$0xff]
        %v642 = vld [vmem:[#allocation2 + $0x360] sm:$0xff]
        %v643 = vld [vmem:[#allocation2 + $0x368] sm:$0xff]
        %v644 = vld [vmem:[#allocation2 + $0x370] sm:$0xff]
        %v645 = vld [vmem:[#allocation2 + $0x378] sm:$0xff]
        %v646 = vld [vmem:[#allocation2 + $0x380] sm:$0xff]
        %v647 = vld [vmem:[#allocation2 + $0x388] sm:$0xff]
        %v648 = vld [vmem:[#allocation2 + $0x390] sm:$0xff]
        %v649 = vld [vmem:[#allocation2 + $0x398] sm:$0xff]
        %v650 = vld [vmem:[#allocation2 + $0x3a0] sm:$0xff]
        %v651 = vld [vmem:[#allocation2 + $0x3a8] sm:$0xff]
        %v652 = vld [vmem:[#allocation2 + $0x3b0] sm:$0xff]
        %v653 = vld [vmem:[#allocation2 + $0x3b8] sm:$0xff]
        %v654 = vld [vmem:[#allocation2 + $0x3c0] sm:$0xff]
        %v655 = vld [vmem:[#allocation2 + $0x3c8] sm:$0xff]
        %v656 = vld [vmem:[#allocation2 + $0x3d0] sm:$0xff]
        %v657 = vld [vmem:[#allocation2 + $0x3d8] sm:$0xff]
        %v658 = vld [vmem:[#allocation2 + $0x3e0] sm:$0xff]
        %v659 = vld [vmem:[#allocation2 + $0x3e8] sm:$0xff]
        %v660 = vld [vmem:[#allocation2 + $0x3f0] sm:$0xff]
        %v661 = vld [vmem:[#allocation2 + $0x3f8] sm:$0xff]
        %v662 = vld [vmem:[%s337] sm:$0xff]
        %v663 = vld [vmem:[%s337 + $0x8] sm:$0xff]
        %v664 = vld [vmem:[%s337 + $0x10] sm:$0xff]
        %v665 = vld [vmem:[%s337 + $0x18] sm:$0xff]
        %v666 = vld [vmem:[%s337 + $0x20] sm:$0xff]
        %v667 = vld [vmem:[%s337 + $0x28] sm:$0xff]
        %v668 = vld [vmem:[%s337 + $0x30] sm:$0xff]
        %v669 = vld [vmem:[%s337 + $0x38] sm:$0xff]
        %v670 = vld [vmem:[%s337 + $0x40] sm:$0xff]
        %v671 = vld [vmem:[%s337 + $0x48] sm:$0xff]
        %v672 = vld [vmem:[%s337 + $0x50] sm:$0xff]
        %v673 = vld [vmem:[%s337 + $0x58] sm:$0xff]
        %v674 = vld [vmem:[%s337 + $0x60] sm:$0xff]
        %v675 = vld [vmem:[%s337 + $0x68] sm:$0xff]
        %v676 = vld [vmem:[%s337 + $0x70] sm:$0xff]
        %v677 = vld [vmem:[%s337 + $0x78] sm:$0xff]
        %v678 = vld [vmem:[%s337 + $0x80] sm:$0xff]
        %v679 = vld [vmem:[%s337 + $0x88] sm:$0xff]
        %v680 = vld [vmem:[%s337 + $0x90] sm:$0xff]
        %v681 = vld [vmem:[%s337 + $0x98] sm:$0xff]
        %v682 = vld [vmem:[%s337 + $0xa0] sm:$0xff]
        %v683 = vld [vmem:[%s337 + $0xa8] sm:$0xff]
        %v684 = vld [vmem:[%s337 + $0xb0] sm:$0xff]
        %v685 = vld [vmem:[%s337 + $0xb8] sm:$0xff]
        %v686 = vld [vmem:[%s337 + $0xc0] sm:$0xff]
        %v687 = vld [vmem:[%s337 + $0xc8] sm:$0xff]
        %v688 = vld [vmem:[%s337 + $0xd0] sm:$0xff]
        %v689 = vld [vmem:[%s337 + $0xd8] sm:$0xff]
        %v690 = vld [vmem:[%s337 + $0xe0] sm:$0xff]
        %v691 = vld [vmem:[%s337 + $0xe8] sm:$0xff]
        %v692 = vld [vmem:[%s337 + $0xf0] sm:$0xff]
        %v693 = vld [vmem:[%s337 + $0xf8] sm:$0xff]
        %v694 = vld [vmem:[%s337 + $0x100] sm:$0xff]
        %v695 = vld [vmem:[%s337 + $0x108] sm:$0xff]
        %v696 = vld [vmem:[%s337 + $0x110] sm:$0xff]
        %v697 = vld [vmem:[%s337 + $0x118] sm:$0xff]
        %v698 = vld [vmem:[%s337 + $0x120] sm:$0xff]
        %v699 = vld [vmem:[%s337 + $0x128] sm:$0xff]
        %v700 = vld [vmem:[%s337 + $0x130] sm:$0xff]
        %v701 = vld [vmem:[%s337 + $0x138] sm:$0xff]
        %v702 = vld [vmem:[%s337 + $0x140] sm:$0xff]
        %v703 = vld [vmem:[%s337 + $0x148] sm:$0xff]
        %v704 = vld [vmem:[%s337 + $0x150] sm:$0xff]
        %v705 = vld [vmem:[%s337 + $0x158] sm:$0xff]
        %v706 = vld [vmem:[%s337 + $0x160] sm:$0xff]
        %v707 = vld [vmem:[%s337 + $0x168] sm:$0xff]
        %v708 = vld [vmem:[%s337 + $0x170] sm:$0xff]
        %v709 = vld [vmem:[%s337 + $0x178] sm:$0xff]
        %v710 = vld [vmem:[%s337 + $0x180] sm:$0xff]
        %v711 = vld [vmem:[%s337 + $0x188] sm:$0xff]
        %v712 = vld [vmem:[%s337 + $0x190] sm:$0xff]
        %v713 = vld [vmem:[%s337 + $0x198] sm:$0xff]
        %v714 = vld [vmem:[%s337 + $0x1a0] sm:$0xff]
        %v715 = vld [vmem:[%s337 + $0x1a8] sm:$0xff]
        %v716 = vld [vmem:[%s337 + $0x1b0] sm:$0xff]
        %v717 = vld [vmem:[%s337 + $0x1b8] sm:$0xff]
        %v718 = vld [vmem:[%s337 + $0x1c0] sm:$0xff]
        %v719 = vld [vmem:[%s337 + $0x1c8] sm:$0xff]
        %v720 = vld [vmem:[%s337 + $0x1d0] sm:$0xff]
        %v721 = vld [vmem:[%s337 + $0x1d8] sm:$0xff]
        %v722 = vld [vmem:[%s337 + $0x1e0] sm:$0xff]
        %v723 = vld [vmem:[%s337 + $0x1e8] sm:$0xff]
        %v724 = vld [vmem:[%s337 + $0x1f0] sm:$0xff]
        %v725 = vld [vmem:[%s337 + $0x1f8] sm:$0xff]
        %v726 = vld [vmem:[%s337 + $0x200] sm:$0xff]
        %v727 = vld [vmem:[%s337 + $0x208] sm:$0xff]
        %v728 = vld [vmem:[%s337 + $0x210] sm:$0xff]
        %v729 = vld [vmem:[%s337 + $0x218] sm:$0xff]
        %v730 = vld [vmem:[%s337 + $0x220] sm:$0xff]
        %v731 = vld [vmem:[%s337 + $0x228] sm:$0xff]
        %v732 = vld [vmem:[%s337 + $0x230] sm:$0xff]
        %v733 = vld [vmem:[%s337 + $0x238] sm:$0xff]
        %v734 = vld [vmem:[%s337 + $0x240] sm:$0xff]
        %v735 = vld [vmem:[%s337 + $0x248] sm:$0xff]
        %v736 = vld [vmem:[%s337 + $0x250] sm:$0xff]
        %v737 = vld [vmem:[%s337 + $0x258] sm:$0xff]
        %v738 = vld [vmem:[%s337 + $0x260] sm:$0xff]
        %v739 = vld [vmem:[%s337 + $0x268] sm:$0xff]
        %v740 = vld [vmem:[%s337 + $0x270] sm:$0xff]
        %v741 = vld [vmem:[%s337 + $0x278] sm:$0xff]
        %v742 = vld [vmem:[%s337 + $0x280] sm:$0xff]
        %v743 = vld [vmem:[%s337 + $0x288] sm:$0xff]
        %v744 = vld [vmem:[%s337 + $0x290] sm:$0xff]
        %v745 = vld [vmem:[%s337 + $0x298] sm:$0xff]
        %v746 = vld [vmem:[%s337 + $0x2a0] sm:$0xff]
        %v747 = vld [vmem:[%s337 + $0x2a8] sm:$0xff]
        %v748 = vld [vmem:[%s337 + $0x2b0] sm:$0xff]
        %v749 = vld [vmem:[%s337 + $0x2b8] sm:$0xff]
        %v750 = vld [vmem:[%s337 + $0x2c0] sm:$0xff]
        %v751 = vld [vmem:[%s337 + $0x2c8] sm:$0xff]
        %v752 = vld [vmem:[%s337 + $0x2d0] sm:$0xff]
        %v753 = vld [vmem:[%s337 + $0x2d8] sm:$0xff]
        %v754 = vld [vmem:[%s337 + $0x2e0] sm:$0xff]
        %v755 = vld [vmem:[%s337 + $0x2e8] sm:$0xff]
        %v756 = vld [vmem:[%s337 + $0x2f0] sm:$0xff]
        %v757 = vld [vmem:[%s337 + $0x2f8] sm:$0xff]
        %v758 = vld [vmem:[%s337 + $0x300] sm:$0xff]
        %v759 = vld [vmem:[%s337 + $0x308] sm:$0xff]
        %v760 = vld [vmem:[%s337 + $0x310] sm:$0xff]
        %v761 = vld [vmem:[%s337 + $0x318] sm:$0xff]
        %v762 = vld [vmem:[%s337 + $0x320] sm:$0xff]
        %v763 = vld [vmem:[%s337 + $0x328] sm:$0xff]
        %v764 = vld [vmem:[%s337 + $0x330] sm:$0xff]
        %v765 = vld [vmem:[%s337 + $0x338] sm:$0xff]
        %v766 = vld [vmem:[%s337 + $0x340] sm:$0xff]
        %v767 = vld [vmem:[%s337 + $0x348] sm:$0xff]
        %v768 = vld [vmem:[%s337 + $0x350] sm:$0xff]
        %v769 = vld [vmem:[%s337 + $0x358] sm:$0xff]
        %v770 = vld [vmem:[%s337 + $0x360] sm:$0xff]
        %v771 = vld [vmem:[%s337 + $0x368] sm:$0xff]
        %v772 = vld [vmem:[%s337 + $0x370] sm:$0xff]
        %v773 = vld [vmem:[%s337 + $0x378] sm:$0xff]
        %v774 = vld [vmem:[%s337 + $0x380] sm:$0xff]
        %v775 = vld [vmem:[%s337 + $0x388] sm:$0xff]
        %v776 = vld [vmem:[%s337 + $0x390] sm:$0xff]
        %v777 = vld [vmem:[%s337 + $0x398] sm:$0xff]
        %v778 = vld [vmem:[%s337 + $0x3a0] sm:$0xff]
        %v779 = vld [vmem:[%s337 + $0x3a8] sm:$0xff]
        %v780 = vld [vmem:[%s337 + $0x3b0] sm:$0xff]
        %v781 = vld [vmem:[%s337 + $0x3b8] sm:$0xff]
        %v782 = vld [vmem:[%s337 + $0x3c0] sm:$0xff]
        %v783 = vld [vmem:[%s337 + $0x3c8] sm:$0xff]
        %v784 = vld [vmem:[%s337 + $0x3d0] sm:$0xff]
        %v785 = vld [vmem:[%s337 + $0x3d8] sm:$0xff]
        %v786 = vld [vmem:[%s337 + $0x3e0] sm:$0xff]
        %v787 = vld [vmem:[%s337 + $0x3e8] sm:$0xff]
        %v788 = vld [vmem:[%s337 + $0x3f0] sm:$0xff]
        %v789 = vld [vmem:[%s337 + $0x3f8] sm:$0xff]
        %v790 = vld [vmem:[%s337 + $0x400] sm:$0xff]
        %v791 = vld [vmem:[%s337 + $0x408] sm:$0xff]
        %v792 = vld [vmem:[%s337 + $0x410] sm:$0xff]
        %v793 = vld [vmem:[%s337 + $0x418] sm:$0xff]
        %v794 = vld [vmem:[%s337 + $0x420] sm:$0xff]
        %v795 = vld [vmem:[%s337 + $0x428] sm:$0xff]
        %v796 = vld [vmem:[%s337 + $0x430] sm:$0xff]
        %v797 = vld [vmem:[%s337 + $0x438] sm:$0xff]
        %v798 = vld [vmem:[%s337 + $0x440] sm:$0xff]
        %v799 = vld [vmem:[%s337 + $0x448] sm:$0xff]
        %v800 = vld [vmem:[%s337 + $0x450] sm:$0xff]
        %v801 = vld [vmem:[%s337 + $0x458] sm:$0xff]
        %v802 = vld [vmem:[%s337 + $0x460] sm:$0xff]
        %v803 = vld [vmem:[%s337 + $0x468] sm:$0xff]
        %v804 = vld [vmem:[%s337 + $0x470] sm:$0xff]
        %v805 = vld [vmem:[%s337 + $0x478] sm:$0xff]
        %v806 = vld [vmem:[%s337 + $0x480] sm:$0xff]
        %v807 = vld [vmem:[%s337 + $0x488] sm:$0xff]
        %v808 = vld [vmem:[%s337 + $0x490] sm:$0xff]
        %v809 = vld [vmem:[%s337 + $0x498] sm:$0xff]
        %v810 = vld [vmem:[%s337 + $0x4a0] sm:$0xff]
        %v811 = vld [vmem:[%s337 + $0x4a8] sm:$0xff]
        %v812 = vld [vmem:[%s337 + $0x4b0] sm:$0xff]
        %v813 = vld [vmem:[%s337 + $0x4b8] sm:$0xff]
        %v814 = vld [vmem:[%s337 + $0x4c0] sm:$0xff]
        %v815 = vld [vmem:[%s337 + $0x4c8] sm:$0xff]
        %v816 = vld [vmem:[%s337 + $0x4d0] sm:$0xff]
        %v817 = vld [vmem:[%s337 + $0x4d8] sm:$0xff]
        %v818 = vld [vmem:[%s337 + $0x4e0] sm:$0xff]
        %v819 = vld [vmem:[%s337 + $0x4e8] sm:$0xff]
        %v820 = vld [vmem:[%s337 + $0x4f0] sm:$0xff]
        %v821 = vld [vmem:[%s337 + $0x4f8] sm:$0xff]
        %v822 = vld [vmem:[%s337 + $0x500] sm:$0xff]
        %v823 = vld [vmem:[%s337 + $0x508] sm:$0xff]
        %v824 = vld [vmem:[%s337 + $0x510] sm:$0xff]
        %v825 = vld [vmem:[%s337 + $0x518] sm:$0xff]
        %v826 = vld [vmem:[%s337 + $0x520] sm:$0xff]
        %v827 = vld [vmem:[%s337 + $0x528] sm:$0xff]
        %v828 = vld [vmem:[%s337 + $0x530] sm:$0xff]
        %v829 = vld [vmem:[%s337 + $0x538] sm:$0xff]
        %v830 = vld [vmem:[%s337 + $0x540] sm:$0xff]
        %v831 = vld [vmem:[%s337 + $0x548] sm:$0xff]
        %v832 = vld [vmem:[%s337 + $0x550] sm:$0xff]
        %v833 = vld [vmem:[%s337 + $0x558] sm:$0xff]
        %v834 = vld [vmem:[%s337 + $0x560] sm:$0xff]
        %v835 = vld [vmem:[%s337 + $0x568] sm:$0xff]
        %v836 = vld [vmem:[%s337 + $0x570] sm:$0xff]
        %v837 = vld [vmem:[%s337 + $0x578] sm:$0xff]
        %v838 = vld [vmem:[%s337 + $0x580] sm:$0xff]
        %v839 = vld [vmem:[%s337 + $0x588] sm:$0xff]
        %v840 = vld [vmem:[%s337 + $0x590] sm:$0xff]
        %v841 = vld [vmem:[%s337 + $0x598] sm:$0xff]
        %v842 = vld [vmem:[%s337 + $0x5a0] sm:$0xff]
        %v843 = vld [vmem:[%s337 + $0x5a8] sm:$0xff]
        %v844 = vld [vmem:[%s337 + $0x5b0] sm:$0xff]
        %v845 = vld [vmem:[%s337 + $0x5b8] sm:$0xff]
        %v846 = vld [vmem:[%s337 + $0x5c0] sm:$0xff]
        %v847 = vld [vmem:[%s337 + $0x5c8] sm:$0xff]
        %v848 = vld [vmem:[%s337 + $0x5d0] sm:$0xff]
        %v849 = vld [vmem:[%s337 + $0x5d8] sm:$0xff]
        %v850 = vld [vmem:[%s337 + $0x5e0] sm:$0xff]
        %v851 = vld [vmem:[%s337 + $0x5e8] sm:$0xff]
        %v852 = vld [vmem:[%s337 + $0x5f0] sm:$0xff]
        %v853 = vld [vmem:[%s337 + $0x5f8] sm:$0xff]
        %v854 = vld [vmem:[%s337 + $0x600] sm:$0xff]
        %v855 = vld [vmem:[%s337 + $0x608] sm:$0xff]
        %v856 = vld [vmem:[%s337 + $0x610] sm:$0xff]
        %v857 = vld [vmem:[%s337 + $0x618] sm:$0xff]
        %v858 = vld [vmem:[%s337 + $0x620] sm:$0xff]
        %v859 = vld [vmem:[%s337 + $0x628] sm:$0xff]
        %v860 = vld [vmem:[%s337 + $0x630] sm:$0xff]
        %v861 = vld [vmem:[%s337 + $0x638] sm:$0xff]
        %v862 = vld [vmem:[%s337 + $0x640] sm:$0xff]
        %v863 = vld [vmem:[%s337 + $0x648] sm:$0xff]
        %v864 = vld [vmem:[%s337 + $0x650] sm:$0xff]
        %v865 = vld [vmem:[%s337 + $0x658] sm:$0xff]
        %v866 = vld [vmem:[%s337 + $0x660] sm:$0xff]
        %v867 = vld [vmem:[%s337 + $0x668] sm:$0xff]
        %v868 = vld [vmem:[%s337 + $0x670] sm:$0xff]
        %v869 = vld [vmem:[%s337 + $0x678] sm:$0xff]
        %v870 = vld [vmem:[%s337 + $0x680] sm:$0xff]
        %v871 = vld [vmem:[%s337 + $0x688] sm:$0xff]
        %v872 = vld [vmem:[%s337 + $0x690] sm:$0xff]
        %v873 = vld [vmem:[%s337 + $0x698] sm:$0xff]
        %v874 = vld [vmem:[%s337 + $0x6a0] sm:$0xff]
        %v875 = vld [vmem:[%s337 + $0x6a8] sm:$0xff]
        %v876 = vld [vmem:[%s337 + $0x6b0] sm:$0xff]
        %v877 = vld [vmem:[%s337 + $0x6b8] sm:$0xff]
        %v878 = vld [vmem:[%s337 + $0x6c0] sm:$0xff]
        %v879 = vld [vmem:[%s337 + $0x6c8] sm:$0xff]
        %v880 = vld [vmem:[%s337 + $0x6d0] sm:$0xff]
        %v881 = vld [vmem:[%s337 + $0x6d8] sm:$0xff]
        %v882 = vld [vmem:[%s337 + $0x6e0] sm:$0xff]
        %v883 = vld [vmem:[%s337 + $0x6e8] sm:$0xff]
        %v884 = vld [vmem:[%s337 + $0x6f0] sm:$0xff]
        %v885 = vld [vmem:[%s337 + $0x6f8] sm:$0xff]
        %v886 = vld [vmem:[%s337 + $0x700] sm:$0xff]
        %v887 = vld [vmem:[%s337 + $0x708] sm:$0xff]
        %v888 = vld [vmem:[%s337 + $0x710] sm:$0xff]
        %v889 = vld [vmem:[%s337 + $0x718] sm:$0xff]
        %v890 = vld [vmem:[%s337 + $0x720] sm:$0xff]
        %v891 = vld [vmem:[%s337 + $0x728] sm:$0xff]
        %v892 = vld [vmem:[%s337 + $0x730] sm:$0xff]
        %v893 = vld [vmem:[%s337 + $0x738] sm:$0xff]
        %v894 = vld [vmem:[%s337 + $0x740] sm:$0xff]
        %v895 = vld [vmem:[%s337 + $0x748] sm:$0xff]
        %v896 = vld [vmem:[%s337 + $0x750] sm:$0xff]
        %v897 = vld [vmem:[%s337 + $0x758] sm:$0xff]
        %v898 = vld [vmem:[%s337 + $0x760] sm:$0xff]
        %v899 = vld [vmem:[%s337 + $0x768] sm:$0xff]
        %v900 = vld [vmem:[%s337 + $0x770] sm:$0xff]
        %v901 = vld [vmem:[%s337 + $0x778] sm:$0xff]
        %v902 = vld [vmem:[%s337 + $0x780] sm:$0xff]
        %v903 = vld [vmem:[%s337 + $0x788] sm:$0xff]
        %v904 = vld [vmem:[%s337 + $0x790] sm:$0xff]
        %v905 = vld [vmem:[%s337 + $0x798] sm:$0xff]
        %v906 = vld [vmem:[%s337 + $0x7a0] sm:$0xff]
        %v907 = vld [vmem:[%s337 + $0x7a8] sm:$0xff]
        %v908 = vld [vmem:[%s337 + $0x7b0] sm:$0xff]
        %v909 = vld [vmem:[%s337 + $0x7b8] sm:$0xff]
        %v910 = vld [vmem:[%s337 + $0x7c0] sm:$0xff]
        %v911 = vld [vmem:[%s337 + $0x7c8] sm:$0xff]
        %v912 = vld [vmem:[%s337 + $0x7d0] sm:$0xff]
        %v913 = vld [vmem:[%s337 + $0x7d8] sm:$0xff]
        %v914 = vld [vmem:[%s337 + $0x7e0] sm:$0xff]
        %v915 = vld [vmem:[%s337 + $0x7e8] sm:$0xff]
        %v916 = vld [vmem:[%s337 + $0x7f0] sm:$0xff]
        %v917 = vld [vmem:[%s337 + $0x7f8] sm:$0xff]
        %v918 = vld [vmem:[%s337 + $0x800] sm:$0xff]
        %v919 = vld [vmem:[%s337 + $0x808] sm:$0xff]
        %v920 = vld [vmem:[%s337 + $0x810] sm:$0xff]
        %v921 = vld [vmem:[%s337 + $0x818] sm:$0xff]
        %v922 = vld [vmem:[%s337 + $0x820] sm:$0xff]
        %v923 = vld [vmem:[%s337 + $0x828] sm:$0xff]
        %v924 = vld [vmem:[%s337 + $0x830] sm:$0xff]
        %v925 = vld [vmem:[%s337 + $0x838] sm:$0xff]
        %v926 = vld [vmem:[%s337 + $0x840] sm:$0xff]
        %v927 = vld [vmem:[%s337 + $0x848] sm:$0xff]
        %v928 = vld [vmem:[%s337 + $0x850] sm:$0xff]
        %v929 = vld [vmem:[%s337 + $0x858] sm:$0xff]
        %v930 = vld [vmem:[%s337 + $0x860] sm:$0xff]
        %v931 = vld [vmem:[%s337 + $0x868] sm:$0xff]
        %v932 = vld [vmem:[%s337 + $0x870] sm:$0xff]
        %v933 = vld [vmem:[%s337 + $0x878] sm:$0xff]
        %v934 = vld [vmem:[%s337 + $0x880] sm:$0xff]
        %v935 = vld [vmem:[%s337 + $0x888] sm:$0xff]
        %v936 = vld [vmem:[%s337 + $0x890] sm:$0xff]
        %v937 = vld [vmem:[%s337 + $0x898] sm:$0xff]
        %v938 = vld [vmem:[%s337 + $0x8a0] sm:$0xff]
        %v939 = vld [vmem:[%s337 + $0x8a8] sm:$0xff]
        %v940 = vld [vmem:[%s337 + $0x8b0] sm:$0xff]
        %v941 = vld [vmem:[%s337 + $0x8b8] sm:$0xff]
        %v942 = vld [vmem:[%s337 + $0x8c0] sm:$0xff]
        %v943 = vld [vmem:[%s337 + $0x8c8] sm:$0xff]
        %v944 = vld [vmem:[%s337 + $0x8d0] sm:$0xff]
        %v945 = vld [vmem:[%s337 + $0x8d8] sm:$0xff]
        %v946 = vld [vmem:[%s337 + $0x8e0] sm:$0xff]
        %v947 = vld [vmem:[%s337 + $0x8e8] sm:$0xff]
        %v948 = vld [vmem:[%s337 + $0x8f0] sm:$0xff]
        %v949 = vld [vmem:[%s337 + $0x8f8] sm:$0xff]
        %v950 = vld [vmem:[%s337 + $0x900] sm:$0xff]
        %v951 = vld [vmem:[%s337 + $0x908] sm:$0xff]
        %v952 = vld [vmem:[%s337 + $0x910] sm:$0xff]
        %v953 = vld [vmem:[%s337 + $0x918] sm:$0xff]
        %v954 = vld [vmem:[%s337 + $0x920] sm:$0xff]
        %v955 = vld [vmem:[%s337 + $0x928] sm:$0xff]
        %v956 = vld [vmem:[%s337 + $0x930] sm:$0xff]
        %v957 = vld [vmem:[%s337 + $0x938] sm:$0xff]
        %v958 = vld [vmem:[%s337 + $0x940] sm:$0xff]
        %v959 = vld [vmem:[%s337 + $0x948] sm:$0xff]
        %v960 = vld [vmem:[%s337 + $0x950] sm:$0xff]
        %v961 = vld [vmem:[%s337 + $0x958] sm:$0xff]
        %v962 = vld [vmem:[%s337 + $0x960] sm:$0xff]
        %v963 = vld [vmem:[%s337 + $0x968] sm:$0xff]
        %v964 = vld [vmem:[%s337 + $0x970] sm:$0xff]
        %v965 = vld [vmem:[%s337 + $0x978] sm:$0xff]
        %v966 = vld [vmem:[%s337 + $0x980] sm:$0xff]
        %v967 = vld [vmem:[%s337 + $0x988] sm:$0xff]
        %v968 = vld [vmem:[%s337 + $0x990] sm:$0xff]
        %v969 = vld [vmem:[%s337 + $0x998] sm:$0xff]
        %v970 = vld [vmem:[%s337 + $0x9a0] sm:$0xff]
        %v971 = vld [vmem:[%s337 + $0x9a8] sm:$0xff]
        %v972 = vld [vmem:[%s337 + $0x9b0] sm:$0xff]
        %v973 = vld [vmem:[%s337 + $0x9b8] sm:$0xff]
        %v974 = vld [vmem:[%s337 + $0x9c0] sm:$0xff]
        %v975 = vld [vmem:[%s337 + $0x9c8] sm:$0xff]
        %v976 = vld [vmem:[%s337 + $0x9d0] sm:$0xff]
        %v977 = vld [vmem:[%s337 + $0x9d8] sm:$0xff]
        %v978 = vld [vmem:[%s337 + $0x9e0] sm:$0xff]
        %v979 = vld [vmem:[%s337 + $0x9e8] sm:$0xff]
        %v980 = vld [vmem:[%s337 + $0x9f0] sm:$0xff]
        %v981 = vld [vmem:[%s337 + $0x9f8] sm:$0xff]
        %v982 = vld [vmem:[%s337 + $0xa00] sm:$0xff]
        %v983 = vld [vmem:[%s337 + $0xa08] sm:$0xff]
        %v984 = vld [vmem:[%s337 + $0xa10] sm:$0xff]
        %v985 = vld [vmem:[%s337 + $0xa18] sm:$0xff]
        %v986 = vld [vmem:[%s337 + $0xa20] sm:$0xff]
        %v987 = vld [vmem:[%s337 + $0xa28] sm:$0xff]
        %v988 = vld [vmem:[%s337 + $0xa30] sm:$0xff]
        %v989 = vld [vmem:[%s337 + $0xa38] sm:$0xff]
        %v990 = vld [vmem:[%s337 + $0xa40] sm:$0xff]
        %v991 = vld [vmem:[%s337 + $0xa48] sm:$0xff]
        %v992 = vld [vmem:[%s337 + $0xa50] sm:$0xff]
        %v993 = vld [vmem:[%s337 + $0xa58] sm:$0xff]
        %v994 = vld [vmem:[%s337 + $0xa60] sm:$0xff]
        %v995 = vld [vmem:[%s337 + $0xa68] sm:$0xff]
        %v996 = vld [vmem:[%s337 + $0xa70] sm:$0xff]
        %v997 = vld [vmem:[%s337 + $0xa78] sm:$0xff]
        %v998 = vld [vmem:[%s337 + $0xa80] sm:$0xff]
        %v999 = vld [vmem:[%s337 + $0xa88] sm:$0xff]
        %v1000 = vld [vmem:[%s337 + $0xa90] sm:$0xff]
        %v1001 = vld [vmem:[%s337 + $0xa98] sm:$0xff]
        %v1002 = vld [vmem:[%s337 + $0xaa0] sm:$0xff]
        %v1003 = vld [vmem:[%s337 + $0xaa8] sm:$0xff]
        %v1004 = vld [vmem:[%s337 + $0xab0] sm:$0xff]
        %v1005 = vld [vmem:[%s337 + $0xab8] sm:$0xff]
        %v1006 = vld [vmem:[%s337 + $0xac0] sm:$0xff]
        %v1007 = vld [vmem:[%s337 + $0xac8] sm:$0xff]
        %v1008 = vld [vmem:[%s337 + $0xad0] sm:$0xff]
        %v1009 = vld [vmem:[%s337 + $0xad8] sm:$0xff]
        %v1010 = vld [vmem:[%s337 + $0xae0] sm:$0xff]
        %v1011 = vld [vmem:[%s337 + $0xae8] sm:$0xff]
        %v1012 = vld [vmem:[%s337 + $0xaf0] sm:$0xff]
        %v1013 = vld [vmem:[%s337 + $0xaf8] sm:$0xff]
        %v1014 = vld [vmem:[%s337 + $0xb00] sm:$0xff]
        %v1015 = vld [vmem:[%s337 + $0xb08] sm:$0xff]
        %v1016 = vld [vmem:[%s337 + $0xb10] sm:$0xff]
        %v1017 = vld [vmem:[%s337 + $0xb18] sm:$0xff]
        %v1018 = vld [vmem:[%s337 + $0xb20] sm:$0xff]
        %v1019 = vld [vmem:[%s337 + $0xb28] sm:$0xff]
        %v1020 = vld [vmem:[%s337 + $0xb30] sm:$0xff]
        %v1021 = vld [vmem:[%s337 + $0xb38] sm:$0xff]
        %v1022 = vld [vmem:[%s337 + $0xb40] sm:$0xff]
        %v1023 = vld [vmem:[%s337 + $0xb48] sm:$0xff]
        %v1024 = vld [vmem:[%s337 + $0xb50] sm:$0xff]
        %v1025 = vld [vmem:[%s337 + $0xb58] sm:$0xff]
        %v1026 = vld [vmem:[%s337 + $0xb60] sm:$0xff]
        %v1027 = vld [vmem:[%s337 + $0xb68] sm:$0xff]
        %v1028 = vld [vmem:[%s337 + $0xb70] sm:$0xff]
        %v1029 = vld [vmem:[%s337 + $0xb78] sm:$0xff]
        %v1030 = vld [vmem:[%s337 + $0xb80] sm:$0xff]
        %v1031 = vld [vmem:[%s337 + $0xb88] sm:$0xff]
        %v1032 = vld [vmem:[%s337 + $0xb90] sm:$0xff]
        %v1033 = vld [vmem:[%s337 + $0xb98] sm:$0xff]
        %v1034 = vld [vmem:[%s337 + $0xba0] sm:$0xff]
        %v1035 = vld [vmem:[%s337 + $0xba8] sm:$0xff]
        %v1036 = vld [vmem:[%s337 + $0xbb0] sm:$0xff]
        %v1037 = vld [vmem:[%s337 + $0xbb8] sm:$0xff]
        %v1038 = vld [vmem:[%s337 + $0xbc0] sm:$0xff]
        %v1039 = vld [vmem:[%s337 + $0xbc8] sm:$0xff]
        %v1040 = vld [vmem:[%s337 + $0xbd0] sm:$0xff]
        %v1041 = vld [vmem:[%s337 + $0xbd8] sm:$0xff]
        %v1042 = vld [vmem:[%s337 + $0xbe0] sm:$0xff]
        %v1043 = vld [vmem:[%s337 + $0xbe8] sm:$0xff]
        %v1044 = vld [vmem:[%s337 + $0xbf0] sm:$0xff]
        %v1045 = vld [vmem:[%s337 + $0xbf8] sm:$0xff]
        %v1046 = vld [vmem:[%s337 + $0xc00] sm:$0xff]
        %v1047 = vld [vmem:[%s337 + $0xc08] sm:$0xff]
        %v1048 = vld [vmem:[%s337 + $0xc10] sm:$0xff]
        %v1049 = vld [vmem:[%s337 + $0xc18] sm:$0xff]
        %v1050 = vld [vmem:[%s337 + $0xc20] sm:$0xff]
        %v1051 = vld [vmem:[%s337 + $0xc28] sm:$0xff]
        %v1052 = vld [vmem:[%s337 + $0xc30] sm:$0xff]
        %v1053 = vld [vmem:[%s337 + $0xc38] sm:$0xff]
        %v1054 = vld [vmem:[%s337 + $0xc40] sm:$0xff]
        %v1055 = vld [vmem:[%s337 + $0xc48] sm:$0xff]
        %v1056 = vld [vmem:[%s337 + $0xc50] sm:$0xff]
        %v1057 = vld [vmem:[%s337 + $0xc58] sm:$0xff]
        %v1058 = vld [vmem:[%s337 + $0xc60] sm:$0xff]
        %v1059 = vld [vmem:[%s337 + $0xc68] sm:$0xff]
        %v1060 = vld [vmem:[%s337 + $0xc70] sm:$0xff]
        %v1061 = vld [vmem:[%s337 + $0xc78] sm:$0xff]
        %v1062 = vld [vmem:[%s337 + $0xc80] sm:$0xff]
        %v1063 = vld [vmem:[%s337 + $0xc88] sm:$0xff]
        %v1064 = vld [vmem:[%s337 + $0xc90] sm:$0xff]
        %v1065 = vld [vmem:[%s337 + $0xc98] sm:$0xff]
        %v1066 = vld [vmem:[%s337 + $0xca0] sm:$0xff]
        %v1067 = vld [vmem:[%s337 + $0xca8] sm:$0xff]
        %v1068 = vld [vmem:[%s337 + $0xcb0] sm:$0xff]
        %v1069 = vld [vmem:[%s337 + $0xcb8] sm:$0xff]
        %v1070 = vld [vmem:[%s337 + $0xcc0] sm:$0xff]
        %v1071 = vld [vmem:[%s337 + $0xcc8] sm:$0xff]
        %v1072 = vld [vmem:[%s337 + $0xcd0] sm:$0xff]
        %v1073 = vld [vmem:[%s337 + $0xcd8] sm:$0xff]
        %v1074 = vld [vmem:[%s337 + $0xce0] sm:$0xff]
        %v1075 = vld [vmem:[%s337 + $0xce8] sm:$0xff]
        %v1076 = vld [vmem:[%s337 + $0xcf0] sm:$0xff]
        %v1077 = vld [vmem:[%s337 + $0xcf8] sm:$0xff]
        %v1078 = vld [vmem:[%s337 + $0xd00] sm:$0xff]
        %v1079 = vld [vmem:[%s337 + $0xd08] sm:$0xff]
        %v1080 = vld [vmem:[%s337 + $0xd10] sm:$0xff]
        %v1081 = vld [vmem:[%s337 + $0xd18] sm:$0xff]
        %v1082 = vld [vmem:[%s337 + $0xd20] sm:$0xff]
        %v1083 = vld [vmem:[%s337 + $0xd28] sm:$0xff]
        %v1084 = vld [vmem:[%s337 + $0xd30] sm:$0xff]
        %v1085 = vld [vmem:[%s337 + $0xd38] sm:$0xff]
        %v1086 = vld [vmem:[%s337 + $0xd40] sm:$0xff]
        %v1087 = vld [vmem:[%s337 + $0xd48] sm:$0xff]
        %v1088 = vld [vmem:[%s337 + $0xd50] sm:$0xff]
        %v1089 = vld [vmem:[%s337 + $0xd58] sm:$0xff]
        %v1090 = vld [vmem:[%s337 + $0xd60] sm:$0xff]
        %v1091 = vld [vmem:[%s337 + $0xd68] sm:$0xff]
        %v1092 = vld [vmem:[%s337 + $0xd70] sm:$0xff]
        %v1093 = vld [vmem:[%s337 + $0xd78] sm:$0xff]
        %v1094 = vld [vmem:[%s337 + $0xd80] sm:$0xff]
        %v1095 = vld [vmem:[%s337 + $0xd88] sm:$0xff]
        %v1096 = vld [vmem:[%s337 + $0xd90] sm:$0xff]
        %v1097 = vld [vmem:[%s337 + $0xd98] sm:$0xff]
        %v1098 = vld [vmem:[%s337 + $0xda0] sm:$0xff]
        %v1099 = vld [vmem:[%s337 + $0xda8] sm:$0xff]
        %v1100 = vld [vmem:[%s337 + $0xdb0] sm:$0xff]
        %v1101 = vld [vmem:[%s337 + $0xdb8] sm:$0xff]
        %v1102 = vld [vmem:[%s337 + $0xdc0] sm:$0xff]
        %v1103 = vld [vmem:[%s337 + $0xdc8] sm:$0xff]
        %v1104 = vld [vmem:[%s337 + $0xdd0] sm:$0xff]
        %v1105 = vld [vmem:[%s337 + $0xdd8] sm:$0xff]
        %v1106 = vld [vmem:[%s337 + $0xde0] sm:$0xff]
        %v1107 = vld [vmem:[%s337 + $0xde8] sm:$0xff]
        %v1108 = vld [vmem:[%s337 + $0xdf0] sm:$0xff]
        %v1109 = vld [vmem:[%s337 + $0xdf8] sm:$0xff]
        %v1110 = vld [vmem:[%s337 + $0xe00] sm:$0xff]
        %v1111 = vld [vmem:[%s337 + $0xe08] sm:$0xff]
        %v1112 = vld [vmem:[%s337 + $0xe10] sm:$0xff]
        %v1113 = vld [vmem:[%s337 + $0xe18] sm:$0xff]
        %v1114 = vld [vmem:[%s337 + $0xe20] sm:$0xff]
        %v1115 = vld [vmem:[%s337 + $0xe28] sm:$0xff]
        %v1116 = vld [vmem:[%s337 + $0xe30] sm:$0xff]
        %v1117 = vld [vmem:[%s337 + $0xe38] sm:$0xff]
        %v1118 = vld [vmem:[%s337 + $0xe40] sm:$0xff]
        %v1119 = vld [vmem:[%s337 + $0xe48] sm:$0xff]
        %v1120 = vld [vmem:[%s337 + $0xe50] sm:$0xff]
        %v1121 = vld [vmem:[%s337 + $0xe58] sm:$0xff]
        %v1122 = vld [vmem:[%s337 + $0xe60] sm:$0xff]
        %v1123 = vld [vmem:[%s337 + $0xe68] sm:$0xff]
        %v1124 = vld [vmem:[%s337 + $0xe70] sm:$0xff]
        %v1125 = vld [vmem:[%s337 + $0xe78] sm:$0xff]
        %v1126 = vld [vmem:[%s337 + $0xe80] sm:$0xff]
        %v1127 = vld [vmem:[%s337 + $0xe88] sm:$0xff]
        %v1128 = vld [vmem:[%s337 + $0xe90] sm:$0xff]
        %v1129 = vld [vmem:[%s337 + $0xe98] sm:$0xff]
        %v1130 = vld [vmem:[%s337 + $0xea0] sm:$0xff]
        %v1131 = vld [vmem:[%s337 + $0xea8] sm:$0xff]
        %v1132 = vld [vmem:[%s337 + $0xeb0] sm:$0xff]
        %v1133 = vld [vmem:[%s337 + $0xeb8] sm:$0xff]
        %v1134 = vld [vmem:[%s337 + $0xec0] sm:$0xff]
        %v1135 = vld [vmem:[%s337 + $0xec8] sm:$0xff]
        %v1136 = vld [vmem:[%s337 + $0xed0] sm:$0xff]
        %v1137 = vld [vmem:[%s337 + $0xed8] sm:$0xff]
        %v1138 = vld [vmem:[%s337 + $0xee0] sm:$0xff]
        %v1139 = vld [vmem:[%s337 + $0xee8] sm:$0xff]
        %v1140 = vld [vmem:[%s337 + $0xef0] sm:$0xff]
        %v1141 = vld [vmem:[%s337 + $0xef8] sm:$0xff]
        %v1142 = vld [vmem:[%s337 + $0xf00] sm:$0xff]
        %v1143 = vld [vmem:[%s337 + $0xf08] sm:$0xff]
        %v1144 = vld [vmem:[%s337 + $0xf10] sm:$0xff]
        %v1145 = vld [vmem:[%s337 + $0xf18] sm:$0xff]
        %v1146 = vld [vmem:[%s337 + $0xf20] sm:$0xff]
        %v1147 = vld [vmem:[%s337 + $0xf28] sm:$0xff]
        %v1148 = vld [vmem:[%s337 + $0xf30] sm:$0xff]
        %v1149 = vld [vmem:[%s337 + $0xf38] sm:$0xff]
        %v1150 = vld [vmem:[%s337 + $0xf40] sm:$0xff]
        %v1151 = vld [vmem:[%s337 + $0xf48] sm:$0xff]
        %v1152 = vld [vmem:[%s337 + $0xf50] sm:$0xff]
        %v1153 = vld [vmem:[%s337 + $0xf58] sm:$0xff]
        %v1154 = vld [vmem:[%s337 + $0xf60] sm:$0xff]
        %v1155 = vld [vmem:[%s337 + $0xf68] sm:$0xff]
        %v1156 = vld [vmem:[%s337 + $0xf70] sm:$0xff]
        %v1157 = vld [vmem:[%s337 + $0xf78] sm:$0xff]
        %v1158 = vld [vmem:[%s337 + $0xf80] sm:$0xff]
        %v1159 = vld [vmem:[%s337 + $0xf88] sm:$0xff]
        %v1160 = vld [vmem:[%s337 + $0xf90] sm:$0xff]
        %v1161 = vld [vmem:[%s337 + $0xf98] sm:$0xff]
        %v1162 = vld [vmem:[%s337 + $0xfa0] sm:$0xff]
        %v1163 = vld [vmem:[%s337 + $0xfa8] sm:$0xff]
        %v1164 = vld [vmem:[%s337 + $0xfb0] sm:$0xff]
        %v1165 = vld [vmem:[%s337 + $0xfb8] sm:$0xff]
        %v1166 = vld [vmem:[%s337 + $0xfc0] sm:$0xff]
        %v1167 = vld [vmem:[%s337 + $0xfc8] sm:$0xff]
        %v1168 = vld [vmem:[%s337 + $0xfd0] sm:$0xff]
        %v1169 = vld [vmem:[%s337 + $0xfd8] sm:$0xff]
        %v1170 = vld [vmem:[%s337 + $0xfe0] sm:$0xff]
        %v1171 = vld [vmem:[%s337 + $0xfe8] sm:$0xff]
        %v1172 = vld [vmem:[%s337 + $0xff0] sm:$0xff]
        %v1173 = vld [vmem:[%s337 + $0xff8] sm:$0xff]
        %s1174 = sshra.s32 %s533, 3
        %s1175 = sand.u32 %s533, 7
        %s1176 = smul.u32 %s1174, 2
        %s1177 = smul.addr %s1176, 4
        %s1178 = scalar_lea.vmem [#allocation5], %s1177
        %v1179 = vld [vmem:[%s1178] sm:$0xff]
        %v1180 = vld [vmem:[%s1178 + $0x8] sm:$0xff]
        %v1181 = vld [vmem:[%s1178 + $0x10] sm:$0xff]
        %v1182 = vld [vmem:[%s1178 + $0x18] sm:$0xff]
        %v1183 = vld [vmem:[%s1178 + $0x20] sm:$0xff]
        %v1184 = vld [vmem:[%s1178 + $0x28] sm:$0xff]
        %v1185 = vld [vmem:[%s1178 + $0x30] sm:$0xff]
        %v1186 = vld [vmem:[%s1178 + $0x38] sm:$0xff]
        %v1187 = vld [vmem:[%s1178 + $0x40] sm:$0xff]
        %v1188 = vld [vmem:[%s1178 + $0x48] sm:$0xff]
        %v1189 = vld [vmem:[%s1178 + $0x50] sm:$0xff]
        %v1190 = vld [vmem:[%s1178 + $0x58] sm:$0xff]
        %v1191 = vld [vmem:[%s1178 + $0x60] sm:$0xff]
        %v1192 = vld [vmem:[%s1178 + $0x68] sm:$0xff]
        %v1193 = vld [vmem:[%s1178 + $0x70] sm:$0xff]
        %v1194 = vld [vmem:[%s1178 + $0x78] sm:$0xff]
        %v1195 = vld [vmem:[%s1178 + $0x80] sm:$0xff]
        %v1196 = vld [vmem:[%s1178 + $0x88] sm:$0xff]
        %v1197 = vld [vmem:[%s1178 + $0x90] sm:$0xff]
        %v1198 = vld [vmem:[%s1178 + $0x98] sm:$0xff]
        %v1199 = vld [vmem:[%s1178 + $0xa0] sm:$0xff]
        %v1200 = vld [vmem:[%s1178 + $0xa8] sm:$0xff]
        %v1201 = vld [vmem:[%s1178 + $0xb0] sm:$0xff]
        %v1202 = vld [vmem:[%s1178 + $0xb8] sm:$0xff]
        %v1203 = vld [vmem:[%s1178 + $0xc0] sm:$0xff]
        %v1204 = vld [vmem:[%s1178 + $0xc8] sm:$0xff]
        %v1205 = vld [vmem:[%s1178 + $0xd0] sm:$0xff]
        %v1206 = vld [vmem:[%s1178 + $0xd8] sm:$0xff]
        %v1207 = vld [vmem:[%s1178 + $0xe0] sm:$0xff]
        %v1208 = vld [vmem:[%s1178 + $0xe8] sm:$0xff]
        %v1209 = vld [vmem:[%s1178 + $0xf0] sm:$0xff]
        %v1210 = vld [vmem:[%s1178 + $0xf8] sm:$0xff]
        %v1211 = vld [vmem:[%s1178 + $0x100] sm:$0xff]
        %v1212 = vld [vmem:[%s1178 + $0x108] sm:$0xff]
        %v1213 = vld [vmem:[%s1178 + $0x110] sm:$0xff]
        %v1214 = vld [vmem:[%s1178 + $0x118] sm:$0xff]
        %v1215 = vld [vmem:[%s1178 + $0x120] sm:$0xff]
        %v1216 = vld [vmem:[%s1178 + $0x128] sm:$0xff]
        %v1217 = vld [vmem:[%s1178 + $0x130] sm:$0xff]
        %v1218 = vld [vmem:[%s1178 + $0x138] sm:$0xff]
        %v1219 = vld [vmem:[%s1178 + $0x140] sm:$0xff]
        %v1220 = vld [vmem:[%s1178 + $0x148] sm:$0xff]
        %v1221 = vld [vmem:[%s1178 + $0x150] sm:$0xff]
        %v1222 = vld [vmem:[%s1178 + $0x158] sm:$0xff]
        %v1223 = vld [vmem:[%s1178 + $0x160] sm:$0xff]
        %v1224 = vld [vmem:[%s1178 + $0x168] sm:$0xff]
        %v1225 = vld [vmem:[%s1178 + $0x170] sm:$0xff]
        %v1226 = vld [vmem:[%s1178 + $0x178] sm:$0xff]
        %v1227 = vld [vmem:[%s1178 + $0x180] sm:$0xff]
        %v1228 = vld [vmem:[%s1178 + $0x188] sm:$0xff]
        %v1229 = vld [vmem:[%s1178 + $0x190] sm:$0xff]
        %v1230 = vld [vmem:[%s1178 + $0x198] sm:$0xff]
        %v1231 = vld [vmem:[%s1178 + $0x1a0] sm:$0xff]
        %v1232 = vld [vmem:[%s1178 + $0x1a8] sm:$0xff]
        %v1233 = vld [vmem:[%s1178 + $0x1b0] sm:$0xff]
        %v1234 = vld [vmem:[%s1178 + $0x1b8] sm:$0xff]
        %v1235 = vld [vmem:[%s1178 + $0x1c0] sm:$0xff]
        %v1236 = vld [vmem:[%s1178 + $0x1c8] sm:$0xff]
        %v1237 = vld [vmem:[%s1178 + $0x1d0] sm:$0xff]
        %v1238 = vld [vmem:[%s1178 + $0x1d8] sm:$0xff]
        %v1239 = vld [vmem:[%s1178 + $0x1e0] sm:$0xff]
        %v1240 = vld [vmem:[%s1178 + $0x1e8] sm:$0xff]
        %v1241 = vld [vmem:[%s1178 + $0x1f0] sm:$0xff]
        %v1242 = vld [vmem:[%s1178 + $0x1f8] sm:$0xff]
        %v1243 = vld [vmem:[%s1178 + $0x200] sm:$0xff]
        %v1244 = vld [vmem:[%s1178 + $0x208] sm:$0xff]
        %v1245 = vld [vmem:[%s1178 + $0x210] sm:$0xff]
        %v1246 = vld [vmem:[%s1178 + $0x218] sm:$0xff]
        %v1247 = vld [vmem:[%s1178 + $0x220] sm:$0xff]
        %v1248 = vld [vmem:[%s1178 + $0x228] sm:$0xff]
        %v1249 = vld [vmem:[%s1178 + $0x230] sm:$0xff]
        %v1250 = vld [vmem:[%s1178 + $0x238] sm:$0xff]
        %v1251 = vld [vmem:[%s1178 + $0x240] sm:$0xff]
        %v1252 = vld [vmem:[%s1178 + $0x248] sm:$0xff]
        %v1253 = vld [vmem:[%s1178 + $0x250] sm:$0xff]
        %v1254 = vld [vmem:[%s1178 + $0x258] sm:$0xff]
        %v1255 = vld [vmem:[%s1178 + $0x260] sm:$0xff]
        %v1256 = vld [vmem:[%s1178 + $0x268] sm:$0xff]
        %v1257 = vld [vmem:[%s1178 + $0x270] sm:$0xff]
        %v1258 = vld [vmem:[%s1178 + $0x278] sm:$0xff]
        %v1259 = vld [vmem:[%s1178 + $0x280] sm:$0xff]
        %v1260 = vld [vmem:[%s1178 + $0x288] sm:$0xff]
        %v1261 = vld [vmem:[%s1178 + $0x290] sm:$0xff]
        %v1262 = vld [vmem:[%s1178 + $0x298] sm:$0xff]
        %v1263 = vld [vmem:[%s1178 + $0x2a0] sm:$0xff]
        %v1264 = vld [vmem:[%s1178 + $0x2a8] sm:$0xff]
        %v1265 = vld [vmem:[%s1178 + $0x2b0] sm:$0xff]
        %v1266 = vld [vmem:[%s1178 + $0x2b8] sm:$0xff]
        %v1267 = vld [vmem:[%s1178 + $0x2c0] sm:$0xff]
        %v1268 = vld [vmem:[%s1178 + $0x2c8] sm:$0xff]
        %v1269 = vld [vmem:[%s1178 + $0x2d0] sm:$0xff]
        %v1270 = vld [vmem:[%s1178 + $0x2d8] sm:$0xff]
        %v1271 = vld [vmem:[%s1178 + $0x2e0] sm:$0xff]
        %v1272 = vld [vmem:[%s1178 + $0x2e8] sm:$0xff]
        %v1273 = vld [vmem:[%s1178 + $0x2f0] sm:$0xff]
        %v1274 = vld [vmem:[%s1178 + $0x2f8] sm:$0xff]
        %v1275 = vld [vmem:[%s1178 + $0x300] sm:$0xff]
        %v1276 = vld [vmem:[%s1178 + $0x308] sm:$0xff]
        %v1277 = vld [vmem:[%s1178 + $0x310] sm:$0xff]
        %v1278 = vld [vmem:[%s1178 + $0x318] sm:$0xff]
        %v1279 = vld [vmem:[%s1178 + $0x320] sm:$0xff]
        %v1280 = vld [vmem:[%s1178 + $0x328] sm:$0xff]
        %v1281 = vld [vmem:[%s1178 + $0x330] sm:$0xff]
        %v1282 = vld [vmem:[%s1178 + $0x338] sm:$0xff]
        %v1283 = vld [vmem:[%s1178 + $0x340] sm:$0xff]
        %v1284 = vld [vmem:[%s1178 + $0x348] sm:$0xff]
        %v1285 = vld [vmem:[%s1178 + $0x350] sm:$0xff]
        %v1286 = vld [vmem:[%s1178 + $0x358] sm:$0xff]
        %v1287 = vld [vmem:[%s1178 + $0x360] sm:$0xff]
        %v1288 = vld [vmem:[%s1178 + $0x368] sm:$0xff]
        %v1289 = vld [vmem:[%s1178 + $0x370] sm:$0xff]
        %v1290 = vld [vmem:[%s1178 + $0x378] sm:$0xff]
        %v1291 = vld [vmem:[%s1178 + $0x380] sm:$0xff]
        %v1292 = vld [vmem:[%s1178 + $0x388] sm:$0xff]
        %v1293 = vld [vmem:[%s1178 + $0x390] sm:$0xff]
        %v1294 = vld [vmem:[%s1178 + $0x398] sm:$0xff]
        %v1295 = vld [vmem:[%s1178 + $0x3a0] sm:$0xff]
        %v1296 = vld [vmem:[%s1178 + $0x3a8] sm:$0xff]
        %v1297 = vld [vmem:[%s1178 + $0x3b0] sm:$0xff]
        %v1298 = vld [vmem:[%s1178 + $0x3b8] sm:$0xff]
        %v1299 = vld [vmem:[%s1178 + $0x3c0] sm:$0xff]
        %v1300 = vld [vmem:[%s1178 + $0x3c8] sm:$0xff]
        %v1301 = vld [vmem:[%s1178 + $0x3d0] sm:$0xff]
        %v1302 = vld [vmem:[%s1178 + $0x3d8] sm:$0xff]
        %v1303 = vld [vmem:[%s1178 + $0x3e0] sm:$0xff]
        %v1304 = vld [vmem:[%s1178 + $0x3e8] sm:$0xff]
        %v1305 = vld [vmem:[%s1178 + $0x3f0] sm:$0xff]
        %v1306 = vld [vmem:[%s1178 + $0x3f8] sm:$0xff]
        %v1307 = vld [vmem:[%s1178 + $0x400] sm:$0xff]
        %v1308 = vld [vmem:[%s1178 + $0x408] sm:$0xff]
        %v1309 = vld [vmem:[%s1178 + $0x410] sm:$0xff]
        %v1310 = vld [vmem:[%s1178 + $0x418] sm:$0xff]
        %v1311 = vld [vmem:[%s1178 + $0x420] sm:$0xff]
        %v1312 = vld [vmem:[%s1178 + $0x428] sm:$0xff]
        %v1313 = vld [vmem:[%s1178 + $0x430] sm:$0xff]
        %v1314 = vld [vmem:[%s1178 + $0x438] sm:$0xff]
        %v1315 = vld [vmem:[%s1178 + $0x440] sm:$0xff]
        %v1316 = vld [vmem:[%s1178 + $0x448] sm:$0xff]
        %v1317 = vld [vmem:[%s1178 + $0x450] sm:$0xff]
        %v1318 = vld [vmem:[%s1178 + $0x458] sm:$0xff]
        %v1319 = vld [vmem:[%s1178 + $0x460] sm:$0xff]
        %v1320 = vld [vmem:[%s1178 + $0x468] sm:$0xff]
        %v1321 = vld [vmem:[%s1178 + $0x470] sm:$0xff]
        %v1322 = vld [vmem:[%s1178 + $0x478] sm:$0xff]
        %v1323 = vld [vmem:[%s1178 + $0x480] sm:$0xff]
        %v1324 = vld [vmem:[%s1178 + $0x488] sm:$0xff]
        %v1325 = vld [vmem:[%s1178 + $0x490] sm:$0xff]
        %v1326 = vld [vmem:[%s1178 + $0x498] sm:$0xff]
        %v1327 = vld [vmem:[%s1178 + $0x4a0] sm:$0xff]
        %v1328 = vld [vmem:[%s1178 + $0x4a8] sm:$0xff]
        %v1329 = vld [vmem:[%s1178 + $0x4b0] sm:$0xff]
        %v1330 = vld [vmem:[%s1178 + $0x4b8] sm:$0xff]
        %v1331 = vld [vmem:[%s1178 + $0x4c0] sm:$0xff]
        %v1332 = vld [vmem:[%s1178 + $0x4c8] sm:$0xff]
        %v1333 = vld [vmem:[%s1178 + $0x4d0] sm:$0xff]
        %v1334 = vld [vmem:[%s1178 + $0x4d8] sm:$0xff]
        %v1335 = vld [vmem:[%s1178 + $0x4e0] sm:$0xff]
        %v1336 = vld [vmem:[%s1178 + $0x4e8] sm:$0xff]
        %v1337 = vld [vmem:[%s1178 + $0x4f0] sm:$0xff]
        %v1338 = vld [vmem:[%s1178 + $0x4f8] sm:$0xff]
        %v1339 = vld [vmem:[%s1178 + $0x500] sm:$0xff]
        %v1340 = vld [vmem:[%s1178 + $0x508] sm:$0xff]
        %v1341 = vld [vmem:[%s1178 + $0x510] sm:$0xff]
        %v1342 = vld [vmem:[%s1178 + $0x518] sm:$0xff]
        %v1343 = vld [vmem:[%s1178 + $0x520] sm:$0xff]
        %v1344 = vld [vmem:[%s1178 + $0x528] sm:$0xff]
        %v1345 = vld [vmem:[%s1178 + $0x530] sm:$0xff]
        %v1346 = vld [vmem:[%s1178 + $0x538] sm:$0xff]
        %v1347 = vld [vmem:[%s1178 + $0x540] sm:$0xff]
        %v1348 = vld [vmem:[%s1178 + $0x548] sm:$0xff]
        %v1349 = vld [vmem:[%s1178 + $0x550] sm:$0xff]
        %v1350 = vld [vmem:[%s1178 + $0x558] sm:$0xff]
        %v1351 = vld [vmem:[%s1178 + $0x560] sm:$0xff]
        %v1352 = vld [vmem:[%s1178 + $0x568] sm:$0xff]
        %v1353 = vld [vmem:[%s1178 + $0x570] sm:$0xff]
        %v1354 = vld [vmem:[%s1178 + $0x578] sm:$0xff]
        %v1355 = vld [vmem:[%s1178 + $0x580] sm:$0xff]
        %v1356 = vld [vmem:[%s1178 + $0x588] sm:$0xff]
        %v1357 = vld [vmem:[%s1178 + $0x590] sm:$0xff]
        %v1358 = vld [vmem:[%s1178 + $0x598] sm:$0xff]
        %v1359 = vld [vmem:[%s1178 + $0x5a0] sm:$0xff]
        %v1360 = vld [vmem:[%s1178 + $0x5a8] sm:$0xff]
        %v1361 = vld [vmem:[%s1178 + $0x5b0] sm:$0xff]
        %v1362 = vld [vmem:[%s1178 + $0x5b8] sm:$0xff]
        %v1363 = vld [vmem:[%s1178 + $0x5c0] sm:$0xff]
        %v1364 = vld [vmem:[%s1178 + $0x5c8] sm:$0xff]
        %v1365 = vld [vmem:[%s1178 + $0x5d0] sm:$0xff]
        %v1366 = vld [vmem:[%s1178 + $0x5d8] sm:$0xff]
        %v1367 = vld [vmem:[%s1178 + $0x5e0] sm:$0xff]
        %v1368 = vld [vmem:[%s1178 + $0x5e8] sm:$0xff]
        %v1369 = vld [vmem:[%s1178 + $0x5f0] sm:$0xff]
        %v1370 = vld [vmem:[%s1178 + $0x5f8] sm:$0xff]
        %v1371 = vld [vmem:[%s1178 + $0x600] sm:$0xff]
        %v1372 = vld [vmem:[%s1178 + $0x608] sm:$0xff]
        %v1373 = vld [vmem:[%s1178 + $0x610] sm:$0xff]
        %v1374 = vld [vmem:[%s1178 + $0x618] sm:$0xff]
        %v1375 = vld [vmem:[%s1178 + $0x620] sm:$0xff]
        %v1376 = vld [vmem:[%s1178 + $0x628] sm:$0xff]
        %v1377 = vld [vmem:[%s1178 + $0x630] sm:$0xff]
        %v1378 = vld [vmem:[%s1178 + $0x638] sm:$0xff]
        %v1379 = vld [vmem:[%s1178 + $0x640] sm:$0xff]
        %v1380 = vld [vmem:[%s1178 + $0x648] sm:$0xff]
        %v1381 = vld [vmem:[%s1178 + $0x650] sm:$0xff]
        %v1382 = vld [vmem:[%s1178 + $0x658] sm:$0xff]
        %v1383 = vld [vmem:[%s1178 + $0x660] sm:$0xff]
        %v1384 = vld [vmem:[%s1178 + $0x668] sm:$0xff]
        %v1385 = vld [vmem:[%s1178 + $0x670] sm:$0xff]
        %v1386 = vld [vmem:[%s1178 + $0x678] sm:$0xff]
        %v1387 = vld [vmem:[%s1178 + $0x680] sm:$0xff]
        %v1388 = vld [vmem:[%s1178 + $0x688] sm:$0xff]
        %v1389 = vld [vmem:[%s1178 + $0x690] sm:$0xff]
        %v1390 = vld [vmem:[%s1178 + $0x698] sm:$0xff]
        %v1391 = vld [vmem:[%s1178 + $0x6a0] sm:$0xff]
        %v1392 = vld [vmem:[%s1178 + $0x6a8] sm:$0xff]
        %v1393 = vld [vmem:[%s1178 + $0x6b0] sm:$0xff]
        %v1394 = vld [vmem:[%s1178 + $0x6b8] sm:$0xff]
        %v1395 = vld [vmem:[%s1178 + $0x6c0] sm:$0xff]
        %v1396 = vld [vmem:[%s1178 + $0x6c8] sm:$0xff]
        %v1397 = vld [vmem:[%s1178 + $0x6d0] sm:$0xff]
        %v1398 = vld [vmem:[%s1178 + $0x6d8] sm:$0xff]
        %v1399 = vld [vmem:[%s1178 + $0x6e0] sm:$0xff]
        %v1400 = vld [vmem:[%s1178 + $0x6e8] sm:$0xff]
        %v1401 = vld [vmem:[%s1178 + $0x6f0] sm:$0xff]
        %v1402 = vld [vmem:[%s1178 + $0x6f8] sm:$0xff]
        %v1403 = vld [vmem:[%s1178 + $0x700] sm:$0xff]
        %v1404 = vld [vmem:[%s1178 + $0x708] sm:$0xff]
        %v1405 = vld [vmem:[%s1178 + $0x710] sm:$0xff]
        %v1406 = vld [vmem:[%s1178 + $0x718] sm:$0xff]
        %v1407 = vld [vmem:[%s1178 + $0x720] sm:$0xff]
        %v1408 = vld [vmem:[%s1178 + $0x728] sm:$0xff]
        %v1409 = vld [vmem:[%s1178 + $0x730] sm:$0xff]
        %v1410 = vld [vmem:[%s1178 + $0x738] sm:$0xff]
        %v1411 = vld [vmem:[%s1178 + $0x740] sm:$0xff]
        %v1412 = vld [vmem:[%s1178 + $0x748] sm:$0xff]
        %v1413 = vld [vmem:[%s1178 + $0x750] sm:$0xff]
        %v1414 = vld [vmem:[%s1178 + $0x758] sm:$0xff]
        %v1415 = vld [vmem:[%s1178 + $0x760] sm:$0xff]
        %v1416 = vld [vmem:[%s1178 + $0x768] sm:$0xff]
        %v1417 = vld [vmem:[%s1178 + $0x770] sm:$0xff]
        %v1418 = vld [vmem:[%s1178 + $0x778] sm:$0xff]
        %v1419 = vld [vmem:[%s1178 + $0x780] sm:$0xff]
        %v1420 = vld [vmem:[%s1178 + $0x788] sm:$0xff]
        %v1421 = vld [vmem:[%s1178 + $0x790] sm:$0xff]
        %v1422 = vld [vmem:[%s1178 + $0x798] sm:$0xff]
        %v1423 = vld [vmem:[%s1178 + $0x7a0] sm:$0xff]
        %v1424 = vld [vmem:[%s1178 + $0x7a8] sm:$0xff]
        %v1425 = vld [vmem:[%s1178 + $0x7b0] sm:$0xff]
        %v1426 = vld [vmem:[%s1178 + $0x7b8] sm:$0xff]
        %v1427 = vld [vmem:[%s1178 + $0x7c0] sm:$0xff]
        %v1428 = vld [vmem:[%s1178 + $0x7c8] sm:$0xff]
        %v1429 = vld [vmem:[%s1178 + $0x7d0] sm:$0xff]
        %v1430 = vld [vmem:[%s1178 + $0x7d8] sm:$0xff]
        %v1431 = vld [vmem:[%s1178 + $0x7e0] sm:$0xff]
        %v1432 = vld [vmem:[%s1178 + $0x7e8] sm:$0xff]
        %v1433 = vld [vmem:[%s1178 + $0x7f0] sm:$0xff]
        %v1434 = vld [vmem:[%s1178 + $0x7f8] sm:$0xff]
        %v1947 = vunpack.c.l.b16 %v662
        %v1948 = vunpack.c.h.b16 %v662
        %v1949 = vunpack.c.l.b16 %v663
        %v1950 = vunpack.c.h.b16 %v663
        %v1951 = vunpack.c.l.b16 %v664
        %v1952 = vunpack.c.h.b16 %v664
        %v1953 = vunpack.c.l.b16 %v665
        %v1954 = vunpack.c.h.b16 %v665
        %v1955 = vunpack.c.l.b16 %v666
        %v1956 = vunpack.c.h.b16 %v666
        %v1957 = vunpack.c.l.b16 %v667
        %v1958 = vunpack.c.h.b16 %v667
        %v1959 = vunpack.c.l.b16 %v668
        %v1960 = vunpack.c.h.b16 %v668
        %v1961 = vunpack.c.l.b16 %v669
        %v1962 = vunpack.c.h.b16 %v669
        %v1963 = vunpack.c.l.b16 %v670
        %v1964 = vunpack.c.h.b16 %v670
        %v1965 = vunpack.c.l.b16 %v671
        %v1966 = vunpack.c.h.b16 %v671
        %v1967 = vunpack.c.l.b16 %v672
        %v1968 = vunpack.c.h.b16 %v672
        %v1969 = vunpack.c.l.b16 %v673
        %v1970 = vunpack.c.h.b16 %v673
        %v1971 = vunpack.c.l.b16 %v674
        %v1972 = vunpack.c.h.b16 %v674
        %v1973 = vunpack.c.l.b16 %v675
        %v1974 = vunpack.c.h.b16 %v675
        %v1975 = vunpack.c.l.b16 %v676
        %v1976 = vunpack.c.h.b16 %v676
        %v1977 = vunpack.c.l.b16 %v677
        %v1978 = vunpack.c.h.b16 %v677
        %v1979 = vunpack.c.l.b16 %v678
        %v1980 = vunpack.c.h.b16 %v678
        %v1981 = vunpack.c.l.b16 %v679
        %v1982 = vunpack.c.h.b16 %v679
        %v1983 = vunpack.c.l.b16 %v680
        %v1984 = vunpack.c.h.b16 %v680
        %v1985 = vunpack.c.l.b16 %v681
        %v1986 = vunpack.c.h.b16 %v681
        %v1987 = vunpack.c.l.b16 %v682
        %v1988 = vunpack.c.h.b16 %v682
        %v1989 = vunpack.c.l.b16 %v683
        %v1990 = vunpack.c.h.b16 %v683
        %v1991 = vunpack.c.l.b16 %v684
        %v1992 = vunpack.c.h.b16 %v684
        %v1993 = vunpack.c.l.b16 %v685
        %v1994 = vunpack.c.h.b16 %v685
        %v1995 = vunpack.c.l.b16 %v686
        %v1996 = vunpack.c.h.b16 %v686
        %v1997 = vunpack.c.l.b16 %v687
        %v1998 = vunpack.c.h.b16 %v687
        %v1999 = vunpack.c.l.b16 %v688
        %v2000 = vunpack.c.h.b16 %v688
        %v2001 = vunpack.c.l.b16 %v689
        %v2002 = vunpack.c.h.b16 %v689
        %v2003 = vunpack.c.l.b16 %v690
        %v2004 = vunpack.c.h.b16 %v690
        %v2005 = vunpack.c.l.b16 %v691
        %v2006 = vunpack.c.h.b16 %v691
        %v2007 = vunpack.c.l.b16 %v692
        %v2008 = vunpack.c.h.b16 %v692
        %v2009 = vunpack.c.l.b16 %v693
        %v2010 = vunpack.c.h.b16 %v693
        %v2011 = vunpack.c.l.b16 %v694
        %v2012 = vunpack.c.h.b16 %v694
        %v2013 = vunpack.c.l.b16 %v695
        %v2014 = vunpack.c.h.b16 %v695
        %v2015 = vunpack.c.l.b16 %v696
        %v2016 = vunpack.c.h.b16 %v696
        %v2017 = vunpack.c.l.b16 %v697
        %v2018 = vunpack.c.h.b16 %v697
        %v2019 = vunpack.c.l.b16 %v698
        %v2020 = vunpack.c.h.b16 %v698
        %v2021 = vunpack.c.l.b16 %v699
        %v2022 = vunpack.c.h.b16 %v699
        %v2023 = vunpack.c.l.b16 %v700
        %v2024 = vunpack.c.h.b16 %v700
        %v2025 = vunpack.c.l.b16 %v701
        %v2026 = vunpack.c.h.b16 %v701
        %v2027 = vunpack.c.l.b16 %v702
        %v2028 = vunpack.c.h.b16 %v702
        %v2029 = vunpack.c.l.b16 %v703
        %v2030 = vunpack.c.h.b16 %v703
        %v2031 = vunpack.c.l.b16 %v704
        %v2032 = vunpack.c.h.b16 %v704
        %v2033 = vunpack.c.l.b16 %v705
        %v2034 = vunpack.c.h.b16 %v705
        %v2035 = vunpack.c.l.b16 %v706
        %v2036 = vunpack.c.h.b16 %v706
        %v2037 = vunpack.c.l.b16 %v707
        %v2038 = vunpack.c.h.b16 %v707
        %v2039 = vunpack.c.l.b16 %v708
        %v2040 = vunpack.c.h.b16 %v708
        %v2041 = vunpack.c.l.b16 %v709
        %v2042 = vunpack.c.h.b16 %v709
        %v2043 = vunpack.c.l.b16 %v710
        %v2044 = vunpack.c.h.b16 %v710
        %v2045 = vunpack.c.l.b16 %v711
        %v2046 = vunpack.c.h.b16 %v711
        %v2047 = vunpack.c.l.b16 %v712
        %v2048 = vunpack.c.h.b16 %v712
        %v2049 = vunpack.c.l.b16 %v713
        %v2050 = vunpack.c.h.b16 %v713
        %v2051 = vunpack.c.l.b16 %v714
        %v2052 = vunpack.c.h.b16 %v714
        %v2053 = vunpack.c.l.b16 %v715
        %v2054 = vunpack.c.h.b16 %v715
        %v2055 = vunpack.c.l.b16 %v716
        %v2056 = vunpack.c.h.b16 %v716
        %v2057 = vunpack.c.l.b16 %v717
        %v2058 = vunpack.c.h.b16 %v717
        %v2059 = vunpack.c.l.b16 %v718
        %v2060 = vunpack.c.h.b16 %v718
        %v2061 = vunpack.c.l.b16 %v719
        %v2062 = vunpack.c.h.b16 %v719
        %v2063 = vunpack.c.l.b16 %v720
        %v2064 = vunpack.c.h.b16 %v720
        %v2065 = vunpack.c.l.b16 %v721
        %v2066 = vunpack.c.h.b16 %v721
        %v2067 = vunpack.c.l.b16 %v722
        %v2068 = vunpack.c.h.b16 %v722
        %v2069 = vunpack.c.l.b16 %v723
        %v2070 = vunpack.c.h.b16 %v723
        %v2071 = vunpack.c.l.b16 %v724
        %v2072 = vunpack.c.h.b16 %v724
        %v2073 = vunpack.c.l.b16 %v725
        %v2074 = vunpack.c.h.b16 %v725
        %v2075 = vunpack.c.l.b16 %v726
        %v2076 = vunpack.c.h.b16 %v726
        %v2077 = vunpack.c.l.b16 %v727
        %v2078 = vunpack.c.h.b16 %v727
        %v2079 = vunpack.c.l.b16 %v728
        %v2080 = vunpack.c.h.b16 %v728
        %v2081 = vunpack.c.l.b16 %v729
        %v2082 = vunpack.c.h.b16 %v729
        %v2083 = vunpack.c.l.b16 %v730
        %v2084 = vunpack.c.h.b16 %v730
        %v2085 = vunpack.c.l.b16 %v731
        %v2086 = vunpack.c.h.b16 %v731
        %v2087 = vunpack.c.l.b16 %v732
        %v2088 = vunpack.c.h.b16 %v732
        %v2089 = vunpack.c.l.b16 %v733
        %v2090 = vunpack.c.h.b16 %v733
        %v2091 = vunpack.c.l.b16 %v734
        %v2092 = vunpack.c.h.b16 %v734
        %v2093 = vunpack.c.l.b16 %v735
        %v2094 = vunpack.c.h.b16 %v735
        %v2095 = vunpack.c.l.b16 %v736
        %v2096 = vunpack.c.h.b16 %v736
        %v2097 = vunpack.c.l.b16 %v737
        %v2098 = vunpack.c.h.b16 %v737
        %v2099 = vunpack.c.l.b16 %v738
        %v2100 = vunpack.c.h.b16 %v738
        %v2101 = vunpack.c.l.b16 %v739
        %v2102 = vunpack.c.h.b16 %v739
        %v2103 = vunpack.c.l.b16 %v740
        %v2104 = vunpack.c.h.b16 %v740
        %v2105 = vunpack.c.l.b16 %v741
        %v2106 = vunpack.c.h.b16 %v741
        %v2107 = vunpack.c.l.b16 %v742
        %v2108 = vunpack.c.h.b16 %v742
        %v2109 = vunpack.c.l.b16 %v743
        %v2110 = vunpack.c.h.b16 %v743
        %v2111 = vunpack.c.l.b16 %v744
        %v2112 = vunpack.c.h.b16 %v744
        %v2113 = vunpack.c.l.b16 %v745
        %v2114 = vunpack.c.h.b16 %v745
        %v2115 = vunpack.c.l.b16 %v746
        %v2116 = vunpack.c.h.b16 %v746
        %v2117 = vunpack.c.l.b16 %v747
        %v2118 = vunpack.c.h.b16 %v747
        %v2119 = vunpack.c.l.b16 %v748
        %v2120 = vunpack.c.h.b16 %v748
        %v2121 = vunpack.c.l.b16 %v749
        %v2122 = vunpack.c.h.b16 %v749
        %v2123 = vunpack.c.l.b16 %v750
        %v2124 = vunpack.c.h.b16 %v750
        %v2125 = vunpack.c.l.b16 %v751
        %v2126 = vunpack.c.h.b16 %v751
        %v2127 = vunpack.c.l.b16 %v752
        %v2128 = vunpack.c.h.b16 %v752
        %v2129 = vunpack.c.l.b16 %v753
        %v2130 = vunpack.c.h.b16 %v753
        %v2131 = vunpack.c.l.b16 %v754
        %v2132 = vunpack.c.h.b16 %v754
        %v2133 = vunpack.c.l.b16 %v755
        %v2134 = vunpack.c.h.b16 %v755
        %v2135 = vunpack.c.l.b16 %v756
        %v2136 = vunpack.c.h.b16 %v756
        %v2137 = vunpack.c.l.b16 %v757
        %v2138 = vunpack.c.h.b16 %v757
        %v2139 = vunpack.c.l.b16 %v758
        %v2140 = vunpack.c.h.b16 %v758
        %v2141 = vunpack.c.l.b16 %v759
        %v2142 = vunpack.c.h.b16 %v759
        %v2143 = vunpack.c.l.b16 %v760
        %v2144 = vunpack.c.h.b16 %v760
        %v2145 = vunpack.c.l.b16 %v761
        %v2146 = vunpack.c.h.b16 %v761
        %v2147 = vunpack.c.l.b16 %v762
        %v2148 = vunpack.c.h.b16 %v762
        %v2149 = vunpack.c.l.b16 %v763
        %v2150 = vunpack.c.h.b16 %v763
        %v2151 = vunpack.c.l.b16 %v764
        %v2152 = vunpack.c.h.b16 %v764
        %v2153 = vunpack.c.l.b16 %v765
        %v2154 = vunpack.c.h.b16 %v765
        %v2155 = vunpack.c.l.b16 %v766
        %v2156 = vunpack.c.h.b16 %v766
        %v2157 = vunpack.c.l.b16 %v767
        %v2158 = vunpack.c.h.b16 %v767
        %v2159 = vunpack.c.l.b16 %v768
        %v2160 = vunpack.c.h.b16 %v768
        %v2161 = vunpack.c.l.b16 %v769
        %v2162 = vunpack.c.h.b16 %v769
        %v2163 = vunpack.c.l.b16 %v770
        %v2164 = vunpack.c.h.b16 %v770
        %v2165 = vunpack.c.l.b16 %v771
        %v2166 = vunpack.c.h.b16 %v771
        %v2167 = vunpack.c.l.b16 %v772
        %v2168 = vunpack.c.h.b16 %v772
        %v2169 = vunpack.c.l.b16 %v773
        %v2170 = vunpack.c.h.b16 %v773
        %v2171 = vunpack.c.l.b16 %v774
        %v2172 = vunpack.c.h.b16 %v774
        %v2173 = vunpack.c.l.b16 %v775
        %v2174 = vunpack.c.h.b16 %v775
        %v2175 = vunpack.c.l.b16 %v776
        %v2176 = vunpack.c.h.b16 %v776
        %v2177 = vunpack.c.l.b16 %v777
        %v2178 = vunpack.c.h.b16 %v777
        %v2179 = vunpack.c.l.b16 %v778
        %v2180 = vunpack.c.h.b16 %v778
        %v2181 = vunpack.c.l.b16 %v779
        %v2182 = vunpack.c.h.b16 %v779
        %v2183 = vunpack.c.l.b16 %v780
        %v2184 = vunpack.c.h.b16 %v780
        %v2185 = vunpack.c.l.b16 %v781
        %v2186 = vunpack.c.h.b16 %v781
        %v2187 = vunpack.c.l.b16 %v782
        %v2188 = vunpack.c.h.b16 %v782
        %v2189 = vunpack.c.l.b16 %v783
        %v2190 = vunpack.c.h.b16 %v783
        %v2191 = vunpack.c.l.b16 %v784
        %v2192 = vunpack.c.h.b16 %v784
        %v2193 = vunpack.c.l.b16 %v785
        %v2194 = vunpack.c.h.b16 %v785
        %v2195 = vunpack.c.l.b16 %v786
        %v2196 = vunpack.c.h.b16 %v786
        %v2197 = vunpack.c.l.b16 %v787
        %v2198 = vunpack.c.h.b16 %v787
        %v2199 = vunpack.c.l.b16 %v788
        %v2200 = vunpack.c.h.b16 %v788
        %v2201 = vunpack.c.l.b16 %v789
        %v2202 = vunpack.c.h.b16 %v789
        %v2203 = vunpack.c.l.b16 %v790
        %v2204 = vunpack.c.h.b16 %v790
        %v2205 = vunpack.c.l.b16 %v791
        %v2206 = vunpack.c.h.b16 %v791
        %v2207 = vunpack.c.l.b16 %v792
        %v2208 = vunpack.c.h.b16 %v792
        %v2209 = vunpack.c.l.b16 %v793
        %v2210 = vunpack.c.h.b16 %v793
        %v2211 = vunpack.c.l.b16 %v794
        %v2212 = vunpack.c.h.b16 %v794
        %v2213 = vunpack.c.l.b16 %v795
        %v2214 = vunpack.c.h.b16 %v795
        %v2215 = vunpack.c.l.b16 %v796
        %v2216 = vunpack.c.h.b16 %v796
        %v2217 = vunpack.c.l.b16 %v797
        %v2218 = vunpack.c.h.b16 %v797
        %v2219 = vunpack.c.l.b16 %v798
        %v2220 = vunpack.c.h.b16 %v798
        %v2221 = vunpack.c.l.b16 %v799
        %v2222 = vunpack.c.h.b16 %v799
        %v2223 = vunpack.c.l.b16 %v800
        %v2224 = vunpack.c.h.b16 %v800
        %v2225 = vunpack.c.l.b16 %v801
        %v2226 = vunpack.c.h.b16 %v801
        %v2227 = vunpack.c.l.b16 %v802
        %v2228 = vunpack.c.h.b16 %v802
        %v2229 = vunpack.c.l.b16 %v803
        %v2230 = vunpack.c.h.b16 %v803
        %v2231 = vunpack.c.l.b16 %v804
        %v2232 = vunpack.c.h.b16 %v804
        %v2233 = vunpack.c.l.b16 %v805
        %v2234 = vunpack.c.h.b16 %v805
        %v2235 = vunpack.c.l.b16 %v806
        %v2236 = vunpack.c.h.b16 %v806
        %v2237 = vunpack.c.l.b16 %v807
        %v2238 = vunpack.c.h.b16 %v807
        %v2239 = vunpack.c.l.b16 %v808
        %v2240 = vunpack.c.h.b16 %v808
        %v2241 = vunpack.c.l.b16 %v809
        %v2242 = vunpack.c.h.b16 %v809
        %v2243 = vunpack.c.l.b16 %v810
        %v2244 = vunpack.c.h.b16 %v810
        %v2245 = vunpack.c.l.b16 %v811
        %v2246 = vunpack.c.h.b16 %v811
        %v2247 = vunpack.c.l.b16 %v812
        %v2248 = vunpack.c.h.b16 %v812
        %v2249 = vunpack.c.l.b16 %v813
        %v2250 = vunpack.c.h.b16 %v813
        %v2251 = vunpack.c.l.b16 %v814
        %v2252 = vunpack.c.h.b16 %v814
        %v2253 = vunpack.c.l.b16 %v815
        %v2254 = vunpack.c.h.b16 %v815
        %v2255 = vunpack.c.l.b16 %v816
        %v2256 = vunpack.c.h.b16 %v816
        %v2257 = vunpack.c.l.b16 %v817
        %v2258 = vunpack.c.h.b16 %v817
        %v2259 = vunpack.c.l.b16 %v818
        %v2260 = vunpack.c.h.b16 %v818
        %v2261 = vunpack.c.l.b16 %v819
        %v2262 = vunpack.c.h.b16 %v819
        %v2263 = vunpack.c.l.b16 %v820
        %v2264 = vunpack.c.h.b16 %v820
        %v2265 = vunpack.c.l.b16 %v821
        %v2266 = vunpack.c.h.b16 %v821
        %v2267 = vunpack.c.l.b16 %v822
        %v2268 = vunpack.c.h.b16 %v822
        %v2269 = vunpack.c.l.b16 %v823
        %v2270 = vunpack.c.h.b16 %v823
        %v2271 = vunpack.c.l.b16 %v824
        %v2272 = vunpack.c.h.b16 %v824
        %v2273 = vunpack.c.l.b16 %v825
        %v2274 = vunpack.c.h.b16 %v825
        %v2275 = vunpack.c.l.b16 %v826
        %v2276 = vunpack.c.h.b16 %v826
        %v2277 = vunpack.c.l.b16 %v827
        %v2278 = vunpack.c.h.b16 %v827
        %v2279 = vunpack.c.l.b16 %v828
        %v2280 = vunpack.c.h.b16 %v828
        %v2281 = vunpack.c.l.b16 %v829
        %v2282 = vunpack.c.h.b16 %v829
        %v2283 = vunpack.c.l.b16 %v830
        %v2284 = vunpack.c.h.b16 %v830
        %v2285 = vunpack.c.l.b16 %v831
        %v2286 = vunpack.c.h.b16 %v831
        %v2287 = vunpack.c.l.b16 %v832
        %v2288 = vunpack.c.h.b16 %v832
        %v2289 = vunpack.c.l.b16 %v833
        %v2290 = vunpack.c.h.b16 %v833
        %v2291 = vunpack.c.l.b16 %v834
        %v2292 = vunpack.c.h.b16 %v834
        %v2293 = vunpack.c.l.b16 %v835
        %v2294 = vunpack.c.h.b16 %v835
        %v2295 = vunpack.c.l.b16 %v836
        %v2296 = vunpack.c.h.b16 %v836
        %v2297 = vunpack.c.l.b16 %v837
        %v2298 = vunpack.c.h.b16 %v837
        %v2299 = vunpack.c.l.b16 %v838
        %v2300 = vunpack.c.h.b16 %v838
        %v2301 = vunpack.c.l.b16 %v839
        %v2302 = vunpack.c.h.b16 %v839
        %v2303 = vunpack.c.l.b16 %v840
        %v2304 = vunpack.c.h.b16 %v840
        %v2305 = vunpack.c.l.b16 %v841
        %v2306 = vunpack.c.h.b16 %v841
        %v2307 = vunpack.c.l.b16 %v842
        %v2308 = vunpack.c.h.b16 %v842
        %v2309 = vunpack.c.l.b16 %v843
        %v2310 = vunpack.c.h.b16 %v843
        %v2311 = vunpack.c.l.b16 %v844
        %v2312 = vunpack.c.h.b16 %v844
        %v2313 = vunpack.c.l.b16 %v845
        %v2314 = vunpack.c.h.b16 %v845
        %v2315 = vunpack.c.l.b16 %v846
        %v2316 = vunpack.c.h.b16 %v846
        %v2317 = vunpack.c.l.b16 %v847
        %v2318 = vunpack.c.h.b16 %v847
        %v2319 = vunpack.c.l.b16 %v848
        %v2320 = vunpack.c.h.b16 %v848
        %v2321 = vunpack.c.l.b16 %v849
        %v2322 = vunpack.c.h.b16 %v849
        %v2323 = vunpack.c.l.b16 %v850
        %v2324 = vunpack.c.h.b16 %v850
        %v2325 = vunpack.c.l.b16 %v851
        %v2326 = vunpack.c.h.b16 %v851
        %v2327 = vunpack.c.l.b16 %v852
        %v2328 = vunpack.c.h.b16 %v852
        %v2329 = vunpack.c.l.b16 %v853
        %v2330 = vunpack.c.h.b16 %v853
        %v2331 = vunpack.c.l.b16 %v854
        %v2332 = vunpack.c.h.b16 %v854
        %v2333 = vunpack.c.l.b16 %v855
        %v2334 = vunpack.c.h.b16 %v855
        %v2335 = vunpack.c.l.b16 %v856
        %v2336 = vunpack.c.h.b16 %v856
        %v2337 = vunpack.c.l.b16 %v857
        %v2338 = vunpack.c.h.b16 %v857
        %v2339 = vunpack.c.l.b16 %v858
        %v2340 = vunpack.c.h.b16 %v858
        %v2341 = vunpack.c.l.b16 %v859
        %v2342 = vunpack.c.h.b16 %v859
        %v2343 = vunpack.c.l.b16 %v860
        %v2344 = vunpack.c.h.b16 %v860
        %v2345 = vunpack.c.l.b16 %v861
        %v2346 = vunpack.c.h.b16 %v861
        %v2347 = vunpack.c.l.b16 %v862
        %v2348 = vunpack.c.h.b16 %v862
        %v2349 = vunpack.c.l.b16 %v863
        %v2350 = vunpack.c.h.b16 %v863
        %v2351 = vunpack.c.l.b16 %v864
        %v2352 = vunpack.c.h.b16 %v864
        %v2353 = vunpack.c.l.b16 %v865
        %v2354 = vunpack.c.h.b16 %v865
        %v2355 = vunpack.c.l.b16 %v866
        %v2356 = vunpack.c.h.b16 %v866
        %v2357 = vunpack.c.l.b16 %v867
        %v2358 = vunpack.c.h.b16 %v867
        %v2359 = vunpack.c.l.b16 %v868
        %v2360 = vunpack.c.h.b16 %v868
        %v2361 = vunpack.c.l.b16 %v869
        %v2362 = vunpack.c.h.b16 %v869
        %v2363 = vunpack.c.l.b16 %v870
        %v2364 = vunpack.c.h.b16 %v870
        %v2365 = vunpack.c.l.b16 %v871
        %v2366 = vunpack.c.h.b16 %v871
        %v2367 = vunpack.c.l.b16 %v872
        %v2368 = vunpack.c.h.b16 %v872
        %v2369 = vunpack.c.l.b16 %v873
        %v2370 = vunpack.c.h.b16 %v873
        %v2371 = vunpack.c.l.b16 %v874
        %v2372 = vunpack.c.h.b16 %v874
        %v2373 = vunpack.c.l.b16 %v875
        %v2374 = vunpack.c.h.b16 %v875
        %v2375 = vunpack.c.l.b16 %v876
        %v2376 = vunpack.c.h.b16 %v876
        %v2377 = vunpack.c.l.b16 %v877
        %v2378 = vunpack.c.h.b16 %v877
        %v2379 = vunpack.c.l.b16 %v878
        %v2380 = vunpack.c.h.b16 %v878
        %v2381 = vunpack.c.l.b16 %v879
        %v2382 = vunpack.c.h.b16 %v879
        %v2383 = vunpack.c.l.b16 %v880
        %v2384 = vunpack.c.h.b16 %v880
        %v2385 = vunpack.c.l.b16 %v881
        %v2386 = vunpack.c.h.b16 %v881
        %v2387 = vunpack.c.l.b16 %v882
        %v2388 = vunpack.c.h.b16 %v882
        %v2389 = vunpack.c.l.b16 %v883
        %v2390 = vunpack.c.h.b16 %v883
        %v2391 = vunpack.c.l.b16 %v884
        %v2392 = vunpack.c.h.b16 %v884
        %v2393 = vunpack.c.l.b16 %v885
        %v2394 = vunpack.c.h.b16 %v885
        %v2395 = vunpack.c.l.b16 %v886
        %v2396 = vunpack.c.h.b16 %v886
        %v2397 = vunpack.c.l.b16 %v887
        %v2398 = vunpack.c.h.b16 %v887
        %v2399 = vunpack.c.l.b16 %v888
        %v2400 = vunpack.c.h.b16 %v888
        %v2401 = vunpack.c.l.b16 %v889
        %v2402 = vunpack.c.h.b16 %v889
        %v2403 = vunpack.c.l.b16 %v890
        %v2404 = vunpack.c.h.b16 %v890
        %v2405 = vunpack.c.l.b16 %v891
        %v2406 = vunpack.c.h.b16 %v891
        %v2407 = vunpack.c.l.b16 %v892
        %v2408 = vunpack.c.h.b16 %v892
        %v2409 = vunpack.c.l.b16 %v893
        %v2410 = vunpack.c.h.b16 %v893
        %v2411 = vunpack.c.l.b16 %v894
        %v2412 = vunpack.c.h.b16 %v894
        %v2413 = vunpack.c.l.b16 %v895
        %v2414 = vunpack.c.h.b16 %v895
        %v2415 = vunpack.c.l.b16 %v896
        %v2416 = vunpack.c.h.b16 %v896
        %v2417 = vunpack.c.l.b16 %v897
        %v2418 = vunpack.c.h.b16 %v897
        %v2419 = vunpack.c.l.b16 %v898
        %v2420 = vunpack.c.h.b16 %v898
        %v2421 = vunpack.c.l.b16 %v899
        %v2422 = vunpack.c.h.b16 %v899
        %v2423 = vunpack.c.l.b16 %v900
        %v2424 = vunpack.c.h.b16 %v900
        %v2425 = vunpack.c.l.b16 %v901
        %v2426 = vunpack.c.h.b16 %v901
        %v2427 = vunpack.c.l.b16 %v902
        %v2428 = vunpack.c.h.b16 %v902
        %v2429 = vunpack.c.l.b16 %v903
        %v2430 = vunpack.c.h.b16 %v903
        %v2431 = vunpack.c.l.b16 %v904
        %v2432 = vunpack.c.h.b16 %v904
        %v2433 = vunpack.c.l.b16 %v905
        %v2434 = vunpack.c.h.b16 %v905
        %v2435 = vunpack.c.l.b16 %v906
        %v2436 = vunpack.c.h.b16 %v906
        %v2437 = vunpack.c.l.b16 %v907
        %v2438 = vunpack.c.h.b16 %v907
        %v2439 = vunpack.c.l.b16 %v908
        %v2440 = vunpack.c.h.b16 %v908
        %v2441 = vunpack.c.l.b16 %v909
        %v2442 = vunpack.c.h.b16 %v909
        %v2443 = vunpack.c.l.b16 %v910
        %v2444 = vunpack.c.h.b16 %v910
        %v2445 = vunpack.c.l.b16 %v911
        %v2446 = vunpack.c.h.b16 %v911
        %v2447 = vunpack.c.l.b16 %v912
        %v2448 = vunpack.c.h.b16 %v912
        %v2449 = vunpack.c.l.b16 %v913
        %v2450 = vunpack.c.h.b16 %v913
        %v2451 = vunpack.c.l.b16 %v914
        %v2452 = vunpack.c.h.b16 %v914
        %v2453 = vunpack.c.l.b16 %v915
        %v2454 = vunpack.c.h.b16 %v915
        %v2455 = vunpack.c.l.b16 %v916
        %v2456 = vunpack.c.h.b16 %v916
        %v2457 = vunpack.c.l.b16 %v917
        %v2458 = vunpack.c.h.b16 %v917
        %v2459 = vunpack.c.l.b16 %v918
        %v2460 = vunpack.c.h.b16 %v918
        %v2461 = vunpack.c.l.b16 %v919
        %v2462 = vunpack.c.h.b16 %v919
        %v2463 = vunpack.c.l.b16 %v920
        %v2464 = vunpack.c.h.b16 %v920
        %v2465 = vunpack.c.l.b16 %v921
        %v2466 = vunpack.c.h.b16 %v921
        %v2467 = vunpack.c.l.b16 %v922
        %v2468 = vunpack.c.h.b16 %v922
        %v2469 = vunpack.c.l.b16 %v923
        %v2470 = vunpack.c.h.b16 %v923
        %v2471 = vunpack.c.l.b16 %v924
        %v2472 = vunpack.c.h.b16 %v924
        %v2473 = vunpack.c.l.b16 %v925
        %v2474 = vunpack.c.h.b16 %v925
        %v2475 = vunpack.c.l.b16 %v926
        %v2476 = vunpack.c.h.b16 %v926
        %v2477 = vunpack.c.l.b16 %v927
        %v2478 = vunpack.c.h.b16 %v927
        %v2479 = vunpack.c.l.b16 %v928
        %v2480 = vunpack.c.h.b16 %v928
        %v2481 = vunpack.c.l.b16 %v929
        %v2482 = vunpack.c.h.b16 %v929
        %v2483 = vunpack.c.l.b16 %v930
        %v2484 = vunpack.c.h.b16 %v930
        %v2485 = vunpack.c.l.b16 %v931
        %v2486 = vunpack.c.h.b16 %v931
        %v2487 = vunpack.c.l.b16 %v932
        %v2488 = vunpack.c.h.b16 %v932
        %v2489 = vunpack.c.l.b16 %v933
        %v2490 = vunpack.c.h.b16 %v933
        %v2491 = vunpack.c.l.b16 %v934
        %v2492 = vunpack.c.h.b16 %v934
        %v2493 = vunpack.c.l.b16 %v935
        %v2494 = vunpack.c.h.b16 %v935
        %v2495 = vunpack.c.l.b16 %v936
        %v2496 = vunpack.c.h.b16 %v936
        %v2497 = vunpack.c.l.b16 %v937
        %v2498 = vunpack.c.h.b16 %v937
        %v2499 = vunpack.c.l.b16 %v938
        %v2500 = vunpack.c.h.b16 %v938
        %v2501 = vunpack.c.l.b16 %v939
        %v2502 = vunpack.c.h.b16 %v939
        %v2503 = vunpack.c.l.b16 %v940
        %v2504 = vunpack.c.h.b16 %v940
        %v2505 = vunpack.c.l.b16 %v941
        %v2506 = vunpack.c.h.b16 %v941
        %v2507 = vunpack.c.l.b16 %v942
        %v2508 = vunpack.c.h.b16 %v942
        %v2509 = vunpack.c.l.b16 %v943
        %v2510 = vunpack.c.h.b16 %v943
        %v2511 = vunpack.c.l.b16 %v944
        %v2512 = vunpack.c.h.b16 %v944
        %v2513 = vunpack.c.l.b16 %v945
        %v2514 = vunpack.c.h.b16 %v945
        %v2515 = vunpack.c.l.b16 %v946
        %v2516 = vunpack.c.h.b16 %v946
        %v2517 = vunpack.c.l.b16 %v947
        %v2518 = vunpack.c.h.b16 %v947
        %v2519 = vunpack.c.l.b16 %v948
        %v2520 = vunpack.c.h.b16 %v948
        %v2521 = vunpack.c.l.b16 %v949
        %v2522 = vunpack.c.h.b16 %v949
        %v2523 = vunpack.c.l.b16 %v950
        %v2524 = vunpack.c.h.b16 %v950
        %v2525 = vunpack.c.l.b16 %v951
        %v2526 = vunpack.c.h.b16 %v951
        %v2527 = vunpack.c.l.b16 %v952
        %v2528 = vunpack.c.h.b16 %v952
        %v2529 = vunpack.c.l.b16 %v953
        %v2530 = vunpack.c.h.b16 %v953
        %v2531 = vunpack.c.l.b16 %v954
        %v2532 = vunpack.c.h.b16 %v954
        %v2533 = vunpack.c.l.b16 %v955
        %v2534 = vunpack.c.h.b16 %v955
        %v2535 = vunpack.c.l.b16 %v956
        %v2536 = vunpack.c.h.b16 %v956
        %v2537 = vunpack.c.l.b16 %v957
        %v2538 = vunpack.c.h.b16 %v957
        %v2539 = vunpack.c.l.b16 %v958
        %v2540 = vunpack.c.h.b16 %v958
        %v2541 = vunpack.c.l.b16 %v959
        %v2542 = vunpack.c.h.b16 %v959
        %v2543 = vunpack.c.l.b16 %v960
        %v2544 = vunpack.c.h.b16 %v960
        %v2545 = vunpack.c.l.b16 %v961
        %v2546 = vunpack.c.h.b16 %v961
        %v2547 = vunpack.c.l.b16 %v962
        %v2548 = vunpack.c.h.b16 %v962
        %v2549 = vunpack.c.l.b16 %v963
        %v2550 = vunpack.c.h.b16 %v963
        %v2551 = vunpack.c.l.b16 %v964
        %v2552 = vunpack.c.h.b16 %v964
        %v2553 = vunpack.c.l.b16 %v965
        %v2554 = vunpack.c.h.b16 %v965
        %v2555 = vunpack.c.l.b16 %v966
        %v2556 = vunpack.c.h.b16 %v966
        %v2557 = vunpack.c.l.b16 %v967
        %v2558 = vunpack.c.h.b16 %v967
        %v2559 = vunpack.c.l.b16 %v968
        %v2560 = vunpack.c.h.b16 %v968
        %v2561 = vunpack.c.l.b16 %v969
        %v2562 = vunpack.c.h.b16 %v969
        %v2563 = vunpack.c.l.b16 %v970
        %v2564 = vunpack.c.h.b16 %v970
        %v2565 = vunpack.c.l.b16 %v971
        %v2566 = vunpack.c.h.b16 %v971
        %v2567 = vunpack.c.l.b16 %v972
        %v2568 = vunpack.c.h.b16 %v972
        %v2569 = vunpack.c.l.b16 %v973
        %v2570 = vunpack.c.h.b16 %v973
        %v2571 = vunpack.c.l.b16 %v974
        %v2572 = vunpack.c.h.b16 %v974
        %v2573 = vunpack.c.l.b16 %v975
        %v2574 = vunpack.c.h.b16 %v975
        %v2575 = vunpack.c.l.b16 %v976
        %v2576 = vunpack.c.h.b16 %v976
        %v2577 = vunpack.c.l.b16 %v977
        %v2578 = vunpack.c.h.b16 %v977
        %v2579 = vunpack.c.l.b16 %v978
        %v2580 = vunpack.c.h.b16 %v978
        %v2581 = vunpack.c.l.b16 %v979
        %v2582 = vunpack.c.h.b16 %v979
        %v2583 = vunpack.c.l.b16 %v980
        %v2584 = vunpack.c.h.b16 %v980
        %v2585 = vunpack.c.l.b16 %v981
        %v2586 = vunpack.c.h.b16 %v981
        %v2587 = vunpack.c.l.b16 %v982
        %v2588 = vunpack.c.h.b16 %v982
        %v2589 = vunpack.c.l.b16 %v983
        %v2590 = vunpack.c.h.b16 %v983
        %v2591 = vunpack.c.l.b16 %v984
        %v2592 = vunpack.c.h.b16 %v984
        %v2593 = vunpack.c.l.b16 %v985
        %v2594 = vunpack.c.h.b16 %v985
        %v2595 = vunpack.c.l.b16 %v986
        %v2596 = vunpack.c.h.b16 %v986
        %v2597 = vunpack.c.l.b16 %v987
        %v2598 = vunpack.c.h.b16 %v987
        %v2599 = vunpack.c.l.b16 %v988
        %v2600 = vunpack.c.h.b16 %v988
        %v2601 = vunpack.c.l.b16 %v989
        %v2602 = vunpack.c.h.b16 %v989
        %v2603 = vunpack.c.l.b16 %v990
        %v2604 = vunpack.c.h.b16 %v990
        %v2605 = vunpack.c.l.b16 %v991
        %v2606 = vunpack.c.h.b16 %v991
        %v2607 = vunpack.c.l.b16 %v992
        %v2608 = vunpack.c.h.b16 %v992
        %v2609 = vunpack.c.l.b16 %v993
        %v2610 = vunpack.c.h.b16 %v993
        %v2611 = vunpack.c.l.b16 %v994
        %v2612 = vunpack.c.h.b16 %v994
        %v2613 = vunpack.c.l.b16 %v995
        %v2614 = vunpack.c.h.b16 %v995
        %v2615 = vunpack.c.l.b16 %v996
        %v2616 = vunpack.c.h.b16 %v996
        %v2617 = vunpack.c.l.b16 %v997
        %v2618 = vunpack.c.h.b16 %v997
        %v2619 = vunpack.c.l.b16 %v998
        %v2620 = vunpack.c.h.b16 %v998
        %v2621 = vunpack.c.l.b16 %v999
        %v2622 = vunpack.c.h.b16 %v999
        %v2623 = vunpack.c.l.b16 %v1000
        %v2624 = vunpack.c.h.b16 %v1000
        %v2625 = vunpack.c.l.b16 %v1001
        %v2626 = vunpack.c.h.b16 %v1001
        %v2627 = vunpack.c.l.b16 %v1002
        %v2628 = vunpack.c.h.b16 %v1002
        %v2629 = vunpack.c.l.b16 %v1003
        %v2630 = vunpack.c.h.b16 %v1003
        %v2631 = vunpack.c.l.b16 %v1004
        %v2632 = vunpack.c.h.b16 %v1004
        %v2633 = vunpack.c.l.b16 %v1005
        %v2634 = vunpack.c.h.b16 %v1005
        %v2635 = vunpack.c.l.b16 %v1006
        %v2636 = vunpack.c.h.b16 %v1006
        %v2637 = vunpack.c.l.b16 %v1007
        %v2638 = vunpack.c.h.b16 %v1007
        %v2639 = vunpack.c.l.b16 %v1008
        %v2640 = vunpack.c.h.b16 %v1008
        %v2641 = vunpack.c.l.b16 %v1009
        %v2642 = vunpack.c.h.b16 %v1009
        %v2643 = vunpack.c.l.b16 %v1010
        %v2644 = vunpack.c.h.b16 %v1010
        %v2645 = vunpack.c.l.b16 %v1011
        %v2646 = vunpack.c.h.b16 %v1011
        %v2647 = vunpack.c.l.b16 %v1012
        %v2648 = vunpack.c.h.b16 %v1012
        %v2649 = vunpack.c.l.b16 %v1013
        %v2650 = vunpack.c.h.b16 %v1013
        %v2651 = vunpack.c.l.b16 %v1014
        %v2652 = vunpack.c.h.b16 %v1014
        %v2653 = vunpack.c.l.b16 %v1015
        %v2654 = vunpack.c.h.b16 %v1015
        %v2655 = vunpack.c.l.b16 %v1016
        %v2656 = vunpack.c.h.b16 %v1016
        %v2657 = vunpack.c.l.b16 %v1017
        %v2658 = vunpack.c.h.b16 %v1017
        %v2659 = vunpack.c.l.b16 %v1018
        %v2660 = vunpack.c.h.b16 %v1018
        %v2661 = vunpack.c.l.b16 %v1019
        %v2662 = vunpack.c.h.b16 %v1019
        %v2663 = vunpack.c.l.b16 %v1020
        %v2664 = vunpack.c.h.b16 %v1020
        %v2665 = vunpack.c.l.b16 %v1021
        %v2666 = vunpack.c.h.b16 %v1021
        %v2667 = vunpack.c.l.b16 %v1022
        %v2668 = vunpack.c.h.b16 %v1022
        %v2669 = vunpack.c.l.b16 %v1023
        %v2670 = vunpack.c.h.b16 %v1023
        %v2671 = vunpack.c.l.b16 %v1024
        %v2672 = vunpack.c.h.b16 %v1024
        %v2673 = vunpack.c.l.b16 %v1025
        %v2674 = vunpack.c.h.b16 %v1025
        %v2675 = vunpack.c.l.b16 %v1026
        %v2676 = vunpack.c.h.b16 %v1026
        %v2677 = vunpack.c.l.b16 %v1027
        %v2678 = vunpack.c.h.b16 %v1027
        %v2679 = vunpack.c.l.b16 %v1028
        %v2680 = vunpack.c.h.b16 %v1028
        %v2681 = vunpack.c.l.b16 %v1029
        %v2682 = vunpack.c.h.b16 %v1029
        %v2683 = vunpack.c.l.b16 %v1030
        %v2684 = vunpack.c.h.b16 %v1030
        %v2685 = vunpack.c.l.b16 %v1031
        %v2686 = vunpack.c.h.b16 %v1031
        %v2687 = vunpack.c.l.b16 %v1032
        %v2688 = vunpack.c.h.b16 %v1032
        %v2689 = vunpack.c.l.b16 %v1033
        %v2690 = vunpack.c.h.b16 %v1033
        %v2691 = vunpack.c.l.b16 %v1034
        %v2692 = vunpack.c.h.b16 %v1034
        %v2693 = vunpack.c.l.b16 %v1035
        %v2694 = vunpack.c.h.b16 %v1035
        %v2695 = vunpack.c.l.b16 %v1036
        %v2696 = vunpack.c.h.b16 %v1036
        %v2697 = vunpack.c.l.b16 %v1037
        %v2698 = vunpack.c.h.b16 %v1037
        %v2699 = vunpack.c.l.b16 %v1038
        %v2700 = vunpack.c.h.b16 %v1038
        %v2701 = vunpack.c.l.b16 %v1039
        %v2702 = vunpack.c.h.b16 %v1039
        %v2703 = vunpack.c.l.b16 %v1040
        %v2704 = vunpack.c.h.b16 %v1040
        %v2705 = vunpack.c.l.b16 %v1041
        %v2706 = vunpack.c.h.b16 %v1041
        %v2707 = vunpack.c.l.b16 %v1042
        %v2708 = vunpack.c.h.b16 %v1042
        %v2709 = vunpack.c.l.b16 %v1043
        %v2710 = vunpack.c.h.b16 %v1043
        %v2711 = vunpack.c.l.b16 %v1044
        %v2712 = vunpack.c.h.b16 %v1044
        %v2713 = vunpack.c.l.b16 %v1045
        %v2714 = vunpack.c.h.b16 %v1045
        %v2715 = vunpack.c.l.b16 %v1046
        %v2716 = vunpack.c.h.b16 %v1046
        %v2717 = vunpack.c.l.b16 %v1047
        %v2718 = vunpack.c.h.b16 %v1047
        %v2719 = vunpack.c.l.b16 %v1048
        %v2720 = vunpack.c.h.b16 %v1048
        %v2721 = vunpack.c.l.b16 %v1049
        %v2722 = vunpack.c.h.b16 %v1049
        %v2723 = vunpack.c.l.b16 %v1050
        %v2724 = vunpack.c.h.b16 %v1050
        %v2725 = vunpack.c.l.b16 %v1051
        %v2726 = vunpack.c.h.b16 %v1051
        %v2727 = vunpack.c.l.b16 %v1052
        %v2728 = vunpack.c.h.b16 %v1052
        %v2729 = vunpack.c.l.b16 %v1053
        %v2730 = vunpack.c.h.b16 %v1053
        %v2731 = vunpack.c.l.b16 %v1054
        %v2732 = vunpack.c.h.b16 %v1054
        %v2733 = vunpack.c.l.b16 %v1055
        %v2734 = vunpack.c.h.b16 %v1055
        %v2735 = vunpack.c.l.b16 %v1056
        %v2736 = vunpack.c.h.b16 %v1056
        %v2737 = vunpack.c.l.b16 %v1057
        %v2738 = vunpack.c.h.b16 %v1057
        %v2739 = vunpack.c.l.b16 %v1058
        %v2740 = vunpack.c.h.b16 %v1058
        %v2741 = vunpack.c.l.b16 %v1059
        %v2742 = vunpack.c.h.b16 %v1059
        %v2743 = vunpack.c.l.b16 %v1060
        %v2744 = vunpack.c.h.b16 %v1060
        %v2745 = vunpack.c.l.b16 %v1061
        %v2746 = vunpack.c.h.b16 %v1061
        %v2747 = vunpack.c.l.b16 %v1062
        %v2748 = vunpack.c.h.b16 %v1062
        %v2749 = vunpack.c.l.b16 %v1063
        %v2750 = vunpack.c.h.b16 %v1063
        %v2751 = vunpack.c.l.b16 %v1064
        %v2752 = vunpack.c.h.b16 %v1064
        %v2753 = vunpack.c.l.b16 %v1065
        %v2754 = vunpack.c.h.b16 %v1065
        %v2755 = vunpack.c.l.b16 %v1066
        %v2756 = vunpack.c.h.b16 %v1066
        %v2757 = vunpack.c.l.b16 %v1067
        %v2758 = vunpack.c.h.b16 %v1067
        %v2759 = vunpack.c.l.b16 %v1068
        %v2760 = vunpack.c.h.b16 %v1068
        %v2761 = vunpack.c.l.b16 %v1069
        %v2762 = vunpack.c.h.b16 %v1069
        %v2763 = vunpack.c.l.b16 %v1070
        %v2764 = vunpack.c.h.b16 %v1070
        %v2765 = vunpack.c.l.b16 %v1071
        %v2766 = vunpack.c.h.b16 %v1071
        %v2767 = vunpack.c.l.b16 %v1072
        %v2768 = vunpack.c.h.b16 %v1072
        %v2769 = vunpack.c.l.b16 %v1073
        %v2770 = vunpack.c.h.b16 %v1073
        %v2771 = vunpack.c.l.b16 %v1074
        %v2772 = vunpack.c.h.b16 %v1074
        %v2773 = vunpack.c.l.b16 %v1075
        %v2774 = vunpack.c.h.b16 %v1075
        %v2775 = vunpack.c.l.b16 %v1076
        %v2776 = vunpack.c.h.b16 %v1076
        %v2777 = vunpack.c.l.b16 %v1077
        %v2778 = vunpack.c.h.b16 %v1077
        %v2779 = vunpack.c.l.b16 %v1078
        %v2780 = vunpack.c.h.b16 %v1078
        %v2781 = vunpack.c.l.b16 %v1079
        %v2782 = vunpack.c.h.b16 %v1079
        %v2783 = vunpack.c.l.b16 %v1080
        %v2784 = vunpack.c.h.b16 %v1080
        %v2785 = vunpack.c.l.b16 %v1081
        %v2786 = vunpack.c.h.b16 %v1081
        %v2787 = vunpack.c.l.b16 %v1082
        %v2788 = vunpack.c.h.b16 %v1082
        %v2789 = vunpack.c.l.b16 %v1083
        %v2790 = vunpack.c.h.b16 %v1083
        %v2791 = vunpack.c.l.b16 %v1084
        %v2792 = vunpack.c.h.b16 %v1084
        %v2793 = vunpack.c.l.b16 %v1085
        %v2794 = vunpack.c.h.b16 %v1085
        %v2795 = vunpack.c.l.b16 %v1086
        %v2796 = vunpack.c.h.b16 %v1086
        %v2797 = vunpack.c.l.b16 %v1087
        %v2798 = vunpack.c.h.b16 %v1087
        %v2799 = vunpack.c.l.b16 %v1088
        %v2800 = vunpack.c.h.b16 %v1088
        %v2801 = vunpack.c.l.b16 %v1089
        %v2802 = vunpack.c.h.b16 %v1089
        %v2803 = vunpack.c.l.b16 %v1090
        %v2804 = vunpack.c.h.b16 %v1090
        %v2805 = vunpack.c.l.b16 %v1091
        %v2806 = vunpack.c.h.b16 %v1091
        %v2807 = vunpack.c.l.b16 %v1092
        %v2808 = vunpack.c.h.b16 %v1092
        %v2809 = vunpack.c.l.b16 %v1093
        %v2810 = vunpack.c.h.b16 %v1093
        %v2811 = vunpack.c.l.b16 %v1094
        %v2812 = vunpack.c.h.b16 %v1094
        %v2813 = vunpack.c.l.b16 %v1095
        %v2814 = vunpack.c.h.b16 %v1095
        %v2815 = vunpack.c.l.b16 %v1096
        %v2816 = vunpack.c.h.b16 %v1096
        %v2817 = vunpack.c.l.b16 %v1097
        %v2818 = vunpack.c.h.b16 %v1097
        %v2819 = vunpack.c.l.b16 %v1098
        %v2820 = vunpack.c.h.b16 %v1098
        %v2821 = vunpack.c.l.b16 %v1099
        %v2822 = vunpack.c.h.b16 %v1099
        %v2823 = vunpack.c.l.b16 %v1100
        %v2824 = vunpack.c.h.b16 %v1100
        %v2825 = vunpack.c.l.b16 %v1101
        %v2826 = vunpack.c.h.b16 %v1101
        %v2827 = vunpack.c.l.b16 %v1102
        %v2828 = vunpack.c.h.b16 %v1102
        %v2829 = vunpack.c.l.b16 %v1103
        %v2830 = vunpack.c.h.b16 %v1103
        %v2831 = vunpack.c.l.b16 %v1104
        %v2832 = vunpack.c.h.b16 %v1104
        %v2833 = vunpack.c.l.b16 %v1105
        %v2834 = vunpack.c.h.b16 %v1105
        %v2835 = vunpack.c.l.b16 %v1106
        %v2836 = vunpack.c.h.b16 %v1106
        %v2837 = vunpack.c.l.b16 %v1107
        %v2838 = vunpack.c.h.b16 %v1107
        %v2839 = vunpack.c.l.b16 %v1108
        %v2840 = vunpack.c.h.b16 %v1108
        %v2841 = vunpack.c.l.b16 %v1109
        %v2842 = vunpack.c.h.b16 %v1109
        %v2843 = vunpack.c.l.b16 %v1110
        %v2844 = vunpack.c.h.b16 %v1110
        %v2845 = vunpack.c.l.b16 %v1111
        %v2846 = vunpack.c.h.b16 %v1111
        %v2847 = vunpack.c.l.b16 %v1112
        %v2848 = vunpack.c.h.b16 %v1112
        %v2849 = vunpack.c.l.b16 %v1113
        %v2850 = vunpack.c.h.b16 %v1113
        %v2851 = vunpack.c.l.b16 %v1114
        %v2852 = vunpack.c.h.b16 %v1114
        %v2853 = vunpack.c.l.b16 %v1115
        %v2854 = vunpack.c.h.b16 %v1115
        %v2855 = vunpack.c.l.b16 %v1116
        %v2856 = vunpack.c.h.b16 %v1116
        %v2857 = vunpack.c.l.b16 %v1117
        %v2858 = vunpack.c.h.b16 %v1117
        %v2859 = vunpack.c.l.b16 %v1118
        %v2860 = vunpack.c.h.b16 %v1118
        %v2861 = vunpack.c.l.b16 %v1119
        %v2862 = vunpack.c.h.b16 %v1119
        %v2863 = vunpack.c.l.b16 %v1120
        %v2864 = vunpack.c.h.b16 %v1120
        %v2865 = vunpack.c.l.b16 %v1121
        %v2866 = vunpack.c.h.b16 %v1121
        %v2867 = vunpack.c.l.b16 %v1122
        %v2868 = vunpack.c.h.b16 %v1122
        %v2869 = vunpack.c.l.b16 %v1123
        %v2870 = vunpack.c.h.b16 %v1123
        %v2871 = vunpack.c.l.b16 %v1124
        %v2872 = vunpack.c.h.b16 %v1124
        %v2873 = vunpack.c.l.b16 %v1125
        %v2874 = vunpack.c.h.b16 %v1125
        %v2875 = vunpack.c.l.b16 %v1126
        %v2876 = vunpack.c.h.b16 %v1126
        %v2877 = vunpack.c.l.b16 %v1127
        %v2878 = vunpack.c.h.b16 %v1127
        %v2879 = vunpack.c.l.b16 %v1128
        %v2880 = vunpack.c.h.b16 %v1128
        %v2881 = vunpack.c.l.b16 %v1129
        %v2882 = vunpack.c.h.b16 %v1129
        %v2883 = vunpack.c.l.b16 %v1130
        %v2884 = vunpack.c.h.b16 %v1130
        %v2885 = vunpack.c.l.b16 %v1131
        %v2886 = vunpack.c.h.b16 %v1131
        %v2887 = vunpack.c.l.b16 %v1132
        %v2888 = vunpack.c.h.b16 %v1132
        %v2889 = vunpack.c.l.b16 %v1133
        %v2890 = vunpack.c.h.b16 %v1133
        %v2891 = vunpack.c.l.b16 %v1134
        %v2892 = vunpack.c.h.b16 %v1134
        %v2893 = vunpack.c.l.b16 %v1135
        %v2894 = vunpack.c.h.b16 %v1135
        %v2895 = vunpack.c.l.b16 %v1136
        %v2896 = vunpack.c.h.b16 %v1136
        %v2897 = vunpack.c.l.b16 %v1137
        %v2898 = vunpack.c.h.b16 %v1137
        %v2899 = vunpack.c.l.b16 %v1138
        %v2900 = vunpack.c.h.b16 %v1138
        %v2901 = vunpack.c.l.b16 %v1139
        %v2902 = vunpack.c.h.b16 %v1139
        %v2903 = vunpack.c.l.b16 %v1140
        %v2904 = vunpack.c.h.b16 %v1140
        %v2905 = vunpack.c.l.b16 %v1141
        %v2906 = vunpack.c.h.b16 %v1141
        %v2907 = vunpack.c.l.b16 %v1142
        %v2908 = vunpack.c.h.b16 %v1142
        %v2909 = vunpack.c.l.b16 %v1143
        %v2910 = vunpack.c.h.b16 %v1143
        %v2911 = vunpack.c.l.b16 %v1144
        %v2912 = vunpack.c.h.b16 %v1144
        %v2913 = vunpack.c.l.b16 %v1145
        %v2914 = vunpack.c.h.b16 %v1145
        %v2915 = vunpack.c.l.b16 %v1146
        %v2916 = vunpack.c.h.b16 %v1146
        %v2917 = vunpack.c.l.b16 %v1147
        %v2918 = vunpack.c.h.b16 %v1147
        %v2919 = vunpack.c.l.b16 %v1148
        %v2920 = vunpack.c.h.b16 %v1148
        %v2921 = vunpack.c.l.b16 %v1149
        %v2922 = vunpack.c.h.b16 %v1149
        %v2923 = vunpack.c.l.b16 %v1150
        %v2924 = vunpack.c.h.b16 %v1150
        %v2925 = vunpack.c.l.b16 %v1151
        %v2926 = vunpack.c.h.b16 %v1151
        %v2927 = vunpack.c.l.b16 %v1152
        %v2928 = vunpack.c.h.b16 %v1152
        %v2929 = vunpack.c.l.b16 %v1153
        %v2930 = vunpack.c.h.b16 %v1153
        %v2931 = vunpack.c.l.b16 %v1154
        %v2932 = vunpack.c.h.b16 %v1154
        %v2933 = vunpack.c.l.b16 %v1155
        %v2934 = vunpack.c.h.b16 %v1155
        %v2935 = vunpack.c.l.b16 %v1156
        %v2936 = vunpack.c.h.b16 %v1156
        %v2937 = vunpack.c.l.b16 %v1157
        %v2938 = vunpack.c.h.b16 %v1157
        %v2939 = vunpack.c.l.b16 %v1158
        %v2940 = vunpack.c.h.b16 %v1158
        %v2941 = vunpack.c.l.b16 %v1159
        %v2942 = vunpack.c.h.b16 %v1159
        %v2943 = vunpack.c.l.b16 %v1160
        %v2944 = vunpack.c.h.b16 %v1160
        %v2945 = vunpack.c.l.b16 %v1161
        %v2946 = vunpack.c.h.b16 %v1161
        %v2947 = vunpack.c.l.b16 %v1162
        %v2948 = vunpack.c.h.b16 %v1162
        %v2949 = vunpack.c.l.b16 %v1163
        %v2950 = vunpack.c.h.b16 %v1163
        %v2951 = vunpack.c.l.b16 %v1164
        %v2952 = vunpack.c.h.b16 %v1164
        %v2953 = vunpack.c.l.b16 %v1165
        %v2954 = vunpack.c.h.b16 %v1165
        %v2955 = vunpack.c.l.b16 %v1166
        %v2956 = vunpack.c.h.b16 %v1166
        %v2957 = vunpack.c.l.b16 %v1167
        %v2958 = vunpack.c.h.b16 %v1167
        %v2959 = vunpack.c.l.b16 %v1168
        %v2960 = vunpack.c.h.b16 %v1168
        %v2961 = vunpack.c.l.b16 %v1169
        %v2962 = vunpack.c.h.b16 %v1169
        %v2963 = vunpack.c.l.b16 %v1170
        %v2964 = vunpack.c.h.b16 %v1170
        %v2965 = vunpack.c.l.b16 %v1171
        %v2966 = vunpack.c.h.b16 %v1171
        %v2967 = vunpack.c.l.b16 %v1172
        %v2968 = vunpack.c.h.b16 %v1172
        %v2969 = vunpack.c.l.b16 %v1173
        %v2970 = vunpack.c.h.b16 %v1173
        %v2971 = vpack.c.b16 %v1963, %v1947
        %v2972 = vpack.c.b16 %v1964, %v1948
        %v2973 = vpack.c.b16 %v1965, %v1949
        %v2974 = vpack.c.b16 %v1966, %v1950
        %v2975 = vpack.c.b16 %v1967, %v1951
        %v2976 = vpack.c.b16 %v1968, %v1952
        %v2977 = vpack.c.b16 %v1969, %v1953
        %v2978 = vpack.c.b16 %v1970, %v1954
        %v2979 = vpack.c.b16 %v1971, %v1955
        %v2980 = vpack.c.b16 %v1972, %v1956
        %v2981 = vpack.c.b16 %v1973, %v1957
        %v2982 = vpack.c.b16 %v1974, %v1958
        %v2983 = vpack.c.b16 %v1975, %v1959
        %v2984 = vpack.c.b16 %v1976, %v1960
        %v2985 = vpack.c.b16 %v1977, %v1961
        %v2986 = vpack.c.b16 %v1978, %v1962
        %v2987 = vpack.c.b16 %v1995, %v1979
        %v2988 = vpack.c.b16 %v1996, %v1980
        %v2989 = vpack.c.b16 %v1997, %v1981
        %v2990 = vpack.c.b16 %v1998, %v1982
        %v2991 = vpack.c.b16 %v1999, %v1983
        %v2992 = vpack.c.b16 %v2000, %v1984
        %v2993 = vpack.c.b16 %v2001, %v1985
        %v2994 = vpack.c.b16 %v2002, %v1986
        %v2995 = vpack.c.b16 %v2003, %v1987
        %v2996 = vpack.c.b16 %v2004, %v1988
        %v2997 = vpack.c.b16 %v2005, %v1989
        %v2998 = vpack.c.b16 %v2006, %v1990
        %v2999 = vpack.c.b16 %v2007, %v1991
        %v3000 = vpack.c.b16 %v2008, %v1992
        %v3001 = vpack.c.b16 %v2009, %v1993
        %v3002 = vpack.c.b16 %v2010, %v1994
        %v3003 = vpack.c.b16 %v2027, %v2011
        %v3004 = vpack.c.b16 %v2028, %v2012
        %v3005 = vpack.c.b16 %v2029, %v2013
        %v3006 = vpack.c.b16 %v2030, %v2014
        %v3007 = vpack.c.b16 %v2031, %v2015
        %v3008 = vpack.c.b16 %v2032, %v2016
        %v3009 = vpack.c.b16 %v2033, %v2017
        %v3010 = vpack.c.b16 %v2034, %v2018
        %v3011 = vpack.c.b16 %v2035, %v2019
        %v3012 = vpack.c.b16 %v2036, %v2020
        %v3013 = vpack.c.b16 %v2037, %v2021
        %v3014 = vpack.c.b16 %v2038, %v2022
        %v3015 = vpack.c.b16 %v2039, %v2023
        %v3016 = vpack.c.b16 %v2040, %v2024
        %v3017 = vpack.c.b16 %v2041, %v2025
        %v3018 = vpack.c.b16 %v2042, %v2026
        %v3019 = vpack.c.b16 %v2059, %v2043
        %v3020 = vpack.c.b16 %v2060, %v2044
        %v3021 = vpack.c.b16 %v2061, %v2045
        %v3022 = vpack.c.b16 %v2062, %v2046
        %v3023 = vpack.c.b16 %v2063, %v2047
        %v3024 = vpack.c.b16 %v2064, %v2048
        %v3025 = vpack.c.b16 %v2065, %v2049
        %v3026 = vpack.c.b16 %v2066, %v2050
        %v3027 = vpack.c.b16 %v2067, %v2051
        %v3028 = vpack.c.b16 %v2068, %v2052
        %v3029 = vpack.c.b16 %v2069, %v2053
        %v3030 = vpack.c.b16 %v2070, %v2054
        %v3031 = vpack.c.b16 %v2071, %v2055
        %v3032 = vpack.c.b16 %v2072, %v2056
        %v3033 = vpack.c.b16 %v2073, %v2057
        %v3034 = vpack.c.b16 %v2074, %v2058
        %v3035 = vpack.c.b16 %v2091, %v2075
        %v3036 = vpack.c.b16 %v2092, %v2076
        %v3037 = vpack.c.b16 %v2093, %v2077
        %v3038 = vpack.c.b16 %v2094, %v2078
        %v3039 = vpack.c.b16 %v2095, %v2079
        %v3040 = vpack.c.b16 %v2096, %v2080
        %v3041 = vpack.c.b16 %v2097, %v2081
        %v3042 = vpack.c.b16 %v2098, %v2082
        %v3043 = vpack.c.b16 %v2099, %v2083
        %v3044 = vpack.c.b16 %v2100, %v2084
        %v3045 = vpack.c.b16 %v2101, %v2085
        %v3046 = vpack.c.b16 %v2102, %v2086
        %v3047 = vpack.c.b16 %v2103, %v2087
        %v3048 = vpack.c.b16 %v2104, %v2088
        %v3049 = vpack.c.b16 %v2105, %v2089
        %v3050 = vpack.c.b16 %v2106, %v2090
        %v3051 = vpack.c.b16 %v2123, %v2107
        %v3052 = vpack.c.b16 %v2124, %v2108
        %v3053 = vpack.c.b16 %v2125, %v2109
        %v3054 = vpack.c.b16 %v2126, %v2110
        %v3055 = vpack.c.b16 %v2127, %v2111
        %v3056 = vpack.c.b16 %v2128, %v2112
        %v3057 = vpack.c.b16 %v2129, %v2113
        %v3058 = vpack.c.b16 %v2130, %v2114
        %v3059 = vpack.c.b16 %v2131, %v2115
        %v3060 = vpack.c.b16 %v2132, %v2116
        %v3061 = vpack.c.b16 %v2133, %v2117
        %v3062 = vpack.c.b16 %v2134, %v2118
        %v3063 = vpack.c.b16 %v2135, %v2119
        %v3064 = vpack.c.b16 %v2136, %v2120
        %v3065 = vpack.c.b16 %v2137, %v2121
        %v3066 = vpack.c.b16 %v2138, %v2122
        %v3067 = vpack.c.b16 %v2155, %v2139
        %v3068 = vpack.c.b16 %v2156, %v2140
        %v3069 = vpack.c.b16 %v2157, %v2141
        %v3070 = vpack.c.b16 %v2158, %v2142
        %v3071 = vpack.c.b16 %v2159, %v2143
        %v3072 = vpack.c.b16 %v2160, %v2144
        %v3073 = vpack.c.b16 %v2161, %v2145
        %v3074 = vpack.c.b16 %v2162, %v2146
        %v3075 = vpack.c.b16 %v2163, %v2147
        %v3076 = vpack.c.b16 %v2164, %v2148
        %v3077 = vpack.c.b16 %v2165, %v2149
        %v3078 = vpack.c.b16 %v2166, %v2150
        %v3079 = vpack.c.b16 %v2167, %v2151
        %v3080 = vpack.c.b16 %v2168, %v2152
        %v3081 = vpack.c.b16 %v2169, %v2153
        %v3082 = vpack.c.b16 %v2170, %v2154
        %v3083 = vpack.c.b16 %v2187, %v2171
        %v3084 = vpack.c.b16 %v2188, %v2172
        %v3085 = vpack.c.b16 %v2189, %v2173
        %v3086 = vpack.c.b16 %v2190, %v2174
        %v3087 = vpack.c.b16 %v2191, %v2175
        %v3088 = vpack.c.b16 %v2192, %v2176
        %v3089 = vpack.c.b16 %v2193, %v2177
        %v3090 = vpack.c.b16 %v2194, %v2178
        %v3091 = vpack.c.b16 %v2195, %v2179
        %v3092 = vpack.c.b16 %v2196, %v2180
        %v3093 = vpack.c.b16 %v2197, %v2181
        %v3094 = vpack.c.b16 %v2198, %v2182
        %v3095 = vpack.c.b16 %v2199, %v2183
        %v3096 = vpack.c.b16 %v2200, %v2184
        %v3097 = vpack.c.b16 %v2201, %v2185
        %v3098 = vpack.c.b16 %v2202, %v2186
        %v3099 = vpack.c.b16 %v2219, %v2203
        %v3100 = vpack.c.b16 %v2220, %v2204
        %v3101 = vpack.c.b16 %v2221, %v2205
        %v3102 = vpack.c.b16 %v2222, %v2206
        %v3103 = vpack.c.b16 %v2223, %v2207
        %v3104 = vpack.c.b16 %v2224, %v2208
        %v3105 = vpack.c.b16 %v2225, %v2209
        %v3106 = vpack.c.b16 %v2226, %v2210
        %v3107 = vpack.c.b16 %v2227, %v2211
        %v3108 = vpack.c.b16 %v2228, %v2212
        %v3109 = vpack.c.b16 %v2229, %v2213
        %v3110 = vpack.c.b16 %v2230, %v2214
        %v3111 = vpack.c.b16 %v2231, %v2215
        %v3112 = vpack.c.b16 %v2232, %v2216
        %v3113 = vpack.c.b16 %v2233, %v2217
        %v3114 = vpack.c.b16 %v2234, %v2218
        %v3115 = vpack.c.b16 %v2251, %v2235
        %v3116 = vpack.c.b16 %v2252, %v2236
        %v3117 = vpack.c.b16 %v2253, %v2237
        %v3118 = vpack.c.b16 %v2254, %v2238
        %v3119 = vpack.c.b16 %v2255, %v2239
        %v3120 = vpack.c.b16 %v2256, %v2240
        %v3121 = vpack.c.b16 %v2257, %v2241
        %v3122 = vpack.c.b16 %v2258, %v2242
        %v3123 = vpack.c.b16 %v2259, %v2243
        %v3124 = vpack.c.b16 %v2260, %v2244
        %v3125 = vpack.c.b16 %v2261, %v2245
        %v3126 = vpack.c.b16 %v2262, %v2246
        %v3127 = vpack.c.b16 %v2263, %v2247
        %v3128 = vpack.c.b16 %v2264, %v2248
        %v3129 = vpack.c.b16 %v2265, %v2249
        %v3130 = vpack.c.b16 %v2266, %v2250
        %v3131 = vpack.c.b16 %v2283, %v2267
        %v3132 = vpack.c.b16 %v2284, %v2268
        %v3133 = vpack.c.b16 %v2285, %v2269
        %v3134 = vpack.c.b16 %v2286, %v2270
        %v3135 = vpack.c.b16 %v2287, %v2271
        %v3136 = vpack.c.b16 %v2288, %v2272
        %v3137 = vpack.c.b16 %v2289, %v2273
        %v3138 = vpack.c.b16 %v2290, %v2274
        %v3139 = vpack.c.b16 %v2291, %v2275
        %v3140 = vpack.c.b16 %v2292, %v2276
        %v3141 = vpack.c.b16 %v2293, %v2277
        %v3142 = vpack.c.b16 %v2294, %v2278
        %v3143 = vpack.c.b16 %v2295, %v2279
        %v3144 = vpack.c.b16 %v2296, %v2280
        %v3145 = vpack.c.b16 %v2297, %v2281
        %v3146 = vpack.c.b16 %v2298, %v2282
        %v3147 = vpack.c.b16 %v2315, %v2299
        %v3148 = vpack.c.b16 %v2316, %v2300
        %v3149 = vpack.c.b16 %v2317, %v2301
        %v3150 = vpack.c.b16 %v2318, %v2302
        %v3151 = vpack.c.b16 %v2319, %v2303
        %v3152 = vpack.c.b16 %v2320, %v2304
        %v3153 = vpack.c.b16 %v2321, %v2305
        %v3154 = vpack.c.b16 %v2322, %v2306
        %v3155 = vpack.c.b16 %v2323, %v2307
        %v3156 = vpack.c.b16 %v2324, %v2308
        %v3157 = vpack.c.b16 %v2325, %v2309
        %v3158 = vpack.c.b16 %v2326, %v2310
        %v3159 = vpack.c.b16 %v2327, %v2311
        %v3160 = vpack.c.b16 %v2328, %v2312
        %v3161 = vpack.c.b16 %v2329, %v2313
        %v3162 = vpack.c.b16 %v2330, %v2314
        %v3163 = vpack.c.b16 %v2347, %v2331
        %v3164 = vpack.c.b16 %v2348, %v2332
        %v3165 = vpack.c.b16 %v2349, %v2333
        %v3166 = vpack.c.b16 %v2350, %v2334
        %v3167 = vpack.c.b16 %v2351, %v2335
        %v3168 = vpack.c.b16 %v2352, %v2336
        %v3169 = vpack.c.b16 %v2353, %v2337
        %v3170 = vpack.c.b16 %v2354, %v2338
        %v3171 = vpack.c.b16 %v2355, %v2339
        %v3172 = vpack.c.b16 %v2356, %v2340
        %v3173 = vpack.c.b16 %v2357, %v2341
        %v3174 = vpack.c.b16 %v2358, %v2342
        %v3175 = vpack.c.b16 %v2359, %v2343
        %v3176 = vpack.c.b16 %v2360, %v2344
        %v3177 = vpack.c.b16 %v2361, %v2345
        %v3178 = vpack.c.b16 %v2362, %v2346
        %v3179 = vpack.c.b16 %v2379, %v2363
        %v3180 = vpack.c.b16 %v2380, %v2364
        %v3181 = vpack.c.b16 %v2381, %v2365
        %v3182 = vpack.c.b16 %v2382, %v2366
        %v3183 = vpack.c.b16 %v2383, %v2367
        %v3184 = vpack.c.b16 %v2384, %v2368
        %v3185 = vpack.c.b16 %v2385, %v2369
        %v3186 = vpack.c.b16 %v2386, %v2370
        %v3187 = vpack.c.b16 %v2387, %v2371
        %v3188 = vpack.c.b16 %v2388, %v2372
        %v3189 = vpack.c.b16 %v2389, %v2373
        %v3190 = vpack.c.b16 %v2390, %v2374
        %v3191 = vpack.c.b16 %v2391, %v2375
        %v3192 = vpack.c.b16 %v2392, %v2376
        %v3193 = vpack.c.b16 %v2393, %v2377
        %v3194 = vpack.c.b16 %v2394, %v2378
        %v3195 = vpack.c.b16 %v2411, %v2395
        %v3196 = vpack.c.b16 %v2412, %v2396
        %v3197 = vpack.c.b16 %v2413, %v2397
        %v3198 = vpack.c.b16 %v2414, %v2398
        %v3199 = vpack.c.b16 %v2415, %v2399
        %v3200 = vpack.c.b16 %v2416, %v2400
        %v3201 = vpack.c.b16 %v2417, %v2401
        %v3202 = vpack.c.b16 %v2418, %v2402
        %v3203 = vpack.c.b16 %v2419, %v2403
        %v3204 = vpack.c.b16 %v2420, %v2404
        %v3205 = vpack.c.b16 %v2421, %v2405
        %v3206 = vpack.c.b16 %v2422, %v2406
        %v3207 = vpack.c.b16 %v2423, %v2407
        %v3208 = vpack.c.b16 %v2424, %v2408
        %v3209 = vpack.c.b16 %v2425, %v2409
        %v3210 = vpack.c.b16 %v2426, %v2410
        %v3211 = vpack.c.b16 %v2443, %v2427
        %v3212 = vpack.c.b16 %v2444, %v2428
        %v3213 = vpack.c.b16 %v2445, %v2429
        %v3214 = vpack.c.b16 %v2446, %v2430
        %v3215 = vpack.c.b16 %v2447, %v2431
        %v3216 = vpack.c.b16 %v2448, %v2432
        %v3217 = vpack.c.b16 %v2449, %v2433
        %v3218 = vpack.c.b16 %v2450, %v2434
        %v3219 = vpack.c.b16 %v2451, %v2435
        %v3220 = vpack.c.b16 %v2452, %v2436
        %v3221 = vpack.c.b16 %v2453, %v2437
        %v3222 = vpack.c.b16 %v2454, %v2438
        %v3223 = vpack.c.b16 %v2455, %v2439
        %v3224 = vpack.c.b16 %v2456, %v2440
        %v3225 = vpack.c.b16 %v2457, %v2441
        %v3226 = vpack.c.b16 %v2458, %v2442
        %v3227 = vpack.c.b16 %v2475, %v2459
        %v3228 = vpack.c.b16 %v2476, %v2460
        %v3229 = vpack.c.b16 %v2477, %v2461
        %v3230 = vpack.c.b16 %v2478, %v2462
        %v3231 = vpack.c.b16 %v2479, %v2463
        %v3232 = vpack.c.b16 %v2480, %v2464
        %v3233 = vpack.c.b16 %v2481, %v2465
        %v3234 = vpack.c.b16 %v2482, %v2466
        %v3235 = vpack.c.b16 %v2483, %v2467
        %v3236 = vpack.c.b16 %v2484, %v2468
        %v3237 = vpack.c.b16 %v2485, %v2469
        %v3238 = vpack.c.b16 %v2486, %v2470
        %v3239 = vpack.c.b16 %v2487, %v2471
        %v3240 = vpack.c.b16 %v2488, %v2472
        %v3241 = vpack.c.b16 %v2489, %v2473
        %v3242 = vpack.c.b16 %v2490, %v2474
        %v3243 = vpack.c.b16 %v2507, %v2491
        %v3244 = vpack.c.b16 %v2508, %v2492
        %v3245 = vpack.c.b16 %v2509, %v2493
        %v3246 = vpack.c.b16 %v2510, %v2494
        %v3247 = vpack.c.b16 %v2511, %v2495
        %v3248 = vpack.c.b16 %v2512, %v2496
        %v3249 = vpack.c.b16 %v2513, %v2497
        %v3250 = vpack.c.b16 %v2514, %v2498
        %v3251 = vpack.c.b16 %v2515, %v2499
        %v3252 = vpack.c.b16 %v2516, %v2500
        %v3253 = vpack.c.b16 %v2517, %v2501
        %v3254 = vpack.c.b16 %v2518, %v2502
        %v3255 = vpack.c.b16 %v2519, %v2503
        %v3256 = vpack.c.b16 %v2520, %v2504
        %v3257 = vpack.c.b16 %v2521, %v2505
        %v3258 = vpack.c.b16 %v2522, %v2506
        %v3259 = vpack.c.b16 %v2539, %v2523
        %v3260 = vpack.c.b16 %v2540, %v2524
        %v3261 = vpack.c.b16 %v2541, %v2525
        %v3262 = vpack.c.b16 %v2542, %v2526
        %v3263 = vpack.c.b16 %v2543, %v2527
        %v3264 = vpack.c.b16 %v2544, %v2528
        %v3265 = vpack.c.b16 %v2545, %v2529
        %v3266 = vpack.c.b16 %v2546, %v2530
        %v3267 = vpack.c.b16 %v2547, %v2531
        %v3268 = vpack.c.b16 %v2548, %v2532
        %v3269 = vpack.c.b16 %v2549, %v2533
        %v3270 = vpack.c.b16 %v2550, %v2534
        %v3271 = vpack.c.b16 %v2551, %v2535
        %v3272 = vpack.c.b16 %v2552, %v2536
        %v3273 = vpack.c.b16 %v2553, %v2537
        %v3274 = vpack.c.b16 %v2554, %v2538
        %v3275 = vpack.c.b16 %v2571, %v2555
        %v3276 = vpack.c.b16 %v2572, %v2556
        %v3277 = vpack.c.b16 %v2573, %v2557
        %v3278 = vpack.c.b16 %v2574, %v2558
        %v3279 = vpack.c.b16 %v2575, %v2559
        %v3280 = vpack.c.b16 %v2576, %v2560
        %v3281 = vpack.c.b16 %v2577, %v2561
        %v3282 = vpack.c.b16 %v2578, %v2562
        %v3283 = vpack.c.b16 %v2579, %v2563
        %v3284 = vpack.c.b16 %v2580, %v2564
        %v3285 = vpack.c.b16 %v2581, %v2565
        %v3286 = vpack.c.b16 %v2582, %v2566
        %v3287 = vpack.c.b16 %v2583, %v2567
        %v3288 = vpack.c.b16 %v2584, %v2568
        %v3289 = vpack.c.b16 %v2585, %v2569
        %v3290 = vpack.c.b16 %v2586, %v2570
        %v3291 = vpack.c.b16 %v2603, %v2587
        %v3292 = vpack.c.b16 %v2604, %v2588
        %v3293 = vpack.c.b16 %v2605, %v2589
        %v3294 = vpack.c.b16 %v2606, %v2590
        %v3295 = vpack.c.b16 %v2607, %v2591
        %v3296 = vpack.c.b16 %v2608, %v2592
        %v3297 = vpack.c.b16 %v2609, %v2593
        %v3298 = vpack.c.b16 %v2610, %v2594
        %v3299 = vpack.c.b16 %v2611, %v2595
        %v3300 = vpack.c.b16 %v2612, %v2596
        %v3301 = vpack.c.b16 %v2613, %v2597
        %v3302 = vpack.c.b16 %v2614, %v2598
        %v3303 = vpack.c.b16 %v2615, %v2599
        %v3304 = vpack.c.b16 %v2616, %v2600
        %v3305 = vpack.c.b16 %v2617, %v2601
        %v3306 = vpack.c.b16 %v2618, %v2602
        %v3307 = vpack.c.b16 %v2635, %v2619
        %v3308 = vpack.c.b16 %v2636, %v2620
        %v3309 = vpack.c.b16 %v2637, %v2621
        %v3310 = vpack.c.b16 %v2638, %v2622
        %v3311 = vpack.c.b16 %v2639, %v2623
        %v3312 = vpack.c.b16 %v2640, %v2624
        %v3313 = vpack.c.b16 %v2641, %v2625
        %v3314 = vpack.c.b16 %v2642, %v2626
        %v3315 = vpack.c.b16 %v2643, %v2627
        %v3316 = vpack.c.b16 %v2644, %v2628
        %v3317 = vpack.c.b16 %v2645, %v2629
        %v3318 = vpack.c.b16 %v2646, %v2630
        %v3319 = vpack.c.b16 %v2647, %v2631
        %v3320 = vpack.c.b16 %v2648, %v2632
        %v3321 = vpack.c.b16 %v2649, %v2633
        %v3322 = vpack.c.b16 %v2650, %v2634
        %v3323 = vpack.c.b16 %v2667, %v2651
        %v3324 = vpack.c.b16 %v2668, %v2652
        %v3325 = vpack.c.b16 %v2669, %v2653
        %v3326 = vpack.c.b16 %v2670, %v2654
        %v3327 = vpack.c.b16 %v2671, %v2655
        %v3328 = vpack.c.b16 %v2672, %v2656
        %v3329 = vpack.c.b16 %v2673, %v2657
        %v3330 = vpack.c.b16 %v2674, %v2658
        %v3331 = vpack.c.b16 %v2675, %v2659
        %v3332 = vpack.c.b16 %v2676, %v2660
        %v3333 = vpack.c.b16 %v2677, %v2661
        %v3334 = vpack.c.b16 %v2678, %v2662
        %v3335 = vpack.c.b16 %v2679, %v2663
        %v3336 = vpack.c.b16 %v2680, %v2664
        %v3337 = vpack.c.b16 %v2681, %v2665
        %v3338 = vpack.c.b16 %v2682, %v2666
        %v3339 = vpack.c.b16 %v2699, %v2683
        %v3340 = vpack.c.b16 %v2700, %v2684
        %v3341 = vpack.c.b16 %v2701, %v2685
        %v3342 = vpack.c.b16 %v2702, %v2686
        %v3343 = vpack.c.b16 %v2703, %v2687
        %v3344 = vpack.c.b16 %v2704, %v2688
        %v3345 = vpack.c.b16 %v2705, %v2689
        %v3346 = vpack.c.b16 %v2706, %v2690
        %v3347 = vpack.c.b16 %v2707, %v2691
        %v3348 = vpack.c.b16 %v2708, %v2692
        %v3349 = vpack.c.b16 %v2709, %v2693
        %v3350 = vpack.c.b16 %v2710, %v2694
        %v3351 = vpack.c.b16 %v2711, %v2695
        %v3352 = vpack.c.b16 %v2712, %v2696
        %v3353 = vpack.c.b16 %v2713, %v2697
        %v3354 = vpack.c.b16 %v2714, %v2698
        %v3355 = vpack.c.b16 %v2731, %v2715
        %v3356 = vpack.c.b16 %v2732, %v2716
        %v3357 = vpack.c.b16 %v2733, %v2717
        %v3358 = vpack.c.b16 %v2734, %v2718
        %v3359 = vpack.c.b16 %v2735, %v2719
        %v3360 = vpack.c.b16 %v2736, %v2720
        %v3361 = vpack.c.b16 %v2737, %v2721
        %v3362 = vpack.c.b16 %v2738, %v2722
        %v3363 = vpack.c.b16 %v2739, %v2723
        %v3364 = vpack.c.b16 %v2740, %v2724
        %v3365 = vpack.c.b16 %v2741, %v2725
        %v3366 = vpack.c.b16 %v2742, %v2726
        %v3367 = vpack.c.b16 %v2743, %v2727
        %v3368 = vpack.c.b16 %v2744, %v2728
        %v3369 = vpack.c.b16 %v2745, %v2729
        %v3370 = vpack.c.b16 %v2746, %v2730
        %v3371 = vpack.c.b16 %v2763, %v2747
        %v3372 = vpack.c.b16 %v2764, %v2748
        %v3373 = vpack.c.b16 %v2765, %v2749
        %v3374 = vpack.c.b16 %v2766, %v2750
        %v3375 = vpack.c.b16 %v2767, %v2751
        %v3376 = vpack.c.b16 %v2768, %v2752
        %v3377 = vpack.c.b16 %v2769, %v2753
        %v3378 = vpack.c.b16 %v2770, %v2754
        %v3379 = vpack.c.b16 %v2771, %v2755
        %v3380 = vpack.c.b16 %v2772, %v2756
        %v3381 = vpack.c.b16 %v2773, %v2757
        %v3382 = vpack.c.b16 %v2774, %v2758
        %v3383 = vpack.c.b16 %v2775, %v2759
        %v3384 = vpack.c.b16 %v2776, %v2760
        %v3385 = vpack.c.b16 %v2777, %v2761
        %v3386 = vpack.c.b16 %v2778, %v2762
        %v3387 = vpack.c.b16 %v2795, %v2779
        %v3388 = vpack.c.b16 %v2796, %v2780
        %v3389 = vpack.c.b16 %v2797, %v2781
        %v3390 = vpack.c.b16 %v2798, %v2782
        %v3391 = vpack.c.b16 %v2799, %v2783
        %v3392 = vpack.c.b16 %v2800, %v2784
        %v3393 = vpack.c.b16 %v2801, %v2785
        %v3394 = vpack.c.b16 %v2802, %v2786
        %v3395 = vpack.c.b16 %v2803, %v2787
        %v3396 = vpack.c.b16 %v2804, %v2788
        %v3397 = vpack.c.b16 %v2805, %v2789
        %v3398 = vpack.c.b16 %v2806, %v2790
        %v3399 = vpack.c.b16 %v2807, %v2791
        %v3400 = vpack.c.b16 %v2808, %v2792
        %v3401 = vpack.c.b16 %v2809, %v2793
        %v3402 = vpack.c.b16 %v2810, %v2794
        %v3403 = vpack.c.b16 %v2827, %v2811
        %v3404 = vpack.c.b16 %v2828, %v2812
        %v3405 = vpack.c.b16 %v2829, %v2813
        %v3406 = vpack.c.b16 %v2830, %v2814
        %v3407 = vpack.c.b16 %v2831, %v2815
        %v3408 = vpack.c.b16 %v2832, %v2816
        %v3409 = vpack.c.b16 %v2833, %v2817
        %v3410 = vpack.c.b16 %v2834, %v2818
        %v3411 = vpack.c.b16 %v2835, %v2819
        %v3412 = vpack.c.b16 %v2836, %v2820
        %v3413 = vpack.c.b16 %v2837, %v2821
        %v3414 = vpack.c.b16 %v2838, %v2822
        %v3415 = vpack.c.b16 %v2839, %v2823
        %v3416 = vpack.c.b16 %v2840, %v2824
        %v3417 = vpack.c.b16 %v2841, %v2825
        %v3418 = vpack.c.b16 %v2842, %v2826
        %v3419 = vpack.c.b16 %v2859, %v2843
        %v3420 = vpack.c.b16 %v2860, %v2844
        %v3421 = vpack.c.b16 %v2861, %v2845
        %v3422 = vpack.c.b16 %v2862, %v2846
        %v3423 = vpack.c.b16 %v2863, %v2847
        %v3424 = vpack.c.b16 %v2864, %v2848
        %v3425 = vpack.c.b16 %v2865, %v2849
        %v3426 = vpack.c.b16 %v2866, %v2850
        %v3427 = vpack.c.b16 %v2867, %v2851
        %v3428 = vpack.c.b16 %v2868, %v2852
        %v3429 = vpack.c.b16 %v2869, %v2853
        %v3430 = vpack.c.b16 %v2870, %v2854
        %v3431 = vpack.c.b16 %v2871, %v2855
        %v3432 = vpack.c.b16 %v2872, %v2856
        %v3433 = vpack.c.b16 %v2873, %v2857
        %v3434 = vpack.c.b16 %v2874, %v2858
        %v3435 = vpack.c.b16 %v2891, %v2875
        %v3436 = vpack.c.b16 %v2892, %v2876
        %v3437 = vpack.c.b16 %v2893, %v2877
        %v3438 = vpack.c.b16 %v2894, %v2878
        %v3439 = vpack.c.b16 %v2895, %v2879
        %v3440 = vpack.c.b16 %v2896, %v2880
        %v3441 = vpack.c.b16 %v2897, %v2881
        %v3442 = vpack.c.b16 %v2898, %v2882
        %v3443 = vpack.c.b16 %v2899, %v2883
        %v3444 = vpack.c.b16 %v2900, %v2884
        %v3445 = vpack.c.b16 %v2901, %v2885
        %v3446 = vpack.c.b16 %v2902, %v2886
        %v3447 = vpack.c.b16 %v2903, %v2887
        %v3448 = vpack.c.b16 %v2904, %v2888
        %v3449 = vpack.c.b16 %v2905, %v2889
        %v3450 = vpack.c.b16 %v2906, %v2890
        %v3451 = vpack.c.b16 %v2923, %v2907
        %v3452 = vpack.c.b16 %v2924, %v2908
        %v3453 = vpack.c.b16 %v2925, %v2909
        %v3454 = vpack.c.b16 %v2926, %v2910
        %v3455 = vpack.c.b16 %v2927, %v2911
        %v3456 = vpack.c.b16 %v2928, %v2912
        %v3457 = vpack.c.b16 %v2929, %v2913
        %v3458 = vpack.c.b16 %v2930, %v2914
        %v3459 = vpack.c.b16 %v2931, %v2915
        %v3460 = vpack.c.b16 %v2932, %v2916
        %v3461 = vpack.c.b16 %v2933, %v2917
        %v3462 = vpack.c.b16 %v2934, %v2918
        %v3463 = vpack.c.b16 %v2935, %v2919
        %v3464 = vpack.c.b16 %v2936, %v2920
        %v3465 = vpack.c.b16 %v2937, %v2921
        %v3466 = vpack.c.b16 %v2938, %v2922
        %v3467 = vpack.c.b16 %v2955, %v2939
        %v3468 = vpack.c.b16 %v2956, %v2940
        %v3469 = vpack.c.b16 %v2957, %v2941
        %v3470 = vpack.c.b16 %v2958, %v2942
        %v3471 = vpack.c.b16 %v2959, %v2943
        %v3472 = vpack.c.b16 %v2960, %v2944
        %v3473 = vpack.c.b16 %v2961, %v2945
        %v3474 = vpack.c.b16 %v2962, %v2946
        %v3475 = vpack.c.b16 %v2963, %v2947
        %v3476 = vpack.c.b16 %v2964, %v2948
        %v3477 = vpack.c.b16 %v2965, %v2949
        %v3478 = vpack.c.b16 %v2966, %v2950
        %v3479 = vpack.c.b16 %v2967, %v2951
        %v3480 = vpack.c.b16 %v2968, %v2952
        %v3481 = vpack.c.b16 %v2969, %v2953
        %v3482 = vpack.c.b16 %v2970, %v2954
        %v4251 = vunpack.c.l.b16 %v1179
        %v4252 = vunpack.c.h.b16 %v1179
        %v4253 = vunpack.c.l.b16 %v1180
        %v4254 = vunpack.c.h.b16 %v1180
        %v4255 = vunpack.c.l.b16 %v1181
        %v4256 = vunpack.c.h.b16 %v1181
        %v4257 = vunpack.c.l.b16 %v1182
        %v4258 = vunpack.c.h.b16 %v1182
        %v4259 = vunpack.c.l.b16 %v1183
        %v4260 = vunpack.c.h.b16 %v1183
        %v4261 = vunpack.c.l.b16 %v1184
        %v4262 = vunpack.c.h.b16 %v1184
        %v4263 = vunpack.c.l.b16 %v1185
        %v4264 = vunpack.c.h.b16 %v1185
        %v4265 = vunpack.c.l.b16 %v1186
        %v4266 = vunpack.c.h.b16 %v1186
        %v4267 = vunpack.c.l.b16 %v1187
        %v4268 = vunpack.c.h.b16 %v1187
        %v4269 = vunpack.c.l.b16 %v1188
        %v4270 = vunpack.c.h.b16 %v1188
        %v4271 = vunpack.c.l.b16 %v1189
        %v4272 = vunpack.c.h.b16 %v1189
        %v4273 = vunpack.c.l.b16 %v1190
        %v4274 = vunpack.c.h.b16 %v1190
        %v4275 = vunpack.c.l.b16 %v1191
        %v4276 = vunpack.c.h.b16 %v1191
        %v4277 = vunpack.c.l.b16 %v1192
        %v4278 = vunpack.c.h.b16 %v1192
        %v4279 = vunpack.c.l.b16 %v1193
        %v4280 = vunpack.c.h.b16 %v1193
        %v4281 = vunpack.c.l.b16 %v1194
        %v4282 = vunpack.c.h.b16 %v1194
        %v4283 = vunpack.c.l.b16 %v1195
        %v4284 = vunpack.c.h.b16 %v1195
        %v4285 = vunpack.c.l.b16 %v1196
        %v4286 = vunpack.c.h.b16 %v1196
        %v4287 = vunpack.c.l.b16 %v1197
        %v4288 = vunpack.c.h.b16 %v1197
        %v4289 = vunpack.c.l.b16 %v1198
        %v4290 = vunpack.c.h.b16 %v1198
        %v4291 = vunpack.c.l.b16 %v1199
        %v4292 = vunpack.c.h.b16 %v1199
        %v4293 = vunpack.c.l.b16 %v1200
        %v4294 = vunpack.c.h.b16 %v1200
        %v4295 = vunpack.c.l.b16 %v1201
        %v4296 = vunpack.c.h.b16 %v1201
        %v4297 = vunpack.c.l.b16 %v1202
        %v4298 = vunpack.c.h.b16 %v1202
        %v4299 = vunpack.c.l.b16 %v1203
        %v4300 = vunpack.c.h.b16 %v1203
        %v4301 = vunpack.c.l.b16 %v1204
        %v4302 = vunpack.c.h.b16 %v1204
        %v4303 = vunpack.c.l.b16 %v1205
        %v4304 = vunpack.c.h.b16 %v1205
        %v4305 = vunpack.c.l.b16 %v1206
        %v4306 = vunpack.c.h.b16 %v1206
        %v4307 = vunpack.c.l.b16 %v1207
        %v4308 = vunpack.c.h.b16 %v1207
        %v4309 = vunpack.c.l.b16 %v1208
        %v4310 = vunpack.c.h.b16 %v1208
        %v4311 = vunpack.c.l.b16 %v1209
        %v4312 = vunpack.c.h.b16 %v1209
        %v4313 = vunpack.c.l.b16 %v1210
        %v4314 = vunpack.c.h.b16 %v1210
        %v4315 = vunpack.c.l.b16 %v1211
        %v4316 = vunpack.c.h.b16 %v1211
        %v4317 = vunpack.c.l.b16 %v1212
        %v4318 = vunpack.c.h.b16 %v1212
        %v4319 = vunpack.c.l.b16 %v1213
        %v4320 = vunpack.c.h.b16 %v1213
        %v4321 = vunpack.c.l.b16 %v1214
        %v4322 = vunpack.c.h.b16 %v1214
        %v4323 = vunpack.c.l.b16 %v1215
        %v4324 = vunpack.c.h.b16 %v1215
        %v4325 = vunpack.c.l.b16 %v1216
        %v4326 = vunpack.c.h.b16 %v1216
        %v4327 = vunpack.c.l.b16 %v1217
        %v4328 = vunpack.c.h.b16 %v1217
        %v4329 = vunpack.c.l.b16 %v1218
        %v4330 = vunpack.c.h.b16 %v1218
        %v4331 = vunpack.c.l.b16 %v1219
        %v4332 = vunpack.c.h.b16 %v1219
        %v4333 = vunpack.c.l.b16 %v1220
        %v4334 = vunpack.c.h.b16 %v1220
        %v4335 = vunpack.c.l.b16 %v1221
        %v4336 = vunpack.c.h.b16 %v1221
        %v4337 = vunpack.c.l.b16 %v1222
        %v4338 = vunpack.c.h.b16 %v1222
        %v4339 = vunpack.c.l.b16 %v1223
        %v4340 = vunpack.c.h.b16 %v1223
        %v4341 = vunpack.c.l.b16 %v1224
        %v4342 = vunpack.c.h.b16 %v1224
        %v4343 = vunpack.c.l.b16 %v1225
        %v4344 = vunpack.c.h.b16 %v1225
        %v4345 = vunpack.c.l.b16 %v1226
        %v4346 = vunpack.c.h.b16 %v1226
        %v4347 = vunpack.c.l.b16 %v1227
        %v4348 = vunpack.c.h.b16 %v1227
        %v4349 = vunpack.c.l.b16 %v1228
        %v4350 = vunpack.c.h.b16 %v1228
        %v4351 = vunpack.c.l.b16 %v1229
        %v4352 = vunpack.c.h.b16 %v1229
        %v4353 = vunpack.c.l.b16 %v1230
        %v4354 = vunpack.c.h.b16 %v1230
        %v4355 = vunpack.c.l.b16 %v1231
        %v4356 = vunpack.c.h.b16 %v1231
        %v4357 = vunpack.c.l.b16 %v1232
        %v4358 = vunpack.c.h.b16 %v1232
        %v4359 = vunpack.c.l.b16 %v1233
        %v4360 = vunpack.c.h.b16 %v1233
        %v4361 = vunpack.c.l.b16 %v1234
        %v4362 = vunpack.c.h.b16 %v1234
        %v4363 = vunpack.c.l.b16 %v1235
        %v4364 = vunpack.c.h.b16 %v1235
        %v4365 = vunpack.c.l.b16 %v1236
        %v4366 = vunpack.c.h.b16 %v1236
        %v4367 = vunpack.c.l.b16 %v1237
        %v4368 = vunpack.c.h.b16 %v1237
        %v4369 = vunpack.c.l.b16 %v1238
        %v4370 = vunpack.c.h.b16 %v1238
        %v4371 = vunpack.c.l.b16 %v1239
        %v4372 = vunpack.c.h.b16 %v1239
        %v4373 = vunpack.c.l.b16 %v1240
        %v4374 = vunpack.c.h.b16 %v1240
        %v4375 = vunpack.c.l.b16 %v1241
        %v4376 = vunpack.c.h.b16 %v1241
        %v4377 = vunpack.c.l.b16 %v1242
        %v4378 = vunpack.c.h.b16 %v1242
        %v4379 = vunpack.c.l.b16 %v1243
        %v4380 = vunpack.c.h.b16 %v1243
        %v4381 = vunpack.c.l.b16 %v1244
        %v4382 = vunpack.c.h.b16 %v1244
        %v4383 = vunpack.c.l.b16 %v1245
        %v4384 = vunpack.c.h.b16 %v1245
        %v4385 = vunpack.c.l.b16 %v1246
        %v4386 = vunpack.c.h.b16 %v1246
        %v4387 = vunpack.c.l.b16 %v1247
        %v4388 = vunpack.c.h.b16 %v1247
        %v4389 = vunpack.c.l.b16 %v1248
        %v4390 = vunpack.c.h.b16 %v1248
        %v4391 = vunpack.c.l.b16 %v1249
        %v4392 = vunpack.c.h.b16 %v1249
        %v4393 = vunpack.c.l.b16 %v1250
        %v4394 = vunpack.c.h.b16 %v1250
        %v4395 = vunpack.c.l.b16 %v1251
        %v4396 = vunpack.c.h.b16 %v1251
        %v4397 = vunpack.c.l.b16 %v1252
        %v4398 = vunpack.c.h.b16 %v1252
        %v4399 = vunpack.c.l.b16 %v1253
        %v4400 = vunpack.c.h.b16 %v1253
        %v4401 = vunpack.c.l.b16 %v1254
        %v4402 = vunpack.c.h.b16 %v1254
        %v4403 = vunpack.c.l.b16 %v1255
        %v4404 = vunpack.c.h.b16 %v1255
        %v4405 = vunpack.c.l.b16 %v1256
        %v4406 = vunpack.c.h.b16 %v1256
        %v4407 = vunpack.c.l.b16 %v1257
        %v4408 = vunpack.c.h.b16 %v1257
        %v4409 = vunpack.c.l.b16 %v1258
        %v4410 = vunpack.c.h.b16 %v1258
        %v4411 = vunpack.c.l.b16 %v1259
        %v4412 = vunpack.c.h.b16 %v1259
        %v4413 = vunpack.c.l.b16 %v1260
        %v4414 = vunpack.c.h.b16 %v1260
        %v4415 = vunpack.c.l.b16 %v1261
        %v4416 = vunpack.c.h.b16 %v1261
        %v4417 = vunpack.c.l.b16 %v1262
        %v4418 = vunpack.c.h.b16 %v1262
        %v4419 = vunpack.c.l.b16 %v1263
        %v4420 = vunpack.c.h.b16 %v1263
        %v4421 = vunpack.c.l.b16 %v1264
        %v4422 = vunpack.c.h.b16 %v1264
        %v4423 = vunpack.c.l.b16 %v1265
        %v4424 = vunpack.c.h.b16 %v1265
        %v4425 = vunpack.c.l.b16 %v1266
        %v4426 = vunpack.c.h.b16 %v1266
        %v4427 = vunpack.c.l.b16 %v1267
        %v4428 = vunpack.c.h.b16 %v1267
        %v4429 = vunpack.c.l.b16 %v1268
        %v4430 = vunpack.c.h.b16 %v1268
        %v4431 = vunpack.c.l.b16 %v1269
        %v4432 = vunpack.c.h.b16 %v1269
        %v4433 = vunpack.c.l.b16 %v1270
        %v4434 = vunpack.c.h.b16 %v1270
        %v4435 = vunpack.c.l.b16 %v1271
        %v4436 = vunpack.c.h.b16 %v1271
        %v4437 = vunpack.c.l.b16 %v1272
        %v4438 = vunpack.c.h.b16 %v1272
        %v4439 = vunpack.c.l.b16 %v1273
        %v4440 = vunpack.c.h.b16 %v1273
        %v4441 = vunpack.c.l.b16 %v1274
        %v4442 = vunpack.c.h.b16 %v1274
        %v4443 = vunpack.c.l.b16 %v1275
        %v4444 = vunpack.c.h.b16 %v1275
        %v4445 = vunpack.c.l.b16 %v1276
        %v4446 = vunpack.c.h.b16 %v1276
        %v4447 = vunpack.c.l.b16 %v1277
        %v4448 = vunpack.c.h.b16 %v1277
        %v4449 = vunpack.c.l.b16 %v1278
        %v4450 = vunpack.c.h.b16 %v1278
        %v4451 = vunpack.c.l.b16 %v1279
        %v4452 = vunpack.c.h.b16 %v1279
        %v4453 = vunpack.c.l.b16 %v1280
        %v4454 = vunpack.c.h.b16 %v1280
        %v4455 = vunpack.c.l.b16 %v1281
        %v4456 = vunpack.c.h.b16 %v1281
        %v4457 = vunpack.c.l.b16 %v1282
        %v4458 = vunpack.c.h.b16 %v1282
        %v4459 = vunpack.c.l.b16 %v1283
        %v4460 = vunpack.c.h.b16 %v1283
        %v4461 = vunpack.c.l.b16 %v1284
        %v4462 = vunpack.c.h.b16 %v1284
        %v4463 = vunpack.c.l.b16 %v1285
        %v4464 = vunpack.c.h.b16 %v1285
        %v4465 = vunpack.c.l.b16 %v1286
        %v4466 = vunpack.c.h.b16 %v1286
        %v4467 = vunpack.c.l.b16 %v1287
        %v4468 = vunpack.c.h.b16 %v1287
        %v4469 = vunpack.c.l.b16 %v1288
        %v4470 = vunpack.c.h.b16 %v1288
        %v4471 = vunpack.c.l.b16 %v1289
        %v4472 = vunpack.c.h.b16 %v1289
        %v4473 = vunpack.c.l.b16 %v1290
        %v4474 = vunpack.c.h.b16 %v1290
        %v4475 = vunpack.c.l.b16 %v1291
        %v4476 = vunpack.c.h.b16 %v1291
        %v4477 = vunpack.c.l.b16 %v1292
        %v4478 = vunpack.c.h.b16 %v1292
        %v4479 = vunpack.c.l.b16 %v1293
        %v4480 = vunpack.c.h.b16 %v1293
        %v4481 = vunpack.c.l.b16 %v1294
        %v4482 = vunpack.c.h.b16 %v1294
        %v4483 = vunpack.c.l.b16 %v1295
        %v4484 = vunpack.c.h.b16 %v1295
        %v4485 = vunpack.c.l.b16 %v1296
        %v4486 = vunpack.c.h.b16 %v1296
        %v4487 = vunpack.c.l.b16 %v1297
        %v4488 = vunpack.c.h.b16 %v1297
        %v4489 = vunpack.c.l.b16 %v1298
        %v4490 = vunpack.c.h.b16 %v1298
        %v4491 = vunpack.c.l.b16 %v1299
        %v4492 = vunpack.c.h.b16 %v1299
        %v4493 = vunpack.c.l.b16 %v1300
        %v4494 = vunpack.c.h.b16 %v1300
        %v4495 = vunpack.c.l.b16 %v1301
        %v4496 = vunpack.c.h.b16 %v1301
        %v4497 = vunpack.c.l.b16 %v1302
        %v4498 = vunpack.c.h.b16 %v1302
        %v4499 = vunpack.c.l.b16 %v1303
        %v4500 = vunpack.c.h.b16 %v1303
        %v4501 = vunpack.c.l.b16 %v1304
        %v4502 = vunpack.c.h.b16 %v1304
        %v4503 = vunpack.c.l.b16 %v1305
        %v4504 = vunpack.c.h.b16 %v1305
        %v4505 = vunpack.c.l.b16 %v1306
        %v4506 = vunpack.c.h.b16 %v1306
        %v4507 = vunpack.c.l.b16 %v1307
        %v4508 = vunpack.c.h.b16 %v1307
        %v4509 = vunpack.c.l.b16 %v1308
        %v4510 = vunpack.c.h.b16 %v1308
        %v4511 = vunpack.c.l.b16 %v1309
        %v4512 = vunpack.c.h.b16 %v1309
        %v4513 = vunpack.c.l.b16 %v1310
        %v4514 = vunpack.c.h.b16 %v1310
        %v4515 = vunpack.c.l.b16 %v1311
        %v4516 = vunpack.c.h.b16 %v1311
        %v4517 = vunpack.c.l.b16 %v1312
        %v4518 = vunpack.c.h.b16 %v1312
        %v4519 = vunpack.c.l.b16 %v1313
        %v4520 = vunpack.c.h.b16 %v1313
        %v4521 = vunpack.c.l.b16 %v1314
        %v4522 = vunpack.c.h.b16 %v1314
        %v4523 = vunpack.c.l.b16 %v1315
        %v4524 = vunpack.c.h.b16 %v1315
        %v4525 = vunpack.c.l.b16 %v1316
        %v4526 = vunpack.c.h.b16 %v1316
        %v4527 = vunpack.c.l.b16 %v1317
        %v4528 = vunpack.c.h.b16 %v1317
        %v4529 = vunpack.c.l.b16 %v1318
        %v4530 = vunpack.c.h.b16 %v1318
        %v4531 = vunpack.c.l.b16 %v1319
        %v4532 = vunpack.c.h.b16 %v1319
        %v4533 = vunpack.c.l.b16 %v1320
        %v4534 = vunpack.c.h.b16 %v1320
        %v4535 = vunpack.c.l.b16 %v1321
        %v4536 = vunpack.c.h.b16 %v1321
        %v4537 = vunpack.c.l.b16 %v1322
        %v4538 = vunpack.c.h.b16 %v1322
        %v4539 = vunpack.c.l.b16 %v1323
        %v4540 = vunpack.c.h.b16 %v1323
        %v4541 = vunpack.c.l.b16 %v1324
        %v4542 = vunpack.c.h.b16 %v1324
        %v4543 = vunpack.c.l.b16 %v1325
        %v4544 = vunpack.c.h.b16 %v1325
        %v4545 = vunpack.c.l.b16 %v1326
        %v4546 = vunpack.c.h.b16 %v1326
        %v4547 = vunpack.c.l.b16 %v1327
        %v4548 = vunpack.c.h.b16 %v1327
        %v4549 = vunpack.c.l.b16 %v1328
        %v4550 = vunpack.c.h.b16 %v1328
        %v4551 = vunpack.c.l.b16 %v1329
        %v4552 = vunpack.c.h.b16 %v1329
        %v4553 = vunpack.c.l.b16 %v1330
        %v4554 = vunpack.c.h.b16 %v1330
        %v4555 = vunpack.c.l.b16 %v1331
        %v4556 = vunpack.c.h.b16 %v1331
        %v4557 = vunpack.c.l.b16 %v1332
        %v4558 = vunpack.c.h.b16 %v1332
        %v4559 = vunpack.c.l.b16 %v1333
        %v4560 = vunpack.c.h.b16 %v1333
        %v4561 = vunpack.c.l.b16 %v1334
        %v4562 = vunpack.c.h.b16 %v1334
        %v4563 = vunpack.c.l.b16 %v1335
        %v4564 = vunpack.c.h.b16 %v1335
        %v4565 = vunpack.c.l.b16 %v1336
        %v4566 = vunpack.c.h.b16 %v1336
        %v4567 = vunpack.c.l.b16 %v1337
        %v4568 = vunpack.c.h.b16 %v1337
        %v4569 = vunpack.c.l.b16 %v1338
        %v4570 = vunpack.c.h.b16 %v1338
        %v4571 = vunpack.c.l.b16 %v1339
        %v4572 = vunpack.c.h.b16 %v1339
        %v4573 = vunpack.c.l.b16 %v1340
        %v4574 = vunpack.c.h.b16 %v1340
        %v4575 = vunpack.c.l.b16 %v1341
        %v4576 = vunpack.c.h.b16 %v1341
        %v4577 = vunpack.c.l.b16 %v1342
        %v4578 = vunpack.c.h.b16 %v1342
        %v4579 = vunpack.c.l.b16 %v1343
        %v4580 = vunpack.c.h.b16 %v1343
        %v4581 = vunpack.c.l.b16 %v1344
        %v4582 = vunpack.c.h.b16 %v1344
        %v4583 = vunpack.c.l.b16 %v1345
        %v4584 = vunpack.c.h.b16 %v1345
        %v4585 = vunpack.c.l.b16 %v1346
        %v4586 = vunpack.c.h.b16 %v1346
        %v4587 = vunpack.c.l.b16 %v1347
        %v4588 = vunpack.c.h.b16 %v1347
        %v4589 = vunpack.c.l.b16 %v1348
        %v4590 = vunpack.c.h.b16 %v1348
        %v4591 = vunpack.c.l.b16 %v1349
        %v4592 = vunpack.c.h.b16 %v1349
        %v4593 = vunpack.c.l.b16 %v1350
        %v4594 = vunpack.c.h.b16 %v1350
        %v4595 = vunpack.c.l.b16 %v1351
        %v4596 = vunpack.c.h.b16 %v1351
        %v4597 = vunpack.c.l.b16 %v1352
        %v4598 = vunpack.c.h.b16 %v1352
        %v4599 = vunpack.c.l.b16 %v1353
        %v4600 = vunpack.c.h.b16 %v1353
        %v4601 = vunpack.c.l.b16 %v1354
        %v4602 = vunpack.c.h.b16 %v1354
        %v4603 = vunpack.c.l.b16 %v1355
        %v4604 = vunpack.c.h.b16 %v1355
        %v4605 = vunpack.c.l.b16 %v1356
        %v4606 = vunpack.c.h.b16 %v1356
        %v4607 = vunpack.c.l.b16 %v1357
        %v4608 = vunpack.c.h.b16 %v1357
        %v4609 = vunpack.c.l.b16 %v1358
        %v4610 = vunpack.c.h.b16 %v1358
        %v4611 = vunpack.c.l.b16 %v1359
        %v4612 = vunpack.c.h.b16 %v1359
        %v4613 = vunpack.c.l.b16 %v1360
        %v4614 = vunpack.c.h.b16 %v1360
        %v4615 = vunpack.c.l.b16 %v1361
        %v4616 = vunpack.c.h.b16 %v1361
        %v4617 = vunpack.c.l.b16 %v1362
        %v4618 = vunpack.c.h.b16 %v1362
        %v4619 = vunpack.c.l.b16 %v1363
        %v4620 = vunpack.c.h.b16 %v1363
        %v4621 = vunpack.c.l.b16 %v1364
        %v4622 = vunpack.c.h.b16 %v1364
        %v4623 = vunpack.c.l.b16 %v1365
        %v4624 = vunpack.c.h.b16 %v1365
        %v4625 = vunpack.c.l.b16 %v1366
        %v4626 = vunpack.c.h.b16 %v1366
        %v4627 = vunpack.c.l.b16 %v1367
        %v4628 = vunpack.c.h.b16 %v1367
        %v4629 = vunpack.c.l.b16 %v1368
        %v4630 = vunpack.c.h.b16 %v1368
        %v4631 = vunpack.c.l.b16 %v1369
        %v4632 = vunpack.c.h.b16 %v1369
        %v4633 = vunpack.c.l.b16 %v1370
        %v4634 = vunpack.c.h.b16 %v1370
        %v4635 = vunpack.c.l.b16 %v1371
        %v4636 = vunpack.c.h.b16 %v1371
        %v4637 = vunpack.c.l.b16 %v1372
        %v4638 = vunpack.c.h.b16 %v1372
        %v4639 = vunpack.c.l.b16 %v1373
        %v4640 = vunpack.c.h.b16 %v1373
        %v4641 = vunpack.c.l.b16 %v1374
        %v4642 = vunpack.c.h.b16 %v1374
        %v4643 = vunpack.c.l.b16 %v1375
        %v4644 = vunpack.c.h.b16 %v1375
        %v4645 = vunpack.c.l.b16 %v1376
        %v4646 = vunpack.c.h.b16 %v1376
        %v4647 = vunpack.c.l.b16 %v1377
        %v4648 = vunpack.c.h.b16 %v1377
        %v4649 = vunpack.c.l.b16 %v1378
        %v4650 = vunpack.c.h.b16 %v1378
        %v4651 = vunpack.c.l.b16 %v1379
        %v4652 = vunpack.c.h.b16 %v1379
        %v4653 = vunpack.c.l.b16 %v1380
        %v4654 = vunpack.c.h.b16 %v1380
        %v4655 = vunpack.c.l.b16 %v1381
        %v4656 = vunpack.c.h.b16 %v1381
        %v4657 = vunpack.c.l.b16 %v1382
        %v4658 = vunpack.c.h.b16 %v1382
        %v4659 = vunpack.c.l.b16 %v1383
        %v4660 = vunpack.c.h.b16 %v1383
        %v4661 = vunpack.c.l.b16 %v1384
        %v4662 = vunpack.c.h.b16 %v1384
        %v4663 = vunpack.c.l.b16 %v1385
        %v4664 = vunpack.c.h.b16 %v1385
        %v4665 = vunpack.c.l.b16 %v1386
        %v4666 = vunpack.c.h.b16 %v1386
        %v4667 = vunpack.c.l.b16 %v1387
        %v4668 = vunpack.c.h.b16 %v1387
        %v4669 = vunpack.c.l.b16 %v1388
        %v4670 = vunpack.c.h.b16 %v1388
        %v4671 = vunpack.c.l.b16 %v1389
        %v4672 = vunpack.c.h.b16 %v1389
        %v4673 = vunpack.c.l.b16 %v1390
        %v4674 = vunpack.c.h.b16 %v1390
        %v4675 = vunpack.c.l.b16 %v1391
        %v4676 = vunpack.c.h.b16 %v1391
        %v4677 = vunpack.c.l.b16 %v1392
        %v4678 = vunpack.c.h.b16 %v1392
        %v4679 = vunpack.c.l.b16 %v1393
        %v4680 = vunpack.c.h.b16 %v1393
        %v4681 = vunpack.c.l.b16 %v1394
        %v4682 = vunpack.c.h.b16 %v1394
        %v4683 = vunpack.c.l.b16 %v1395
        %v4684 = vunpack.c.h.b16 %v1395
        %v4685 = vunpack.c.l.b16 %v1396
        %v4686 = vunpack.c.h.b16 %v1396
        %v4687 = vunpack.c.l.b16 %v1397
        %v4688 = vunpack.c.h.b16 %v1397
        %v4689 = vunpack.c.l.b16 %v1398
        %v4690 = vunpack.c.h.b16 %v1398
        %v4691 = vunpack.c.l.b16 %v1399
        %v4692 = vunpack.c.h.b16 %v1399
        %v4693 = vunpack.c.l.b16 %v1400
        %v4694 = vunpack.c.h.b16 %v1400
        %v4695 = vunpack.c.l.b16 %v1401
        %v4696 = vunpack.c.h.b16 %v1401
        %v4697 = vunpack.c.l.b16 %v1402
        %v4698 = vunpack.c.h.b16 %v1402
        %v4699 = vunpack.c.l.b16 %v1403
        %v4700 = vunpack.c.h.b16 %v1403
        %v4701 = vunpack.c.l.b16 %v1404
        %v4702 = vunpack.c.h.b16 %v1404
        %v4703 = vunpack.c.l.b16 %v1405
        %v4704 = vunpack.c.h.b16 %v1405
        %v4705 = vunpack.c.l.b16 %v1406
        %v4706 = vunpack.c.h.b16 %v1406
        %v4707 = vunpack.c.l.b16 %v1407
        %v4708 = vunpack.c.h.b16 %v1407
        %v4709 = vunpack.c.l.b16 %v1408
        %v4710 = vunpack.c.h.b16 %v1408
        %v4711 = vunpack.c.l.b16 %v1409
        %v4712 = vunpack.c.h.b16 %v1409
        %v4713 = vunpack.c.l.b16 %v1410
        %v4714 = vunpack.c.h.b16 %v1410
        %v4715 = vunpack.c.l.b16 %v1411
        %v4716 = vunpack.c.h.b16 %v1411
        %v4717 = vunpack.c.l.b16 %v1412
        %v4718 = vunpack.c.h.b16 %v1412
        %v4719 = vunpack.c.l.b16 %v1413
        %v4720 = vunpack.c.h.b16 %v1413
        %v4721 = vunpack.c.l.b16 %v1414
        %v4722 = vunpack.c.h.b16 %v1414
        %v4723 = vunpack.c.l.b16 %v1415
        %v4724 = vunpack.c.h.b16 %v1415
        %v4725 = vunpack.c.l.b16 %v1416
        %v4726 = vunpack.c.h.b16 %v1416
        %v4727 = vunpack.c.l.b16 %v1417
        %v4728 = vunpack.c.h.b16 %v1417
        %v4729 = vunpack.c.l.b16 %v1418
        %v4730 = vunpack.c.h.b16 %v1418
        %v4731 = vunpack.c.l.b16 %v1419
        %v4732 = vunpack.c.h.b16 %v1419
        %v4733 = vunpack.c.l.b16 %v1420
        %v4734 = vunpack.c.h.b16 %v1420
        %v4735 = vunpack.c.l.b16 %v1421
        %v4736 = vunpack.c.h.b16 %v1421
        %v4737 = vunpack.c.l.b16 %v1422
        %v4738 = vunpack.c.h.b16 %v1422
        %v4739 = vunpack.c.l.b16 %v1423
        %v4740 = vunpack.c.h.b16 %v1423
        %v4741 = vunpack.c.l.b16 %v1424
        %v4742 = vunpack.c.h.b16 %v1424
        %v4743 = vunpack.c.l.b16 %v1425
        %v4744 = vunpack.c.h.b16 %v1425
        %v4745 = vunpack.c.l.b16 %v1426
        %v4746 = vunpack.c.h.b16 %v1426
        %v4747 = vunpack.c.l.b16 %v1427
        %v4748 = vunpack.c.h.b16 %v1427
        %v4749 = vunpack.c.l.b16 %v1428
        %v4750 = vunpack.c.h.b16 %v1428
        %v4751 = vunpack.c.l.b16 %v1429
        %v4752 = vunpack.c.h.b16 %v1429
        %v4753 = vunpack.c.l.b16 %v1430
        %v4754 = vunpack.c.h.b16 %v1430
        %v4755 = vunpack.c.l.b16 %v1431
        %v4756 = vunpack.c.h.b16 %v1431
        %v4757 = vunpack.c.l.b16 %v1432
        %v4758 = vunpack.c.h.b16 %v1432
        %v4759 = vunpack.c.l.b16 %v1433
        %v4760 = vunpack.c.h.b16 %v1433
        %v4761 = vunpack.c.l.b16 %v1434
        %v4762 = vunpack.c.h.b16 %v1434
        %v4763 = vpack.c.b16 %v4253, %v4251
        %v4764 = vpack.c.b16 %v4254, %v4252
        %v4765 = vpack.c.b16 %v4257, %v4255
        %v4766 = vpack.c.b16 %v4258, %v4256
        %v4767 = vpack.c.b16 %v4261, %v4259
        %v4768 = vpack.c.b16 %v4262, %v4260
        %v4769 = vpack.c.b16 %v4265, %v4263
        %v4770 = vpack.c.b16 %v4266, %v4264
        %v4771 = vpack.c.b16 %v4269, %v4267
        %v4772 = vpack.c.b16 %v4270, %v4268
        %v4773 = vpack.c.b16 %v4273, %v4271
        %v4774 = vpack.c.b16 %v4274, %v4272
        %v4775 = vpack.c.b16 %v4277, %v4275
        %v4776 = vpack.c.b16 %v4278, %v4276
        %v4777 = vpack.c.b16 %v4281, %v4279
        %v4778 = vpack.c.b16 %v4282, %v4280
        %v4779 = vpack.c.b16 %v4285, %v4283
        %v4780 = vpack.c.b16 %v4286, %v4284
        %v4781 = vpack.c.b16 %v4289, %v4287
        %v4782 = vpack.c.b16 %v4290, %v4288
        %v4783 = vpack.c.b16 %v4293, %v4291
        %v4784 = vpack.c.b16 %v4294, %v4292
        %v4785 = vpack.c.b16 %v4297, %v4295
        %v4786 = vpack.c.b16 %v4298, %v4296
        %v4787 = vpack.c.b16 %v4301, %v4299
        %v4788 = vpack.c.b16 %v4302, %v4300
        %v4789 = vpack.c.b16 %v4305, %v4303
        %v4790 = vpack.c.b16 %v4306, %v4304
        %v4791 = vpack.c.b16 %v4309, %v4307
        %v4792 = vpack.c.b16 %v4310, %v4308
        %v4793 = vpack.c.b16 %v4313, %v4311
        %v4794 = vpack.c.b16 %v4314, %v4312
        %v4795 = vpack.c.b16 %v4317, %v4315
        %v4796 = vpack.c.b16 %v4318, %v4316
        %v4797 = vpack.c.b16 %v4321, %v4319
        %v4798 = vpack.c.b16 %v4322, %v4320
        %v4799 = vpack.c.b16 %v4325, %v4323
        %v4800 = vpack.c.b16 %v4326, %v4324
        %v4801 = vpack.c.b16 %v4329, %v4327
        %v4802 = vpack.c.b16 %v4330, %v4328
        %v4803 = vpack.c.b16 %v4333, %v4331
        %v4804 = vpack.c.b16 %v4334, %v4332
        %v4805 = vpack.c.b16 %v4337, %v4335
        %v4806 = vpack.c.b16 %v4338, %v4336
        %v4807 = vpack.c.b16 %v4341, %v4339
        %v4808 = vpack.c.b16 %v4342, %v4340
        %v4809 = vpack.c.b16 %v4345, %v4343
        %v4810 = vpack.c.b16 %v4346, %v4344
        %v4811 = vpack.c.b16 %v4349, %v4347
        %v4812 = vpack.c.b16 %v4350, %v4348
        %v4813 = vpack.c.b16 %v4353, %v4351
        %v4814 = vpack.c.b16 %v4354, %v4352
        %v4815 = vpack.c.b16 %v4357, %v4355
        %v4816 = vpack.c.b16 %v4358, %v4356
        %v4817 = vpack.c.b16 %v4361, %v4359
        %v4818 = vpack.c.b16 %v4362, %v4360
        %v4819 = vpack.c.b16 %v4365, %v4363
        %v4820 = vpack.c.b16 %v4366, %v4364
        %v4821 = vpack.c.b16 %v4369, %v4367
        %v4822 = vpack.c.b16 %v4370, %v4368
        %v4823 = vpack.c.b16 %v4373, %v4371
        %v4824 = vpack.c.b16 %v4374, %v4372
        %v4825 = vpack.c.b16 %v4377, %v4375
        %v4826 = vpack.c.b16 %v4378, %v4376
        %v4827 = vpack.c.b16 %v4381, %v4379
        %v4828 = vpack.c.b16 %v4382, %v4380
        %v4829 = vpack.c.b16 %v4385, %v4383
        %v4830 = vpack.c.b16 %v4386, %v4384
        %v4831 = vpack.c.b16 %v4389, %v4387
        %v4832 = vpack.c.b16 %v4390, %v4388
        %v4833 = vpack.c.b16 %v4393, %v4391
        %v4834 = vpack.c.b16 %v4394, %v4392
        %v4835 = vpack.c.b16 %v4397, %v4395
        %v4836 = vpack.c.b16 %v4398, %v4396
        %v4837 = vpack.c.b16 %v4401, %v4399
        %v4838 = vpack.c.b16 %v4402, %v4400
        %v4839 = vpack.c.b16 %v4405, %v4403
        %v4840 = vpack.c.b16 %v4406, %v4404
        %v4841 = vpack.c.b16 %v4409, %v4407
        %v4842 = vpack.c.b16 %v4410, %v4408
        %v4843 = vpack.c.b16 %v4413, %v4411
        %v4844 = vpack.c.b16 %v4414, %v4412
        %v4845 = vpack.c.b16 %v4417, %v4415
        %v4846 = vpack.c.b16 %v4418, %v4416
        %v4847 = vpack.c.b16 %v4421, %v4419
        %v4848 = vpack.c.b16 %v4422, %v4420
        %v4849 = vpack.c.b16 %v4425, %v4423
        %v4850 = vpack.c.b16 %v4426, %v4424
        %v4851 = vpack.c.b16 %v4429, %v4427
        %v4852 = vpack.c.b16 %v4430, %v4428
        %v4853 = vpack.c.b16 %v4433, %v4431
        %v4854 = vpack.c.b16 %v4434, %v4432
        %v4855 = vpack.c.b16 %v4437, %v4435
        %v4856 = vpack.c.b16 %v4438, %v4436
        %v4857 = vpack.c.b16 %v4441, %v4439
        %v4858 = vpack.c.b16 %v4442, %v4440
        %v4859 = vpack.c.b16 %v4445, %v4443
        %v4860 = vpack.c.b16 %v4446, %v4444
        %v4861 = vpack.c.b16 %v4449, %v4447
        %v4862 = vpack.c.b16 %v4450, %v4448
        %v4863 = vpack.c.b16 %v4453, %v4451
        %v4864 = vpack.c.b16 %v4454, %v4452
        %v4865 = vpack.c.b16 %v4457, %v4455
        %v4866 = vpack.c.b16 %v4458, %v4456
        %v4867 = vpack.c.b16 %v4461, %v4459
        %v4868 = vpack.c.b16 %v4462, %v4460
        %v4869 = vpack.c.b16 %v4465, %v4463
        %v4870 = vpack.c.b16 %v4466, %v4464
        %v4871 = vpack.c.b16 %v4469, %v4467
        %v4872 = vpack.c.b16 %v4470, %v4468
        %v4873 = vpack.c.b16 %v4473, %v4471
        %v4874 = vpack.c.b16 %v4474, %v4472
        %v4875 = vpack.c.b16 %v4477, %v4475
        %v4876 = vpack.c.b16 %v4478, %v4476
        %v4877 = vpack.c.b16 %v4481, %v4479
        %v4878 = vpack.c.b16 %v4482, %v4480
        %v4879 = vpack.c.b16 %v4485, %v4483
        %v4880 = vpack.c.b16 %v4486, %v4484
        %v4881 = vpack.c.b16 %v4489, %v4487
        %v4882 = vpack.c.b16 %v4490, %v4488
        %v4883 = vpack.c.b16 %v4493, %v4491
        %v4884 = vpack.c.b16 %v4494, %v4492
        %v4885 = vpack.c.b16 %v4497, %v4495
        %v4886 = vpack.c.b16 %v4498, %v4496
        %v4887 = vpack.c.b16 %v4501, %v4499
        %v4888 = vpack.c.b16 %v4502, %v4500
        %v4889 = vpack.c.b16 %v4505, %v4503
        %v4890 = vpack.c.b16 %v4506, %v4504
        %v4891 = vpack.c.b16 %v4509, %v4507
        %v4892 = vpack.c.b16 %v4510, %v4508
        %v4893 = vpack.c.b16 %v4513, %v4511
        %v4894 = vpack.c.b16 %v4514, %v4512
        %v4895 = vpack.c.b16 %v4517, %v4515
        %v4896 = vpack.c.b16 %v4518, %v4516
        %v4897 = vpack.c.b16 %v4521, %v4519
        %v4898 = vpack.c.b16 %v4522, %v4520
        %v4899 = vpack.c.b16 %v4525, %v4523
        %v4900 = vpack.c.b16 %v4526, %v4524
        %v4901 = vpack.c.b16 %v4529, %v4527
        %v4902 = vpack.c.b16 %v4530, %v4528
        %v4903 = vpack.c.b16 %v4533, %v4531
        %v4904 = vpack.c.b16 %v4534, %v4532
        %v4905 = vpack.c.b16 %v4537, %v4535
        %v4906 = vpack.c.b16 %v4538, %v4536
        %v4907 = vpack.c.b16 %v4541, %v4539
        %v4908 = vpack.c.b16 %v4542, %v4540
        %v4909 = vpack.c.b16 %v4545, %v4543
        %v4910 = vpack.c.b16 %v4546, %v4544
        %v4911 = vpack.c.b16 %v4549, %v4547
        %v4912 = vpack.c.b16 %v4550, %v4548
        %v4913 = vpack.c.b16 %v4553, %v4551
        %v4914 = vpack.c.b16 %v4554, %v4552
        %v4915 = vpack.c.b16 %v4557, %v4555
        %v4916 = vpack.c.b16 %v4558, %v4556
        %v4917 = vpack.c.b16 %v4561, %v4559
        %v4918 = vpack.c.b16 %v4562, %v4560
        %v4919 = vpack.c.b16 %v4565, %v4563
        %v4920 = vpack.c.b16 %v4566, %v4564
        %v4921 = vpack.c.b16 %v4569, %v4567
        %v4922 = vpack.c.b16 %v4570, %v4568
        %v4923 = vpack.c.b16 %v4573, %v4571
        %v4924 = vpack.c.b16 %v4574, %v4572
        %v4925 = vpack.c.b16 %v4577, %v4575
        %v4926 = vpack.c.b16 %v4578, %v4576
        %v4927 = vpack.c.b16 %v4581, %v4579
        %v4928 = vpack.c.b16 %v4582, %v4580
        %v4929 = vpack.c.b16 %v4585, %v4583
        %v4930 = vpack.c.b16 %v4586, %v4584
        %v4931 = vpack.c.b16 %v4589, %v4587
        %v4932 = vpack.c.b16 %v4590, %v4588
        %v4933 = vpack.c.b16 %v4593, %v4591
        %v4934 = vpack.c.b16 %v4594, %v4592
        %v4935 = vpack.c.b16 %v4597, %v4595
        %v4936 = vpack.c.b16 %v4598, %v4596
        %v4937 = vpack.c.b16 %v4601, %v4599
        %v4938 = vpack.c.b16 %v4602, %v4600
        %v4939 = vpack.c.b16 %v4605, %v4603
        %v4940 = vpack.c.b16 %v4606, %v4604
        %v4941 = vpack.c.b16 %v4609, %v4607
        %v4942 = vpack.c.b16 %v4610, %v4608
        %v4943 = vpack.c.b16 %v4613, %v4611
        %v4944 = vpack.c.b16 %v4614, %v4612
        %v4945 = vpack.c.b16 %v4617, %v4615
        %v4946 = vpack.c.b16 %v4618, %v4616
        %v4947 = vpack.c.b16 %v4621, %v4619
        %v4948 = vpack.c.b16 %v4622, %v4620
        %v4949 = vpack.c.b16 %v4625, %v4623
        %v4950 = vpack.c.b16 %v4626, %v4624
        %v4951 = vpack.c.b16 %v4629, %v4627
        %v4952 = vpack.c.b16 %v4630, %v4628
        %v4953 = vpack.c.b16 %v4633, %v4631
        %v4954 = vpack.c.b16 %v4634, %v4632
        %v4955 = vpack.c.b16 %v4637, %v4635
        %v4956 = vpack.c.b16 %v4638, %v4636
        %v4957 = vpack.c.b16 %v4641, %v4639
        %v4958 = vpack.c.b16 %v4642, %v4640
        %v4959 = vpack.c.b16 %v4645, %v4643
        %v4960 = vpack.c.b16 %v4646, %v4644
        %v4961 = vpack.c.b16 %v4649, %v4647
        %v4962 = vpack.c.b16 %v4650, %v4648
        %v4963 = vpack.c.b16 %v4653, %v4651
        %v4964 = vpack.c.b16 %v4654, %v4652
        %v4965 = vpack.c.b16 %v4657, %v4655
        %v4966 = vpack.c.b16 %v4658, %v4656
        %v4967 = vpack.c.b16 %v4661, %v4659
        %v4968 = vpack.c.b16 %v4662, %v4660
        %v4969 = vpack.c.b16 %v4665, %v4663
        %v4970 = vpack.c.b16 %v4666, %v4664
        %v4971 = vpack.c.b16 %v4669, %v4667
        %v4972 = vpack.c.b16 %v4670, %v4668
        %v4973 = vpack.c.b16 %v4673, %v4671
        %v4974 = vpack.c.b16 %v4674, %v4672
        %v4975 = vpack.c.b16 %v4677, %v4675
        %v4976 = vpack.c.b16 %v4678, %v4676
        %v4977 = vpack.c.b16 %v4681, %v4679
        %v4978 = vpack.c.b16 %v4682, %v4680
        %v4979 = vpack.c.b16 %v4685, %v4683
        %v4980 = vpack.c.b16 %v4686, %v4684
        %v4981 = vpack.c.b16 %v4689, %v4687
        %v4982 = vpack.c.b16 %v4690, %v4688
        %v4983 = vpack.c.b16 %v4693, %v4691
        %v4984 = vpack.c.b16 %v4694, %v4692
        %v4985 = vpack.c.b16 %v4697, %v4695
        %v4986 = vpack.c.b16 %v4698, %v4696
        %v4987 = vpack.c.b16 %v4701, %v4699
        %v4988 = vpack.c.b16 %v4702, %v4700
        %v4989 = vpack.c.b16 %v4705, %v4703
        %v4990 = vpack.c.b16 %v4706, %v4704
        %v4991 = vpack.c.b16 %v4709, %v4707
        %v4992 = vpack.c.b16 %v4710, %v4708
        %v4993 = vpack.c.b16 %v4713, %v4711
        %v4994 = vpack.c.b16 %v4714, %v4712
        %v4995 = vpack.c.b16 %v4717, %v4715
        %v4996 = vpack.c.b16 %v4718, %v4716
        %v4997 = vpack.c.b16 %v4721, %v4719
        %v4998 = vpack.c.b16 %v4722, %v4720
        %v4999 = vpack.c.b16 %v4725, %v4723
        %v5000 = vpack.c.b16 %v4726, %v4724
        %v5001 = vpack.c.b16 %v4729, %v4727
        %v5002 = vpack.c.b16 %v4730, %v4728
        %v5003 = vpack.c.b16 %v4733, %v4731
        %v5004 = vpack.c.b16 %v4734, %v4732
        %v5005 = vpack.c.b16 %v4737, %v4735
        %v5006 = vpack.c.b16 %v4738, %v4736
        %v5007 = vpack.c.b16 %v4741, %v4739
        %v5008 = vpack.c.b16 %v4742, %v4740
        %v5009 = vpack.c.b16 %v4745, %v4743
        %v5010 = vpack.c.b16 %v4746, %v4744
        %v5011 = vpack.c.b16 %v4749, %v4747
        %v5012 = vpack.c.b16 %v4750, %v4748
        %v5013 = vpack.c.b16 %v4753, %v4751
        %v5014 = vpack.c.b16 %v4754, %v4752
        %v5015 = vpack.c.b16 %v4757, %v4755
        %v5016 = vpack.c.b16 %v4758, %v4756
        %v5017 = vpack.c.b16 %v4761, %v4759
        %v5018 = vpack.c.b16 %v4762, %v4760
        %5275 = vmatprep.subr.bf16.mxu0 %v4778
        %5276 = vmatpush1.bf16.msra.mxu0 %v4777
        %5277 = vmatprep.subr.bf16.mxu0 %v4776
        %5278 = vmatpush1.bf16.msra.mxu0 %v4775
        %5279 = vmatprep.subr.bf16.mxu0 %v4774
        %5280 = vmatpush1.bf16.msra.mxu0 %v4773
        %5281 = vmatprep.subr.bf16.mxu0 %v4772
        %5282 = vmatpush1.bf16.msra.mxu0 %v4771
        %5283 = vmatprep.subr.bf16.mxu0 %v4770
        %5284 = vmatpush1.bf16.msra.mxu0 %v4769
        %5285 = vmatprep.subr.bf16.mxu0 %v4768
        %5286 = vmatpush1.bf16.msra.mxu0 %v4767
        %5287 = vmatprep.subr.bf16.mxu0 %v4766
        %5288 = vmatpush1.bf16.msra.mxu0 %v4765
        %5289 = vmatprep.subr.bf16.mxu0 %v4764
        %5290 = vmatpush1.bf16.msra.mxu0 %v4763
        %5291 = vmatprep.subr.bf16.mxu0 %v4794
        %5292 = vmatpush2.bf16.msra.mxu0 %v4793
        %5293 = vmatprep.subr.bf16.mxu0 %v4792
        %5294 = vmatpush2.bf16.msra.mxu0 %v4791
        %5295 = vmatprep.subr.bf16.mxu0 %v4790
        %5296 = vmatpush2.bf16.msra.mxu0 %v4789
        %5297 = vmatprep.subr.bf16.mxu0 %v4788
        %5298 = vmatpush2.bf16.msra.mxu0 %v4787
        %5299 = vmatprep.subr.bf16.mxu0 %v4786
        %5300 = vmatpush2.bf16.msra.mxu0 %v4785
        %5301 = vmatprep.subr.bf16.mxu0 %v4784
        %5302 = vmatpush2.bf16.msra.mxu0 %v4783
        %5303 = vmatprep.subr.bf16.mxu0 %v4782
        %5304 = vmatpush2.bf16.msra.mxu0 %v4781
        %5305 = vmatprep.subr.bf16.mxu0 %v4780
        %5306 = vmatpush2.bf16.msra.mxu0 %v4779
        %5307 = vmatprep.mubr.bf16.mxu0 %v2972
        %5308 = vmatmul.mubr.bf16.gmra.mxu0 %v2971
        %v5309 = vpop.f32.mrf.mxu0
        %v5310 = vadd.f32 0.0, %v5309
        %v5311 = vpop.f32.mrf.mxu0
        %v5312 = vadd.f32 0.0, %v5311
        %v5313 = vpop.f32.mrf.mxu0
        %v5314 = vadd.f32 0.0, %v5313
        %v5315 = vpop.f32.mrf.mxu0
        %v5316 = vadd.f32 0.0, %v5315
        %5317 = vmatprep.mubr.bf16.mxu0 %v2988
        %5318 = vmatmul.mubr.bf16.gmra.mxu0 %v2987
        %v5319 = vpop.f32.mrf.mxu0
        %v5320 = vadd.f32 0.0, %v5319
        %v5321 = vpop.f32.mrf.mxu0
        %v5322 = vadd.f32 0.0, %v5321
        %v5323 = vpop.f32.mrf.mxu0
        %v5324 = vadd.f32 0.0, %v5323
        %v5325 = vpop.f32.mrf.mxu0
        %v5326 = vadd.f32 0.0, %v5325
        %5327 = vmatprep.mubr.bf16.mxu0 %v3004
        %5328 = vmatmul.mubr.bf16.gmra.mxu0 %v3003
        %v5329 = vpop.f32.mrf.mxu0
        %v5330 = vadd.f32 0.0, %v5329
        %v5331 = vpop.f32.mrf.mxu0
        %v5332 = vadd.f32 0.0, %v5331
        %v5333 = vpop.f32.mrf.mxu0
        %v5334 = vadd.f32 0.0, %v5333
        %v5335 = vpop.f32.mrf.mxu0
        %v5336 = vadd.f32 0.0, %v5335
        %5337 = vmatprep.mubr.bf16.mxu0 %v3020
        %5338 = vmatmul.mubr.bf16.gmra.mxu0 %v3019
        %v5339 = vpop.f32.mrf.mxu0
        %v5340 = vadd.f32 0.0, %v5339
        %v5341 = vpop.f32.mrf.mxu0
        %v5342 = vadd.f32 0.0, %v5341
        %v5343 = vpop.f32.mrf.mxu0
        %v5344 = vadd.f32 0.0, %v5343
        %v5345 = vpop.f32.mrf.mxu0
        %v5346 = vadd.f32 0.0, %v5345
        %5347 = vmatprep.mubr.bf16.mxu0 %v3036
        %5348 = vmatmul.mubr.bf16.gmra.mxu0 %v3035
        %v5349 = vpop.f32.mrf.mxu0
        %v5350 = vadd.f32 0.0, %v5349
        %v5351 = vpop.f32.mrf.mxu0
        %v5352 = vadd.f32 0.0, %v5351
        %v5353 = vpop.f32.mrf.mxu0
        %v5354 = vadd.f32 0.0, %v5353
        %v5355 = vpop.f32.mrf.mxu0
        %v5356 = vadd.f32 0.0, %v5355
        %5357 = vmatprep.mubr.bf16.mxu0 %v3052
        %5358 = vmatmul.mubr.bf16.gmra.mxu0 %v3051
        %v5359 = vpop.f32.mrf.mxu0
        %v5360 = vadd.f32 0.0, %v5359
        %v5361 = vpop.f32.mrf.mxu0
        %v5362 = vadd.f32 0.0, %v5361
        %v5363 = vpop.f32.mrf.mxu0
        %v5364 = vadd.f32 0.0, %v5363
        %v5365 = vpop.f32.mrf.mxu0
        %v5366 = vadd.f32 0.0, %v5365
        %5367 = vmatprep.mubr.bf16.mxu0 %v3068
        %5368 = vmatmul.mubr.bf16.gmra.mxu0 %v3067
        %v5369 = vpop.f32.mrf.mxu0
        %v5370 = vadd.f32 0.0, %v5369
        %v5371 = vpop.f32.mrf.mxu0
        %v5372 = vadd.f32 0.0, %v5371
        %v5373 = vpop.f32.mrf.mxu0
        %v5374 = vadd.f32 0.0, %v5373
        %v5375 = vpop.f32.mrf.mxu0
        %v5376 = vadd.f32 0.0, %v5375
        %5377 = vmatprep.mubr.bf16.mxu0 %v3084
        %5378 = vmatmul.mubr.bf16.gmra.mxu0 %v3083
        %v5379 = vpop.f32.mrf.mxu0
        %v5380 = vadd.f32 0.0, %v5379
        %v5381 = vpop.f32.mrf.mxu0
        %v5382 = vadd.f32 0.0, %v5381
        %v5383 = vpop.f32.mrf.mxu0
        %v5384 = vadd.f32 0.0, %v5383
        %v5385 = vpop.f32.mrf.mxu0
        %v5386 = vadd.f32 0.0, %v5385
        %5387 = vmatprep.mubr.bf16.mxu0 %v3100
        %5388 = vmatmul.mubr.bf16.gmra.mxu0 %v3099
        %v5389 = vpop.f32.mrf.mxu0
        %v5390 = vadd.f32 0.0, %v5389
        %v5391 = vpop.f32.mrf.mxu0
        %v5392 = vadd.f32 0.0, %v5391
        %v5393 = vpop.f32.mrf.mxu0
        %v5394 = vadd.f32 0.0, %v5393
        %v5395 = vpop.f32.mrf.mxu0
        %v5396 = vadd.f32 0.0, %v5395
        %5397 = vmatprep.mubr.bf16.mxu0 %v3116
        %5398 = vmatmul.mubr.bf16.gmra.mxu0 %v3115
        %v5399 = vpop.f32.mrf.mxu0
        %v5400 = vadd.f32 0.0, %v5399
        %v5401 = vpop.f32.mrf.mxu0
        %v5402 = vadd.f32 0.0, %v5401
        %v5403 = vpop.f32.mrf.mxu0
        %v5404 = vadd.f32 0.0, %v5403
        %v5405 = vpop.f32.mrf.mxu0
        %v5406 = vadd.f32 0.0, %v5405
        %5407 = vmatprep.mubr.bf16.mxu0 %v3132
        %5408 = vmatmul.mubr.bf16.gmra.mxu0 %v3131
        %v5409 = vpop.f32.mrf.mxu0
        %v5410 = vadd.f32 0.0, %v5409
        %v5411 = vpop.f32.mrf.mxu0
        %v5412 = vadd.f32 0.0, %v5411
        %v5413 = vpop.f32.mrf.mxu0
        %v5414 = vadd.f32 0.0, %v5413
        %v5415 = vpop.f32.mrf.mxu0
        %v5416 = vadd.f32 0.0, %v5415
        %5417 = vmatprep.mubr.bf16.mxu0 %v3148
        %5418 = vmatmul.mubr.bf16.gmra.mxu0 %v3147
        %v5419 = vpop.f32.mrf.mxu0
        %v5420 = vadd.f32 0.0, %v5419
        %v5421 = vpop.f32.mrf.mxu0
        %v5422 = vadd.f32 0.0, %v5421
        %v5423 = vpop.f32.mrf.mxu0
        %v5424 = vadd.f32 0.0, %v5423
        %v5425 = vpop.f32.mrf.mxu0
        %v5426 = vadd.f32 0.0, %v5425
        %5427 = vmatprep.mubr.bf16.mxu0 %v3164
        %5428 = vmatmul.mubr.bf16.gmra.mxu0 %v3163
        %v5429 = vpop.f32.mrf.mxu0
        %v5430 = vadd.f32 0.0, %v5429
        %v5431 = vpop.f32.mrf.mxu0
        %v5432 = vadd.f32 0.0, %v5431
        %v5433 = vpop.f32.mrf.mxu0
        %v5434 = vadd.f32 0.0, %v5433
        %v5435 = vpop.f32.mrf.mxu0
        %v5436 = vadd.f32 0.0, %v5435
        %5437 = vmatprep.mubr.bf16.mxu0 %v3180
        %5438 = vmatmul.mubr.bf16.gmra.mxu0 %v3179
        %v5439 = vpop.f32.mrf.mxu0
        %v5440 = vadd.f32 0.0, %v5439
        %v5441 = vpop.f32.mrf.mxu0
        %v5442 = vadd.f32 0.0, %v5441
        %v5443 = vpop.f32.mrf.mxu0
        %v5444 = vadd.f32 0.0, %v5443
        %v5445 = vpop.f32.mrf.mxu0
        %v5446 = vadd.f32 0.0, %v5445
        %5447 = vmatprep.mubr.bf16.mxu0 %v3196
        %5448 = vmatmul.mubr.bf16.gmra.mxu0 %v3195
        %v5449 = vpop.f32.mrf.mxu0
        %v5450 = vadd.f32 0.0, %v5449
        %v5451 = vpop.f32.mrf.mxu0
        %v5452 = vadd.f32 0.0, %v5451
        %v5453 = vpop.f32.mrf.mxu0
        %v5454 = vadd.f32 0.0, %v5453
        %v5455 = vpop.f32.mrf.mxu0
        %v5456 = vadd.f32 0.0, %v5455
        %5457 = vmatprep.mubr.bf16.mxu0 %v3212
        %5458 = vmatmul.mubr.bf16.gmra.mxu0 %v3211
        %v5459 = vpop.f32.mrf.mxu0
        %v5460 = vadd.f32 0.0, %v5459
        %v5461 = vpop.f32.mrf.mxu0
        %v5462 = vadd.f32 0.0, %v5461
        %v5463 = vpop.f32.mrf.mxu0
        %v5464 = vadd.f32 0.0, %v5463
        %v5465 = vpop.f32.mrf.mxu0
        %v5466 = vadd.f32 0.0, %v5465
        %5467 = vmatprep.mubr.bf16.mxu0 %v3228
        %5468 = vmatmul.mubr.bf16.gmra.mxu0 %v3227
        %v5469 = vpop.f32.mrf.mxu0
        %v5470 = vadd.f32 0.0, %v5469
        %v5471 = vpop.f32.mrf.mxu0
        %v5472 = vadd.f32 0.0, %v5471
        %v5473 = vpop.f32.mrf.mxu0
        %v5474 = vadd.f32 0.0, %v5473
        %v5475 = vpop.f32.mrf.mxu0
        %v5476 = vadd.f32 0.0, %v5475
        %5477 = vmatprep.mubr.bf16.mxu0 %v3244
        %5478 = vmatmul.mubr.bf16.gmra.mxu0 %v3243
        %v5479 = vpop.f32.mrf.mxu0
        %v5480 = vadd.f32 0.0, %v5479
        %v5481 = vpop.f32.mrf.mxu0
        %v5482 = vadd.f32 0.0, %v5481
        %v5483 = vpop.f32.mrf.mxu0
        %v5484 = vadd.f32 0.0, %v5483
        %v5485 = vpop.f32.mrf.mxu0
        %v5486 = vadd.f32 0.0, %v5485
        %5487 = vmatprep.mubr.bf16.mxu0 %v3260
        %5488 = vmatmul.mubr.bf16.gmra.mxu0 %v3259
        %v5489 = vpop.f32.mrf.mxu0
        %v5490 = vadd.f32 0.0, %v5489
        %v5491 = vpop.f32.mrf.mxu0
        %v5492 = vadd.f32 0.0, %v5491
        %v5493 = vpop.f32.mrf.mxu0
        %v5494 = vadd.f32 0.0, %v5493
        %v5495 = vpop.f32.mrf.mxu0
        %v5496 = vadd.f32 0.0, %v5495
        %5497 = vmatprep.mubr.bf16.mxu0 %v3276
        %5498 = vmatmul.mubr.bf16.gmra.mxu0 %v3275
        %v5499 = vpop.f32.mrf.mxu0
        %v5500 = vadd.f32 0.0, %v5499
        %v5501 = vpop.f32.mrf.mxu0
        %v5502 = vadd.f32 0.0, %v5501
        %v5503 = vpop.f32.mrf.mxu0
        %v5504 = vadd.f32 0.0, %v5503
        %v5505 = vpop.f32.mrf.mxu0
        %v5506 = vadd.f32 0.0, %v5505
        %5507 = vmatprep.mubr.bf16.mxu0 %v3292
        %5508 = vmatmul.mubr.bf16.gmra.mxu0 %v3291
        %v5509 = vpop.f32.mrf.mxu0
        %v5510 = vadd.f32 0.0, %v5509
        %v5511 = vpop.f32.mrf.mxu0
        %v5512 = vadd.f32 0.0, %v5511
        %v5513 = vpop.f32.mrf.mxu0
        %v5514 = vadd.f32 0.0, %v5513
        %v5515 = vpop.f32.mrf.mxu0
        %v5516 = vadd.f32 0.0, %v5515
        %5517 = vmatprep.mubr.bf16.mxu0 %v3308
        %5518 = vmatmul.mubr.bf16.gmra.mxu0 %v3307
        %v5519 = vpop.f32.mrf.mxu0
        %v5520 = vadd.f32 0.0, %v5519
        %v5521 = vpop.f32.mrf.mxu0
        %v5522 = vadd.f32 0.0, %v5521
        %v5523 = vpop.f32.mrf.mxu0
        %v5524 = vadd.f32 0.0, %v5523
        %v5525 = vpop.f32.mrf.mxu0
        %v5526 = vadd.f32 0.0, %v5525
        %5527 = vmatprep.mubr.bf16.mxu0 %v3324
        %5528 = vmatmul.mubr.bf16.gmra.mxu0 %v3323
        %v5529 = vpop.f32.mrf.mxu0
        %v5530 = vadd.f32 0.0, %v5529
        %v5531 = vpop.f32.mrf.mxu0
        %v5532 = vadd.f32 0.0, %v5531
        %v5533 = vpop.f32.mrf.mxu0
        %v5534 = vadd.f32 0.0, %v5533
        %v5535 = vpop.f32.mrf.mxu0
        %v5536 = vadd.f32 0.0, %v5535
        %5537 = vmatprep.mubr.bf16.mxu0 %v3340
        %5538 = vmatmul.mubr.bf16.gmra.mxu0 %v3339
        %v5539 = vpop.f32.mrf.mxu0
        %v5540 = vadd.f32 0.0, %v5539
        %v5541 = vpop.f32.mrf.mxu0
        %v5542 = vadd.f32 0.0, %v5541
        %v5543 = vpop.f32.mrf.mxu0
        %v5544 = vadd.f32 0.0, %v5543
        %v5545 = vpop.f32.mrf.mxu0
        %v5546 = vadd.f32 0.0, %v5545
        %5547 = vmatprep.mubr.bf16.mxu0 %v3356
        %5548 = vmatmul.mubr.bf16.gmra.mxu0 %v3355
        %v5549 = vpop.f32.mrf.mxu0
        %v5550 = vadd.f32 0.0, %v5549
        %v5551 = vpop.f32.mrf.mxu0
        %v5552 = vadd.f32 0.0, %v5551
        %v5553 = vpop.f32.mrf.mxu0
        %v5554 = vadd.f32 0.0, %v5553
        %v5555 = vpop.f32.mrf.mxu0
        %v5556 = vadd.f32 0.0, %v5555
        %5557 = vmatprep.mubr.bf16.mxu0 %v3372
        %5558 = vmatmul.mubr.bf16.gmra.mxu0 %v3371
        %v5559 = vpop.f32.mrf.mxu0
        %v5560 = vadd.f32 0.0, %v5559
        %v5561 = vpop.f32.mrf.mxu0
        %v5562 = vadd.f32 0.0, %v5561
        %v5563 = vpop.f32.mrf.mxu0
        %v5564 = vadd.f32 0.0, %v5563
        %v5565 = vpop.f32.mrf.mxu0
        %v5566 = vadd.f32 0.0, %v5565
        %5567 = vmatprep.mubr.bf16.mxu0 %v3388
        %5568 = vmatmul.mubr.bf16.gmra.mxu0 %v3387
        %v5569 = vpop.f32.mrf.mxu0
        %v5570 = vadd.f32 0.0, %v5569
        %v5571 = vpop.f32.mrf.mxu0
        %v5572 = vadd.f32 0.0, %v5571
        %v5573 = vpop.f32.mrf.mxu0
        %v5574 = vadd.f32 0.0, %v5573
        %v5575 = vpop.f32.mrf.mxu0
        %v5576 = vadd.f32 0.0, %v5575
        %5577 = vmatprep.mubr.bf16.mxu0 %v3404
        %5578 = vmatmul.mubr.bf16.gmra.mxu0 %v3403
        %v5579 = vpop.f32.mrf.mxu0
        %v5580 = vadd.f32 0.0, %v5579
        %v5581 = vpop.f32.mrf.mxu0
        %v5582 = vadd.f32 0.0, %v5581
        %v5583 = vpop.f32.mrf.mxu0
        %v5584 = vadd.f32 0.0, %v5583
        %v5585 = vpop.f32.mrf.mxu0
        %v5586 = vadd.f32 0.0, %v5585
        %5587 = vmatprep.mubr.bf16.mxu0 %v3420
        %5588 = vmatmul.mubr.bf16.gmra.mxu0 %v3419
        %v5589 = vpop.f32.mrf.mxu0
        %v5590 = vadd.f32 0.0, %v5589
        %v5591 = vpop.f32.mrf.mxu0
        %v5592 = vadd.f32 0.0, %v5591
        %v5593 = vpop.f32.mrf.mxu0
        %v5594 = vadd.f32 0.0, %v5593
        %v5595 = vpop.f32.mrf.mxu0
        %v5596 = vadd.f32 0.0, %v5595
        %5597 = vmatprep.mubr.bf16.mxu0 %v3436
        %5598 = vmatmul.mubr.bf16.gmra.mxu0 %v3435
        %v5599 = vpop.f32.mrf.mxu0
        %v5600 = vadd.f32 0.0, %v5599
        %v5601 = vpop.f32.mrf.mxu0
        %v5602 = vadd.f32 0.0, %v5601
        %v5603 = vpop.f32.mrf.mxu0
        %v5604 = vadd.f32 0.0, %v5603
        %v5605 = vpop.f32.mrf.mxu0
        %v5606 = vadd.f32 0.0, %v5605
        %5607 = vmatprep.mubr.bf16.mxu0 %v3452
        %5608 = vmatmul.mubr.bf16.gmra.mxu0 %v3451
        %v5609 = vpop.f32.mrf.mxu0
        %v5610 = vadd.f32 0.0, %v5609
        %v5611 = vpop.f32.mrf.mxu0
        %v5612 = vadd.f32 0.0, %v5611
        %v5613 = vpop.f32.mrf.mxu0
        %v5614 = vadd.f32 0.0, %v5613
        %v5615 = vpop.f32.mrf.mxu0
        %v5616 = vadd.f32 0.0, %v5615
        %5617 = vmatprep.mubr.bf16.mxu0 %v3468
        %5618 = vmatmul.mubr.bf16.gmra.mxu0 %v3467
        %v5619 = vpop.f32.mrf.mxu0
        %v5620 = vadd.f32 0.0, %v5619
        %v5621 = vpop.f32.mrf.mxu0
        %v5622 = vadd.f32 0.0, %v5621
        %v5623 = vpop.f32.mrf.mxu0
        %v5624 = vadd.f32 0.0, %v5623
        %v5625 = vpop.f32.mrf.mxu0
        %v5626 = vadd.f32 0.0, %v5625
        %5627 = vdwg.mxu0
        %5628 = vmatprep.subr.bf16.mxu0 %v4810
        %5629 = vmatpush1.bf16.msra.mxu0 %v4809
        %5630 = vmatprep.subr.bf16.mxu0 %v4808
        %5631 = vmatpush1.bf16.msra.mxu0 %v4807
        %5632 = vmatprep.subr.bf16.mxu0 %v4806
        %5633 = vmatpush1.bf16.msra.mxu0 %v4805
        %5634 = vmatprep.subr.bf16.mxu0 %v4804
        %5635 = vmatpush1.bf16.msra.mxu0 %v4803
        %5636 = vmatprep.subr.bf16.mxu0 %v4802
        %5637 = vmatpush1.bf16.msra.mxu0 %v4801
        %5638 = vmatprep.subr.bf16.mxu0 %v4800
        %5639 = vmatpush1.bf16.msra.mxu0 %v4799
        %5640 = vmatprep.subr.bf16.mxu0 %v4798
        %5641 = vmatpush1.bf16.msra.mxu0 %v4797
        %5642 = vmatprep.subr.bf16.mxu0 %v4796
        %5643 = vmatpush1.bf16.msra.mxu0 %v4795
        %5644 = vmatprep.subr.bf16.mxu0 %v4826
        %5645 = vmatpush2.bf16.msra.mxu0 %v4825
        %5646 = vmatprep.subr.bf16.mxu0 %v4824
        %5647 = vmatpush2.bf16.msra.mxu0 %v4823
        %5648 = vmatprep.subr.bf16.mxu0 %v4822
        %5649 = vmatpush2.bf16.msra.mxu0 %v4821
        %5650 = vmatprep.subr.bf16.mxu0 %v4820
        %5651 = vmatpush2.bf16.msra.mxu0 %v4819
        %5652 = vmatprep.subr.bf16.mxu0 %v4818
        %5653 = vmatpush2.bf16.msra.mxu0 %v4817
        %5654 = vmatprep.subr.bf16.mxu0 %v4816
        %5655 = vmatpush2.bf16.msra.mxu0 %v4815
        %5656 = vmatprep.subr.bf16.mxu0 %v4814
        %5657 = vmatpush2.bf16.msra.mxu0 %v4813
        %5658 = vmatprep.subr.bf16.mxu0 %v4812
        %5659 = vmatpush2.bf16.msra.mxu0 %v4811
        %5660 = vmatprep.mubr.bf16.mxu0 %v2974
        %5661 = vmatmul.mubr.bf16.gmra.mxu0 %v2973
        %v5662 = vpop.f32.mrf.mxu0
        %v5663 = vadd.f32 %v5310, %v5662
        %v5664 = vpop.f32.mrf.mxu0
        %v5665 = vadd.f32 %v5312, %v5664
        %v5666 = vpop.f32.mrf.mxu0
        %v5667 = vadd.f32 %v5314, %v5666
        %v5668 = vpop.f32.mrf.mxu0
        %v5669 = vadd.f32 %v5316, %v5668
        %5670 = vmatprep.mubr.bf16.mxu0 %v2990
        %5671 = vmatmul.mubr.bf16.gmra.mxu0 %v2989
        %v5672 = vpop.f32.mrf.mxu0
        %v5673 = vadd.f32 %v5320, %v5672
        %v5674 = vpop.f32.mrf.mxu0
        %v5675 = vadd.f32 %v5322, %v5674
        %v5676 = vpop.f32.mrf.mxu0
        %v5677 = vadd.f32 %v5324, %v5676
        %v5678 = vpop.f32.mrf.mxu0
        %v5679 = vadd.f32 %v5326, %v5678
        %5680 = vmatprep.mubr.bf16.mxu0 %v3006
        %5681 = vmatmul.mubr.bf16.gmra.mxu0 %v3005
        %v5682 = vpop.f32.mrf.mxu0
        %v5683 = vadd.f32 %v5330, %v5682
        %v5684 = vpop.f32.mrf.mxu0
        %v5685 = vadd.f32 %v5332, %v5684
        %v5686 = vpop.f32.mrf.mxu0
        %v5687 = vadd.f32 %v5334, %v5686
        %v5688 = vpop.f32.mrf.mxu0
        %v5689 = vadd.f32 %v5336, %v5688
        %5690 = vmatprep.mubr.bf16.mxu0 %v3022
        %5691 = vmatmul.mubr.bf16.gmra.mxu0 %v3021
        %v5692 = vpop.f32.mrf.mxu0
        %v5693 = vadd.f32 %v5340, %v5692
        %v5694 = vpop.f32.mrf.mxu0
        %v5695 = vadd.f32 %v5342, %v5694
        %v5696 = vpop.f32.mrf.mxu0
        %v5697 = vadd.f32 %v5344, %v5696
        %v5698 = vpop.f32.mrf.mxu0
        %v5699 = vadd.f32 %v5346, %v5698
        %5700 = vmatprep.mubr.bf16.mxu0 %v3038
        %5701 = vmatmul.mubr.bf16.gmra.mxu0 %v3037
        %v5702 = vpop.f32.mrf.mxu0
        %v5703 = vadd.f32 %v5350, %v5702
        %v5704 = vpop.f32.mrf.mxu0
        %v5705 = vadd.f32 %v5352, %v5704
        %v5706 = vpop.f32.mrf.mxu0
        %v5707 = vadd.f32 %v5354, %v5706
        %v5708 = vpop.f32.mrf.mxu0
        %v5709 = vadd.f32 %v5356, %v5708
        %5710 = vmatprep.mubr.bf16.mxu0 %v3054
        %5711 = vmatmul.mubr.bf16.gmra.mxu0 %v3053
        %v5712 = vpop.f32.mrf.mxu0
        %v5713 = vadd.f32 %v5360, %v5712
        %v5714 = vpop.f32.mrf.mxu0
        %v5715 = vadd.f32 %v5362, %v5714
        %v5716 = vpop.f32.mrf.mxu0
        %v5717 = vadd.f32 %v5364, %v5716
        %v5718 = vpop.f32.mrf.mxu0
        %v5719 = vadd.f32 %v5366, %v5718
        %5720 = vmatprep.mubr.bf16.mxu0 %v3070
        %5721 = vmatmul.mubr.bf16.gmra.mxu0 %v3069
        %v5722 = vpop.f32.mrf.mxu0
        %v5723 = vadd.f32 %v5370, %v5722
        %v5724 = vpop.f32.mrf.mxu0
        %v5725 = vadd.f32 %v5372, %v5724
        %v5726 = vpop.f32.mrf.mxu0
        %v5727 = vadd.f32 %v5374, %v5726
        %v5728 = vpop.f32.mrf.mxu0
        %v5729 = vadd.f32 %v5376, %v5728
        %5730 = vmatprep.mubr.bf16.mxu0 %v3086
        %5731 = vmatmul.mubr.bf16.gmra.mxu0 %v3085
        %v5732 = vpop.f32.mrf.mxu0
        %v5733 = vadd.f32 %v5380, %v5732
        %v5734 = vpop.f32.mrf.mxu0
        %v5735 = vadd.f32 %v5382, %v5734
        %v5736 = vpop.f32.mrf.mxu0
        %v5737 = vadd.f32 %v5384, %v5736
        %v5738 = vpop.f32.mrf.mxu0
        %v5739 = vadd.f32 %v5386, %v5738
        %5740 = vmatprep.mubr.bf16.mxu0 %v3102
        %5741 = vmatmul.mubr.bf16.gmra.mxu0 %v3101
        %v5742 = vpop.f32.mrf.mxu0
        %v5743 = vadd.f32 %v5390, %v5742
        %v5744 = vpop.f32.mrf.mxu0
        %v5745 = vadd.f32 %v5392, %v5744
        %v5746 = vpop.f32.mrf.mxu0
        %v5747 = vadd.f32 %v5394, %v5746
        %v5748 = vpop.f32.mrf.mxu0
        %v5749 = vadd.f32 %v5396, %v5748
        %5750 = vmatprep.mubr.bf16.mxu0 %v3118
        %5751 = vmatmul.mubr.bf16.gmra.mxu0 %v3117
        %v5752 = vpop.f32.mrf.mxu0
        %v5753 = vadd.f32 %v5400, %v5752
        %v5754 = vpop.f32.mrf.mxu0
        %v5755 = vadd.f32 %v5402, %v5754
        %v5756 = vpop.f32.mrf.mxu0
        %v5757 = vadd.f32 %v5404, %v5756
        %v5758 = vpop.f32.mrf.mxu0
        %v5759 = vadd.f32 %v5406, %v5758
        %5760 = vmatprep.mubr.bf16.mxu0 %v3134
        %5761 = vmatmul.mubr.bf16.gmra.mxu0 %v3133
        %v5762 = vpop.f32.mrf.mxu0
        %v5763 = vadd.f32 %v5410, %v5762
        %v5764 = vpop.f32.mrf.mxu0
        %v5765 = vadd.f32 %v5412, %v5764
        %v5766 = vpop.f32.mrf.mxu0
        %v5767 = vadd.f32 %v5414, %v5766
        %v5768 = vpop.f32.mrf.mxu0
        %v5769 = vadd.f32 %v5416, %v5768
        %5770 = vmatprep.mubr.bf16.mxu0 %v3150
        %5771 = vmatmul.mubr.bf16.gmra.mxu0 %v3149
        %v5772 = vpop.f32.mrf.mxu0
        %v5773 = vadd.f32 %v5420, %v5772
        %v5774 = vpop.f32.mrf.mxu0
        %v5775 = vadd.f32 %v5422, %v5774
        %v5776 = vpop.f32.mrf.mxu0
        %v5777 = vadd.f32 %v5424, %v5776
        %v5778 = vpop.f32.mrf.mxu0
        %v5779 = vadd.f32 %v5426, %v5778
        %5780 = vmatprep.mubr.bf16.mxu0 %v3166
        %5781 = vmatmul.mubr.bf16.gmra.mxu0 %v3165
        %v5782 = vpop.f32.mrf.mxu0
        %v5783 = vadd.f32 %v5430, %v5782
        %v5784 = vpop.f32.mrf.mxu0
        %v5785 = vadd.f32 %v5432, %v5784
        %v5786 = vpop.f32.mrf.mxu0
        %v5787 = vadd.f32 %v5434, %v5786
        %v5788 = vpop.f32.mrf.mxu0
        %v5789 = vadd.f32 %v5436, %v5788
        %5790 = vmatprep.mubr.bf16.mxu0 %v3182
        %5791 = vmatmul.mubr.bf16.gmra.mxu0 %v3181
        %v5792 = vpop.f32.mrf.mxu0
        %v5793 = vadd.f32 %v5440, %v5792
        %v5794 = vpop.f32.mrf.mxu0
        %v5795 = vadd.f32 %v5442, %v5794
        %v5796 = vpop.f32.mrf.mxu0
        %v5797 = vadd.f32 %v5444, %v5796
        %v5798 = vpop.f32.mrf.mxu0
        %v5799 = vadd.f32 %v5446, %v5798
        %5800 = vmatprep.mubr.bf16.mxu0 %v3198
        %5801 = vmatmul.mubr.bf16.gmra.mxu0 %v3197
        %v5802 = vpop.f32.mrf.mxu0
        %v5803 = vadd.f32 %v5450, %v5802
        %v5804 = vpop.f32.mrf.mxu0
        %v5805 = vadd.f32 %v5452, %v5804
        %v5806 = vpop.f32.mrf.mxu0
        %v5807 = vadd.f32 %v5454, %v5806
        %v5808 = vpop.f32.mrf.mxu0
        %v5809 = vadd.f32 %v5456, %v5808
        %5810 = vmatprep.mubr.bf16.mxu0 %v3214
        %5811 = vmatmul.mubr.bf16.gmra.mxu0 %v3213
        %v5812 = vpop.f32.mrf.mxu0
        %v5813 = vadd.f32 %v5460, %v5812
        %v5814 = vpop.f32.mrf.mxu0
        %v5815 = vadd.f32 %v5462, %v5814
        %v5816 = vpop.f32.mrf.mxu0
        %v5817 = vadd.f32 %v5464, %v5816
        %v5818 = vpop.f32.mrf.mxu0
        %v5819 = vadd.f32 %v5466, %v5818
        %5820 = vmatprep.mubr.bf16.mxu0 %v3230
        %5821 = vmatmul.mubr.bf16.gmra.mxu0 %v3229
        %v5822 = vpop.f32.mrf.mxu0
        %v5823 = vadd.f32 %v5470, %v5822
        %v5824 = vpop.f32.mrf.mxu0
        %v5825 = vadd.f32 %v5472, %v5824
        %v5826 = vpop.f32.mrf.mxu0
        %v5827 = vadd.f32 %v5474, %v5826
        %v5828 = vpop.f32.mrf.mxu0
        %v5829 = vadd.f32 %v5476, %v5828
        %5830 = vmatprep.mubr.bf16.mxu0 %v3246
        %5831 = vmatmul.mubr.bf16.gmra.mxu0 %v3245
        %v5832 = vpop.f32.mrf.mxu0
        %v5833 = vadd.f32 %v5480, %v5832
        %v5834 = vpop.f32.mrf.mxu0
        %v5835 = vadd.f32 %v5482, %v5834
        %v5836 = vpop.f32.mrf.mxu0
        %v5837 = vadd.f32 %v5484, %v5836
        %v5838 = vpop.f32.mrf.mxu0
        %v5839 = vadd.f32 %v5486, %v5838
        %5840 = vmatprep.mubr.bf16.mxu0 %v3262
        %5841 = vmatmul.mubr.bf16.gmra.mxu0 %v3261
        %v5842 = vpop.f32.mrf.mxu0
        %v5843 = vadd.f32 %v5490, %v5842
        %v5844 = vpop.f32.mrf.mxu0
        %v5845 = vadd.f32 %v5492, %v5844
        %v5846 = vpop.f32.mrf.mxu0
        %v5847 = vadd.f32 %v5494, %v5846
        %v5848 = vpop.f32.mrf.mxu0
        %v5849 = vadd.f32 %v5496, %v5848
        %5850 = vmatprep.mubr.bf16.mxu0 %v3278
        %5851 = vmatmul.mubr.bf16.gmra.mxu0 %v3277
        %v5852 = vpop.f32.mrf.mxu0
        %v5853 = vadd.f32 %v5500, %v5852
        %v5854 = vpop.f32.mrf.mxu0
        %v5855 = vadd.f32 %v5502, %v5854
        %v5856 = vpop.f32.mrf.mxu0
        %v5857 = vadd.f32 %v5504, %v5856
        %v5858 = vpop.f32.mrf.mxu0
        %v5859 = vadd.f32 %v5506, %v5858
        %5860 = vmatprep.mubr.bf16.mxu0 %v3294
        %5861 = vmatmul.mubr.bf16.gmra.mxu0 %v3293
        %v5862 = vpop.f32.mrf.mxu0
        %v5863 = vadd.f32 %v5510, %v5862
        %v5864 = vpop.f32.mrf.mxu0
        %v5865 = vadd.f32 %v5512, %v5864
        %v5866 = vpop.f32.mrf.mxu0
        %v5867 = vadd.f32 %v5514, %v5866
        %v5868 = vpop.f32.mrf.mxu0
        %v5869 = vadd.f32 %v5516, %v5868
        %5870 = vmatprep.mubr.bf16.mxu0 %v3310
        %5871 = vmatmul.mubr.bf16.gmra.mxu0 %v3309
        %v5872 = vpop.f32.mrf.mxu0
        %v5873 = vadd.f32 %v5520, %v5872
        %v5874 = vpop.f32.mrf.mxu0
        %v5875 = vadd.f32 %v5522, %v5874
        %v5876 = vpop.f32.mrf.mxu0
        %v5877 = vadd.f32 %v5524, %v5876
        %v5878 = vpop.f32.mrf.mxu0
        %v5879 = vadd.f32 %v5526, %v5878
        %5880 = vmatprep.mubr.bf16.mxu0 %v3326
        %5881 = vmatmul.mubr.bf16.gmra.mxu0 %v3325
        %v5882 = vpop.f32.mrf.mxu0
        %v5883 = vadd.f32 %v5530, %v5882
        %v5884 = vpop.f32.mrf.mxu0
        %v5885 = vadd.f32 %v5532, %v5884
        %v5886 = vpop.f32.mrf.mxu0
        %v5887 = vadd.f32 %v5534, %v5886
        %v5888 = vpop.f32.mrf.mxu0
        %v5889 = vadd.f32 %v5536, %v5888
        %5890 = vmatprep.mubr.bf16.mxu0 %v3342
        %5891 = vmatmul.mubr.bf16.gmra.mxu0 %v3341
        %v5892 = vpop.f32.mrf.mxu0
        %v5893 = vadd.f32 %v5540, %v5892
        %v5894 = vpop.f32.mrf.mxu0
        %v5895 = vadd.f32 %v5542, %v5894
        %v5896 = vpop.f32.mrf.mxu0
        %v5897 = vadd.f32 %v5544, %v5896
        %v5898 = vpop.f32.mrf.mxu0
        %v5899 = vadd.f32 %v5546, %v5898
        %5900 = vmatprep.mubr.bf16.mxu0 %v3358
        %5901 = vmatmul.mubr.bf16.gmra.mxu0 %v3357
        %v5902 = vpop.f32.mrf.mxu0
        %v5903 = vadd.f32 %v5550, %v5902
        %v5904 = vpop.f32.mrf.mxu0
        %v5905 = vadd.f32 %v5552, %v5904
        %v5906 = vpop.f32.mrf.mxu0
        %v5907 = vadd.f32 %v5554, %v5906
        %v5908 = vpop.f32.mrf.mxu0
        %v5909 = vadd.f32 %v5556, %v5908
        %5910 = vmatprep.mubr.bf16.mxu0 %v3374
        %5911 = vmatmul.mubr.bf16.gmra.mxu0 %v3373
        %v5912 = vpop.f32.mrf.mxu0
        %v5913 = vadd.f32 %v5560, %v5912
        %v5914 = vpop.f32.mrf.mxu0
        %v5915 = vadd.f32 %v5562, %v5914
        %v5916 = vpop.f32.mrf.mxu0
        %v5917 = vadd.f32 %v5564, %v5916
        %v5918 = vpop.f32.mrf.mxu0
        %v5919 = vadd.f32 %v5566, %v5918
        %5920 = vmatprep.mubr.bf16.mxu0 %v3390
        %5921 = vmatmul.mubr.bf16.gmra.mxu0 %v3389
        %v5922 = vpop.f32.mrf.mxu0
        %v5923 = vadd.f32 %v5570, %v5922
        %v5924 = vpop.f32.mrf.mxu0
        %v5925 = vadd.f32 %v5572, %v5924
        %v5926 = vpop.f32.mrf.mxu0
        %v5927 = vadd.f32 %v5574, %v5926
        %v5928 = vpop.f32.mrf.mxu0
        %v5929 = vadd.f32 %v5576, %v5928
        %5930 = vmatprep.mubr.bf16.mxu0 %v3406
        %5931 = vmatmul.mubr.bf16.gmra.mxu0 %v3405
        %v5932 = vpop.f32.mrf.mxu0
        %v5933 = vadd.f32 %v5580, %v5932
        %v5934 = vpop.f32.mrf.mxu0
        %v5935 = vadd.f32 %v5582, %v5934
        %v5936 = vpop.f32.mrf.mxu0
        %v5937 = vadd.f32 %v5584, %v5936
        %v5938 = vpop.f32.mrf.mxu0
        %v5939 = vadd.f32 %v5586, %v5938
        %5940 = vmatprep.mubr.bf16.mxu0 %v3422
        %5941 = vmatmul.mubr.bf16.gmra.mxu0 %v3421
        %v5942 = vpop.f32.mrf.mxu0
        %v5943 = vadd.f32 %v5590, %v5942
        %v5944 = vpop.f32.mrf.mxu0
        %v5945 = vadd.f32 %v5592, %v5944
        %v5946 = vpop.f32.mrf.mxu0
        %v5947 = vadd.f32 %v5594, %v5946
        %v5948 = vpop.f32.mrf.mxu0
        %v5949 = vadd.f32 %v5596, %v5948
        %5950 = vmatprep.mubr.bf16.mxu0 %v3438
        %5951 = vmatmul.mubr.bf16.gmra.mxu0 %v3437
        %v5952 = vpop.f32.mrf.mxu0
        %v5953 = vadd.f32 %v5600, %v5952
        %v5954 = vpop.f32.mrf.mxu0
        %v5955 = vadd.f32 %v5602, %v5954
        %v5956 = vpop.f32.mrf.mxu0
        %v5957 = vadd.f32 %v5604, %v5956
        %v5958 = vpop.f32.mrf.mxu0
        %v5959 = vadd.f32 %v5606, %v5958
        %5960 = vmatprep.mubr.bf16.mxu0 %v3454
        %5961 = vmatmul.mubr.bf16.gmra.mxu0 %v3453
        %v5962 = vpop.f32.mrf.mxu0
        %v5963 = vadd.f32 %v5610, %v5962
        %v5964 = vpop.f32.mrf.mxu0
        %v5965 = vadd.f32 %v5612, %v5964
        %v5966 = vpop.f32.mrf.mxu0
        %v5967 = vadd.f32 %v5614, %v5966
        %v5968 = vpop.f32.mrf.mxu0
        %v5969 = vadd.f32 %v5616, %v5968
        %5970 = vmatprep.mubr.bf16.mxu0 %v3470
        %5971 = vmatmul.mubr.bf16.gmra.mxu0 %v3469
        %v5972 = vpop.f32.mrf.mxu0
        %v5973 = vadd.f32 %v5620, %v5972
        %v5974 = vpop.f32.mrf.mxu0
        %v5975 = vadd.f32 %v5622, %v5974
        %v5976 = vpop.f32.mrf.mxu0
        %v5977 = vadd.f32 %v5624, %v5976
        %v5978 = vpop.f32.mrf.mxu0
        %v5979 = vadd.f32 %v5626, %v5978
        %5980 = vdwg.mxu0
        %5981 = vmatprep.subr.bf16.mxu0 %v4842
        %5982 = vmatpush1.bf16.msra.mxu0 %v4841
        %5983 = vmatprep.subr.bf16.mxu0 %v4840
        %5984 = vmatpush1.bf16.msra.mxu0 %v4839
        %5985 = vmatprep.subr.bf16.mxu0 %v4838
        %5986 = vmatpush1.bf16.msra.mxu0 %v4837
        %5987 = vmatprep.subr.bf16.mxu0 %v4836
        %5988 = vmatpush1.bf16.msra.mxu0 %v4835
        %5989 = vmatprep.subr.bf16.mxu0 %v4834
        %5990 = vmatpush1.bf16.msra.mxu0 %v4833
        %5991 = vmatprep.subr.bf16.mxu0 %v4832
        %5992 = vmatpush1.bf16.msra.mxu0 %v4831
        %5993 = vmatprep.subr.bf16.mxu0 %v4830
        %5994 = vmatpush1.bf16.msra.mxu0 %v4829
        %5995 = vmatprep.subr.bf16.mxu0 %v4828
        %5996 = vmatpush1.bf16.msra.mxu0 %v4827
        %5997 = vmatprep.subr.bf16.mxu0 %v4858
        %5998 = vmatpush2.bf16.msra.mxu0 %v4857
        %5999 = vmatprep.subr.bf16.mxu0 %v4856
        %6000 = vmatpush2.bf16.msra.mxu0 %v4855
        %6001 = vmatprep.subr.bf16.mxu0 %v4854
        %6002 = vmatpush2.bf16.msra.mxu0 %v4853
        %6003 = vmatprep.subr.bf16.mxu0 %v4852
        %6004 = vmatpush2.bf16.msra.mxu0 %v4851
        %6005 = vmatprep.subr.bf16.mxu0 %v4850
        %6006 = vmatpush2.bf16.msra.mxu0 %v4849
        %6007 = vmatprep.subr.bf16.mxu0 %v4848
        %6008 = vmatpush2.bf16.msra.mxu0 %v4847
        %6009 = vmatprep.subr.bf16.mxu0 %v4846
        %6010 = vmatpush2.bf16.msra.mxu0 %v4845
        %6011 = vmatprep.subr.bf16.mxu0 %v4844
        %6012 = vmatpush2.bf16.msra.mxu0 %v4843
        %6013 = vmatprep.mubr.bf16.mxu0 %v2976
        %6014 = vmatmul.mubr.bf16.gmra.mxu0 %v2975
        %v6015 = vpop.f32.mrf.mxu0
        %v6016 = vadd.f32 %v5663, %v6015
        %v6017 = vpop.f32.mrf.mxu0
        %v6018 = vadd.f32 %v5665, %v6017
        %v6019 = vpop.f32.mrf.mxu0
        %v6020 = vadd.f32 %v5667, %v6019
        %v6021 = vpop.f32.mrf.mxu0
        %v6022 = vadd.f32 %v5669, %v6021
        %6023 = vmatprep.mubr.bf16.mxu0 %v2992
        %6024 = vmatmul.mubr.bf16.gmra.mxu0 %v2991
        %v6025 = vpop.f32.mrf.mxu0
        %v6026 = vadd.f32 %v5673, %v6025
        %v6027 = vpop.f32.mrf.mxu0
        %v6028 = vadd.f32 %v5675, %v6027
        %v6029 = vpop.f32.mrf.mxu0
        %v6030 = vadd.f32 %v5677, %v6029
        %v6031 = vpop.f32.mrf.mxu0
        %v6032 = vadd.f32 %v5679, %v6031
        %6033 = vmatprep.mubr.bf16.mxu0 %v3008
        %6034 = vmatmul.mubr.bf16.gmra.mxu0 %v3007
        %v6035 = vpop.f32.mrf.mxu0
        %v6036 = vadd.f32 %v5683, %v6035
        %v6037 = vpop.f32.mrf.mxu0
        %v6038 = vadd.f32 %v5685, %v6037
        %v6039 = vpop.f32.mrf.mxu0
        %v6040 = vadd.f32 %v5687, %v6039
        %v6041 = vpop.f32.mrf.mxu0
        %v6042 = vadd.f32 %v5689, %v6041
        %6043 = vmatprep.mubr.bf16.mxu0 %v3024
        %6044 = vmatmul.mubr.bf16.gmra.mxu0 %v3023
        %v6045 = vpop.f32.mrf.mxu0
        %v6046 = vadd.f32 %v5693, %v6045
        %v6047 = vpop.f32.mrf.mxu0
        %v6048 = vadd.f32 %v5695, %v6047
        %v6049 = vpop.f32.mrf.mxu0
        %v6050 = vadd.f32 %v5697, %v6049
        %v6051 = vpop.f32.mrf.mxu0
        %v6052 = vadd.f32 %v5699, %v6051
        %6053 = vmatprep.mubr.bf16.mxu0 %v3040
        %6054 = vmatmul.mubr.bf16.gmra.mxu0 %v3039
        %v6055 = vpop.f32.mrf.mxu0
        %v6056 = vadd.f32 %v5703, %v6055
        %v6057 = vpop.f32.mrf.mxu0
        %v6058 = vadd.f32 %v5705, %v6057
        %v6059 = vpop.f32.mrf.mxu0
        %v6060 = vadd.f32 %v5707, %v6059
        %v6061 = vpop.f32.mrf.mxu0
        %v6062 = vadd.f32 %v5709, %v6061
        %6063 = vmatprep.mubr.bf16.mxu0 %v3056
        %6064 = vmatmul.mubr.bf16.gmra.mxu0 %v3055
        %v6065 = vpop.f32.mrf.mxu0
        %v6066 = vadd.f32 %v5713, %v6065
        %v6067 = vpop.f32.mrf.mxu0
        %v6068 = vadd.f32 %v5715, %v6067
        %v6069 = vpop.f32.mrf.mxu0
        %v6070 = vadd.f32 %v5717, %v6069
        %v6071 = vpop.f32.mrf.mxu0
        %v6072 = vadd.f32 %v5719, %v6071
        %6073 = vmatprep.mubr.bf16.mxu0 %v3072
        %6074 = vmatmul.mubr.bf16.gmra.mxu0 %v3071
        %v6075 = vpop.f32.mrf.mxu0
        %v6076 = vadd.f32 %v5723, %v6075
        %v6077 = vpop.f32.mrf.mxu0
        %v6078 = vadd.f32 %v5725, %v6077
        %v6079 = vpop.f32.mrf.mxu0
        %v6080 = vadd.f32 %v5727, %v6079
        %v6081 = vpop.f32.mrf.mxu0
        %v6082 = vadd.f32 %v5729, %v6081
        %6083 = vmatprep.mubr.bf16.mxu0 %v3088
        %6084 = vmatmul.mubr.bf16.gmra.mxu0 %v3087
        %v6085 = vpop.f32.mrf.mxu0
        %v6086 = vadd.f32 %v5733, %v6085
        %v6087 = vpop.f32.mrf.mxu0
        %v6088 = vadd.f32 %v5735, %v6087
        %v6089 = vpop.f32.mrf.mxu0
        %v6090 = vadd.f32 %v5737, %v6089
        %v6091 = vpop.f32.mrf.mxu0
        %v6092 = vadd.f32 %v5739, %v6091
        %6093 = vmatprep.mubr.bf16.mxu0 %v3104
        %6094 = vmatmul.mubr.bf16.gmra.mxu0 %v3103
        %v6095 = vpop.f32.mrf.mxu0
        %v6096 = vadd.f32 %v5743, %v6095
        %v6097 = vpop.f32.mrf.mxu0
        %v6098 = vadd.f32 %v5745, %v6097
        %v6099 = vpop.f32.mrf.mxu0
        %v6100 = vadd.f32 %v5747, %v6099
        %v6101 = vpop.f32.mrf.mxu0
        %v6102 = vadd.f32 %v5749, %v6101
        %6103 = vmatprep.mubr.bf16.mxu0 %v3120
        %6104 = vmatmul.mubr.bf16.gmra.mxu0 %v3119
        %v6105 = vpop.f32.mrf.mxu0
        %v6106 = vadd.f32 %v5753, %v6105
        %v6107 = vpop.f32.mrf.mxu0
        %v6108 = vadd.f32 %v5755, %v6107
        %v6109 = vpop.f32.mrf.mxu0
        %v6110 = vadd.f32 %v5757, %v6109
        %v6111 = vpop.f32.mrf.mxu0
        %v6112 = vadd.f32 %v5759, %v6111
        %6113 = vmatprep.mubr.bf16.mxu0 %v3136
        %6114 = vmatmul.mubr.bf16.gmra.mxu0 %v3135
        %v6115 = vpop.f32.mrf.mxu0
        %v6116 = vadd.f32 %v5763, %v6115
        %v6117 = vpop.f32.mrf.mxu0
        %v6118 = vadd.f32 %v5765, %v6117
        %v6119 = vpop.f32.mrf.mxu0
        %v6120 = vadd.f32 %v5767, %v6119
        %v6121 = vpop.f32.mrf.mxu0
        %v6122 = vadd.f32 %v5769, %v6121
        %6123 = vmatprep.mubr.bf16.mxu0 %v3152
        %6124 = vmatmul.mubr.bf16.gmra.mxu0 %v3151
        %v6125 = vpop.f32.mrf.mxu0
        %v6126 = vadd.f32 %v5773, %v6125
        %v6127 = vpop.f32.mrf.mxu0
        %v6128 = vadd.f32 %v5775, %v6127
        %v6129 = vpop.f32.mrf.mxu0
        %v6130 = vadd.f32 %v5777, %v6129
        %v6131 = vpop.f32.mrf.mxu0
        %v6132 = vadd.f32 %v5779, %v6131
        %6133 = vmatprep.mubr.bf16.mxu0 %v3168
        %6134 = vmatmul.mubr.bf16.gmra.mxu0 %v3167
        %v6135 = vpop.f32.mrf.mxu0
        %v6136 = vadd.f32 %v5783, %v6135
        %v6137 = vpop.f32.mrf.mxu0
        %v6138 = vadd.f32 %v5785, %v6137
        %v6139 = vpop.f32.mrf.mxu0
        %v6140 = vadd.f32 %v5787, %v6139
        %v6141 = vpop.f32.mrf.mxu0
        %v6142 = vadd.f32 %v5789, %v6141
        %6143 = vmatprep.mubr.bf16.mxu0 %v3184
        %6144 = vmatmul.mubr.bf16.gmra.mxu0 %v3183
        %v6145 = vpop.f32.mrf.mxu0
        %v6146 = vadd.f32 %v5793, %v6145
        %v6147 = vpop.f32.mrf.mxu0
        %v6148 = vadd.f32 %v5795, %v6147
        %v6149 = vpop.f32.mrf.mxu0
        %v6150 = vadd.f32 %v5797, %v6149
        %v6151 = vpop.f32.mrf.mxu0
        %v6152 = vadd.f32 %v5799, %v6151
        %6153 = vmatprep.mubr.bf16.mxu0 %v3200
        %6154 = vmatmul.mubr.bf16.gmra.mxu0 %v3199
        %v6155 = vpop.f32.mrf.mxu0
        %v6156 = vadd.f32 %v5803, %v6155
        %v6157 = vpop.f32.mrf.mxu0
        %v6158 = vadd.f32 %v5805, %v6157
        %v6159 = vpop.f32.mrf.mxu0
        %v6160 = vadd.f32 %v5807, %v6159
        %v6161 = vpop.f32.mrf.mxu0
        %v6162 = vadd.f32 %v5809, %v6161
        %6163 = vmatprep.mubr.bf16.mxu0 %v3216
        %6164 = vmatmul.mubr.bf16.gmra.mxu0 %v3215
        %v6165 = vpop.f32.mrf.mxu0
        %v6166 = vadd.f32 %v5813, %v6165
        %v6167 = vpop.f32.mrf.mxu0
        %v6168 = vadd.f32 %v5815, %v6167
        %v6169 = vpop.f32.mrf.mxu0
        %v6170 = vadd.f32 %v5817, %v6169
        %v6171 = vpop.f32.mrf.mxu0
        %v6172 = vadd.f32 %v5819, %v6171
        %6173 = vmatprep.mubr.bf16.mxu0 %v3232
        %6174 = vmatmul.mubr.bf16.gmra.mxu0 %v3231
        %v6175 = vpop.f32.mrf.mxu0
        %v6176 = vadd.f32 %v5823, %v6175
        %v6177 = vpop.f32.mrf.mxu0
        %v6178 = vadd.f32 %v5825, %v6177
        %v6179 = vpop.f32.mrf.mxu0
        %v6180 = vadd.f32 %v5827, %v6179
        %v6181 = vpop.f32.mrf.mxu0
        %v6182 = vadd.f32 %v5829, %v6181
        %6183 = vmatprep.mubr.bf16.mxu0 %v3248
        %6184 = vmatmul.mubr.bf16.gmra.mxu0 %v3247
        %v6185 = vpop.f32.mrf.mxu0
        %v6186 = vadd.f32 %v5833, %v6185
        %v6187 = vpop.f32.mrf.mxu0
        %v6188 = vadd.f32 %v5835, %v6187
        %v6189 = vpop.f32.mrf.mxu0
        %v6190 = vadd.f32 %v5837, %v6189
        %v6191 = vpop.f32.mrf.mxu0
        %v6192 = vadd.f32 %v5839, %v6191
        %6193 = vmatprep.mubr.bf16.mxu0 %v3264
        %6194 = vmatmul.mubr.bf16.gmra.mxu0 %v3263
        %v6195 = vpop.f32.mrf.mxu0
        %v6196 = vadd.f32 %v5843, %v6195
        %v6197 = vpop.f32.mrf.mxu0
        %v6198 = vadd.f32 %v5845, %v6197
        %v6199 = vpop.f32.mrf.mxu0
        %v6200 = vadd.f32 %v5847, %v6199
        %v6201 = vpop.f32.mrf.mxu0
        %v6202 = vadd.f32 %v5849, %v6201
        %6203 = vmatprep.mubr.bf16.mxu0 %v3280
        %6204 = vmatmul.mubr.bf16.gmra.mxu0 %v3279
        %v6205 = vpop.f32.mrf.mxu0
        %v6206 = vadd.f32 %v5853, %v6205
        %v6207 = vpop.f32.mrf.mxu0
        %v6208 = vadd.f32 %v5855, %v6207
        %v6209 = vpop.f32.mrf.mxu0
        %v6210 = vadd.f32 %v5857, %v6209
        %v6211 = vpop.f32.mrf.mxu0
        %v6212 = vadd.f32 %v5859, %v6211
        %6213 = vmatprep.mubr.bf16.mxu0 %v3296
        %6214 = vmatmul.mubr.bf16.gmra.mxu0 %v3295
        %v6215 = vpop.f32.mrf.mxu0
        %v6216 = vadd.f32 %v5863, %v6215
        %v6217 = vpop.f32.mrf.mxu0
        %v6218 = vadd.f32 %v5865, %v6217
        %v6219 = vpop.f32.mrf.mxu0
        %v6220 = vadd.f32 %v5867, %v6219
        %v6221 = vpop.f32.mrf.mxu0
        %v6222 = vadd.f32 %v5869, %v6221
        %6223 = vmatprep.mubr.bf16.mxu0 %v3312
        %6224 = vmatmul.mubr.bf16.gmra.mxu0 %v3311
        %v6225 = vpop.f32.mrf.mxu0
        %v6226 = vadd.f32 %v5873, %v6225
        %v6227 = vpop.f32.mrf.mxu0
        %v6228 = vadd.f32 %v5875, %v6227
        %v6229 = vpop.f32.mrf.mxu0
        %v6230 = vadd.f32 %v5877, %v6229
        %v6231 = vpop.f32.mrf.mxu0
        %v6232 = vadd.f32 %v5879, %v6231
        %6233 = vmatprep.mubr.bf16.mxu0 %v3328
        %6234 = vmatmul.mubr.bf16.gmra.mxu0 %v3327
        %v6235 = vpop.f32.mrf.mxu0
        %v6236 = vadd.f32 %v5883, %v6235
        %v6237 = vpop.f32.mrf.mxu0
        %v6238 = vadd.f32 %v5885, %v6237
        %v6239 = vpop.f32.mrf.mxu0
        %v6240 = vadd.f32 %v5887, %v6239
        %v6241 = vpop.f32.mrf.mxu0
        %v6242 = vadd.f32 %v5889, %v6241
        %6243 = vmatprep.mubr.bf16.mxu0 %v3344
        %6244 = vmatmul.mubr.bf16.gmra.mxu0 %v3343
        %v6245 = vpop.f32.mrf.mxu0
        %v6246 = vadd.f32 %v5893, %v6245
        %v6247 = vpop.f32.mrf.mxu0
        %v6248 = vadd.f32 %v5895, %v6247
        %v6249 = vpop.f32.mrf.mxu0
        %v6250 = vadd.f32 %v5897, %v6249
        %v6251 = vpop.f32.mrf.mxu0
        %v6252 = vadd.f32 %v5899, %v6251
        %6253 = vmatprep.mubr.bf16.mxu0 %v3360
        %6254 = vmatmul.mubr.bf16.gmra.mxu0 %v3359
        %v6255 = vpop.f32.mrf.mxu0
        %v6256 = vadd.f32 %v5903, %v6255
        %v6257 = vpop.f32.mrf.mxu0
        %v6258 = vadd.f32 %v5905, %v6257
        %v6259 = vpop.f32.mrf.mxu0
        %v6260 = vadd.f32 %v5907, %v6259
        %v6261 = vpop.f32.mrf.mxu0
        %v6262 = vadd.f32 %v5909, %v6261
        %6263 = vmatprep.mubr.bf16.mxu0 %v3376
        %6264 = vmatmul.mubr.bf16.gmra.mxu0 %v3375
        %v6265 = vpop.f32.mrf.mxu0
        %v6266 = vadd.f32 %v5913, %v6265
        %v6267 = vpop.f32.mrf.mxu0
        %v6268 = vadd.f32 %v5915, %v6267
        %v6269 = vpop.f32.mrf.mxu0
        %v6270 = vadd.f32 %v5917, %v6269
        %v6271 = vpop.f32.mrf.mxu0
        %v6272 = vadd.f32 %v5919, %v6271
        %6273 = vmatprep.mubr.bf16.mxu0 %v3392
        %6274 = vmatmul.mubr.bf16.gmra.mxu0 %v3391
        %v6275 = vpop.f32.mrf.mxu0
        %v6276 = vadd.f32 %v5923, %v6275
        %v6277 = vpop.f32.mrf.mxu0
        %v6278 = vadd.f32 %v5925, %v6277
        %v6279 = vpop.f32.mrf.mxu0
        %v6280 = vadd.f32 %v5927, %v6279
        %v6281 = vpop.f32.mrf.mxu0
        %v6282 = vadd.f32 %v5929, %v6281
        %6283 = vmatprep.mubr.bf16.mxu0 %v3408
        %6284 = vmatmul.mubr.bf16.gmra.mxu0 %v3407
        %v6285 = vpop.f32.mrf.mxu0
        %v6286 = vadd.f32 %v5933, %v6285
        %v6287 = vpop.f32.mrf.mxu0
        %v6288 = vadd.f32 %v5935, %v6287
        %v6289 = vpop.f32.mrf.mxu0
        %v6290 = vadd.f32 %v5937, %v6289
        %v6291 = vpop.f32.mrf.mxu0
        %v6292 = vadd.f32 %v5939, %v6291
        %6293 = vmatprep.mubr.bf16.mxu0 %v3424
        %6294 = vmatmul.mubr.bf16.gmra.mxu0 %v3423
        %v6295 = vpop.f32.mrf.mxu0
        %v6296 = vadd.f32 %v5943, %v6295
        %v6297 = vpop.f32.mrf.mxu0
        %v6298 = vadd.f32 %v5945, %v6297
        %v6299 = vpop.f32.mrf.mxu0
        %v6300 = vadd.f32 %v5947, %v6299
        %v6301 = vpop.f32.mrf.mxu0
        %v6302 = vadd.f32 %v5949, %v6301
        %6303 = vmatprep.mubr.bf16.mxu0 %v3440
        %6304 = vmatmul.mubr.bf16.gmra.mxu0 %v3439
        %v6305 = vpop.f32.mrf.mxu0
        %v6306 = vadd.f32 %v5953, %v6305
        %v6307 = vpop.f32.mrf.mxu0
        %v6308 = vadd.f32 %v5955, %v6307
        %v6309 = vpop.f32.mrf.mxu0
        %v6310 = vadd.f32 %v5957, %v6309
        %v6311 = vpop.f32.mrf.mxu0
        %v6312 = vadd.f32 %v5959, %v6311
        %6313 = vmatprep.mubr.bf16.mxu0 %v3456
        %6314 = vmatmul.mubr.bf16.gmra.mxu0 %v3455
        %v6315 = vpop.f32.mrf.mxu0
        %v6316 = vadd.f32 %v5963, %v6315
        %v6317 = vpop.f32.mrf.mxu0
        %v6318 = vadd.f32 %v5965, %v6317
        %v6319 = vpop.f32.mrf.mxu0
        %v6320 = vadd.f32 %v5967, %v6319
        %v6321 = vpop.f32.mrf.mxu0
        %v6322 = vadd.f32 %v5969, %v6321
        %6323 = vmatprep.mubr.bf16.mxu0 %v3472
        %6324 = vmatmul.mubr.bf16.gmra.mxu0 %v3471
        %v6325 = vpop.f32.mrf.mxu0
        %v6326 = vadd.f32 %v5973, %v6325
        %v6327 = vpop.f32.mrf.mxu0
        %v6328 = vadd.f32 %v5975, %v6327
        %v6329 = vpop.f32.mrf.mxu0
        %v6330 = vadd.f32 %v5977, %v6329
        %v6331 = vpop.f32.mrf.mxu0
        %v6332 = vadd.f32 %v5979, %v6331
        %6333 = vdwg.mxu0
        %6334 = vmatprep.subr.bf16.mxu0 %v4874
        %6335 = vmatpush1.bf16.msra.mxu0 %v4873
        %6336 = vmatprep.subr.bf16.mxu0 %v4872
        %6337 = vmatpush1.bf16.msra.mxu0 %v4871
        %6338 = vmatprep.subr.bf16.mxu0 %v4870
        %6339 = vmatpush1.bf16.msra.mxu0 %v4869
        %6340 = vmatprep.subr.bf16.mxu0 %v4868
        %6341 = vmatpush1.bf16.msra.mxu0 %v4867
        %6342 = vmatprep.subr.bf16.mxu0 %v4866
        %6343 = vmatpush1.bf16.msra.mxu0 %v4865
        %6344 = vmatprep.subr.bf16.mxu0 %v4864
        %6345 = vmatpush1.bf16.msra.mxu0 %v4863
        %6346 = vmatprep.subr.bf16.mxu0 %v4862
        %6347 = vmatpush1.bf16.msra.mxu0 %v4861
        %6348 = vmatprep.subr.bf16.mxu0 %v4860
        %6349 = vmatpush1.bf16.msra.mxu0 %v4859
        %6350 = vmatprep.subr.bf16.mxu0 %v4890
        %6351 = vmatpush2.bf16.msra.mxu0 %v4889
        %6352 = vmatprep.subr.bf16.mxu0 %v4888
        %6353 = vmatpush2.bf16.msra.mxu0 %v4887
        %6354 = vmatprep.subr.bf16.mxu0 %v4886
        %6355 = vmatpush2.bf16.msra.mxu0 %v4885
        %6356 = vmatprep.subr.bf16.mxu0 %v4884
        %6357 = vmatpush2.bf16.msra.mxu0 %v4883
        %6358 = vmatprep.subr.bf16.mxu0 %v4882
        %6359 = vmatpush2.bf16.msra.mxu0 %v4881
        %6360 = vmatprep.subr.bf16.mxu0 %v4880
        %6361 = vmatpush2.bf16.msra.mxu0 %v4879
        %6362 = vmatprep.subr.bf16.mxu0 %v4878
        %6363 = vmatpush2.bf16.msra.mxu0 %v4877
        %6364 = vmatprep.subr.bf16.mxu0 %v4876
        %6365 = vmatpush2.bf16.msra.mxu0 %v4875
        %6366 = vmatprep.mubr.bf16.mxu0 %v2978
        %6367 = vmatmul.mubr.bf16.gmra.mxu0 %v2977
        %v6368 = vpop.f32.mrf.mxu0
        %v6369 = vadd.f32 %v6016, %v6368
        %v6370 = vpop.f32.mrf.mxu0
        %v6371 = vadd.f32 %v6018, %v6370
        %v6372 = vpop.f32.mrf.mxu0
        %v6373 = vadd.f32 %v6020, %v6372
        %v6374 = vpop.f32.mrf.mxu0
        %v6375 = vadd.f32 %v6022, %v6374
        %6376 = vmatprep.mubr.bf16.mxu0 %v2994
        %6377 = vmatmul.mubr.bf16.gmra.mxu0 %v2993
        %v6378 = vpop.f32.mrf.mxu0
        %v6379 = vadd.f32 %v6026, %v6378
        %v6380 = vpop.f32.mrf.mxu0
        %v6381 = vadd.f32 %v6028, %v6380
        %v6382 = vpop.f32.mrf.mxu0
        %v6383 = vadd.f32 %v6030, %v6382
        %v6384 = vpop.f32.mrf.mxu0
        %v6385 = vadd.f32 %v6032, %v6384
        %6386 = vmatprep.mubr.bf16.mxu0 %v3010
        %6387 = vmatmul.mubr.bf16.gmra.mxu0 %v3009
        %v6388 = vpop.f32.mrf.mxu0
        %v6389 = vadd.f32 %v6036, %v6388
        %v6390 = vpop.f32.mrf.mxu0
        %v6391 = vadd.f32 %v6038, %v6390
        %v6392 = vpop.f32.mrf.mxu0
        %v6393 = vadd.f32 %v6040, %v6392
        %v6394 = vpop.f32.mrf.mxu0
        %v6395 = vadd.f32 %v6042, %v6394
        %6396 = vmatprep.mubr.bf16.mxu0 %v3026
        %6397 = vmatmul.mubr.bf16.gmra.mxu0 %v3025
        %v6398 = vpop.f32.mrf.mxu0
        %v6399 = vadd.f32 %v6046, %v6398
        %v6400 = vpop.f32.mrf.mxu0
        %v6401 = vadd.f32 %v6048, %v6400
        %v6402 = vpop.f32.mrf.mxu0
        %v6403 = vadd.f32 %v6050, %v6402
        %v6404 = vpop.f32.mrf.mxu0
        %v6405 = vadd.f32 %v6052, %v6404
        %6406 = vmatprep.mubr.bf16.mxu0 %v3042
        %6407 = vmatmul.mubr.bf16.gmra.mxu0 %v3041
        %v6408 = vpop.f32.mrf.mxu0
        %v6409 = vadd.f32 %v6056, %v6408
        %v6410 = vpop.f32.mrf.mxu0
        %v6411 = vadd.f32 %v6058, %v6410
        %v6412 = vpop.f32.mrf.mxu0
        %v6413 = vadd.f32 %v6060, %v6412
        %v6414 = vpop.f32.mrf.mxu0
        %v6415 = vadd.f32 %v6062, %v6414
        %6416 = vmatprep.mubr.bf16.mxu0 %v3058
        %6417 = vmatmul.mubr.bf16.gmra.mxu0 %v3057
        %v6418 = vpop.f32.mrf.mxu0
        %v6419 = vadd.f32 %v6066, %v6418
        %v6420 = vpop.f32.mrf.mxu0
        %v6421 = vadd.f32 %v6068, %v6420
        %v6422 = vpop.f32.mrf.mxu0
        %v6423 = vadd.f32 %v6070, %v6422
        %v6424 = vpop.f32.mrf.mxu0
        %v6425 = vadd.f32 %v6072, %v6424
        %6426 = vmatprep.mubr.bf16.mxu0 %v3074
        %6427 = vmatmul.mubr.bf16.gmra.mxu0 %v3073
        %v6428 = vpop.f32.mrf.mxu0
        %v6429 = vadd.f32 %v6076, %v6428
        %v6430 = vpop.f32.mrf.mxu0
        %v6431 = vadd.f32 %v6078, %v6430
        %v6432 = vpop.f32.mrf.mxu0
        %v6433 = vadd.f32 %v6080, %v6432
        %v6434 = vpop.f32.mrf.mxu0
        %v6435 = vadd.f32 %v6082, %v6434
        %6436 = vmatprep.mubr.bf16.mxu0 %v3090
        %6437 = vmatmul.mubr.bf16.gmra.mxu0 %v3089
        %v6438 = vpop.f32.mrf.mxu0
        %v6439 = vadd.f32 %v6086, %v6438
        %v6440 = vpop.f32.mrf.mxu0
        %v6441 = vadd.f32 %v6088, %v6440
        %v6442 = vpop.f32.mrf.mxu0
        %v6443 = vadd.f32 %v6090, %v6442
        %v6444 = vpop.f32.mrf.mxu0
        %v6445 = vadd.f32 %v6092, %v6444
        %6446 = vmatprep.mubr.bf16.mxu0 %v3106
        %6447 = vmatmul.mubr.bf16.gmra.mxu0 %v3105
        %v6448 = vpop.f32.mrf.mxu0
        %v6449 = vadd.f32 %v6096, %v6448
        %v6450 = vpop.f32.mrf.mxu0
        %v6451 = vadd.f32 %v6098, %v6450
        %v6452 = vpop.f32.mrf.mxu0
        %v6453 = vadd.f32 %v6100, %v6452
        %v6454 = vpop.f32.mrf.mxu0
        %v6455 = vadd.f32 %v6102, %v6454
        %6456 = vmatprep.mubr.bf16.mxu0 %v3122
        %6457 = vmatmul.mubr.bf16.gmra.mxu0 %v3121
        %v6458 = vpop.f32.mrf.mxu0
        %v6459 = vadd.f32 %v6106, %v6458
        %v6460 = vpop.f32.mrf.mxu0
        %v6461 = vadd.f32 %v6108, %v6460
        %v6462 = vpop.f32.mrf.mxu0
        %v6463 = vadd.f32 %v6110, %v6462
        %v6464 = vpop.f32.mrf.mxu0
        %v6465 = vadd.f32 %v6112, %v6464
        %6466 = vmatprep.mubr.bf16.mxu0 %v3138
        %6467 = vmatmul.mubr.bf16.gmra.mxu0 %v3137
        %v6468 = vpop.f32.mrf.mxu0
        %v6469 = vadd.f32 %v6116, %v6468
        %v6470 = vpop.f32.mrf.mxu0
        %v6471 = vadd.f32 %v6118, %v6470
        %v6472 = vpop.f32.mrf.mxu0
        %v6473 = vadd.f32 %v6120, %v6472
        %v6474 = vpop.f32.mrf.mxu0
        %v6475 = vadd.f32 %v6122, %v6474
        %6476 = vmatprep.mubr.bf16.mxu0 %v3154
        %6477 = vmatmul.mubr.bf16.gmra.mxu0 %v3153
        %v6478 = vpop.f32.mrf.mxu0
        %v6479 = vadd.f32 %v6126, %v6478
        %v6480 = vpop.f32.mrf.mxu0
        %v6481 = vadd.f32 %v6128, %v6480
        %v6482 = vpop.f32.mrf.mxu0
        %v6483 = vadd.f32 %v6130, %v6482
        %v6484 = vpop.f32.mrf.mxu0
        %v6485 = vadd.f32 %v6132, %v6484
        %6486 = vmatprep.mubr.bf16.mxu0 %v3170
        %6487 = vmatmul.mubr.bf16.gmra.mxu0 %v3169
        %v6488 = vpop.f32.mrf.mxu0
        %v6489 = vadd.f32 %v6136, %v6488
        %v6490 = vpop.f32.mrf.mxu0
        %v6491 = vadd.f32 %v6138, %v6490
        %v6492 = vpop.f32.mrf.mxu0
        %v6493 = vadd.f32 %v6140, %v6492
        %v6494 = vpop.f32.mrf.mxu0
        %v6495 = vadd.f32 %v6142, %v6494
        %6496 = vmatprep.mubr.bf16.mxu0 %v3186
        %6497 = vmatmul.mubr.bf16.gmra.mxu0 %v3185
        %v6498 = vpop.f32.mrf.mxu0
        %v6499 = vadd.f32 %v6146, %v6498
        %v6500 = vpop.f32.mrf.mxu0
        %v6501 = vadd.f32 %v6148, %v6500
        %v6502 = vpop.f32.mrf.mxu0
        %v6503 = vadd.f32 %v6150, %v6502
        %v6504 = vpop.f32.mrf.mxu0
        %v6505 = vadd.f32 %v6152, %v6504
        %6506 = vmatprep.mubr.bf16.mxu0 %v3202
        %6507 = vmatmul.mubr.bf16.gmra.mxu0 %v3201
        %v6508 = vpop.f32.mrf.mxu0
        %v6509 = vadd.f32 %v6156, %v6508
        %v6510 = vpop.f32.mrf.mxu0
        %v6511 = vadd.f32 %v6158, %v6510
        %v6512 = vpop.f32.mrf.mxu0
        %v6513 = vadd.f32 %v6160, %v6512
        %v6514 = vpop.f32.mrf.mxu0
        %v6515 = vadd.f32 %v6162, %v6514
        %6516 = vmatprep.mubr.bf16.mxu0 %v3218
        %6517 = vmatmul.mubr.bf16.gmra.mxu0 %v3217
        %v6518 = vpop.f32.mrf.mxu0
        %v6519 = vadd.f32 %v6166, %v6518
        %v6520 = vpop.f32.mrf.mxu0
        %v6521 = vadd.f32 %v6168, %v6520
        %v6522 = vpop.f32.mrf.mxu0
        %v6523 = vadd.f32 %v6170, %v6522
        %v6524 = vpop.f32.mrf.mxu0
        %v6525 = vadd.f32 %v6172, %v6524
        %6526 = vmatprep.mubr.bf16.mxu0 %v3234
        %6527 = vmatmul.mubr.bf16.gmra.mxu0 %v3233
        %v6528 = vpop.f32.mrf.mxu0
        %v6529 = vadd.f32 %v6176, %v6528
        %v6530 = vpop.f32.mrf.mxu0
        %v6531 = vadd.f32 %v6178, %v6530
        %v6532 = vpop.f32.mrf.mxu0
        %v6533 = vadd.f32 %v6180, %v6532
        %v6534 = vpop.f32.mrf.mxu0
        %v6535 = vadd.f32 %v6182, %v6534
        %6536 = vmatprep.mubr.bf16.mxu0 %v3250
        %6537 = vmatmul.mubr.bf16.gmra.mxu0 %v3249
        %v6538 = vpop.f32.mrf.mxu0
        %v6539 = vadd.f32 %v6186, %v6538
        %v6540 = vpop.f32.mrf.mxu0
        %v6541 = vadd.f32 %v6188, %v6540
        %v6542 = vpop.f32.mrf.mxu0
        %v6543 = vadd.f32 %v6190, %v6542
        %v6544 = vpop.f32.mrf.mxu0
        %v6545 = vadd.f32 %v6192, %v6544
        %6546 = vmatprep.mubr.bf16.mxu0 %v3266
        %6547 = vmatmul.mubr.bf16.gmra.mxu0 %v3265
        %v6548 = vpop.f32.mrf.mxu0
        %v6549 = vadd.f32 %v6196, %v6548
        %v6550 = vpop.f32.mrf.mxu0
        %v6551 = vadd.f32 %v6198, %v6550
        %v6552 = vpop.f32.mrf.mxu0
        %v6553 = vadd.f32 %v6200, %v6552
        %v6554 = vpop.f32.mrf.mxu0
        %v6555 = vadd.f32 %v6202, %v6554
        %6556 = vmatprep.mubr.bf16.mxu0 %v3282
        %6557 = vmatmul.mubr.bf16.gmra.mxu0 %v3281
        %v6558 = vpop.f32.mrf.mxu0
        %v6559 = vadd.f32 %v6206, %v6558
        %v6560 = vpop.f32.mrf.mxu0
        %v6561 = vadd.f32 %v6208, %v6560
        %v6562 = vpop.f32.mrf.mxu0
        %v6563 = vadd.f32 %v6210, %v6562
        %v6564 = vpop.f32.mrf.mxu0
        %v6565 = vadd.f32 %v6212, %v6564
        %6566 = vmatprep.mubr.bf16.mxu0 %v3298
        %6567 = vmatmul.mubr.bf16.gmra.mxu0 %v3297
        %v6568 = vpop.f32.mrf.mxu0
        %v6569 = vadd.f32 %v6216, %v6568
        %v6570 = vpop.f32.mrf.mxu0
        %v6571 = vadd.f32 %v6218, %v6570
        %v6572 = vpop.f32.mrf.mxu0
        %v6573 = vadd.f32 %v6220, %v6572
        %v6574 = vpop.f32.mrf.mxu0
        %v6575 = vadd.f32 %v6222, %v6574
        %6576 = vmatprep.mubr.bf16.mxu0 %v3314
        %6577 = vmatmul.mubr.bf16.gmra.mxu0 %v3313
        %v6578 = vpop.f32.mrf.mxu0
        %v6579 = vadd.f32 %v6226, %v6578
        %v6580 = vpop.f32.mrf.mxu0
        %v6581 = vadd.f32 %v6228, %v6580
        %v6582 = vpop.f32.mrf.mxu0
        %v6583 = vadd.f32 %v6230, %v6582
        %v6584 = vpop.f32.mrf.mxu0
        %v6585 = vadd.f32 %v6232, %v6584
        %6586 = vmatprep.mubr.bf16.mxu0 %v3330
        %6587 = vmatmul.mubr.bf16.gmra.mxu0 %v3329
        %v6588 = vpop.f32.mrf.mxu0
        %v6589 = vadd.f32 %v6236, %v6588
        %v6590 = vpop.f32.mrf.mxu0
        %v6591 = vadd.f32 %v6238, %v6590
        %v6592 = vpop.f32.mrf.mxu0
        %v6593 = vadd.f32 %v6240, %v6592
        %v6594 = vpop.f32.mrf.mxu0
        %v6595 = vadd.f32 %v6242, %v6594
        %6596 = vmatprep.mubr.bf16.mxu0 %v3346
        %6597 = vmatmul.mubr.bf16.gmra.mxu0 %v3345
        %v6598 = vpop.f32.mrf.mxu0
        %v6599 = vadd.f32 %v6246, %v6598
        %v6600 = vpop.f32.mrf.mxu0
        %v6601 = vadd.f32 %v6248, %v6600
        %v6602 = vpop.f32.mrf.mxu0
        %v6603 = vadd.f32 %v6250, %v6602
        %v6604 = vpop.f32.mrf.mxu0
        %v6605 = vadd.f32 %v6252, %v6604
        %6606 = vmatprep.mubr.bf16.mxu0 %v3362
        %6607 = vmatmul.mubr.bf16.gmra.mxu0 %v3361
        %v6608 = vpop.f32.mrf.mxu0
        %v6609 = vadd.f32 %v6256, %v6608
        %v6610 = vpop.f32.mrf.mxu0
        %v6611 = vadd.f32 %v6258, %v6610
        %v6612 = vpop.f32.mrf.mxu0
        %v6613 = vadd.f32 %v6260, %v6612
        %v6614 = vpop.f32.mrf.mxu0
        %v6615 = vadd.f32 %v6262, %v6614
        %6616 = vmatprep.mubr.bf16.mxu0 %v3378
        %6617 = vmatmul.mubr.bf16.gmra.mxu0 %v3377
        %v6618 = vpop.f32.mrf.mxu0
        %v6619 = vadd.f32 %v6266, %v6618
        %v6620 = vpop.f32.mrf.mxu0
        %v6621 = vadd.f32 %v6268, %v6620
        %v6622 = vpop.f32.mrf.mxu0
        %v6623 = vadd.f32 %v6270, %v6622
        %v6624 = vpop.f32.mrf.mxu0
        %v6625 = vadd.f32 %v6272, %v6624
        %6626 = vmatprep.mubr.bf16.mxu0 %v3394
        %6627 = vmatmul.mubr.bf16.gmra.mxu0 %v3393
        %v6628 = vpop.f32.mrf.mxu0
        %v6629 = vadd.f32 %v6276, %v6628
        %v6630 = vpop.f32.mrf.mxu0
        %v6631 = vadd.f32 %v6278, %v6630
        %v6632 = vpop.f32.mrf.mxu0
        %v6633 = vadd.f32 %v6280, %v6632
        %v6634 = vpop.f32.mrf.mxu0
        %v6635 = vadd.f32 %v6282, %v6634
        %6636 = vmatprep.mubr.bf16.mxu0 %v3410
        %6637 = vmatmul.mubr.bf16.gmra.mxu0 %v3409
        %v6638 = vpop.f32.mrf.mxu0
        %v6639 = vadd.f32 %v6286, %v6638
        %v6640 = vpop.f32.mrf.mxu0
        %v6641 = vadd.f32 %v6288, %v6640
        %v6642 = vpop.f32.mrf.mxu0
        %v6643 = vadd.f32 %v6290, %v6642
        %v6644 = vpop.f32.mrf.mxu0
        %v6645 = vadd.f32 %v6292, %v6644
        %6646 = vmatprep.mubr.bf16.mxu0 %v3426
        %6647 = vmatmul.mubr.bf16.gmra.mxu0 %v3425
        %v6648 = vpop.f32.mrf.mxu0
        %v6649 = vadd.f32 %v6296, %v6648
        %v6650 = vpop.f32.mrf.mxu0
        %v6651 = vadd.f32 %v6298, %v6650
        %v6652 = vpop.f32.mrf.mxu0
        %v6653 = vadd.f32 %v6300, %v6652
        %v6654 = vpop.f32.mrf.mxu0
        %v6655 = vadd.f32 %v6302, %v6654
        %6656 = vmatprep.mubr.bf16.mxu0 %v3442
        %6657 = vmatmul.mubr.bf16.gmra.mxu0 %v3441
        %v6658 = vpop.f32.mrf.mxu0
        %v6659 = vadd.f32 %v6306, %v6658
        %v6660 = vpop.f32.mrf.mxu0
        %v6661 = vadd.f32 %v6308, %v6660
        %v6662 = vpop.f32.mrf.mxu0
        %v6663 = vadd.f32 %v6310, %v6662
        %v6664 = vpop.f32.mrf.mxu0
        %v6665 = vadd.f32 %v6312, %v6664
        %6666 = vmatprep.mubr.bf16.mxu0 %v3458
        %6667 = vmatmul.mubr.bf16.gmra.mxu0 %v3457
        %v6668 = vpop.f32.mrf.mxu0
        %v6669 = vadd.f32 %v6316, %v6668
        %v6670 = vpop.f32.mrf.mxu0
        %v6671 = vadd.f32 %v6318, %v6670
        %v6672 = vpop.f32.mrf.mxu0
        %v6673 = vadd.f32 %v6320, %v6672
        %v6674 = vpop.f32.mrf.mxu0
        %v6675 = vadd.f32 %v6322, %v6674
        %6676 = vmatprep.mubr.bf16.mxu0 %v3474
        %6677 = vmatmul.mubr.bf16.gmra.mxu0 %v3473
        %v6678 = vpop.f32.mrf.mxu0
        %v6679 = vadd.f32 %v6326, %v6678
        %v6680 = vpop.f32.mrf.mxu0
        %v6681 = vadd.f32 %v6328, %v6680
        %v6682 = vpop.f32.mrf.mxu0
        %v6683 = vadd.f32 %v6330, %v6682
        %v6684 = vpop.f32.mrf.mxu0
        %v6685 = vadd.f32 %v6332, %v6684
        %6686 = vdwg.mxu0
        %6687 = vmatprep.subr.bf16.mxu0 %v4906
        %6688 = vmatpush1.bf16.msra.mxu0 %v4905
        %6689 = vmatprep.subr.bf16.mxu0 %v4904
        %6690 = vmatpush1.bf16.msra.mxu0 %v4903
        %6691 = vmatprep.subr.bf16.mxu0 %v4902
        %6692 = vmatpush1.bf16.msra.mxu0 %v4901
        %6693 = vmatprep.subr.bf16.mxu0 %v4900
        %6694 = vmatpush1.bf16.msra.mxu0 %v4899
        %6695 = vmatprep.subr.bf16.mxu0 %v4898
        %6696 = vmatpush1.bf16.msra.mxu0 %v4897
        %6697 = vmatprep.subr.bf16.mxu0 %v4896
        %6698 = vmatpush1.bf16.msra.mxu0 %v4895
        %6699 = vmatprep.subr.bf16.mxu0 %v4894
        %6700 = vmatpush1.bf16.msra.mxu0 %v4893
        %6701 = vmatprep.subr.bf16.mxu0 %v4892
        %6702 = vmatpush1.bf16.msra.mxu0 %v4891
        %6703 = vmatprep.subr.bf16.mxu0 %v4922
        %6704 = vmatpush2.bf16.msra.mxu0 %v4921
        %6705 = vmatprep.subr.bf16.mxu0 %v4920
        %6706 = vmatpush2.bf16.msra.mxu0 %v4919
        %6707 = vmatprep.subr.bf16.mxu0 %v4918
        %6708 = vmatpush2.bf16.msra.mxu0 %v4917
        %6709 = vmatprep.subr.bf16.mxu0 %v4916
        %6710 = vmatpush2.bf16.msra.mxu0 %v4915
        %6711 = vmatprep.subr.bf16.mxu0 %v4914
        %6712 = vmatpush2.bf16.msra.mxu0 %v4913
        %6713 = vmatprep.subr.bf16.mxu0 %v4912
        %6714 = vmatpush2.bf16.msra.mxu0 %v4911
        %6715 = vmatprep.subr.bf16.mxu0 %v4910
        %6716 = vmatpush2.bf16.msra.mxu0 %v4909
        %6717 = vmatprep.subr.bf16.mxu0 %v4908
        %6718 = vmatpush2.bf16.msra.mxu0 %v4907
        %6719 = vmatprep.mubr.bf16.mxu0 %v2980
        %6720 = vmatmul.mubr.bf16.gmra.mxu0 %v2979
        %v6721 = vpop.f32.mrf.mxu0
        %v6722 = vadd.f32 %v6369, %v6721
        %v6723 = vpop.f32.mrf.mxu0
        %v6724 = vadd.f32 %v6371, %v6723
        %v6725 = vpop.f32.mrf.mxu0
        %v6726 = vadd.f32 %v6373, %v6725
        %v6727 = vpop.f32.mrf.mxu0
        %v6728 = vadd.f32 %v6375, %v6727
        %6729 = vmatprep.mubr.bf16.mxu0 %v2996
        %6730 = vmatmul.mubr.bf16.gmra.mxu0 %v2995
        %v6731 = vpop.f32.mrf.mxu0
        %v6732 = vadd.f32 %v6379, %v6731
        %v6733 = vpop.f32.mrf.mxu0
        %v6734 = vadd.f32 %v6381, %v6733
        %v6735 = vpop.f32.mrf.mxu0
        %v6736 = vadd.f32 %v6383, %v6735
        %v6737 = vpop.f32.mrf.mxu0
        %v6738 = vadd.f32 %v6385, %v6737
        %6739 = vmatprep.mubr.bf16.mxu0 %v3012
        %6740 = vmatmul.mubr.bf16.gmra.mxu0 %v3011
        %v6741 = vpop.f32.mrf.mxu0
        %v6742 = vadd.f32 %v6389, %v6741
        %v6743 = vpop.f32.mrf.mxu0
        %v6744 = vadd.f32 %v6391, %v6743
        %v6745 = vpop.f32.mrf.mxu0
        %v6746 = vadd.f32 %v6393, %v6745
        %v6747 = vpop.f32.mrf.mxu0
        %v6748 = vadd.f32 %v6395, %v6747
        %6749 = vmatprep.mubr.bf16.mxu0 %v3028
        %6750 = vmatmul.mubr.bf16.gmra.mxu0 %v3027
        %v6751 = vpop.f32.mrf.mxu0
        %v6752 = vadd.f32 %v6399, %v6751
        %v6753 = vpop.f32.mrf.mxu0
        %v6754 = vadd.f32 %v6401, %v6753
        %v6755 = vpop.f32.mrf.mxu0
        %v6756 = vadd.f32 %v6403, %v6755
        %v6757 = vpop.f32.mrf.mxu0
        %v6758 = vadd.f32 %v6405, %v6757
        %6759 = vmatprep.mubr.bf16.mxu0 %v3044
        %6760 = vmatmul.mubr.bf16.gmra.mxu0 %v3043
        %v6761 = vpop.f32.mrf.mxu0
        %v6762 = vadd.f32 %v6409, %v6761
        %v6763 = vpop.f32.mrf.mxu0
        %v6764 = vadd.f32 %v6411, %v6763
        %v6765 = vpop.f32.mrf.mxu0
        %v6766 = vadd.f32 %v6413, %v6765
        %v6767 = vpop.f32.mrf.mxu0
        %v6768 = vadd.f32 %v6415, %v6767
        %6769 = vmatprep.mubr.bf16.mxu0 %v3060
        %6770 = vmatmul.mubr.bf16.gmra.mxu0 %v3059
        %v6771 = vpop.f32.mrf.mxu0
        %v6772 = vadd.f32 %v6419, %v6771
        %v6773 = vpop.f32.mrf.mxu0
        %v6774 = vadd.f32 %v6421, %v6773
        %v6775 = vpop.f32.mrf.mxu0
        %v6776 = vadd.f32 %v6423, %v6775
        %v6777 = vpop.f32.mrf.mxu0
        %v6778 = vadd.f32 %v6425, %v6777
        %6779 = vmatprep.mubr.bf16.mxu0 %v3076
        %6780 = vmatmul.mubr.bf16.gmra.mxu0 %v3075
        %v6781 = vpop.f32.mrf.mxu0
        %v6782 = vadd.f32 %v6429, %v6781
        %v6783 = vpop.f32.mrf.mxu0
        %v6784 = vadd.f32 %v6431, %v6783
        %v6785 = vpop.f32.mrf.mxu0
        %v6786 = vadd.f32 %v6433, %v6785
        %v6787 = vpop.f32.mrf.mxu0
        %v6788 = vadd.f32 %v6435, %v6787
        %6789 = vmatprep.mubr.bf16.mxu0 %v3092
        %6790 = vmatmul.mubr.bf16.gmra.mxu0 %v3091
        %v6791 = vpop.f32.mrf.mxu0
        %v6792 = vadd.f32 %v6439, %v6791
        %v6793 = vpop.f32.mrf.mxu0
        %v6794 = vadd.f32 %v6441, %v6793
        %v6795 = vpop.f32.mrf.mxu0
        %v6796 = vadd.f32 %v6443, %v6795
        %v6797 = vpop.f32.mrf.mxu0
        %v6798 = vadd.f32 %v6445, %v6797
        %6799 = vmatprep.mubr.bf16.mxu0 %v3108
        %6800 = vmatmul.mubr.bf16.gmra.mxu0 %v3107
        %v6801 = vpop.f32.mrf.mxu0
        %v6802 = vadd.f32 %v6449, %v6801
        %v6803 = vpop.f32.mrf.mxu0
        %v6804 = vadd.f32 %v6451, %v6803
        %v6805 = vpop.f32.mrf.mxu0
        %v6806 = vadd.f32 %v6453, %v6805
        %v6807 = vpop.f32.mrf.mxu0
        %v6808 = vadd.f32 %v6455, %v6807
        %6809 = vmatprep.mubr.bf16.mxu0 %v3124
        %6810 = vmatmul.mubr.bf16.gmra.mxu0 %v3123
        %v6811 = vpop.f32.mrf.mxu0
        %v6812 = vadd.f32 %v6459, %v6811
        %v6813 = vpop.f32.mrf.mxu0
        %v6814 = vadd.f32 %v6461, %v6813
        %v6815 = vpop.f32.mrf.mxu0
        %v6816 = vadd.f32 %v6463, %v6815
        %v6817 = vpop.f32.mrf.mxu0
        %v6818 = vadd.f32 %v6465, %v6817
        %6819 = vmatprep.mubr.bf16.mxu0 %v3140
        %6820 = vmatmul.mubr.bf16.gmra.mxu0 %v3139
        %v6821 = vpop.f32.mrf.mxu0
        %v6822 = vadd.f32 %v6469, %v6821
        %v6823 = vpop.f32.mrf.mxu0
        %v6824 = vadd.f32 %v6471, %v6823
        %v6825 = vpop.f32.mrf.mxu0
        %v6826 = vadd.f32 %v6473, %v6825
        %v6827 = vpop.f32.mrf.mxu0
        %v6828 = vadd.f32 %v6475, %v6827
        %6829 = vmatprep.mubr.bf16.mxu0 %v3156
        %6830 = vmatmul.mubr.bf16.gmra.mxu0 %v3155
        %v6831 = vpop.f32.mrf.mxu0
        %v6832 = vadd.f32 %v6479, %v6831
        %v6833 = vpop.f32.mrf.mxu0
        %v6834 = vadd.f32 %v6481, %v6833
        %v6835 = vpop.f32.mrf.mxu0
        %v6836 = vadd.f32 %v6483, %v6835
        %v6837 = vpop.f32.mrf.mxu0
        %v6838 = vadd.f32 %v6485, %v6837
        %6839 = vmatprep.mubr.bf16.mxu0 %v3172
        %6840 = vmatmul.mubr.bf16.gmra.mxu0 %v3171
        %v6841 = vpop.f32.mrf.mxu0
        %v6842 = vadd.f32 %v6489, %v6841
        %v6843 = vpop.f32.mrf.mxu0
        %v6844 = vadd.f32 %v6491, %v6843
        %v6845 = vpop.f32.mrf.mxu0
        %v6846 = vadd.f32 %v6493, %v6845
        %v6847 = vpop.f32.mrf.mxu0
        %v6848 = vadd.f32 %v6495, %v6847
        %6849 = vmatprep.mubr.bf16.mxu0 %v3188
        %6850 = vmatmul.mubr.bf16.gmra.mxu0 %v3187
        %v6851 = vpop.f32.mrf.mxu0
        %v6852 = vadd.f32 %v6499, %v6851
        %v6853 = vpop.f32.mrf.mxu0
        %v6854 = vadd.f32 %v6501, %v6853
        %v6855 = vpop.f32.mrf.mxu0
        %v6856 = vadd.f32 %v6503, %v6855
        %v6857 = vpop.f32.mrf.mxu0
        %v6858 = vadd.f32 %v6505, %v6857
        %6859 = vmatprep.mubr.bf16.mxu0 %v3204
        %6860 = vmatmul.mubr.bf16.gmra.mxu0 %v3203
        %v6861 = vpop.f32.mrf.mxu0
        %v6862 = vadd.f32 %v6509, %v6861
        %v6863 = vpop.f32.mrf.mxu0
        %v6864 = vadd.f32 %v6511, %v6863
        %v6865 = vpop.f32.mrf.mxu0
        %v6866 = vadd.f32 %v6513, %v6865
        %v6867 = vpop.f32.mrf.mxu0
        %v6868 = vadd.f32 %v6515, %v6867
        %6869 = vmatprep.mubr.bf16.mxu0 %v3220
        %6870 = vmatmul.mubr.bf16.gmra.mxu0 %v3219
        %v6871 = vpop.f32.mrf.mxu0
        %v6872 = vadd.f32 %v6519, %v6871
        %v6873 = vpop.f32.mrf.mxu0
        %v6874 = vadd.f32 %v6521, %v6873
        %v6875 = vpop.f32.mrf.mxu0
        %v6876 = vadd.f32 %v6523, %v6875
        %v6877 = vpop.f32.mrf.mxu0
        %v6878 = vadd.f32 %v6525, %v6877
        %6879 = vmatprep.mubr.bf16.mxu0 %v3236
        %6880 = vmatmul.mubr.bf16.gmra.mxu0 %v3235
        %v6881 = vpop.f32.mrf.mxu0
        %v6882 = vadd.f32 %v6529, %v6881
        %v6883 = vpop.f32.mrf.mxu0
        %v6884 = vadd.f32 %v6531, %v6883
        %v6885 = vpop.f32.mrf.mxu0
        %v6886 = vadd.f32 %v6533, %v6885
        %v6887 = vpop.f32.mrf.mxu0
        %v6888 = vadd.f32 %v6535, %v6887
        %6889 = vmatprep.mubr.bf16.mxu0 %v3252
        %6890 = vmatmul.mubr.bf16.gmra.mxu0 %v3251
        %v6891 = vpop.f32.mrf.mxu0
        %v6892 = vadd.f32 %v6539, %v6891
        %v6893 = vpop.f32.mrf.mxu0
        %v6894 = vadd.f32 %v6541, %v6893
        %v6895 = vpop.f32.mrf.mxu0
        %v6896 = vadd.f32 %v6543, %v6895
        %v6897 = vpop.f32.mrf.mxu0
        %v6898 = vadd.f32 %v6545, %v6897
        %6899 = vmatprep.mubr.bf16.mxu0 %v3268
        %6900 = vmatmul.mubr.bf16.gmra.mxu0 %v3267
        %v6901 = vpop.f32.mrf.mxu0
        %v6902 = vadd.f32 %v6549, %v6901
        %v6903 = vpop.f32.mrf.mxu0
        %v6904 = vadd.f32 %v6551, %v6903
        %v6905 = vpop.f32.mrf.mxu0
        %v6906 = vadd.f32 %v6553, %v6905
        %v6907 = vpop.f32.mrf.mxu0
        %v6908 = vadd.f32 %v6555, %v6907
        %6909 = vmatprep.mubr.bf16.mxu0 %v3284
        %6910 = vmatmul.mubr.bf16.gmra.mxu0 %v3283
        %v6911 = vpop.f32.mrf.mxu0
        %v6912 = vadd.f32 %v6559, %v6911
        %v6913 = vpop.f32.mrf.mxu0
        %v6914 = vadd.f32 %v6561, %v6913
        %v6915 = vpop.f32.mrf.mxu0
        %v6916 = vadd.f32 %v6563, %v6915
        %v6917 = vpop.f32.mrf.mxu0
        %v6918 = vadd.f32 %v6565, %v6917
        %6919 = vmatprep.mubr.bf16.mxu0 %v3300
        %6920 = vmatmul.mubr.bf16.gmra.mxu0 %v3299
        %v6921 = vpop.f32.mrf.mxu0
        %v6922 = vadd.f32 %v6569, %v6921
        %v6923 = vpop.f32.mrf.mxu0
        %v6924 = vadd.f32 %v6571, %v6923
        %v6925 = vpop.f32.mrf.mxu0
        %v6926 = vadd.f32 %v6573, %v6925
        %v6927 = vpop.f32.mrf.mxu0
        %v6928 = vadd.f32 %v6575, %v6927
        %6929 = vmatprep.mubr.bf16.mxu0 %v3316
        %6930 = vmatmul.mubr.bf16.gmra.mxu0 %v3315
        %v6931 = vpop.f32.mrf.mxu0
        %v6932 = vadd.f32 %v6579, %v6931
        %v6933 = vpop.f32.mrf.mxu0
        %v6934 = vadd.f32 %v6581, %v6933
        %v6935 = vpop.f32.mrf.mxu0
        %v6936 = vadd.f32 %v6583, %v6935
        %v6937 = vpop.f32.mrf.mxu0
        %v6938 = vadd.f32 %v6585, %v6937
        %6939 = vmatprep.mubr.bf16.mxu0 %v3332
        %6940 = vmatmul.mubr.bf16.gmra.mxu0 %v3331
        %v6941 = vpop.f32.mrf.mxu0
        %v6942 = vadd.f32 %v6589, %v6941
        %v6943 = vpop.f32.mrf.mxu0
        %v6944 = vadd.f32 %v6591, %v6943
        %v6945 = vpop.f32.mrf.mxu0
        %v6946 = vadd.f32 %v6593, %v6945
        %v6947 = vpop.f32.mrf.mxu0
        %v6948 = vadd.f32 %v6595, %v6947
        %6949 = vmatprep.mubr.bf16.mxu0 %v3348
        %6950 = vmatmul.mubr.bf16.gmra.mxu0 %v3347
        %v6951 = vpop.f32.mrf.mxu0
        %v6952 = vadd.f32 %v6599, %v6951
        %v6953 = vpop.f32.mrf.mxu0
        %v6954 = vadd.f32 %v6601, %v6953
        %v6955 = vpop.f32.mrf.mxu0
        %v6956 = vadd.f32 %v6603, %v6955
        %v6957 = vpop.f32.mrf.mxu0
        %v6958 = vadd.f32 %v6605, %v6957
        %6959 = vmatprep.mubr.bf16.mxu0 %v3364
        %6960 = vmatmul.mubr.bf16.gmra.mxu0 %v3363
        %v6961 = vpop.f32.mrf.mxu0
        %v6962 = vadd.f32 %v6609, %v6961
        %v6963 = vpop.f32.mrf.mxu0
        %v6964 = vadd.f32 %v6611, %v6963
        %v6965 = vpop.f32.mrf.mxu0
        %v6966 = vadd.f32 %v6613, %v6965
        %v6967 = vpop.f32.mrf.mxu0
        %v6968 = vadd.f32 %v6615, %v6967
        %6969 = vmatprep.mubr.bf16.mxu0 %v3380
        %6970 = vmatmul.mubr.bf16.gmra.mxu0 %v3379
        %v6971 = vpop.f32.mrf.mxu0
        %v6972 = vadd.f32 %v6619, %v6971
        %v6973 = vpop.f32.mrf.mxu0
        %v6974 = vadd.f32 %v6621, %v6973
        %v6975 = vpop.f32.mrf.mxu0
        %v6976 = vadd.f32 %v6623, %v6975
        %v6977 = vpop.f32.mrf.mxu0
        %v6978 = vadd.f32 %v6625, %v6977
        %6979 = vmatprep.mubr.bf16.mxu0 %v3396
        %6980 = vmatmul.mubr.bf16.gmra.mxu0 %v3395
        %v6981 = vpop.f32.mrf.mxu0
        %v6982 = vadd.f32 %v6629, %v6981
        %v6983 = vpop.f32.mrf.mxu0
        %v6984 = vadd.f32 %v6631, %v6983
        %v6985 = vpop.f32.mrf.mxu0
        %v6986 = vadd.f32 %v6633, %v6985
        %v6987 = vpop.f32.mrf.mxu0
        %v6988 = vadd.f32 %v6635, %v6987
        %6989 = vmatprep.mubr.bf16.mxu0 %v3412
        %6990 = vmatmul.mubr.bf16.gmra.mxu0 %v3411
        %v6991 = vpop.f32.mrf.mxu0
        %v6992 = vadd.f32 %v6639, %v6991
        %v6993 = vpop.f32.mrf.mxu0
        %v6994 = vadd.f32 %v6641, %v6993
        %v6995 = vpop.f32.mrf.mxu0
        %v6996 = vadd.f32 %v6643, %v6995
        %v6997 = vpop.f32.mrf.mxu0
        %v6998 = vadd.f32 %v6645, %v6997
        %6999 = vmatprep.mubr.bf16.mxu0 %v3428
        %7000 = vmatmul.mubr.bf16.gmra.mxu0 %v3427
        %v7001 = vpop.f32.mrf.mxu0
        %v7002 = vadd.f32 %v6649, %v7001
        %v7003 = vpop.f32.mrf.mxu0
        %v7004 = vadd.f32 %v6651, %v7003
        %v7005 = vpop.f32.mrf.mxu0
        %v7006 = vadd.f32 %v6653, %v7005
        %v7007 = vpop.f32.mrf.mxu0
        %v7008 = vadd.f32 %v6655, %v7007
        %7009 = vmatprep.mubr.bf16.mxu0 %v3444
        %7010 = vmatmul.mubr.bf16.gmra.mxu0 %v3443
        %v7011 = vpop.f32.mrf.mxu0
        %v7012 = vadd.f32 %v6659, %v7011
        %v7013 = vpop.f32.mrf.mxu0
        %v7014 = vadd.f32 %v6661, %v7013
        %v7015 = vpop.f32.mrf.mxu0
        %v7016 = vadd.f32 %v6663, %v7015
        %v7017 = vpop.f32.mrf.mxu0
        %v7018 = vadd.f32 %v6665, %v7017
        %7019 = vmatprep.mubr.bf16.mxu0 %v3460
        %7020 = vmatmul.mubr.bf16.gmra.mxu0 %v3459
        %v7021 = vpop.f32.mrf.mxu0
        %v7022 = vadd.f32 %v6669, %v7021
        %v7023 = vpop.f32.mrf.mxu0
        %v7024 = vadd.f32 %v6671, %v7023
        %v7025 = vpop.f32.mrf.mxu0
        %v7026 = vadd.f32 %v6673, %v7025
        %v7027 = vpop.f32.mrf.mxu0
        %v7028 = vadd.f32 %v6675, %v7027
        %7029 = vmatprep.mubr.bf16.mxu0 %v3476
        %7030 = vmatmul.mubr.bf16.gmra.mxu0 %v3475
        %v7031 = vpop.f32.mrf.mxu0
        %v7032 = vadd.f32 %v6679, %v7031
        %v7033 = vpop.f32.mrf.mxu0
        %v7034 = vadd.f32 %v6681, %v7033
        %v7035 = vpop.f32.mrf.mxu0
        %v7036 = vadd.f32 %v6683, %v7035
        %v7037 = vpop.f32.mrf.mxu0
        %v7038 = vadd.f32 %v6685, %v7037
        %7039 = vdwg.mxu0
        %7040 = vmatprep.subr.bf16.mxu0 %v4938
        %7041 = vmatpush1.bf16.msra.mxu0 %v4937
        %7042 = vmatprep.subr.bf16.mxu0 %v4936
        %7043 = vmatpush1.bf16.msra.mxu0 %v4935
        %7044 = vmatprep.subr.bf16.mxu0 %v4934
        %7045 = vmatpush1.bf16.msra.mxu0 %v4933
        %7046 = vmatprep.subr.bf16.mxu0 %v4932
        %7047 = vmatpush1.bf16.msra.mxu0 %v4931
        %7048 = vmatprep.subr.bf16.mxu0 %v4930
        %7049 = vmatpush1.bf16.msra.mxu0 %v4929
        %7050 = vmatprep.subr.bf16.mxu0 %v4928
        %7051 = vmatpush1.bf16.msra.mxu0 %v4927
        %7052 = vmatprep.subr.bf16.mxu0 %v4926
        %7053 = vmatpush1.bf16.msra.mxu0 %v4925
        %7054 = vmatprep.subr.bf16.mxu0 %v4924
        %7055 = vmatpush1.bf16.msra.mxu0 %v4923
        %7056 = vmatprep.subr.bf16.mxu0 %v4954
        %7057 = vmatpush2.bf16.msra.mxu0 %v4953
        %7058 = vmatprep.subr.bf16.mxu0 %v4952
        %7059 = vmatpush2.bf16.msra.mxu0 %v4951
        %7060 = vmatprep.subr.bf16.mxu0 %v4950
        %7061 = vmatpush2.bf16.msra.mxu0 %v4949
        %7062 = vmatprep.subr.bf16.mxu0 %v4948
        %7063 = vmatpush2.bf16.msra.mxu0 %v4947
        %7064 = vmatprep.subr.bf16.mxu0 %v4946
        %7065 = vmatpush2.bf16.msra.mxu0 %v4945
        %7066 = vmatprep.subr.bf16.mxu0 %v4944
        %7067 = vmatpush2.bf16.msra.mxu0 %v4943
        %7068 = vmatprep.subr.bf16.mxu0 %v4942
        %7069 = vmatpush2.bf16.msra.mxu0 %v4941
        %7070 = vmatprep.subr.bf16.mxu0 %v4940
        %7071 = vmatpush2.bf16.msra.mxu0 %v4939
        %7072 = vmatprep.mubr.bf16.mxu0 %v2982
        %7073 = vmatmul.mubr.bf16.gmra.mxu0 %v2981
        %v7074 = vpop.f32.mrf.mxu0
        %v7075 = vadd.f32 %v6722, %v7074
        %v7076 = vpop.f32.mrf.mxu0
        %v7077 = vadd.f32 %v6724, %v7076
        %v7078 = vpop.f32.mrf.mxu0
        %v7079 = vadd.f32 %v6726, %v7078
        %v7080 = vpop.f32.mrf.mxu0
        %v7081 = vadd.f32 %v6728, %v7080
        %7082 = vmatprep.mubr.bf16.mxu0 %v2998
        %7083 = vmatmul.mubr.bf16.gmra.mxu0 %v2997
        %v7084 = vpop.f32.mrf.mxu0
        %v7085 = vadd.f32 %v6732, %v7084
        %v7086 = vpop.f32.mrf.mxu0
        %v7087 = vadd.f32 %v6734, %v7086
        %v7088 = vpop.f32.mrf.mxu0
        %v7089 = vadd.f32 %v6736, %v7088
        %v7090 = vpop.f32.mrf.mxu0
        %v7091 = vadd.f32 %v6738, %v7090
        %7092 = vmatprep.mubr.bf16.mxu0 %v3014
        %7093 = vmatmul.mubr.bf16.gmra.mxu0 %v3013
        %v7094 = vpop.f32.mrf.mxu0
        %v7095 = vadd.f32 %v6742, %v7094
        %v7096 = vpop.f32.mrf.mxu0
        %v7097 = vadd.f32 %v6744, %v7096
        %v7098 = vpop.f32.mrf.mxu0
        %v7099 = vadd.f32 %v6746, %v7098
        %v7100 = vpop.f32.mrf.mxu0
        %v7101 = vadd.f32 %v6748, %v7100
        %7102 = vmatprep.mubr.bf16.mxu0 %v3030
        %7103 = vmatmul.mubr.bf16.gmra.mxu0 %v3029
        %v7104 = vpop.f32.mrf.mxu0
        %v7105 = vadd.f32 %v6752, %v7104
        %v7106 = vpop.f32.mrf.mxu0
        %v7107 = vadd.f32 %v6754, %v7106
        %v7108 = vpop.f32.mrf.mxu0
        %v7109 = vadd.f32 %v6756, %v7108
        %v7110 = vpop.f32.mrf.mxu0
        %v7111 = vadd.f32 %v6758, %v7110
        %7112 = vmatprep.mubr.bf16.mxu0 %v3046
        %7113 = vmatmul.mubr.bf16.gmra.mxu0 %v3045
        %v7114 = vpop.f32.mrf.mxu0
        %v7115 = vadd.f32 %v6762, %v7114
        %v7116 = vpop.f32.mrf.mxu0
        %v7117 = vadd.f32 %v6764, %v7116
        %v7118 = vpop.f32.mrf.mxu0
        %v7119 = vadd.f32 %v6766, %v7118
        %v7120 = vpop.f32.mrf.mxu0
        %v7121 = vadd.f32 %v6768, %v7120
        %7122 = vmatprep.mubr.bf16.mxu0 %v3062
        %7123 = vmatmul.mubr.bf16.gmra.mxu0 %v3061
        %v7124 = vpop.f32.mrf.mxu0
        %v7125 = vadd.f32 %v6772, %v7124
        %v7126 = vpop.f32.mrf.mxu0
        %v7127 = vadd.f32 %v6774, %v7126
        %v7128 = vpop.f32.mrf.mxu0
        %v7129 = vadd.f32 %v6776, %v7128
        %v7130 = vpop.f32.mrf.mxu0
        %v7131 = vadd.f32 %v6778, %v7130
        %7132 = vmatprep.mubr.bf16.mxu0 %v3078
        %7133 = vmatmul.mubr.bf16.gmra.mxu0 %v3077
        %v7134 = vpop.f32.mrf.mxu0
        %v7135 = vadd.f32 %v6782, %v7134
        %v7136 = vpop.f32.mrf.mxu0
        %v7137 = vadd.f32 %v6784, %v7136
        %v7138 = vpop.f32.mrf.mxu0
        %v7139 = vadd.f32 %v6786, %v7138
        %v7140 = vpop.f32.mrf.mxu0
        %v7141 = vadd.f32 %v6788, %v7140
        %7142 = vmatprep.mubr.bf16.mxu0 %v3094
        %7143 = vmatmul.mubr.bf16.gmra.mxu0 %v3093
        %v7144 = vpop.f32.mrf.mxu0
        %v7145 = vadd.f32 %v6792, %v7144
        %v7146 = vpop.f32.mrf.mxu0
        %v7147 = vadd.f32 %v6794, %v7146
        %v7148 = vpop.f32.mrf.mxu0
        %v7149 = vadd.f32 %v6796, %v7148
        %v7150 = vpop.f32.mrf.mxu0
        %v7151 = vadd.f32 %v6798, %v7150
        %7152 = vmatprep.mubr.bf16.mxu0 %v3110
        %7153 = vmatmul.mubr.bf16.gmra.mxu0 %v3109
        %v7154 = vpop.f32.mrf.mxu0
        %v7155 = vadd.f32 %v6802, %v7154
        %v7156 = vpop.f32.mrf.mxu0
        %v7157 = vadd.f32 %v6804, %v7156
        %v7158 = vpop.f32.mrf.mxu0
        %v7159 = vadd.f32 %v6806, %v7158
        %v7160 = vpop.f32.mrf.mxu0
        %v7161 = vadd.f32 %v6808, %v7160
        %7162 = vmatprep.mubr.bf16.mxu0 %v3126
        %7163 = vmatmul.mubr.bf16.gmra.mxu0 %v3125
        %v7164 = vpop.f32.mrf.mxu0
        %v7165 = vadd.f32 %v6812, %v7164
        %v7166 = vpop.f32.mrf.mxu0
        %v7167 = vadd.f32 %v6814, %v7166
        %v7168 = vpop.f32.mrf.mxu0
        %v7169 = vadd.f32 %v6816, %v7168
        %v7170 = vpop.f32.mrf.mxu0
        %v7171 = vadd.f32 %v6818, %v7170
        %7172 = vmatprep.mubr.bf16.mxu0 %v3142
        %7173 = vmatmul.mubr.bf16.gmra.mxu0 %v3141
        %v7174 = vpop.f32.mrf.mxu0
        %v7175 = vadd.f32 %v6822, %v7174
        %v7176 = vpop.f32.mrf.mxu0
        %v7177 = vadd.f32 %v6824, %v7176
        %v7178 = vpop.f32.mrf.mxu0
        %v7179 = vadd.f32 %v6826, %v7178
        %v7180 = vpop.f32.mrf.mxu0
        %v7181 = vadd.f32 %v6828, %v7180
        %7182 = vmatprep.mubr.bf16.mxu0 %v3158
        %7183 = vmatmul.mubr.bf16.gmra.mxu0 %v3157
        %v7184 = vpop.f32.mrf.mxu0
        %v7185 = vadd.f32 %v6832, %v7184
        %v7186 = vpop.f32.mrf.mxu0
        %v7187 = vadd.f32 %v6834, %v7186
        %v7188 = vpop.f32.mrf.mxu0
        %v7189 = vadd.f32 %v6836, %v7188
        %v7190 = vpop.f32.mrf.mxu0
        %v7191 = vadd.f32 %v6838, %v7190
        %7192 = vmatprep.mubr.bf16.mxu0 %v3174
        %7193 = vmatmul.mubr.bf16.gmra.mxu0 %v3173
        %v7194 = vpop.f32.mrf.mxu0
        %v7195 = vadd.f32 %v6842, %v7194
        %v7196 = vpop.f32.mrf.mxu0
        %v7197 = vadd.f32 %v6844, %v7196
        %v7198 = vpop.f32.mrf.mxu0
        %v7199 = vadd.f32 %v6846, %v7198
        %v7200 = vpop.f32.mrf.mxu0
        %v7201 = vadd.f32 %v6848, %v7200
        %7202 = vmatprep.mubr.bf16.mxu0 %v3190
        %7203 = vmatmul.mubr.bf16.gmra.mxu0 %v3189
        %v7204 = vpop.f32.mrf.mxu0
        %v7205 = vadd.f32 %v6852, %v7204
        %v7206 = vpop.f32.mrf.mxu0
        %v7207 = vadd.f32 %v6854, %v7206
        %v7208 = vpop.f32.mrf.mxu0
        %v7209 = vadd.f32 %v6856, %v7208
        %v7210 = vpop.f32.mrf.mxu0
        %v7211 = vadd.f32 %v6858, %v7210
        %7212 = vmatprep.mubr.bf16.mxu0 %v3206
        %7213 = vmatmul.mubr.bf16.gmra.mxu0 %v3205
        %v7214 = vpop.f32.mrf.mxu0
        %v7215 = vadd.f32 %v6862, %v7214
        %v7216 = vpop.f32.mrf.mxu0
        %v7217 = vadd.f32 %v6864, %v7216
        %v7218 = vpop.f32.mrf.mxu0
        %v7219 = vadd.f32 %v6866, %v7218
        %v7220 = vpop.f32.mrf.mxu0
        %v7221 = vadd.f32 %v6868, %v7220
        %7222 = vmatprep.mubr.bf16.mxu0 %v3222
        %7223 = vmatmul.mubr.bf16.gmra.mxu0 %v3221
        %v7224 = vpop.f32.mrf.mxu0
        %v7225 = vadd.f32 %v6872, %v7224
        %v7226 = vpop.f32.mrf.mxu0
        %v7227 = vadd.f32 %v6874, %v7226
        %v7228 = vpop.f32.mrf.mxu0
        %v7229 = vadd.f32 %v6876, %v7228
        %v7230 = vpop.f32.mrf.mxu0
        %v7231 = vadd.f32 %v6878, %v7230
        %7232 = vmatprep.mubr.bf16.mxu0 %v3238
        %7233 = vmatmul.mubr.bf16.gmra.mxu0 %v3237
        %v7234 = vpop.f32.mrf.mxu0
        %v7235 = vadd.f32 %v6882, %v7234
        %v7236 = vpop.f32.mrf.mxu0
        %v7237 = vadd.f32 %v6884, %v7236
        %v7238 = vpop.f32.mrf.mxu0
        %v7239 = vadd.f32 %v6886, %v7238
        %v7240 = vpop.f32.mrf.mxu0
        %v7241 = vadd.f32 %v6888, %v7240
        %7242 = vmatprep.mubr.bf16.mxu0 %v3254
        %7243 = vmatmul.mubr.bf16.gmra.mxu0 %v3253
        %v7244 = vpop.f32.mrf.mxu0
        %v7245 = vadd.f32 %v6892, %v7244
        %v7246 = vpop.f32.mrf.mxu0
        %v7247 = vadd.f32 %v6894, %v7246
        %v7248 = vpop.f32.mrf.mxu0
        %v7249 = vadd.f32 %v6896, %v7248
        %v7250 = vpop.f32.mrf.mxu0
        %v7251 = vadd.f32 %v6898, %v7250
        %7252 = vmatprep.mubr.bf16.mxu0 %v3270
        %7253 = vmatmul.mubr.bf16.gmra.mxu0 %v3269
        %v7254 = vpop.f32.mrf.mxu0
        %v7255 = vadd.f32 %v6902, %v7254
        %v7256 = vpop.f32.mrf.mxu0
        %v7257 = vadd.f32 %v6904, %v7256
        %v7258 = vpop.f32.mrf.mxu0
        %v7259 = vadd.f32 %v6906, %v7258
        %v7260 = vpop.f32.mrf.mxu0
        %v7261 = vadd.f32 %v6908, %v7260
        %7262 = vmatprep.mubr.bf16.mxu0 %v3286
        %7263 = vmatmul.mubr.bf16.gmra.mxu0 %v3285
        %v7264 = vpop.f32.mrf.mxu0
        %v7265 = vadd.f32 %v6912, %v7264
        %v7266 = vpop.f32.mrf.mxu0
        %v7267 = vadd.f32 %v6914, %v7266
        %v7268 = vpop.f32.mrf.mxu0
        %v7269 = vadd.f32 %v6916, %v7268
        %v7270 = vpop.f32.mrf.mxu0
        %v7271 = vadd.f32 %v6918, %v7270
        %7272 = vmatprep.mubr.bf16.mxu0 %v3302
        %7273 = vmatmul.mubr.bf16.gmra.mxu0 %v3301
        %v7274 = vpop.f32.mrf.mxu0
        %v7275 = vadd.f32 %v6922, %v7274
        %v7276 = vpop.f32.mrf.mxu0
        %v7277 = vadd.f32 %v6924, %v7276
        %v7278 = vpop.f32.mrf.mxu0
        %v7279 = vadd.f32 %v6926, %v7278
        %v7280 = vpop.f32.mrf.mxu0
        %v7281 = vadd.f32 %v6928, %v7280
        %7282 = vmatprep.mubr.bf16.mxu0 %v3318
        %7283 = vmatmul.mubr.bf16.gmra.mxu0 %v3317
        %v7284 = vpop.f32.mrf.mxu0
        %v7285 = vadd.f32 %v6932, %v7284
        %v7286 = vpop.f32.mrf.mxu0
        %v7287 = vadd.f32 %v6934, %v7286
        %v7288 = vpop.f32.mrf.mxu0
        %v7289 = vadd.f32 %v6936, %v7288
        %v7290 = vpop.f32.mrf.mxu0
        %v7291 = vadd.f32 %v6938, %v7290
        %7292 = vmatprep.mubr.bf16.mxu0 %v3334
        %7293 = vmatmul.mubr.bf16.gmra.mxu0 %v3333
        %v7294 = vpop.f32.mrf.mxu0
        %v7295 = vadd.f32 %v6942, %v7294
        %v7296 = vpop.f32.mrf.mxu0
        %v7297 = vadd.f32 %v6944, %v7296
        %v7298 = vpop.f32.mrf.mxu0
        %v7299 = vadd.f32 %v6946, %v7298
        %v7300 = vpop.f32.mrf.mxu0
        %v7301 = vadd.f32 %v6948, %v7300
        %7302 = vmatprep.mubr.bf16.mxu0 %v3350
        %7303 = vmatmul.mubr.bf16.gmra.mxu0 %v3349
        %v7304 = vpop.f32.mrf.mxu0
        %v7305 = vadd.f32 %v6952, %v7304
        %v7306 = vpop.f32.mrf.mxu0
        %v7307 = vadd.f32 %v6954, %v7306
        %v7308 = vpop.f32.mrf.mxu0
        %v7309 = vadd.f32 %v6956, %v7308
        %v7310 = vpop.f32.mrf.mxu0
        %v7311 = vadd.f32 %v6958, %v7310
        %7312 = vmatprep.mubr.bf16.mxu0 %v3366
        %7313 = vmatmul.mubr.bf16.gmra.mxu0 %v3365
        %v7314 = vpop.f32.mrf.mxu0
        %v7315 = vadd.f32 %v6962, %v7314
        %v7316 = vpop.f32.mrf.mxu0
        %v7317 = vadd.f32 %v6964, %v7316
        %v7318 = vpop.f32.mrf.mxu0
        %v7319 = vadd.f32 %v6966, %v7318
        %v7320 = vpop.f32.mrf.mxu0
        %v7321 = vadd.f32 %v6968, %v7320
        %7322 = vmatprep.mubr.bf16.mxu0 %v3382
        %7323 = vmatmul.mubr.bf16.gmra.mxu0 %v3381
        %v7324 = vpop.f32.mrf.mxu0
        %v7325 = vadd.f32 %v6972, %v7324
        %v7326 = vpop.f32.mrf.mxu0
        %v7327 = vadd.f32 %v6974, %v7326
        %v7328 = vpop.f32.mrf.mxu0
        %v7329 = vadd.f32 %v6976, %v7328
        %v7330 = vpop.f32.mrf.mxu0
        %v7331 = vadd.f32 %v6978, %v7330
        %7332 = vmatprep.mubr.bf16.mxu0 %v3398
        %7333 = vmatmul.mubr.bf16.gmra.mxu0 %v3397
        %v7334 = vpop.f32.mrf.mxu0
        %v7335 = vadd.f32 %v6982, %v7334
        %v7336 = vpop.f32.mrf.mxu0
        %v7337 = vadd.f32 %v6984, %v7336
        %v7338 = vpop.f32.mrf.mxu0
        %v7339 = vadd.f32 %v6986, %v7338
        %v7340 = vpop.f32.mrf.mxu0
        %v7341 = vadd.f32 %v6988, %v7340
        %7342 = vmatprep.mubr.bf16.mxu0 %v3414
        %7343 = vmatmul.mubr.bf16.gmra.mxu0 %v3413
        %v7344 = vpop.f32.mrf.mxu0
        %v7345 = vadd.f32 %v6992, %v7344
        %v7346 = vpop.f32.mrf.mxu0
        %v7347 = vadd.f32 %v6994, %v7346
        %v7348 = vpop.f32.mrf.mxu0
        %v7349 = vadd.f32 %v6996, %v7348
        %v7350 = vpop.f32.mrf.mxu0
        %v7351 = vadd.f32 %v6998, %v7350
        %7352 = vmatprep.mubr.bf16.mxu0 %v3430
        %7353 = vmatmul.mubr.bf16.gmra.mxu0 %v3429
        %v7354 = vpop.f32.mrf.mxu0
        %v7355 = vadd.f32 %v7002, %v7354
        %v7356 = vpop.f32.mrf.mxu0
        %v7357 = vadd.f32 %v7004, %v7356
        %v7358 = vpop.f32.mrf.mxu0
        %v7359 = vadd.f32 %v7006, %v7358
        %v7360 = vpop.f32.mrf.mxu0
        %v7361 = vadd.f32 %v7008, %v7360
        %7362 = vmatprep.mubr.bf16.mxu0 %v3446
        %7363 = vmatmul.mubr.bf16.gmra.mxu0 %v3445
        %v7364 = vpop.f32.mrf.mxu0
        %v7365 = vadd.f32 %v7012, %v7364
        %v7366 = vpop.f32.mrf.mxu0
        %v7367 = vadd.f32 %v7014, %v7366
        %v7368 = vpop.f32.mrf.mxu0
        %v7369 = vadd.f32 %v7016, %v7368
        %v7370 = vpop.f32.mrf.mxu0
        %v7371 = vadd.f32 %v7018, %v7370
        %7372 = vmatprep.mubr.bf16.mxu0 %v3462
        %7373 = vmatmul.mubr.bf16.gmra.mxu0 %v3461
        %v7374 = vpop.f32.mrf.mxu0
        %v7375 = vadd.f32 %v7022, %v7374
        %v7376 = vpop.f32.mrf.mxu0
        %v7377 = vadd.f32 %v7024, %v7376
        %v7378 = vpop.f32.mrf.mxu0
        %v7379 = vadd.f32 %v7026, %v7378
        %v7380 = vpop.f32.mrf.mxu0
        %v7381 = vadd.f32 %v7028, %v7380
        %7382 = vmatprep.mubr.bf16.mxu0 %v3478
        %7383 = vmatmul.mubr.bf16.gmra.mxu0 %v3477
        %v7384 = vpop.f32.mrf.mxu0
        %v7385 = vadd.f32 %v7032, %v7384
        %v7386 = vpop.f32.mrf.mxu0
        %v7387 = vadd.f32 %v7034, %v7386
        %v7388 = vpop.f32.mrf.mxu0
        %v7389 = vadd.f32 %v7036, %v7388
        %v7390 = vpop.f32.mrf.mxu0
        %v7391 = vadd.f32 %v7038, %v7390
        %7392 = vdwg.mxu0
        %7393 = vmatprep.subr.bf16.mxu0 %v4970
        %7394 = vmatpush1.bf16.msra.mxu0 %v4969
        %7395 = vmatprep.subr.bf16.mxu0 %v4968
        %7396 = vmatpush1.bf16.msra.mxu0 %v4967
        %7397 = vmatprep.subr.bf16.mxu0 %v4966
        %7398 = vmatpush1.bf16.msra.mxu0 %v4965
        %7399 = vmatprep.subr.bf16.mxu0 %v4964
        %7400 = vmatpush1.bf16.msra.mxu0 %v4963
        %7401 = vmatprep.subr.bf16.mxu0 %v4962
        %7402 = vmatpush1.bf16.msra.mxu0 %v4961
        %7403 = vmatprep.subr.bf16.mxu0 %v4960
        %7404 = vmatpush1.bf16.msra.mxu0 %v4959
        %7405 = vmatprep.subr.bf16.mxu0 %v4958
        %7406 = vmatpush1.bf16.msra.mxu0 %v4957
        %7407 = vmatprep.subr.bf16.mxu0 %v4956
        %7408 = vmatpush1.bf16.msra.mxu0 %v4955
        %7409 = vmatprep.subr.bf16.mxu0 %v4986
        %7410 = vmatpush2.bf16.msra.mxu0 %v4985
        %7411 = vmatprep.subr.bf16.mxu0 %v4984
        %7412 = vmatpush2.bf16.msra.mxu0 %v4983
        %7413 = vmatprep.subr.bf16.mxu0 %v4982
        %7414 = vmatpush2.bf16.msra.mxu0 %v4981
        %7415 = vmatprep.subr.bf16.mxu0 %v4980
        %7416 = vmatpush2.bf16.msra.mxu0 %v4979
        %7417 = vmatprep.subr.bf16.mxu0 %v4978
        %7418 = vmatpush2.bf16.msra.mxu0 %v4977
        %7419 = vmatprep.subr.bf16.mxu0 %v4976
        %7420 = vmatpush2.bf16.msra.mxu0 %v4975
        %7421 = vmatprep.subr.bf16.mxu0 %v4974
        %7422 = vmatpush2.bf16.msra.mxu0 %v4973
        %7423 = vmatprep.subr.bf16.mxu0 %v4972
        %7424 = vmatpush2.bf16.msra.mxu0 %v4971
        %7425 = vmatprep.mubr.bf16.mxu0 %v2984
        %7426 = vmatmul.mubr.bf16.gmra.mxu0 %v2983
        %v7427 = vpop.f32.mrf.mxu0
        %v7428 = vadd.f32 %v7075, %v7427
        %v7429 = vpop.f32.mrf.mxu0
        %v7430 = vadd.f32 %v7077, %v7429
        %v7431 = vpop.f32.mrf.mxu0
        %v7432 = vadd.f32 %v7079, %v7431
        %v7433 = vpop.f32.mrf.mxu0
        %v7434 = vadd.f32 %v7081, %v7433
        %7435 = vmatprep.mubr.bf16.mxu0 %v3000
        %7436 = vmatmul.mubr.bf16.gmra.mxu0 %v2999
        %v7437 = vpop.f32.mrf.mxu0
        %v7438 = vadd.f32 %v7085, %v7437
        %v7439 = vpop.f32.mrf.mxu0
        %v7440 = vadd.f32 %v7087, %v7439
        %v7441 = vpop.f32.mrf.mxu0
        %v7442 = vadd.f32 %v7089, %v7441
        %v7443 = vpop.f32.mrf.mxu0
        %v7444 = vadd.f32 %v7091, %v7443
        %7445 = vmatprep.mubr.bf16.mxu0 %v3016
        %7446 = vmatmul.mubr.bf16.gmra.mxu0 %v3015
        %v7447 = vpop.f32.mrf.mxu0
        %v7448 = vadd.f32 %v7095, %v7447
        %v7449 = vpop.f32.mrf.mxu0
        %v7450 = vadd.f32 %v7097, %v7449
        %v7451 = vpop.f32.mrf.mxu0
        %v7452 = vadd.f32 %v7099, %v7451
        %v7453 = vpop.f32.mrf.mxu0
        %v7454 = vadd.f32 %v7101, %v7453
        %7455 = vmatprep.mubr.bf16.mxu0 %v3032
        %7456 = vmatmul.mubr.bf16.gmra.mxu0 %v3031
        %v7457 = vpop.f32.mrf.mxu0
        %v7458 = vadd.f32 %v7105, %v7457
        %v7459 = vpop.f32.mrf.mxu0
        %v7460 = vadd.f32 %v7107, %v7459
        %v7461 = vpop.f32.mrf.mxu0
        %v7462 = vadd.f32 %v7109, %v7461
        %v7463 = vpop.f32.mrf.mxu0
        %v7464 = vadd.f32 %v7111, %v7463
        %7465 = vmatprep.mubr.bf16.mxu0 %v3048
        %7466 = vmatmul.mubr.bf16.gmra.mxu0 %v3047
        %v7467 = vpop.f32.mrf.mxu0
        %v7468 = vadd.f32 %v7115, %v7467
        %v7469 = vpop.f32.mrf.mxu0
        %v7470 = vadd.f32 %v7117, %v7469
        %v7471 = vpop.f32.mrf.mxu0
        %v7472 = vadd.f32 %v7119, %v7471
        %v7473 = vpop.f32.mrf.mxu0
        %v7474 = vadd.f32 %v7121, %v7473
        %7475 = vmatprep.mubr.bf16.mxu0 %v3064
        %7476 = vmatmul.mubr.bf16.gmra.mxu0 %v3063
        %v7477 = vpop.f32.mrf.mxu0
        %v7478 = vadd.f32 %v7125, %v7477
        %v7479 = vpop.f32.mrf.mxu0
        %v7480 = vadd.f32 %v7127, %v7479
        %v7481 = vpop.f32.mrf.mxu0
        %v7482 = vadd.f32 %v7129, %v7481
        %v7483 = vpop.f32.mrf.mxu0
        %v7484 = vadd.f32 %v7131, %v7483
        %7485 = vmatprep.mubr.bf16.mxu0 %v3080
        %7486 = vmatmul.mubr.bf16.gmra.mxu0 %v3079
        %v7487 = vpop.f32.mrf.mxu0
        %v7488 = vadd.f32 %v7135, %v7487
        %v7489 = vpop.f32.mrf.mxu0
        %v7490 = vadd.f32 %v7137, %v7489
        %v7491 = vpop.f32.mrf.mxu0
        %v7492 = vadd.f32 %v7139, %v7491
        %v7493 = vpop.f32.mrf.mxu0
        %v7494 = vadd.f32 %v7141, %v7493
        %7495 = vmatprep.mubr.bf16.mxu0 %v3096
        %7496 = vmatmul.mubr.bf16.gmra.mxu0 %v3095
        %v7497 = vpop.f32.mrf.mxu0
        %v7498 = vadd.f32 %v7145, %v7497
        %v7499 = vpop.f32.mrf.mxu0
        %v7500 = vadd.f32 %v7147, %v7499
        %v7501 = vpop.f32.mrf.mxu0
        %v7502 = vadd.f32 %v7149, %v7501
        %v7503 = vpop.f32.mrf.mxu0
        %v7504 = vadd.f32 %v7151, %v7503
        %7505 = vmatprep.mubr.bf16.mxu0 %v3112
        %7506 = vmatmul.mubr.bf16.gmra.mxu0 %v3111
        %v7507 = vpop.f32.mrf.mxu0
        %v7508 = vadd.f32 %v7155, %v7507
        %v7509 = vpop.f32.mrf.mxu0
        %v7510 = vadd.f32 %v7157, %v7509
        %v7511 = vpop.f32.mrf.mxu0
        %v7512 = vadd.f32 %v7159, %v7511
        %v7513 = vpop.f32.mrf.mxu0
        %v7514 = vadd.f32 %v7161, %v7513
        %7515 = vmatprep.mubr.bf16.mxu0 %v3128
        %7516 = vmatmul.mubr.bf16.gmra.mxu0 %v3127
        %v7517 = vpop.f32.mrf.mxu0
        %v7518 = vadd.f32 %v7165, %v7517
        %v7519 = vpop.f32.mrf.mxu0
        %v7520 = vadd.f32 %v7167, %v7519
        %v7521 = vpop.f32.mrf.mxu0
        %v7522 = vadd.f32 %v7169, %v7521
        %v7523 = vpop.f32.mrf.mxu0
        %v7524 = vadd.f32 %v7171, %v7523
        %7525 = vmatprep.mubr.bf16.mxu0 %v3144
        %7526 = vmatmul.mubr.bf16.gmra.mxu0 %v3143
        %v7527 = vpop.f32.mrf.mxu0
        %v7528 = vadd.f32 %v7175, %v7527
        %v7529 = vpop.f32.mrf.mxu0
        %v7530 = vadd.f32 %v7177, %v7529
        %v7531 = vpop.f32.mrf.mxu0
        %v7532 = vadd.f32 %v7179, %v7531
        %v7533 = vpop.f32.mrf.mxu0
        %v7534 = vadd.f32 %v7181, %v7533
        %7535 = vmatprep.mubr.bf16.mxu0 %v3160
        %7536 = vmatmul.mubr.bf16.gmra.mxu0 %v3159
        %v7537 = vpop.f32.mrf.mxu0
        %v7538 = vadd.f32 %v7185, %v7537
        %v7539 = vpop.f32.mrf.mxu0
        %v7540 = vadd.f32 %v7187, %v7539
        %v7541 = vpop.f32.mrf.mxu0
        %v7542 = vadd.f32 %v7189, %v7541
        %v7543 = vpop.f32.mrf.mxu0
        %v7544 = vadd.f32 %v7191, %v7543
        %7545 = vmatprep.mubr.bf16.mxu0 %v3176
        %7546 = vmatmul.mubr.bf16.gmra.mxu0 %v3175
        %v7547 = vpop.f32.mrf.mxu0
        %v7548 = vadd.f32 %v7195, %v7547
        %v7549 = vpop.f32.mrf.mxu0
        %v7550 = vadd.f32 %v7197, %v7549
        %v7551 = vpop.f32.mrf.mxu0
        %v7552 = vadd.f32 %v7199, %v7551
        %v7553 = vpop.f32.mrf.mxu0
        %v7554 = vadd.f32 %v7201, %v7553
        %7555 = vmatprep.mubr.bf16.mxu0 %v3192
        %7556 = vmatmul.mubr.bf16.gmra.mxu0 %v3191
        %v7557 = vpop.f32.mrf.mxu0
        %v7558 = vadd.f32 %v7205, %v7557
        %v7559 = vpop.f32.mrf.mxu0
        %v7560 = vadd.f32 %v7207, %v7559
        %v7561 = vpop.f32.mrf.mxu0
        %v7562 = vadd.f32 %v7209, %v7561
        %v7563 = vpop.f32.mrf.mxu0
        %v7564 = vadd.f32 %v7211, %v7563
        %7565 = vmatprep.mubr.bf16.mxu0 %v3208
        %7566 = vmatmul.mubr.bf16.gmra.mxu0 %v3207
        %v7567 = vpop.f32.mrf.mxu0
        %v7568 = vadd.f32 %v7215, %v7567
        %v7569 = vpop.f32.mrf.mxu0
        %v7570 = vadd.f32 %v7217, %v7569
        %v7571 = vpop.f32.mrf.mxu0
        %v7572 = vadd.f32 %v7219, %v7571
        %v7573 = vpop.f32.mrf.mxu0
        %v7574 = vadd.f32 %v7221, %v7573
        %7575 = vmatprep.mubr.bf16.mxu0 %v3224
        %7576 = vmatmul.mubr.bf16.gmra.mxu0 %v3223
        %v7577 = vpop.f32.mrf.mxu0
        %v7578 = vadd.f32 %v7225, %v7577
        %v7579 = vpop.f32.mrf.mxu0
        %v7580 = vadd.f32 %v7227, %v7579
        %v7581 = vpop.f32.mrf.mxu0
        %v7582 = vadd.f32 %v7229, %v7581
        %v7583 = vpop.f32.mrf.mxu0
        %v7584 = vadd.f32 %v7231, %v7583
        %7585 = vmatprep.mubr.bf16.mxu0 %v3240
        %7586 = vmatmul.mubr.bf16.gmra.mxu0 %v3239
        %v7587 = vpop.f32.mrf.mxu0
        %v7588 = vadd.f32 %v7235, %v7587
        %v7589 = vpop.f32.mrf.mxu0
        %v7590 = vadd.f32 %v7237, %v7589
        %v7591 = vpop.f32.mrf.mxu0
        %v7592 = vadd.f32 %v7239, %v7591
        %v7593 = vpop.f32.mrf.mxu0
        %v7594 = vadd.f32 %v7241, %v7593
        %7595 = vmatprep.mubr.bf16.mxu0 %v3256
        %7596 = vmatmul.mubr.bf16.gmra.mxu0 %v3255
        %v7597 = vpop.f32.mrf.mxu0
        %v7598 = vadd.f32 %v7245, %v7597
        %v7599 = vpop.f32.mrf.mxu0
        %v7600 = vadd.f32 %v7247, %v7599
        %v7601 = vpop.f32.mrf.mxu0
        %v7602 = vadd.f32 %v7249, %v7601
        %v7603 = vpop.f32.mrf.mxu0
        %v7604 = vadd.f32 %v7251, %v7603
        %7605 = vmatprep.mubr.bf16.mxu0 %v3272
        %7606 = vmatmul.mubr.bf16.gmra.mxu0 %v3271
        %v7607 = vpop.f32.mrf.mxu0
        %v7608 = vadd.f32 %v7255, %v7607
        %v7609 = vpop.f32.mrf.mxu0
        %v7610 = vadd.f32 %v7257, %v7609
        %v7611 = vpop.f32.mrf.mxu0
        %v7612 = vadd.f32 %v7259, %v7611
        %v7613 = vpop.f32.mrf.mxu0
        %v7614 = vadd.f32 %v7261, %v7613
        %7615 = vmatprep.mubr.bf16.mxu0 %v3288
        %7616 = vmatmul.mubr.bf16.gmra.mxu0 %v3287
        %v7617 = vpop.f32.mrf.mxu0
        %v7618 = vadd.f32 %v7265, %v7617
        %v7619 = vpop.f32.mrf.mxu0
        %v7620 = vadd.f32 %v7267, %v7619
        %v7621 = vpop.f32.mrf.mxu0
        %v7622 = vadd.f32 %v7269, %v7621
        %v7623 = vpop.f32.mrf.mxu0
        %v7624 = vadd.f32 %v7271, %v7623
        %7625 = vmatprep.mubr.bf16.mxu0 %v3304
        %7626 = vmatmul.mubr.bf16.gmra.mxu0 %v3303
        %v7627 = vpop.f32.mrf.mxu0
        %v7628 = vadd.f32 %v7275, %v7627
        %v7629 = vpop.f32.mrf.mxu0
        %v7630 = vadd.f32 %v7277, %v7629
        %v7631 = vpop.f32.mrf.mxu0
        %v7632 = vadd.f32 %v7279, %v7631
        %v7633 = vpop.f32.mrf.mxu0
        %v7634 = vadd.f32 %v7281, %v7633
        %7635 = vmatprep.mubr.bf16.mxu0 %v3320
        %7636 = vmatmul.mubr.bf16.gmra.mxu0 %v3319
        %v7637 = vpop.f32.mrf.mxu0
        %v7638 = vadd.f32 %v7285, %v7637
        %v7639 = vpop.f32.mrf.mxu0
        %v7640 = vadd.f32 %v7287, %v7639
        %v7641 = vpop.f32.mrf.mxu0
        %v7642 = vadd.f32 %v7289, %v7641
        %v7643 = vpop.f32.mrf.mxu0
        %v7644 = vadd.f32 %v7291, %v7643
        %7645 = vmatprep.mubr.bf16.mxu0 %v3336
        %7646 = vmatmul.mubr.bf16.gmra.mxu0 %v3335
        %v7647 = vpop.f32.mrf.mxu0
        %v7648 = vadd.f32 %v7295, %v7647
        %v7649 = vpop.f32.mrf.mxu0
        %v7650 = vadd.f32 %v7297, %v7649
        %v7651 = vpop.f32.mrf.mxu0
        %v7652 = vadd.f32 %v7299, %v7651
        %v7653 = vpop.f32.mrf.mxu0
        %v7654 = vadd.f32 %v7301, %v7653
        %7655 = vmatprep.mubr.bf16.mxu0 %v3352
        %7656 = vmatmul.mubr.bf16.gmra.mxu0 %v3351
        %v7657 = vpop.f32.mrf.mxu0
        %v7658 = vadd.f32 %v7305, %v7657
        %v7659 = vpop.f32.mrf.mxu0
        %v7660 = vadd.f32 %v7307, %v7659
        %v7661 = vpop.f32.mrf.mxu0
        %v7662 = vadd.f32 %v7309, %v7661
        %v7663 = vpop.f32.mrf.mxu0
        %v7664 = vadd.f32 %v7311, %v7663
        %7665 = vmatprep.mubr.bf16.mxu0 %v3368
        %7666 = vmatmul.mubr.bf16.gmra.mxu0 %v3367
        %v7667 = vpop.f32.mrf.mxu0
        %v7668 = vadd.f32 %v7315, %v7667
        %v7669 = vpop.f32.mrf.mxu0
        %v7670 = vadd.f32 %v7317, %v7669
        %v7671 = vpop.f32.mrf.mxu0
        %v7672 = vadd.f32 %v7319, %v7671
        %v7673 = vpop.f32.mrf.mxu0
        %v7674 = vadd.f32 %v7321, %v7673
        %7675 = vmatprep.mubr.bf16.mxu0 %v3384
        %7676 = vmatmul.mubr.bf16.gmra.mxu0 %v3383
        %v7677 = vpop.f32.mrf.mxu0
        %v7678 = vadd.f32 %v7325, %v7677
        %v7679 = vpop.f32.mrf.mxu0
        %v7680 = vadd.f32 %v7327, %v7679
        %v7681 = vpop.f32.mrf.mxu0
        %v7682 = vadd.f32 %v7329, %v7681
        %v7683 = vpop.f32.mrf.mxu0
        %v7684 = vadd.f32 %v7331, %v7683
        %7685 = vmatprep.mubr.bf16.mxu0 %v3400
        %7686 = vmatmul.mubr.bf16.gmra.mxu0 %v3399
        %v7687 = vpop.f32.mrf.mxu0
        %v7688 = vadd.f32 %v7335, %v7687
        %v7689 = vpop.f32.mrf.mxu0
        %v7690 = vadd.f32 %v7337, %v7689
        %v7691 = vpop.f32.mrf.mxu0
        %v7692 = vadd.f32 %v7339, %v7691
        %v7693 = vpop.f32.mrf.mxu0
        %v7694 = vadd.f32 %v7341, %v7693
        %7695 = vmatprep.mubr.bf16.mxu0 %v3416
        %7696 = vmatmul.mubr.bf16.gmra.mxu0 %v3415
        %v7697 = vpop.f32.mrf.mxu0
        %v7698 = vadd.f32 %v7345, %v7697
        %v7699 = vpop.f32.mrf.mxu0
        %v7700 = vadd.f32 %v7347, %v7699
        %v7701 = vpop.f32.mrf.mxu0
        %v7702 = vadd.f32 %v7349, %v7701
        %v7703 = vpop.f32.mrf.mxu0
        %v7704 = vadd.f32 %v7351, %v7703
        %7705 = vmatprep.mubr.bf16.mxu0 %v3432
        %7706 = vmatmul.mubr.bf16.gmra.mxu0 %v3431
        %v7707 = vpop.f32.mrf.mxu0
        %v7708 = vadd.f32 %v7355, %v7707
        %v7709 = vpop.f32.mrf.mxu0
        %v7710 = vadd.f32 %v7357, %v7709
        %v7711 = vpop.f32.mrf.mxu0
        %v7712 = vadd.f32 %v7359, %v7711
        %v7713 = vpop.f32.mrf.mxu0
        %v7714 = vadd.f32 %v7361, %v7713
        %7715 = vmatprep.mubr.bf16.mxu0 %v3448
        %7716 = vmatmul.mubr.bf16.gmra.mxu0 %v3447
        %v7717 = vpop.f32.mrf.mxu0
        %v7718 = vadd.f32 %v7365, %v7717
        %v7719 = vpop.f32.mrf.mxu0
        %v7720 = vadd.f32 %v7367, %v7719
        %v7721 = vpop.f32.mrf.mxu0
        %v7722 = vadd.f32 %v7369, %v7721
        %v7723 = vpop.f32.mrf.mxu0
        %v7724 = vadd.f32 %v7371, %v7723
        %7725 = vmatprep.mubr.bf16.mxu0 %v3464
        %7726 = vmatmul.mubr.bf16.gmra.mxu0 %v3463
        %v7727 = vpop.f32.mrf.mxu0
        %v7728 = vadd.f32 %v7375, %v7727
        %v7729 = vpop.f32.mrf.mxu0
        %v7730 = vadd.f32 %v7377, %v7729
        %v7731 = vpop.f32.mrf.mxu0
        %v7732 = vadd.f32 %v7379, %v7731
        %v7733 = vpop.f32.mrf.mxu0
        %v7734 = vadd.f32 %v7381, %v7733
        %7735 = vmatprep.mubr.bf16.mxu0 %v3480
        %7736 = vmatmul.mubr.bf16.gmra.mxu0 %v3479
        %v7737 = vpop.f32.mrf.mxu0
        %v7738 = vadd.f32 %v7385, %v7737
        %v7739 = vpop.f32.mrf.mxu0
        %v7740 = vadd.f32 %v7387, %v7739
        %v7741 = vpop.f32.mrf.mxu0
        %v7742 = vadd.f32 %v7389, %v7741
        %v7743 = vpop.f32.mrf.mxu0
        %v7744 = vadd.f32 %v7391, %v7743
        %7745 = vdwg.mxu0
        %7746 = vmatprep.subr.bf16.mxu0 %v5002
        %7747 = vmatpush1.bf16.msra.mxu0 %v5001
        %7748 = vmatprep.subr.bf16.mxu0 %v5000
        %7749 = vmatpush1.bf16.msra.mxu0 %v4999
        %7750 = vmatprep.subr.bf16.mxu0 %v4998
        %7751 = vmatpush1.bf16.msra.mxu0 %v4997
        %7752 = vmatprep.subr.bf16.mxu0 %v4996
        %7753 = vmatpush1.bf16.msra.mxu0 %v4995
        %7754 = vmatprep.subr.bf16.mxu0 %v4994
        %7755 = vmatpush1.bf16.msra.mxu0 %v4993
        %7756 = vmatprep.subr.bf16.mxu0 %v4992
        %7757 = vmatpush1.bf16.msra.mxu0 %v4991
        %7758 = vmatprep.subr.bf16.mxu0 %v4990
        %7759 = vmatpush1.bf16.msra.mxu0 %v4989
        %7760 = vmatprep.subr.bf16.mxu0 %v4988
        %7761 = vmatpush1.bf16.msra.mxu0 %v4987
        %7762 = vmatprep.subr.bf16.mxu0 %v5018
        %7763 = vmatpush2.bf16.msra.mxu0 %v5017
        %7764 = vmatprep.subr.bf16.mxu0 %v5016
        %7765 = vmatpush2.bf16.msra.mxu0 %v5015
        %7766 = vmatprep.subr.bf16.mxu0 %v5014
        %7767 = vmatpush2.bf16.msra.mxu0 %v5013
        %7768 = vmatprep.subr.bf16.mxu0 %v5012
        %7769 = vmatpush2.bf16.msra.mxu0 %v5011
        %7770 = vmatprep.subr.bf16.mxu0 %v5010
        %7771 = vmatpush2.bf16.msra.mxu0 %v5009
        %7772 = vmatprep.subr.bf16.mxu0 %v5008
        %7773 = vmatpush2.bf16.msra.mxu0 %v5007
        %7774 = vmatprep.subr.bf16.mxu0 %v5006
        %7775 = vmatpush2.bf16.msra.mxu0 %v5005
        %7776 = vmatprep.subr.bf16.mxu0 %v5004
        %7777 = vmatpush2.bf16.msra.mxu0 %v5003
        %7778 = vmatprep.mubr.bf16.mxu0 %v2986
        %7779 = vmatmul.mubr.bf16.gmra.mxu0 %v2985
        %v7780 = vpop.f32.mrf.mxu0
        %v7781 = vadd.f32 %v7428, %v7780
        %v7782 = vpop.f32.mrf.mxu0
        %v7783 = vadd.f32 %v7430, %v7782
        %v7784 = vpop.f32.mrf.mxu0
        %v7785 = vadd.f32 %v7432, %v7784
        %v7786 = vpop.f32.mrf.mxu0
        %v7787 = vadd.f32 %v7434, %v7786
        %7788 = vmatprep.mubr.bf16.mxu0 %v3002
        %7789 = vmatmul.mubr.bf16.gmra.mxu0 %v3001
        %v7790 = vpop.f32.mrf.mxu0
        %v7791 = vadd.f32 %v7438, %v7790
        %v7792 = vpop.f32.mrf.mxu0
        %v7793 = vadd.f32 %v7440, %v7792
        %v7794 = vpop.f32.mrf.mxu0
        %v7795 = vadd.f32 %v7442, %v7794
        %v7796 = vpop.f32.mrf.mxu0
        %v7797 = vadd.f32 %v7444, %v7796
        %7798 = vmatprep.mubr.bf16.mxu0 %v3018
        %7799 = vmatmul.mubr.bf16.gmra.mxu0 %v3017
        %v7800 = vpop.f32.mrf.mxu0
        %v7801 = vadd.f32 %v7448, %v7800
        %v7802 = vpop.f32.mrf.mxu0
        %v7803 = vadd.f32 %v7450, %v7802
        %v7804 = vpop.f32.mrf.mxu0
        %v7805 = vadd.f32 %v7452, %v7804
        %v7806 = vpop.f32.mrf.mxu0
        %v7807 = vadd.f32 %v7454, %v7806
        %7808 = vmatprep.mubr.bf16.mxu0 %v3034
        %7809 = vmatmul.mubr.bf16.gmra.mxu0 %v3033
        %v7810 = vpop.f32.mrf.mxu0
        %v7811 = vadd.f32 %v7458, %v7810
        %v7812 = vpop.f32.mrf.mxu0
        %v7813 = vadd.f32 %v7460, %v7812
        %v7814 = vpop.f32.mrf.mxu0
        %v7815 = vadd.f32 %v7462, %v7814
        %v7816 = vpop.f32.mrf.mxu0
        %v7817 = vadd.f32 %v7464, %v7816
        %7818 = vmatprep.mubr.bf16.mxu0 %v3050
        %7819 = vmatmul.mubr.bf16.gmra.mxu0 %v3049
        %v7820 = vpop.f32.mrf.mxu0
        %v7821 = vadd.f32 %v7468, %v7820
        %v7822 = vpop.f32.mrf.mxu0
        %v7823 = vadd.f32 %v7470, %v7822
        %v7824 = vpop.f32.mrf.mxu0
        %v7825 = vadd.f32 %v7472, %v7824
        %v7826 = vpop.f32.mrf.mxu0
        %v7827 = vadd.f32 %v7474, %v7826
        %7828 = vmatprep.mubr.bf16.mxu0 %v3066
        %7829 = vmatmul.mubr.bf16.gmra.mxu0 %v3065
        %v7830 = vpop.f32.mrf.mxu0
        %v7831 = vadd.f32 %v7478, %v7830
        %v7832 = vpop.f32.mrf.mxu0
        %v7833 = vadd.f32 %v7480, %v7832
        %v7834 = vpop.f32.mrf.mxu0
        %v7835 = vadd.f32 %v7482, %v7834
        %v7836 = vpop.f32.mrf.mxu0
        %v7837 = vadd.f32 %v7484, %v7836
        %7838 = vmatprep.mubr.bf16.mxu0 %v3082
        %7839 = vmatmul.mubr.bf16.gmra.mxu0 %v3081
        %v7840 = vpop.f32.mrf.mxu0
        %v7841 = vadd.f32 %v7488, %v7840
        %v7842 = vpop.f32.mrf.mxu0
        %v7843 = vadd.f32 %v7490, %v7842
        %v7844 = vpop.f32.mrf.mxu0
        %v7845 = vadd.f32 %v7492, %v7844
        %v7846 = vpop.f32.mrf.mxu0
        %v7847 = vadd.f32 %v7494, %v7846
        %7848 = vmatprep.mubr.bf16.mxu0 %v3098
        %7849 = vmatmul.mubr.bf16.gmra.mxu0 %v3097
        %v7850 = vpop.f32.mrf.mxu0
        %v7851 = vadd.f32 %v7498, %v7850
        %v7852 = vpop.f32.mrf.mxu0
        %v7853 = vadd.f32 %v7500, %v7852
        %v7854 = vpop.f32.mrf.mxu0
        %v7855 = vadd.f32 %v7502, %v7854
        %v7856 = vpop.f32.mrf.mxu0
        %v7857 = vadd.f32 %v7504, %v7856
        %7858 = vmatprep.mubr.bf16.mxu0 %v3114
        %7859 = vmatmul.mubr.bf16.gmra.mxu0 %v3113
        %v7860 = vpop.f32.mrf.mxu0
        %v7861 = vadd.f32 %v7508, %v7860
        %v7862 = vpop.f32.mrf.mxu0
        %v7863 = vadd.f32 %v7510, %v7862
        %v7864 = vpop.f32.mrf.mxu0
        %v7865 = vadd.f32 %v7512, %v7864
        %v7866 = vpop.f32.mrf.mxu0
        %v7867 = vadd.f32 %v7514, %v7866
        %7868 = vmatprep.mubr.bf16.mxu0 %v3130
        %7869 = vmatmul.mubr.bf16.gmra.mxu0 %v3129
        %v7870 = vpop.f32.mrf.mxu0
        %v7871 = vadd.f32 %v7518, %v7870
        %v7872 = vpop.f32.mrf.mxu0
        %v7873 = vadd.f32 %v7520, %v7872
        %v7874 = vpop.f32.mrf.mxu0
        %v7875 = vadd.f32 %v7522, %v7874
        %v7876 = vpop.f32.mrf.mxu0
        %v7877 = vadd.f32 %v7524, %v7876
        %7878 = vmatprep.mubr.bf16.mxu0 %v3146
        %7879 = vmatmul.mubr.bf16.gmra.mxu0 %v3145
        %v7880 = vpop.f32.mrf.mxu0
        %v7881 = vadd.f32 %v7528, %v7880
        %v7882 = vpop.f32.mrf.mxu0
        %v7883 = vadd.f32 %v7530, %v7882
        %v7884 = vpop.f32.mrf.mxu0
        %v7885 = vadd.f32 %v7532, %v7884
        %v7886 = vpop.f32.mrf.mxu0
        %v7887 = vadd.f32 %v7534, %v7886
        %7888 = vmatprep.mubr.bf16.mxu0 %v3162
        %7889 = vmatmul.mubr.bf16.gmra.mxu0 %v3161
        %v7890 = vpop.f32.mrf.mxu0
        %v7891 = vadd.f32 %v7538, %v7890
        %v7892 = vpop.f32.mrf.mxu0
        %v7893 = vadd.f32 %v7540, %v7892
        %v7894 = vpop.f32.mrf.mxu0
        %v7895 = vadd.f32 %v7542, %v7894
        %v7896 = vpop.f32.mrf.mxu0
        %v7897 = vadd.f32 %v7544, %v7896
        %7898 = vmatprep.mubr.bf16.mxu0 %v3178
        %7899 = vmatmul.mubr.bf16.gmra.mxu0 %v3177
        %v7900 = vpop.f32.mrf.mxu0
        %v7901 = vadd.f32 %v7548, %v7900
        %v7902 = vpop.f32.mrf.mxu0
        %v7903 = vadd.f32 %v7550, %v7902
        %v7904 = vpop.f32.mrf.mxu0
        %v7905 = vadd.f32 %v7552, %v7904
        %v7906 = vpop.f32.mrf.mxu0
        %v7907 = vadd.f32 %v7554, %v7906
        %7908 = vmatprep.mubr.bf16.mxu0 %v3194
        %7909 = vmatmul.mubr.bf16.gmra.mxu0 %v3193
        %v7910 = vpop.f32.mrf.mxu0
        %v7911 = vadd.f32 %v7558, %v7910
        %v7912 = vpop.f32.mrf.mxu0
        %v7913 = vadd.f32 %v7560, %v7912
        %v7914 = vpop.f32.mrf.mxu0
        %v7915 = vadd.f32 %v7562, %v7914
        %v7916 = vpop.f32.mrf.mxu0
        %v7917 = vadd.f32 %v7564, %v7916
        %7918 = vmatprep.mubr.bf16.mxu0 %v3210
        %7919 = vmatmul.mubr.bf16.gmra.mxu0 %v3209
        %v7920 = vpop.f32.mrf.mxu0
        %v7921 = vadd.f32 %v7568, %v7920
        %v7922 = vpop.f32.mrf.mxu0
        %v7923 = vadd.f32 %v7570, %v7922
        %v7924 = vpop.f32.mrf.mxu0
        %v7925 = vadd.f32 %v7572, %v7924
        %v7926 = vpop.f32.mrf.mxu0
        %v7927 = vadd.f32 %v7574, %v7926
        %7928 = vmatprep.mubr.bf16.mxu0 %v3226
        %7929 = vmatmul.mubr.bf16.gmra.mxu0 %v3225
        %v7930 = vpop.f32.mrf.mxu0
        %v7931 = vadd.f32 %v7578, %v7930
        %v7932 = vpop.f32.mrf.mxu0
        %v7933 = vadd.f32 %v7580, %v7932
        %v7934 = vpop.f32.mrf.mxu0
        %v7935 = vadd.f32 %v7582, %v7934
        %v7936 = vpop.f32.mrf.mxu0
        %v7937 = vadd.f32 %v7584, %v7936
        %7938 = vmatprep.mubr.bf16.mxu0 %v3242
        %7939 = vmatmul.mubr.bf16.gmra.mxu0 %v3241
        %v7940 = vpop.f32.mrf.mxu0
        %v7941 = vadd.f32 %v7588, %v7940
        %v7942 = vpop.f32.mrf.mxu0
        %v7943 = vadd.f32 %v7590, %v7942
        %v7944 = vpop.f32.mrf.mxu0
        %v7945 = vadd.f32 %v7592, %v7944
        %v7946 = vpop.f32.mrf.mxu0
        %v7947 = vadd.f32 %v7594, %v7946
        %7948 = vmatprep.mubr.bf16.mxu0 %v3258
        %7949 = vmatmul.mubr.bf16.gmra.mxu0 %v3257
        %v7950 = vpop.f32.mrf.mxu0
        %v7951 = vadd.f32 %v7598, %v7950
        %v7952 = vpop.f32.mrf.mxu0
        %v7953 = vadd.f32 %v7600, %v7952
        %v7954 = vpop.f32.mrf.mxu0
        %v7955 = vadd.f32 %v7602, %v7954
        %v7956 = vpop.f32.mrf.mxu0
        %v7957 = vadd.f32 %v7604, %v7956
        %7958 = vmatprep.mubr.bf16.mxu0 %v3274
        %7959 = vmatmul.mubr.bf16.gmra.mxu0 %v3273
        %v7960 = vpop.f32.mrf.mxu0
        %v7961 = vadd.f32 %v7608, %v7960
        %v7962 = vpop.f32.mrf.mxu0
        %v7963 = vadd.f32 %v7610, %v7962
        %v7964 = vpop.f32.mrf.mxu0
        %v7965 = vadd.f32 %v7612, %v7964
        %v7966 = vpop.f32.mrf.mxu0
        %v7967 = vadd.f32 %v7614, %v7966
        %7968 = vmatprep.mubr.bf16.mxu0 %v3290
        %7969 = vmatmul.mubr.bf16.gmra.mxu0 %v3289
        %v7970 = vpop.f32.mrf.mxu0
        %v7971 = vadd.f32 %v7618, %v7970
        %v7972 = vpop.f32.mrf.mxu0
        %v7973 = vadd.f32 %v7620, %v7972
        %v7974 = vpop.f32.mrf.mxu0
        %v7975 = vadd.f32 %v7622, %v7974
        %v7976 = vpop.f32.mrf.mxu0
        %v7977 = vadd.f32 %v7624, %v7976
        %7978 = vmatprep.mubr.bf16.mxu0 %v3306
        %7979 = vmatmul.mubr.bf16.gmra.mxu0 %v3305
        %v7980 = vpop.f32.mrf.mxu0
        %v7981 = vadd.f32 %v7628, %v7980
        %v7982 = vpop.f32.mrf.mxu0
        %v7983 = vadd.f32 %v7630, %v7982
        %v7984 = vpop.f32.mrf.mxu0
        %v7985 = vadd.f32 %v7632, %v7984
        %v7986 = vpop.f32.mrf.mxu0
        %v7987 = vadd.f32 %v7634, %v7986
        %7988 = vmatprep.mubr.bf16.mxu0 %v3322
        %7989 = vmatmul.mubr.bf16.gmra.mxu0 %v3321
        %v7990 = vpop.f32.mrf.mxu0
        %v7991 = vadd.f32 %v7638, %v7990
        %v7992 = vpop.f32.mrf.mxu0
        %v7993 = vadd.f32 %v7640, %v7992
        %v7994 = vpop.f32.mrf.mxu0
        %v7995 = vadd.f32 %v7642, %v7994
        %v7996 = vpop.f32.mrf.mxu0
        %v7997 = vadd.f32 %v7644, %v7996
        %7998 = vmatprep.mubr.bf16.mxu0 %v3338
        %7999 = vmatmul.mubr.bf16.gmra.mxu0 %v3337
        %v8000 = vpop.f32.mrf.mxu0
        %v8001 = vadd.f32 %v7648, %v8000
        %v8002 = vpop.f32.mrf.mxu0
        %v8003 = vadd.f32 %v7650, %v8002
        %v8004 = vpop.f32.mrf.mxu0
        %v8005 = vadd.f32 %v7652, %v8004
        %v8006 = vpop.f32.mrf.mxu0
        %v8007 = vadd.f32 %v7654, %v8006
        %8008 = vmatprep.mubr.bf16.mxu0 %v3354
        %8009 = vmatmul.mubr.bf16.gmra.mxu0 %v3353
        %v8010 = vpop.f32.mrf.mxu0
        %v8011 = vadd.f32 %v7658, %v8010
        %v8012 = vpop.f32.mrf.mxu0
        %v8013 = vadd.f32 %v7660, %v8012
        %v8014 = vpop.f32.mrf.mxu0
        %v8015 = vadd.f32 %v7662, %v8014
        %v8016 = vpop.f32.mrf.mxu0
        %v8017 = vadd.f32 %v7664, %v8016
        %8018 = vmatprep.mubr.bf16.mxu0 %v3370
        %8019 = vmatmul.mubr.bf16.gmra.mxu0 %v3369
        %v8020 = vpop.f32.mrf.mxu0
        %v8021 = vadd.f32 %v7668, %v8020
        %v8022 = vpop.f32.mrf.mxu0
        %v8023 = vadd.f32 %v7670, %v8022
        %v8024 = vpop.f32.mrf.mxu0
        %v8025 = vadd.f32 %v7672, %v8024
        %v8026 = vpop.f32.mrf.mxu0
        %v8027 = vadd.f32 %v7674, %v8026
        %8028 = vmatprep.mubr.bf16.mxu0 %v3386
        %8029 = vmatmul.mubr.bf16.gmra.mxu0 %v3385
        %v8030 = vpop.f32.mrf.mxu0
        %v8031 = vadd.f32 %v7678, %v8030
        %v8032 = vpop.f32.mrf.mxu0
        %v8033 = vadd.f32 %v7680, %v8032
        %v8034 = vpop.f32.mrf.mxu0
        %v8035 = vadd.f32 %v7682, %v8034
        %v8036 = vpop.f32.mrf.mxu0
        %v8037 = vadd.f32 %v7684, %v8036
        %8038 = vmatprep.mubr.bf16.mxu0 %v3402
        %8039 = vmatmul.mubr.bf16.gmra.mxu0 %v3401
        %v8040 = vpop.f32.mrf.mxu0
        %v8041 = vadd.f32 %v7688, %v8040
        %v8042 = vpop.f32.mrf.mxu0
        %v8043 = vadd.f32 %v7690, %v8042
        %v8044 = vpop.f32.mrf.mxu0
        %v8045 = vadd.f32 %v7692, %v8044
        %v8046 = vpop.f32.mrf.mxu0
        %v8047 = vadd.f32 %v7694, %v8046
        %8048 = vmatprep.mubr.bf16.mxu0 %v3418
        %8049 = vmatmul.mubr.bf16.gmra.mxu0 %v3417
        %v8050 = vpop.f32.mrf.mxu0
        %v8051 = vadd.f32 %v7698, %v8050
        %v8052 = vpop.f32.mrf.mxu0
        %v8053 = vadd.f32 %v7700, %v8052
        %v8054 = vpop.f32.mrf.mxu0
        %v8055 = vadd.f32 %v7702, %v8054
        %v8056 = vpop.f32.mrf.mxu0
        %v8057 = vadd.f32 %v7704, %v8056
        %8058 = vmatprep.mubr.bf16.mxu0 %v3434
        %8059 = vmatmul.mubr.bf16.gmra.mxu0 %v3433
        %v8060 = vpop.f32.mrf.mxu0
        %v8061 = vadd.f32 %v7708, %v8060
        %v8062 = vpop.f32.mrf.mxu0
        %v8063 = vadd.f32 %v7710, %v8062
        %v8064 = vpop.f32.mrf.mxu0
        %v8065 = vadd.f32 %v7712, %v8064
        %v8066 = vpop.f32.mrf.mxu0
        %v8067 = vadd.f32 %v7714, %v8066
        %8068 = vmatprep.mubr.bf16.mxu0 %v3450
        %8069 = vmatmul.mubr.bf16.gmra.mxu0 %v3449
        %v8070 = vpop.f32.mrf.mxu0
        %v8071 = vadd.f32 %v7718, %v8070
        %v8072 = vpop.f32.mrf.mxu0
        %v8073 = vadd.f32 %v7720, %v8072
        %v8074 = vpop.f32.mrf.mxu0
        %v8075 = vadd.f32 %v7722, %v8074
        %v8076 = vpop.f32.mrf.mxu0
        %v8077 = vadd.f32 %v7724, %v8076
        %8078 = vmatprep.mubr.bf16.mxu0 %v3466
        %8079 = vmatmul.mubr.bf16.gmra.mxu0 %v3465
        %v8080 = vpop.f32.mrf.mxu0
        %v8081 = vadd.f32 %v7728, %v8080
        %v8082 = vpop.f32.mrf.mxu0
        %v8083 = vadd.f32 %v7730, %v8082
        %v8084 = vpop.f32.mrf.mxu0
        %v8085 = vadd.f32 %v7732, %v8084
        %v8086 = vpop.f32.mrf.mxu0
        %v8087 = vadd.f32 %v7734, %v8086
        %8088 = vmatprep.mubr.bf16.mxu0 %v3482
        %8089 = vmatmul.mubr.bf16.gmra.mxu0 %v3481
        %v8090 = vpop.f32.mrf.mxu0
        %v8091 = vadd.f32 %v7738, %v8090
        %v8092 = vpop.f32.mrf.mxu0
        %v8093 = vadd.f32 %v7740, %v8092
        %v8094 = vpop.f32.mrf.mxu0
        %v8095 = vadd.f32 %v7742, %v8094
        %v8096 = vpop.f32.mrf.mxu0
        %v8097 = vadd.f32 %v7744, %v8096
        %8098 = vdwg.mxu0
        %v8099 = vadd.f32 %v534, %v7781
        %v8100 = vadd.f32 %v535, %v7783
        %v8101 = vadd.f32 %v536, %v7785
        %v8102 = vadd.f32 %v537, %v7787
        %v8103 = vadd.f32 %v538, %v7791
        %v8104 = vadd.f32 %v539, %v7793
        %v8105 = vadd.f32 %v540, %v7795
        %v8106 = vadd.f32 %v541, %v7797
        %v8107 = vadd.f32 %v542, %v7801
        %v8108 = vadd.f32 %v543, %v7803
        %v8109 = vadd.f32 %v544, %v7805
        %v8110 = vadd.f32 %v545, %v7807
        %v8111 = vadd.f32 %v546, %v7811
        %v8112 = vadd.f32 %v547, %v7813
        %v8113 = vadd.f32 %v548, %v7815
        %v8114 = vadd.f32 %v549, %v7817
        %v8115 = vadd.f32 %v550, %v7821
        %v8116 = vadd.f32 %v551, %v7823
        %v8117 = vadd.f32 %v552, %v7825
        %v8118 = vadd.f32 %v553, %v7827
        %v8119 = vadd.f32 %v554, %v7831
        %v8120 = vadd.f32 %v555, %v7833
        %v8121 = vadd.f32 %v556, %v7835
        %v8122 = vadd.f32 %v557, %v7837
        %v8123 = vadd.f32 %v558, %v7841
        %v8124 = vadd.f32 %v559, %v7843
        %v8125 = vadd.f32 %v560, %v7845
        %v8126 = vadd.f32 %v561, %v7847
        %v8127 = vadd.f32 %v562, %v7851
        %v8128 = vadd.f32 %v563, %v7853
        %v8129 = vadd.f32 %v564, %v7855
        %v8130 = vadd.f32 %v565, %v7857
        %v8131 = vadd.f32 %v566, %v7861
        %v8132 = vadd.f32 %v567, %v7863
        %v8133 = vadd.f32 %v568, %v7865
        %v8134 = vadd.f32 %v569, %v7867
        %v8135 = vadd.f32 %v570, %v7871
        %v8136 = vadd.f32 %v571, %v7873
        %v8137 = vadd.f32 %v572, %v7875
        %v8138 = vadd.f32 %v573, %v7877
        %v8139 = vadd.f32 %v574, %v7881
        %v8140 = vadd.f32 %v575, %v7883
        %v8141 = vadd.f32 %v576, %v7885
        %v8142 = vadd.f32 %v577, %v7887
        %v8143 = vadd.f32 %v578, %v7891
        %v8144 = vadd.f32 %v579, %v7893
        %v8145 = vadd.f32 %v580, %v7895
        %v8146 = vadd.f32 %v581, %v7897
        %v8147 = vadd.f32 %v582, %v7901
        %v8148 = vadd.f32 %v583, %v7903
        %v8149 = vadd.f32 %v584, %v7905
        %v8150 = vadd.f32 %v585, %v7907
        %v8151 = vadd.f32 %v586, %v7911
        %v8152 = vadd.f32 %v587, %v7913
        %v8153 = vadd.f32 %v588, %v7915
        %v8154 = vadd.f32 %v589, %v7917
        %v8155 = vadd.f32 %v590, %v7921
        %v8156 = vadd.f32 %v591, %v7923
        %v8157 = vadd.f32 %v592, %v7925
        %v8158 = vadd.f32 %v593, %v7927
        %v8159 = vadd.f32 %v594, %v7931
        %v8160 = vadd.f32 %v595, %v7933
        %v8161 = vadd.f32 %v596, %v7935
        %v8162 = vadd.f32 %v597, %v7937
        %v8163 = vadd.f32 %v598, %v7941
        %v8164 = vadd.f32 %v599, %v7943
        %v8165 = vadd.f32 %v600, %v7945
        %v8166 = vadd.f32 %v601, %v7947
        %v8167 = vadd.f32 %v602, %v7951
        %v8168 = vadd.f32 %v603, %v7953
        %v8169 = vadd.f32 %v604, %v7955
        %v8170 = vadd.f32 %v605, %v7957
        %v8171 = vadd.f32 %v606, %v7961
        %v8172 = vadd.f32 %v607, %v7963
        %v8173 = vadd.f32 %v608, %v7965
        %v8174 = vadd.f32 %v609, %v7967
        %v8175 = vadd.f32 %v610, %v7971
        %v8176 = vadd.f32 %v611, %v7973
        %v8177 = vadd.f32 %v612, %v7975
        %v8178 = vadd.f32 %v613, %v7977
        %v8179 = vadd.f32 %v614, %v7981
        %v8180 = vadd.f32 %v615, %v7983
        %v8181 = vadd.f32 %v616, %v7985
        %v8182 = vadd.f32 %v617, %v7987
        %v8183 = vadd.f32 %v618, %v7991
        %v8184 = vadd.f32 %v619, %v7993
        %v8185 = vadd.f32 %v620, %v7995
        %v8186 = vadd.f32 %v621, %v7997
        %v8187 = vadd.f32 %v622, %v8001
        %v8188 = vadd.f32 %v623, %v8003
        %v8189 = vadd.f32 %v624, %v8005
        %v8190 = vadd.f32 %v625, %v8007
        %v8191 = vadd.f32 %v626, %v8011
        %v8192 = vadd.f32 %v627, %v8013
        %v8193 = vadd.f32 %v628, %v8015
        %v8194 = vadd.f32 %v629, %v8017
        %v8195 = vadd.f32 %v630, %v8021
        %v8196 = vadd.f32 %v631, %v8023
        %v8197 = vadd.f32 %v632, %v8025
        %v8198 = vadd.f32 %v633, %v8027
        %v8199 = vadd.f32 %v634, %v8031
        %v8200 = vadd.f32 %v635, %v8033
        %v8201 = vadd.f32 %v636, %v8035
        %v8202 = vadd.f32 %v637, %v8037
        %v8203 = vadd.f32 %v638, %v8041
        %v8204 = vadd.f32 %v639, %v8043
        %v8205 = vadd.f32 %v640, %v8045
        %v8206 = vadd.f32 %v641, %v8047
        %v8207 = vadd.f32 %v642, %v8051
        %v8208 = vadd.f32 %v643, %v8053
        %v8209 = vadd.f32 %v644, %v8055
        %v8210 = vadd.f32 %v645, %v8057
        %v8211 = vadd.f32 %v646, %v8061
        %v8212 = vadd.f32 %v647, %v8063
        %v8213 = vadd.f32 %v648, %v8065
        %v8214 = vadd.f32 %v649, %v8067
        %v8215 = vadd.f32 %v650, %v8071
        %v8216 = vadd.f32 %v651, %v8073
        %v8217 = vadd.f32 %v652, %v8075
        %v8218 = vadd.f32 %v653, %v8077
        %v8219 = vadd.f32 %v654, %v8081
        %v8220 = vadd.f32 %v655, %v8083
        %v8221 = vadd.f32 %v656, %v8085
        %v8222 = vadd.f32 %v657, %v8087
        %v8223 = vadd.f32 %v658, %v8091
        %v8224 = vadd.f32 %v659, %v8093
        %v8225 = vadd.f32 %v660, %v8095
        %v8226 = vadd.f32 %v661, %v8097
        %8227 = vst [vmem:[#allocation2] sm:$0xff] %v8099
        %8228 = vst [vmem:[#allocation2 + $0x8] sm:$0xff] %v8100
        %8229 = vst [vmem:[#allocation2 + $0x10] sm:$0xff] %v8101
        %8230 = vst [vmem:[#allocation2 + $0x18] sm:$0xff] %v8102
        %8231 = vst [vmem:[#allocation2 + $0x20] sm:$0xff] %v8103
        %8232 = vst [vmem:[#allocation2 + $0x28] sm:$0xff] %v8104
        %8233 = vst [vmem:[#allocation2 + $0x30] sm:$0xff] %v8105
        %8234 = vst [vmem:[#allocation2 + $0x38] sm:$0xff] %v8106
        %8235 = vst [vmem:[#allocation2 + $0x40] sm:$0xff] %v8107
        %8236 = vst [vmem:[#allocation2 + $0x48] sm:$0xff] %v8108
        %8237 = vst [vmem:[#allocation2 + $0x50] sm:$0xff] %v8109
        %8238 = vst [vmem:[#allocation2 + $0x58] sm:$0xff] %v8110
        %8239 = vst [vmem:[#allocation2 + $0x60] sm:$0xff] %v8111
        %8240 = vst [vmem:[#allocation2 + $0x68] sm:$0xff] %v8112
        %8241 = vst [vmem:[#allocation2 + $0x70] sm:$0xff] %v8113
        %8242 = vst [vmem:[#allocation2 + $0x78] sm:$0xff] %v8114
        %8243 = vst [vmem:[#allocation2 + $0x80] sm:$0xff] %v8115
        %8244 = vst [vmem:[#allocation2 + $0x88] sm:$0xff] %v8116
        %8245 = vst [vmem:[#allocation2 + $0x90] sm:$0xff] %v8117
        %8246 = vst [vmem:[#allocation2 + $0x98] sm:$0xff] %v8118
        %8247 = vst [vmem:[#allocation2 + $0xa0] sm:$0xff] %v8119
        %8248 = vst [vmem:[#allocation2 + $0xa8] sm:$0xff] %v8120
        %8249 = vst [vmem:[#allocation2 + $0xb0] sm:$0xff] %v8121
        %8250 = vst [vmem:[#allocation2 + $0xb8] sm:$0xff] %v8122
        %8251 = vst [vmem:[#allocation2 + $0xc0] sm:$0xff] %v8123
        %8252 = vst [vmem:[#allocation2 + $0xc8] sm:$0xff] %v8124
        %8253 = vst [vmem:[#allocation2 + $0xd0] sm:$0xff] %v8125
        %8254 = vst [vmem:[#allocation2 + $0xd8] sm:$0xff] %v8126
        %8255 = vst [vmem:[#allocation2 + $0xe0] sm:$0xff] %v8127
        %8256 = vst [vmem:[#allocation2 + $0xe8] sm:$0xff] %v8128
        %8257 = vst [vmem:[#allocation2 + $0xf0] sm:$0xff] %v8129
        %8258 = vst [vmem:[#allocation2 + $0xf8] sm:$0xff] %v8130
        %8259 = vst [vmem:[#allocation2 + $0x100] sm:$0xff] %v8131
        %8260 = vst [vmem:[#allocation2 + $0x108] sm:$0xff] %v8132
        %8261 = vst [vmem:[#allocation2 + $0x110] sm:$0xff] %v8133
        %8262 = vst [vmem:[#allocation2 + $0x118] sm:$0xff] %v8134
        %8263 = vst [vmem:[#allocation2 + $0x120] sm:$0xff] %v8135
        %8264 = vst [vmem:[#allocation2 + $0x128] sm:$0xff] %v8136
        %8265 = vst [vmem:[#allocation2 + $0x130] sm:$0xff] %v8137
        %8266 = vst [vmem:[#allocation2 + $0x138] sm:$0xff] %v8138
        %8267 = vst [vmem:[#allocation2 + $0x140] sm:$0xff] %v8139
        %8268 = vst [vmem:[#allocation2 + $0x148] sm:$0xff] %v8140
        %8269 = vst [vmem:[#allocation2 + $0x150] sm:$0xff] %v8141
        %8270 = vst [vmem:[#allocation2 + $0x158] sm:$0xff] %v8142
        %8271 = vst [vmem:[#allocation2 + $0x160] sm:$0xff] %v8143
        %8272 = vst [vmem:[#allocation2 + $0x168] sm:$0xff] %v8144
        %8273 = vst [vmem:[#allocation2 + $0x170] sm:$0xff] %v8145
        %8274 = vst [vmem:[#allocation2 + $0x178] sm:$0xff] %v8146
        %8275 = vst [vmem:[#allocation2 + $0x180] sm:$0xff] %v8147
        %8276 = vst [vmem:[#allocation2 + $0x188] sm:$0xff] %v8148
        %8277 = vst [vmem:[#allocation2 + $0x190] sm:$0xff] %v8149
        %8278 = vst [vmem:[#allocation2 + $0x198] sm:$0xff] %v8150
        %8279 = vst [vmem:[#allocation2 + $0x1a0] sm:$0xff] %v8151
        %8280 = vst [vmem:[#allocation2 + $0x1a8] sm:$0xff] %v8152
        %8281 = vst [vmem:[#allocation2 + $0x1b0] sm:$0xff] %v8153
        %8282 = vst [vmem:[#allocation2 + $0x1b8] sm:$0xff] %v8154
        %8283 = vst [vmem:[#allocation2 + $0x1c0] sm:$0xff] %v8155
        %8284 = vst [vmem:[#allocation2 + $0x1c8] sm:$0xff] %v8156
        %8285 = vst [vmem:[#allocation2 + $0x1d0] sm:$0xff] %v8157
        %8286 = vst [vmem:[#allocation2 + $0x1d8] sm:$0xff] %v8158
        %8287 = vst [vmem:[#allocation2 + $0x1e0] sm:$0xff] %v8159
        %8288 = vst [vmem:[#allocation2 + $0x1e8] sm:$0xff] %v8160
        %8289 = vst [vmem:[#allocation2 + $0x1f0] sm:$0xff] %v8161
        %8290 = vst [vmem:[#allocation2 + $0x1f8] sm:$0xff] %v8162
        %8291 = vst [vmem:[#allocation2 + $0x200] sm:$0xff] %v8163
        %8292 = vst [vmem:[#allocation2 + $0x208] sm:$0xff] %v8164
        %8293 = vst [vmem:[#allocation2 + $0x210] sm:$0xff] %v8165
        %8294 = vst [vmem:[#allocation2 + $0x218] sm:$0xff] %v8166
        %8295 = vst [vmem:[#allocation2 + $0x220] sm:$0xff] %v8167
        %8296 = vst [vmem:[#allocation2 + $0x228] sm:$0xff] %v8168
        %8297 = vst [vmem:[#allocation2 + $0x230] sm:$0xff] %v8169
        %8298 = vst [vmem:[#allocation2 + $0x238] sm:$0xff] %v8170
        %8299 = vst [vmem:[#allocation2 + $0x240] sm:$0xff] %v8171
        %8300 = vst [vmem:[#allocation2 + $0x248] sm:$0xff] %v8172
        %8301 = vst [vmem:[#allocation2 + $0x250] sm:$0xff] %v8173
        %8302 = vst [vmem:[#allocation2 + $0x258] sm:$0xff] %v8174
        %8303 = vst [vmem:[#allocation2 + $0x260] sm:$0xff] %v8175
        %8304 = vst [vmem:[#allocation2 + $0x268] sm:$0xff] %v8176
        %8305 = vst [vmem:[#allocation2 + $0x270] sm:$0xff] %v8177
        %8306 = vst [vmem:[#allocation2 + $0x278] sm:$0xff] %v8178
        %8307 = vst [vmem:[#allocation2 + $0x280] sm:$0xff] %v8179
        %8308 = vst [vmem:[#allocation2 + $0x288] sm:$0xff] %v8180
        %8309 = vst [vmem:[#allocation2 + $0x290] sm:$0xff] %v8181
        %8310 = vst [vmem:[#allocation2 + $0x298] sm:$0xff] %v8182
        %8311 = vst [vmem:[#allocation2 + $0x2a0] sm:$0xff] %v8183
        %8312 = vst [vmem:[#allocation2 + $0x2a8] sm:$0xff] %v8184
        %8313 = vst [vmem:[#allocation2 + $0x2b0] sm:$0xff] %v8185
        %8314 = vst [vmem:[#allocation2 + $0x2b8] sm:$0xff] %v8186
        %8315 = vst [vmem:[#allocation2 + $0x2c0] sm:$0xff] %v8187
        %8316 = vst [vmem:[#allocation2 + $0x2c8] sm:$0xff] %v8188
        %8317 = vst [vmem:[#allocation2 + $0x2d0] sm:$0xff] %v8189
        %8318 = vst [vmem:[#allocation2 + $0x2d8] sm:$0xff] %v8190
        %8319 = vst [vmem:[#allocation2 + $0x2e0] sm:$0xff] %v8191
        %8320 = vst [vmem:[#allocation2 + $0x2e8] sm:$0xff] %v8192
        %8321 = vst [vmem:[#allocation2 + $0x2f0] sm:$0xff] %v8193
        %8322 = vst [vmem:[#allocation2 + $0x2f8] sm:$0xff] %v8194
        %8323 = vst [vmem:[#allocation2 + $0x300] sm:$0xff] %v8195
        %8324 = vst [vmem:[#allocation2 + $0x308] sm:$0xff] %v8196
        %8325 = vst [vmem:[#allocation2 + $0x310] sm:$0xff] %v8197
        %8326 = vst [vmem:[#allocation2 + $0x318] sm:$0xff] %v8198
        %8327 = vst [vmem:[#allocation2 + $0x320] sm:$0xff] %v8199
        %8328 = vst [vmem:[#allocation2 + $0x328] sm:$0xff] %v8200
        %8329 = vst [vmem:[#allocation2 + $0x330] sm:$0xff] %v8201
        %8330 = vst [vmem:[#allocation2 + $0x338] sm:$0xff] %v8202
        %8331 = vst [vmem:[#allocation2 + $0x340] sm:$0xff] %v8203
        %8332 = vst [vmem:[#allocation2 + $0x348] sm:$0xff] %v8204
        %8333 = vst [vmem:[#allocation2 + $0x350] sm:$0xff] %v8205
        %8334 = vst [vmem:[#allocation2 + $0x358] sm:$0xff] %v8206
        %8335 = vst [vmem:[#allocation2 + $0x360] sm:$0xff] %v8207
        %8336 = vst [vmem:[#allocation2 + $0x368] sm:$0xff] %v8208
        %8337 = vst [vmem:[#allocation2 + $0x370] sm:$0xff] %v8209
        %8338 = vst [vmem:[#allocation2 + $0x378] sm:$0xff] %v8210
        %8339 = vst [vmem:[#allocation2 + $0x380] sm:$0xff] %v8211
        %8340 = vst [vmem:[#allocation2 + $0x388] sm:$0xff] %v8212
        %8341 = vst [vmem:[#allocation2 + $0x390] sm:$0xff] %v8213
        %8342 = vst [vmem:[#allocation2 + $0x398] sm:$0xff] %v8214
        %8343 = vst [vmem:[#allocation2 + $0x3a0] sm:$0xff] %v8215
        %8344 = vst [vmem:[#allocation2 + $0x3a8] sm:$0xff] %v8216
        %8345 = vst [vmem:[#allocation2 + $0x3b0] sm:$0xff] %v8217
        %8346 = vst [vmem:[#allocation2 + $0x3b8] sm:$0xff] %v8218
        %8347 = vst [vmem:[#allocation2 + $0x3c0] sm:$0xff] %v8219
        %8348 = vst [vmem:[#allocation2 + $0x3c8] sm:$0xff] %v8220
        %8349 = vst [vmem:[#allocation2 + $0x3d0] sm:$0xff] %v8221
        %8350 = vst [vmem:[#allocation2 + $0x3d8] sm:$0xff] %v8222
        %8351 = vst [vmem:[#allocation2 + $0x3e0] sm:$0xff] %v8223
        %8352 = vst [vmem:[#allocation2 + $0x3e8] sm:$0xff] %v8224
        %8353 = vst [vmem:[#allocation2 + $0x3f0] sm:$0xff] %v8225
        %8354 = vst [vmem:[#allocation2 + $0x3f8] sm:$0xff] %v8226
        %p8355 = scmp.eq.s32.totalorder %s29, 1
        // Predicated region
        $region81: #{infnet_forward.1} parent=47 // pred_check
          %p8356 = pneg %p8355
        $region82: #{infnet_forward.1} parent=47 // pred_check_branch
          %8358 = sbr.rel (%p8356) target = $region84
        $region83: #{infnet_forward.1} parent=47 // pred_region
          %v8359 = vld [vmem:[#allocation2] sm:$0xff]
          %v8360 = vld [vmem:[#allocation2 + $0x8] sm:$0xff]
          %v8361 = vld [vmem:[#allocation2 + $0x10] sm:$0xff]
          %v8362 = vld [vmem:[#allocation2 + $0x18] sm:$0xff]
          %v8363 = vld [vmem:[#allocation2 + $0x20] sm:$0xff]
          %v8364 = vld [vmem:[#allocation2 + $0x28] sm:$0xff]
          %v8365 = vld [vmem:[#allocation2 + $0x30] sm:$0xff]
          %v8366 = vld [vmem:[#allocation2 + $0x38] sm:$0xff]
          %v8367 = vld [vmem:[#allocation2 + $0x40] sm:$0xff]
          %v8368 = vld [vmem:[#allocation2 + $0x48] sm:$0xff]
          %v8369 = vld [vmem:[#allocation2 + $0x50] sm:$0xff]
          %v8370 = vld [vmem:[#allocation2 + $0x58] sm:$0xff]
          %v8371 = vld [vmem:[#allocation2 + $0x60] sm:$0xff]
          %v8372 = vld [vmem:[#allocation2 + $0x68] sm:$0xff]
          %v8373 = vld [vmem:[#allocation2 + $0x70] sm:$0xff]
          %v8374 = vld [vmem:[#allocation2 + $0x78] sm:$0xff]
          %v8375 = vld [vmem:[#allocation2 + $0x80] sm:$0xff]
          %v8376 = vld [vmem:[#allocation2 + $0x88] sm:$0xff]
          %v8377 = vld [vmem:[#allocation2 + $0x90] sm:$0xff]
          %v8378 = vld [vmem:[#allocation2 + $0x98] sm:$0xff]
          %v8379 = vld [vmem:[#allocation2 + $0xa0] sm:$0xff]
          %v8380 = vld [vmem:[#allocation2 + $0xa8] sm:$0xff]
          %v8381 = vld [vmem:[#allocation2 + $0xb0] sm:$0xff]
          %v8382 = vld [vmem:[#allocation2 + $0xb8] sm:$0xff]
          %v8383 = vld [vmem:[#allocation2 + $0xc0] sm:$0xff]
          %v8384 = vld [vmem:[#allocation2 + $0xc8] sm:$0xff]
          %v8385 = vld [vmem:[#allocation2 + $0xd0] sm:$0xff]
          %v8386 = vld [vmem:[#allocation2 + $0xd8] sm:$0xff]
          %v8387 = vld [vmem:[#allocation2 + $0xe0] sm:$0xff]
          %v8388 = vld [vmem:[#allocation2 + $0xe8] sm:$0xff]
          %v8389 = vld [vmem:[#allocation2 + $0xf0] sm:$0xff]
          %v8390 = vld [vmem:[#allocation2 + $0xf8] sm:$0xff]
          %v8391 = vld [vmem:[#allocation2 + $0x100] sm:$0xff]
          %v8392 = vld [vmem:[#allocation2 + $0x108] sm:$0xff]
          %v8393 = vld [vmem:[#allocation2 + $0x110] sm:$0xff]
          %v8394 = vld [vmem:[#allocation2 + $0x118] sm:$0xff]
          %v8395 = vld [vmem:[#allocation2 + $0x120] sm:$0xff]
          %v8396 = vld [vmem:[#allocation2 + $0x128] sm:$0xff]
          %v8397 = vld [vmem:[#allocation2 + $0x130] sm:$0xff]
          %v8398 = vld [vmem:[#allocation2 + $0x138] sm:$0xff]
          %v8399 = vld [vmem:[#allocation2 + $0x140] sm:$0xff]
          %v8400 = vld [vmem:[#allocation2 + $0x148] sm:$0xff]
          %v8401 = vld [vmem:[#allocation2 + $0x150] sm:$0xff]
          %v8402 = vld [vmem:[#allocation2 + $0x158] sm:$0xff]
          %v8403 = vld [vmem:[#allocation2 + $0x160] sm:$0xff]
          %v8404 = vld [vmem:[#allocation2 + $0x168] sm:$0xff]
          %v8405 = vld [vmem:[#allocation2 + $0x170] sm:$0xff]
          %v8406 = vld [vmem:[#allocation2 + $0x178] sm:$0xff]
          %v8407 = vld [vmem:[#allocation2 + $0x180] sm:$0xff]
          %v8408 = vld [vmem:[#allocation2 + $0x188] sm:$0xff]
          %v8409 = vld [vmem:[#allocation2 + $0x190] sm:$0xff]
          %v8410 = vld [vmem:[#allocation2 + $0x198] sm:$0xff]
          %v8411 = vld [vmem:[#allocation2 + $0x1a0] sm:$0xff]
          %v8412 = vld [vmem:[#allocation2 + $0x1a8] sm:$0xff]
          %v8413 = vld [vmem:[#allocation2 + $0x1b0] sm:$0xff]
          %v8414 = vld [vmem:[#allocation2 + $0x1b8] sm:$0xff]
          %v8415 = vld [vmem:[#allocation2 + $0x1c0] sm:$0xff]
          %v8416 = vld [vmem:[#allocation2 + $0x1c8] sm:$0xff]
          %v8417 = vld [vmem:[#allocation2 + $0x1d0] sm:$0xff]
          %v8418 = vld [vmem:[#allocation2 + $0x1d8] sm:$0xff]
          %v8419 = vld [vmem:[#allocation2 + $0x1e0] sm:$0xff]
          %v8420 = vld [vmem:[#allocation2 + $0x1e8] sm:$0xff]
          %v8421 = vld [vmem:[#allocation2 + $0x1f0] sm:$0xff]
          %v8422 = vld [vmem:[#allocation2 + $0x1f8] sm:$0xff]
          %v8423 = vld [vmem:[#allocation2 + $0x200] sm:$0xff]
          %v8424 = vld [vmem:[#allocation2 + $0x208] sm:$0xff]
          %v8425 = vld [vmem:[#allocation2 + $0x210] sm:$0xff]
          %v8426 = vld [vmem:[#allocation2 + $0x218] sm:$0xff]
          %v8427 = vld [vmem:[#allocation2 + $0x220] sm:$0xff]
          %v8428 = vld [vmem:[#allocation2 + $0x228] sm:$0xff]
          %v8429 = vld [vmem:[#allocation2 + $0x230] sm:$0xff]
          %v8430 = vld [vmem:[#allocation2 + $0x238] sm:$0xff]
          %v8431 = vld [vmem:[#allocation2 + $0x240] sm:$0xff]
          %v8432 = vld [vmem:[#allocation2 + $0x248] sm:$0xff]
          %v8433 = vld [vmem:[#allocation2 + $0x250] sm:$0xff]
          %v8434 = vld [vmem:[#allocation2 + $0x258] sm:$0xff]
          %v8435 = vld [vmem:[#allocation2 + $0x260] sm:$0xff]
          %v8436 = vld [vmem:[#allocation2 + $0x268] sm:$0xff]
          %v8437 = vld [vmem:[#allocation2 + $0x270] sm:$0xff]
          %v8438 = vld [vmem:[#allocation2 + $0x278] sm:$0xff]
          %v8439 = vld [vmem:[#allocation2 + $0x280] sm:$0xff]
          %v8440 = vld [vmem:[#allocation2 + $0x288] sm:$0xff]
          %v8441 = vld [vmem:[#allocation2 + $0x290] sm:$0xff]
          %v8442 = vld [vmem:[#allocation2 + $0x298] sm:$0xff]
          %v8443 = vld [vmem:[#allocation2 + $0x2a0] sm:$0xff]
          %v8444 = vld [vmem:[#allocation2 + $0x2a8] sm:$0xff]
          %v8445 = vld [vmem:[#allocation2 + $0x2b0] sm:$0xff]
          %v8446 = vld [vmem:[#allocation2 + $0x2b8] sm:$0xff]
          %v8447 = vld [vmem:[#allocation2 + $0x2c0] sm:$0xff]
          %v8448 = vld [vmem:[#allocation2 + $0x2c8] sm:$0xff]
          %v8449 = vld [vmem:[#allocation2 + $0x2d0] sm:$0xff]
          %v8450 = vld [vmem:[#allocation2 + $0x2d8] sm:$0xff]
          %v8451 = vld [vmem:[#allocation2 + $0x2e0] sm:$0xff]
          %v8452 = vld [vmem:[#allocation2 + $0x2e8] sm:$0xff]
          %v8453 = vld [vmem:[#allocation2 + $0x2f0] sm:$0xff]
          %v8454 = vld [vmem:[#allocation2 + $0x2f8] sm:$0xff]
          %v8455 = vld [vmem:[#allocation2 + $0x300] sm:$0xff]
          %v8456 = vld [vmem:[#allocation2 + $0x308] sm:$0xff]
          %v8457 = vld [vmem:[#allocation2 + $0x310] sm:$0xff]
          %v8458 = vld [vmem:[#allocation2 + $0x318] sm:$0xff]
          %v8459 = vld [vmem:[#allocation2 + $0x320] sm:$0xff]
          %v8460 = vld [vmem:[#allocation2 + $0x328] sm:$0xff]
          %v8461 = vld [vmem:[#allocation2 + $0x330] sm:$0xff]
          %v8462 = vld [vmem:[#allocation2 + $0x338] sm:$0xff]
          %v8463 = vld [vmem:[#allocation2 + $0x340] sm:$0xff]
          %v8464 = vld [vmem:[#allocation2 + $0x348] sm:$0xff]
          %v8465 = vld [vmem:[#allocation2 + $0x350] sm:$0xff]
          %v8466 = vld [vmem:[#allocation2 + $0x358] sm:$0xff]
          %v8467 = vld [vmem:[#allocation2 + $0x360] sm:$0xff]
          %v8468 = vld [vmem:[#allocation2 + $0x368] sm:$0xff]
          %v8469 = vld [vmem:[#allocation2 + $0x370] sm:$0xff]
          %v8470 = vld [vmem:[#allocation2 + $0x378] sm:$0xff]
          %v8471 = vld [vmem:[#allocation2 + $0x380] sm:$0xff]
          %v8472 = vld [vmem:[#allocation2 + $0x388] sm:$0xff]
          %v8473 = vld [vmem:[#allocation2 + $0x390] sm:$0xff]
          %v8474 = vld [vmem:[#allocation2 + $0x398] sm:$0xff]
          %v8475 = vld [vmem:[#allocation2 + $0x3a0] sm:$0xff]
          %v8476 = vld [vmem:[#allocation2 + $0x3a8] sm:$0xff]
          %v8477 = vld [vmem:[#allocation2 + $0x3b0] sm:$0xff]
          %v8478 = vld [vmem:[#allocation2 + $0x3b8] sm:$0xff]
          %v8479 = vld [vmem:[#allocation2 + $0x3c0] sm:$0xff]
          %v8480 = vld [vmem:[#allocation2 + $0x3c8] sm:$0xff]
          %v8481 = vld [vmem:[#allocation2 + $0x3d0] sm:$0xff]
          %v8482 = vld [vmem:[#allocation2 + $0x3d8] sm:$0xff]
          %v8483 = vld [vmem:[#allocation2 + $0x3e0] sm:$0xff]
          %v8484 = vld [vmem:[#allocation2 + $0x3e8] sm:$0xff]
          %v8485 = vld [vmem:[#allocation2 + $0x3f0] sm:$0xff]
          %v8486 = vld [vmem:[#allocation2 + $0x3f8] sm:$0xff]
          %v8487 = vld [vmem:[#allocation7] sm:$0x3]
          %v8489 = vlaneseq
          %v8490 = vshrl.u32 %v8489, 7
          %v8491 = vsub.s32 0, %v8490
          %v8492 = vrot.slane %v8487, %v8491
          %v8493 = vlaneseq
          %v8494 = vshrl.u32 %v8493, 7
          %v8495 = vsub.s32 1, %v8494
          %v8496 = vrot.slane %v8487, %v8495
          %v8499 = vadd.f32 %v8359, %v8492
          %v8500 = vadd.f32 %v8360, %v8496
          %v8501 = vadd.f32 %v8361, %v8492
          %v8502 = vadd.f32 %v8362, %v8496
          %v8503 = vadd.f32 %v8363, %v8492
          %v8504 = vadd.f32 %v8364, %v8496
          %v8505 = vadd.f32 %v8365, %v8492
          %v8506 = vadd.f32 %v8366, %v8496
          %v8507 = vadd.f32 %v8367, %v8492
          %v8508 = vadd.f32 %v8368, %v8496
          %v8509 = vadd.f32 %v8369, %v8492
          %v8510 = vadd.f32 %v8370, %v8496
          %v8511 = vadd.f32 %v8371, %v8492
          %v8512 = vadd.f32 %v8372, %v8496
          %v8513 = vadd.f32 %v8373, %v8492
          %v8514 = vadd.f32 %v8374, %v8496
          %v8515 = vadd.f32 %v8375, %v8492
          %v8516 = vadd.f32 %v8376, %v8496
          %v8517 = vadd.f32 %v8377, %v8492
          %v8518 = vadd.f32 %v8378, %v8496
          %v8519 = vadd.f32 %v8379, %v8492
          %v8520 = vadd.f32 %v8380, %v8496
          %v8521 = vadd.f32 %v8381, %v8492
          %v8522 = vadd.f32 %v8382, %v8496
          %v8523 = vadd.f32 %v8383, %v8492
          %v8524 = vadd.f32 %v8384, %v8496
          %v8525 = vadd.f32 %v8385, %v8492
          %v8526 = vadd.f32 %v8386, %v8496
          %v8527 = vadd.f32 %v8387, %v8492
          %v8528 = vadd.f32 %v8388, %v8496
          %v8529 = vadd.f32 %v8389, %v8492
          %v8530 = vadd.f32 %v8390, %v8496
          %v8531 = vadd.f32 %v8391, %v8492
          %v8532 = vadd.f32 %v8392, %v8496
          %v8533 = vadd.f32 %v8393, %v8492
          %v8534 = vadd.f32 %v8394, %v8496
          %v8535 = vadd.f32 %v8395, %v8492
          %v8536 = vadd.f32 %v8396, %v8496
          %v8537 = vadd.f32 %v8397, %v8492
          %v8538 = vadd.f32 %v8398, %v8496
          %v8539 = vadd.f32 %v8399, %v8492
          %v8540 = vadd.f32 %v8400, %v8496
          %v8541 = vadd.f32 %v8401, %v8492
          %v8542 = vadd.f32 %v8402, %v8496
          %v8543 = vadd.f32 %v8403, %v8492
          %v8544 = vadd.f32 %v8404, %v8496
          %v8545 = vadd.f32 %v8405, %v8492
          %v8546 = vadd.f32 %v8406, %v8496
          %v8547 = vadd.f32 %v8407, %v8492
          %v8548 = vadd.f32 %v8408, %v8496
          %v8549 = vadd.f32 %v8409, %v8492
          %v8550 = vadd.f32 %v8410, %v8496
          %v8551 = vadd.f32 %v8411, %v8492
          %v8552 = vadd.f32 %v8412, %v8496
          %v8553 = vadd.f32 %v8413, %v8492
          %v8554 = vadd.f32 %v8414, %v8496
          %v8555 = vadd.f32 %v8415, %v8492
          %v8556 = vadd.f32 %v8416, %v8496
          %v8557 = vadd.f32 %v8417, %v8492
          %v8558 = vadd.f32 %v8418, %v8496
          %v8559 = vadd.f32 %v8419, %v8492
          %v8560 = vadd.f32 %v8420, %v8496
          %v8561 = vadd.f32 %v8421, %v8492
          %v8562 = vadd.f32 %v8422, %v8496
          %v8563 = vadd.f32 %v8423, %v8492
          %v8564 = vadd.f32 %v8424, %v8496
          %v8565 = vadd.f32 %v8425, %v8492
          %v8566 = vadd.f32 %v8426, %v8496
          %v8567 = vadd.f32 %v8427, %v8492
          %v8568 = vadd.f32 %v8428, %v8496
          %v8569 = vadd.f32 %v8429, %v8492
          %v8570 = vadd.f32 %v8430, %v8496
          %v8571 = vadd.f32 %v8431, %v8492
          %v8572 = vadd.f32 %v8432, %v8496
          %v8573 = vadd.f32 %v8433, %v8492
          %v8574 = vadd.f32 %v8434, %v8496
          %v8575 = vadd.f32 %v8435, %v8492
          %v8576 = vadd.f32 %v8436, %v8496
          %v8577 = vadd.f32 %v8437, %v8492
          %v8578 = vadd.f32 %v8438, %v8496
          %v8579 = vadd.f32 %v8439, %v8492
          %v8580 = vadd.f32 %v8440, %v8496
          %v8581 = vadd.f32 %v8441, %v8492
          %v8582 = vadd.f32 %v8442, %v8496
          %v8583 = vadd.f32 %v8443, %v8492
          %v8584 = vadd.f32 %v8444, %v8496
          %v8585 = vadd.f32 %v8445, %v8492
          %v8586 = vadd.f32 %v8446, %v8496
          %v8587 = vadd.f32 %v8447, %v8492
          %v8588 = vadd.f32 %v8448, %v8496
          %v8589 = vadd.f32 %v8449, %v8492
          %v8590 = vadd.f32 %v8450, %v8496
          %v8591 = vadd.f32 %v8451, %v8492
          %v8592 = vadd.f32 %v8452, %v8496
          %v8593 = vadd.f32 %v8453, %v8492
          %v8594 = vadd.f32 %v8454, %v8496
          %v8595 = vadd.f32 %v8455, %v8492
          %v8596 = vadd.f32 %v8456, %v8496
          %v8597 = vadd.f32 %v8457, %v8492
          %v8598 = vadd.f32 %v8458, %v8496
          %v8599 = vadd.f32 %v8459, %v8492
          %v8600 = vadd.f32 %v8460, %v8496
          %v8601 = vadd.f32 %v8461, %v8492
          %v8602 = vadd.f32 %v8462, %v8496
          %v8603 = vadd.f32 %v8463, %v8492
          %v8604 = vadd.f32 %v8464, %v8496
          %v8605 = vadd.f32 %v8465, %v8492
          %v8606 = vadd.f32 %v8466, %v8496
          %v8607 = vadd.f32 %v8467, %v8492
          %v8608 = vadd.f32 %v8468, %v8496
          %v8609 = vadd.f32 %v8469, %v8492
          %v8610 = vadd.f32 %v8470, %v8496
          %v8611 = vadd.f32 %v8471, %v8492
          %v8612 = vadd.f32 %v8472, %v8496
          %v8613 = vadd.f32 %v8473, %v8492
          %v8614 = vadd.f32 %v8474, %v8496
          %v8615 = vadd.f32 %v8475, %v8492
          %v8616 = vadd.f32 %v8476, %v8496
          %v8617 = vadd.f32 %v8477, %v8492
          %v8618 = vadd.f32 %v8478, %v8496
          %v8619 = vadd.f32 %v8479, %v8492
          %v8620 = vadd.f32 %v8480, %v8496
          %v8621 = vadd.f32 %v8481, %v8492
          %v8622 = vadd.f32 %v8482, %v8496
          %v8623 = vadd.f32 %v8483, %v8492
          %v8624 = vadd.f32 %v8484, %v8496
          %v8625 = vadd.f32 %v8485, %v8492
          %v8626 = vadd.f32 %v8486, %v8496
          %v8627 = vmax.f32 %v8499, 0.0
          %v8628 = vmax.f32 %v8500, 0.0
          %v8629 = vmax.f32 %v8501, 0.0
          %v8630 = vmax.f32 %v8502, 0.0
          %v8631 = vmax.f32 %v8503, 0.0
          %v8632 = vmax.f32 %v8504, 0.0
          %v8633 = vmax.f32 %v8505, 0.0
          %v8634 = vmax.f32 %v8506, 0.0
          %v8635 = vmax.f32 %v8507, 0.0
          %v8636 = vmax.f32 %v8508, 0.0
          %v8637 = vmax.f32 %v8509, 0.0
          %v8638 = vmax.f32 %v8510, 0.0
          %v8639 = vmax.f32 %v8511, 0.0
          %v8640 = vmax.f32 %v8512, 0.0
          %v8641 = vmax.f32 %v8513, 0.0
          %v8642 = vmax.f32 %v8514, 0.0
          %v8643 = vmax.f32 %v8515, 0.0
          %v8644 = vmax.f32 %v8516, 0.0
          %v8645 = vmax.f32 %v8517, 0.0
          %v8646 = vmax.f32 %v8518, 0.0
          %v8647 = vmax.f32 %v8519, 0.0
          %v8648 = vmax.f32 %v8520, 0.0
          %v8649 = vmax.f32 %v8521, 0.0
          %v8650 = vmax.f32 %v8522, 0.0
          %v8651 = vmax.f32 %v8523, 0.0
          %v8652 = vmax.f32 %v8524, 0.0
          %v8653 = vmax.f32 %v8525, 0.0
          %v8654 = vmax.f32 %v8526, 0.0
          %v8655 = vmax.f32 %v8527, 0.0
          %v8656 = vmax.f32 %v8528, 0.0
          %v8657 = vmax.f32 %v8529, 0.0
          %v8658 = vmax.f32 %v8530, 0.0
          %v8659 = vmax.f32 %v8531, 0.0
          %v8660 = vmax.f32 %v8532, 0.0
          %v8661 = vmax.f32 %v8533, 0.0
          %v8662 = vmax.f32 %v8534, 0.0
          %v8663 = vmax.f32 %v8535, 0.0
          %v8664 = vmax.f32 %v8536, 0.0
          %v8665 = vmax.f32 %v8537, 0.0
          %v8666 = vmax.f32 %v8538, 0.0
          %v8667 = vmax.f32 %v8539, 0.0
          %v8668 = vmax.f32 %v8540, 0.0
          %v8669 = vmax.f32 %v8541, 0.0
          %v8670 = vmax.f32 %v8542, 0.0
          %v8671 = vmax.f32 %v8543, 0.0
          %v8672 = vmax.f32 %v8544, 0.0
          %v8673 = vmax.f32 %v8545, 0.0
          %v8674 = vmax.f32 %v8546, 0.0
          %v8675 = vmax.f32 %v8547, 0.0
          %v8676 = vmax.f32 %v8548, 0.0
          %v8677 = vmax.f32 %v8549, 0.0
          %v8678 = vmax.f32 %v8550, 0.0
          %v8679 = vmax.f32 %v8551, 0.0
          %v8680 = vmax.f32 %v8552, 0.0
          %v8681 = vmax.f32 %v8553, 0.0
          %v8682 = vmax.f32 %v8554, 0.0
          %v8683 = vmax.f32 %v8555, 0.0
          %v8684 = vmax.f32 %v8556, 0.0
          %v8685 = vmax.f32 %v8557, 0.0
          %v8686 = vmax.f32 %v8558, 0.0
          %v8687 = vmax.f32 %v8559, 0.0
          %v8688 = vmax.f32 %v8560, 0.0
          %v8689 = vmax.f32 %v8561, 0.0
          %v8690 = vmax.f32 %v8562, 0.0
          %v8691 = vmax.f32 %v8563, 0.0
          %v8692 = vmax.f32 %v8564, 0.0
          %v8693 = vmax.f32 %v8565, 0.0
          %v8694 = vmax.f32 %v8566, 0.0
          %v8695 = vmax.f32 %v8567, 0.0
          %v8696 = vmax.f32 %v8568, 0.0
          %v8697 = vmax.f32 %v8569, 0.0
          %v8698 = vmax.f32 %v8570, 0.0
          %v8699 = vmax.f32 %v8571, 0.0
          %v8700 = vmax.f32 %v8572, 0.0
          %v8701 = vmax.f32 %v8573, 0.0
          %v8702 = vmax.f32 %v8574, 0.0
          %v8703 = vmax.f32 %v8575, 0.0
          %v8704 = vmax.f32 %v8576, 0.0
          %v8705 = vmax.f32 %v8577, 0.0
          %v8706 = vmax.f32 %v8578, 0.0
          %v8707 = vmax.f32 %v8579, 0.0
          %v8708 = vmax.f32 %v8580, 0.0
          %v8709 = vmax.f32 %v8581, 0.0
          %v8710 = vmax.f32 %v8582, 0.0
          %v8711 = vmax.f32 %v8583, 0.0
          %v8712 = vmax.f32 %v8584, 0.0
          %v8713 = vmax.f32 %v8585, 0.0
          %v8714 = vmax.f32 %v8586, 0.0
          %v8715 = vmax.f32 %v8587, 0.0
          %v8716 = vmax.f32 %v8588, 0.0
          %v8717 = vmax.f32 %v8589, 0.0
          %v8718 = vmax.f32 %v8590, 0.0
          %v8719 = vmax.f32 %v8591, 0.0
          %v8720 = vmax.f32 %v8592, 0.0
          %v8721 = vmax.f32 %v8593, 0.0
          %v8722 = vmax.f32 %v8594, 0.0
          %v8723 = vmax.f32 %v8595, 0.0
          %v8724 = vmax.f32 %v8596, 0.0
          %v8725 = vmax.f32 %v8597, 0.0
          %v8726 = vmax.f32 %v8598, 0.0
          %v8727 = vmax.f32 %v8599, 0.0
          %v8728 = vmax.f32 %v8600, 0.0
          %v8729 = vmax.f32 %v8601, 0.0
          %v8730 = vmax.f32 %v8602, 0.0
          %v8731 = vmax.f32 %v8603, 0.0
          %v8732 = vmax.f32 %v8604, 0.0
          %v8733 = vmax.f32 %v8605, 0.0
          %v8734 = vmax.f32 %v8606, 0.0
          %v8735 = vmax.f32 %v8607, 0.0
          %v8736 = vmax.f32 %v8608, 0.0
          %v8737 = vmax.f32 %v8609, 0.0
          %v8738 = vmax.f32 %v8610, 0.0
          %v8739 = vmax.f32 %v8611, 0.0
          %v8740 = vmax.f32 %v8612, 0.0
          %v8741 = vmax.f32 %v8613, 0.0
          %v8742 = vmax.f32 %v8614, 0.0
          %v8743 = vmax.f32 %v8615, 0.0
          %v8744 = vmax.f32 %v8616, 0.0
          %v8745 = vmax.f32 %v8617, 0.0
          %v8746 = vmax.f32 %v8618, 0.0
          %v8747 = vmax.f32 %v8619, 0.0
          %v8748 = vmax.f32 %v8620, 0.0
          %v8749 = vmax.f32 %v8621, 0.0
          %v8750 = vmax.f32 %v8622, 0.0
          %v8751 = vmax.f32 %v8623, 0.0
          %v8752 = vmax.f32 %v8624, 0.0
          %v8753 = vmax.f32 %v8625, 0.0
          %v8754 = vmax.f32 %v8626, 0.0
          %v8755 = vpack.c.bf16 %v8629, %v8627
          %v8756 = vpack.c.bf16 %v8630, %v8628
          %v8757 = vpack.c.bf16 %v8633, %v8631
          %v8758 = vpack.c.bf16 %v8634, %v8632
          %v8759 = vpack.c.bf16 %v8637, %v8635
          %v8760 = vpack.c.bf16 %v8638, %v8636
          %v8761 = vpack.c.bf16 %v8641, %v8639
          %v8762 = vpack.c.bf16 %v8642, %v8640
          %v8763 = vpack.c.bf16 %v8645, %v8643
          %v8764 = vpack.c.bf16 %v8646, %v8644
          %v8765 = vpack.c.bf16 %v8649, %v8647
          %v8766 = vpack.c.bf16 %v8650, %v8648
          %v8767 = vpack.c.bf16 %v8653, %v8651
          %v8768 = vpack.c.bf16 %v8654, %v8652
          %v8769 = vpack.c.bf16 %v8657, %v8655
          %v8770 = vpack.c.bf16 %v8658, %v8656
          %v8771 = vpack.c.bf16 %v8661, %v8659
          %v8772 = vpack.c.bf16 %v8662, %v8660
          %v8773 = vpack.c.bf16 %v8665, %v8663
          %v8774 = vpack.c.bf16 %v8666, %v8664
          %v8775 = vpack.c.bf16 %v8669, %v8667
          %v8776 = vpack.c.bf16 %v8670, %v8668
          %v8777 = vpack.c.bf16 %v8673, %v8671
          %v8778 = vpack.c.bf16 %v8674, %v8672
          %v8779 = vpack.c.bf16 %v8677, %v8675
          %v8780 = vpack.c.bf16 %v8678, %v8676
          %v8781 = vpack.c.bf16 %v8681, %v8679
          %v8782 = vpack.c.bf16 %v8682, %v8680
          %v8783 = vpack.c.bf16 %v8685, %v8683
          %v8784 = vpack.c.bf16 %v8686, %v8684
          %v8785 = vpack.c.bf16 %v8689, %v8687
          %v8786 = vpack.c.bf16 %v8690, %v8688
          %v8787 = vpack.c.bf16 %v8693, %v8691
          %v8788 = vpack.c.bf16 %v8694, %v8692
          %v8789 = vpack.c.bf16 %v8697, %v8695
          %v8790 = vpack.c.bf16 %v8698, %v8696
          %v8791 = vpack.c.bf16 %v8701, %v8699
          %v8792 = vpack.c.bf16 %v8702, %v8700
          %v8793 = vpack.c.bf16 %v8705, %v8703
          %v8794 = vpack.c.bf16 %v8706, %v8704
          %v8795 = vpack.c.bf16 %v8709, %v8707
          %v8796 = vpack.c.bf16 %v8710, %v8708
          %v8797 = vpack.c.bf16 %v8713, %v8711
          %v8798 = vpack.c.bf16 %v8714, %v8712
          %v8799 = vpack.c.bf16 %v8717, %v8715
          %v8800 = vpack.c.bf16 %v8718, %v8716
          %v8801 = vpack.c.bf16 %v8721, %v8719
          %v8802 = vpack.c.bf16 %v8722, %v8720
          %v8803 = vpack.c.bf16 %v8725, %v8723
          %v8804 = vpack.c.bf16 %v8726, %v8724
          %v8805 = vpack.c.bf16 %v8729, %v8727
          %v8806 = vpack.c.bf16 %v8730, %v8728
          %v8807 = vpack.c.bf16 %v8733, %v8731
          %v8808 = vpack.c.bf16 %v8734, %v8732
          %v8809 = vpack.c.bf16 %v8737, %v8735
          %v8810 = vpack.c.bf16 %v8738, %v8736
          %v8811 = vpack.c.bf16 %v8741, %v8739
          %v8812 = vpack.c.bf16 %v8742, %v8740
          %v8813 = vpack.c.bf16 %v8745, %v8743
          %v8814 = vpack.c.bf16 %v8746, %v8744
          %v8815 = vpack.c.bf16 %v8749, %v8747
          %v8816 = vpack.c.bf16 %v8750, %v8748
          %v8817 = vpack.c.bf16 %v8753, %v8751
          %v8818 = vpack.c.bf16 %v8754, %v8752
          %v8819 = vld [vmem:[#allocation8] sm:$0xf]
          %v8820 = vld [vmem:[#allocation8 + $0x4] sm:$0xf]
          %v8821 = vld [vmem:[#allocation8 + $0x8] sm:$0xf]
          %v8822 = vld [vmem:[#allocation8 + $0xc] sm:$0xf]
          %v8823 = vld [vmem:[#allocation8 + $0x10] sm:$0xf]
          %v8824 = vld [vmem:[#allocation8 + $0x14] sm:$0xf]
          %v8825 = vld [vmem:[#allocation8 + $0x18] sm:$0xf]
          %v8826 = vld [vmem:[#allocation8 + $0x1c] sm:$0xf]
          %v8827 = vld [vmem:[#allocation8 + $0x20] sm:$0xf]
          %v8828 = vld [vmem:[#allocation8 + $0x24] sm:$0xf]
          %v8829 = vld [vmem:[#allocation8 + $0x28] sm:$0xf]
          %v8830 = vld [vmem:[#allocation8 + $0x2c] sm:$0xf]
          %v8831 = vld [vmem:[#allocation8 + $0x30] sm:$0xf]
          %v8832 = vld [vmem:[#allocation8 + $0x34] sm:$0xf]
          %v8833 = vld [vmem:[#allocation8 + $0x38] sm:$0xf]
          %v8834 = vld [vmem:[#allocation8 + $0x3c] sm:$0xf]
          %v8835 = vld [vmem:[#allocation8 + $0x40] sm:$0xf]
          %v8836 = vld [vmem:[#allocation8 + $0x44] sm:$0xf]
          %v8837 = vld [vmem:[#allocation8 + $0x48] sm:$0xf]
          %v8838 = vld [vmem:[#allocation8 + $0x4c] sm:$0xf]
          %v8839 = vld [vmem:[#allocation8 + $0x50] sm:$0xf]
          %v8840 = vld [vmem:[#allocation8 + $0x54] sm:$0xf]
          %v8841 = vld [vmem:[#allocation8 + $0x58] sm:$0xf]
          %v8842 = vld [vmem:[#allocation8 + $0x5c] sm:$0xf]
          %v8843 = vld [vmem:[#allocation8 + $0x60] sm:$0xf]
          %v8844 = vld [vmem:[#allocation8 + $0x64] sm:$0xf]
          %v8845 = vld [vmem:[#allocation8 + $0x68] sm:$0xf]
          %v8846 = vld [vmem:[#allocation8 + $0x6c] sm:$0xf]
          %v8847 = vld [vmem:[#allocation8 + $0x70] sm:$0xf]
          %v8848 = vld [vmem:[#allocation8 + $0x74] sm:$0xf]
          %v8849 = vld [vmem:[#allocation8 + $0x78] sm:$0xf]
          %v8850 = vld [vmem:[#allocation8 + $0x7c] sm:$0xf]
          %v8851 = vld [vmem:[#allocation10] sm:$0x1]
          %v8853 = vlaneseq
          %v8854 = vshrl.u32 %v8853, 7
          %v8855 = vsub.s32 0, %v8854
          %v8856 = vrot.slane %v8851, %v8855
          %v8890 = vunpack.c.l.b16 %v8819
          %v8891 = vunpack.c.l.b16 %v8820
          %v8892 = vunpack.c.l.b16 %v8821
          %v8893 = vunpack.c.l.b16 %v8822
          %v8894 = vunpack.c.l.b16 %v8823
          %v8895 = vunpack.c.l.b16 %v8824
          %v8896 = vunpack.c.l.b16 %v8825
          %v8897 = vunpack.c.l.b16 %v8826
          %v8898 = vunpack.c.l.b16 %v8827
          %v8899 = vunpack.c.l.b16 %v8828
          %v8900 = vunpack.c.l.b16 %v8829
          %v8901 = vunpack.c.l.b16 %v8830
          %v8902 = vunpack.c.l.b16 %v8831
          %v8903 = vunpack.c.l.b16 %v8832
          %v8904 = vunpack.c.l.b16 %v8833
          %v8905 = vunpack.c.l.b16 %v8834
          %v8906 = vunpack.c.l.b16 %v8835
          %v8907 = vunpack.c.l.b16 %v8836
          %v8908 = vunpack.c.l.b16 %v8837
          %v8909 = vunpack.c.l.b16 %v8838
          %v8910 = vunpack.c.l.b16 %v8839
          %v8911 = vunpack.c.l.b16 %v8840
          %v8912 = vunpack.c.l.b16 %v8841
          %v8913 = vunpack.c.l.b16 %v8842
          %v8914 = vunpack.c.l.b16 %v8843
          %v8915 = vunpack.c.l.b16 %v8844
          %v8916 = vunpack.c.l.b16 %v8845
          %v8917 = vunpack.c.l.b16 %v8846
          %v8918 = vunpack.c.l.b16 %v8847
          %v8919 = vunpack.c.l.b16 %v8848
          %v8920 = vunpack.c.l.b16 %v8849
          %v8921 = vunpack.c.l.b16 %v8850
          %v8922 = vpack.c.b16 %v8891, %v8890
          %v8923 = vpack.c.b16 %v8893, %v8892
          %v8924 = vpack.c.b16 %v8895, %v8894
          %v8925 = vpack.c.b16 %v8897, %v8896
          %v8926 = vpack.c.b16 %v8899, %v8898
          %v8927 = vpack.c.b16 %v8901, %v8900
          %v8928 = vpack.c.b16 %v8903, %v8902
          %v8929 = vpack.c.b16 %v8905, %v8904
          %v8930 = vpack.c.b16 %v8907, %v8906
          %v8931 = vpack.c.b16 %v8909, %v8908
          %v8932 = vpack.c.b16 %v8911, %v8910
          %v8933 = vpack.c.b16 %v8913, %v8912
          %v8934 = vpack.c.b16 %v8915, %v8914
          %v8935 = vpack.c.b16 %v8917, %v8916
          %v8936 = vpack.c.b16 %v8919, %v8918
          %v8937 = vpack.c.b16 %v8921, %v8920
          %8954 = vmatprep.subr.bf16.mxu0 0
          %8955 = vmatpush1.bf16.msra.mxu0 %v8929
          %8956 = vmatprep.subr.bf16.mxu0 0
          %8957 = vmatpush1.bf16.msra.mxu0 %v8928
          %8958 = vmatprep.subr.bf16.mxu0 0
          %8959 = vmatpush1.bf16.msra.mxu0 %v8927
          %8960 = vmatprep.subr.bf16.mxu0 0
          %8961 = vmatpush1.bf16.msra.mxu0 %v8926
          %8962 = vmatprep.subr.bf16.mxu0 0
          %8963 = vmatpush1.bf16.msra.mxu0 %v8925
          %8964 = vmatprep.subr.bf16.mxu0 0
          %8965 = vmatpush1.bf16.msra.mxu0 %v8924
          %8966 = vmatprep.subr.bf16.mxu0 0
          %8967 = vmatpush1.bf16.msra.mxu0 %v8923
          %8968 = vmatprep.subr.bf16.mxu0 0
          %8969 = vmatpush1.bf16.msra.mxu0 %v8922
          %8970 = vmatprep.subr.bf16.mxu0 0
          %8971 = vmatpush2.bf16.msra.mxu0 %v8937
          %8972 = vmatprep.subr.bf16.mxu0 0
          %8973 = vmatpush2.bf16.msra.mxu0 %v8936
          %8974 = vmatprep.subr.bf16.mxu0 0
          %8975 = vmatpush2.bf16.msra.mxu0 %v8935
          %8976 = vmatprep.subr.bf16.mxu0 0
          %8977 = vmatpush2.bf16.msra.mxu0 %v8934
          %8978 = vmatprep.subr.bf16.mxu0 0
          %8979 = vmatpush2.bf16.msra.mxu0 %v8933
          %8980 = vmatprep.subr.bf16.mxu0 0
          %8981 = vmatpush2.bf16.msra.mxu0 %v8932
          %8982 = vmatprep.subr.bf16.mxu0 0
          %8983 = vmatpush2.bf16.msra.mxu0 %v8931
          %8984 = vmatprep.subr.bf16.mxu0 0
          %8985 = vmatpush2.bf16.msra.mxu0 %v8930
          %8986 = vmatprep.mubr.bf16.mxu0 %v8756
          %8987 = vmatmul.mubr.bf16.gmra.mxu0 %v8755
          %v8988 = vpop.f32.mrf.mxu0
          %v8989 = vadd.f32 %v8856, %v8988
          %v8990 = vpop.f32.mrf.mxu0
          %v8991 = vpop.f32.mrf.mxu0
          %v8992 = vadd.f32 %v8856, %v8991
          %v8993 = vpop.f32.mrf.mxu0
          %8994 = vmatprep.mubr.bf16.mxu0 %v8758
          %8995 = vmatmul.mubr.bf16.gmra.mxu0 %v8757
          %v8996 = vpop.f32.mrf.mxu0
          %v8997 = vadd.f32 %v8856, %v8996
          %v8998 = vpop.f32.mrf.mxu0
          %v8999 = vpop.f32.mrf.mxu0
          %v9000 = vadd.f32 %v8856, %v8999
          %v9001 = vpop.f32.mrf.mxu0
          %9002 = vmatprep.mubr.bf16.mxu0 %v8760
          %9003 = vmatmul.mubr.bf16.gmra.mxu0 %v8759
          %v9004 = vpop.f32.mrf.mxu0
          %v9005 = vadd.f32 %v8856, %v9004
          %v9006 = vpop.f32.mrf.mxu0
          %v9007 = vpop.f32.mrf.mxu0
          %v9008 = vadd.f32 %v8856, %v9007
          %v9009 = vpop.f32.mrf.mxu0
          %9010 = vmatprep.mubr.bf16.mxu0 %v8762
          %9011 = vmatmul.mubr.bf16.gmra.mxu0 %v8761
          %v9012 = vpop.f32.mrf.mxu0
          %v9013 = vadd.f32 %v8856, %v9012
          %v9014 = vpop.f32.mrf.mxu0
          %v9015 = vpop.f32.mrf.mxu0
          %v9016 = vadd.f32 %v8856, %v9015
          %v9017 = vpop.f32.mrf.mxu0
          %9018 = vmatprep.mubr.bf16.mxu0 %v8764
          %9019 = vmatmul.mubr.bf16.gmra.mxu0 %v8763
          %v9020 = vpop.f32.mrf.mxu0
          %v9021 = vadd.f32 %v8856, %v9020
          %v9022 = vpop.f32.mrf.mxu0
          %v9023 = vpop.f32.mrf.mxu0
          %v9024 = vadd.f32 %v8856, %v9023
          %v9025 = vpop.f32.mrf.mxu0
          %9026 = vmatprep.mubr.bf16.mxu0 %v8766
          %9027 = vmatmul.mubr.bf16.gmra.mxu0 %v8765
          %v9028 = vpop.f32.mrf.mxu0
          %v9029 = vadd.f32 %v8856, %v9028
          %v9030 = vpop.f32.mrf.mxu0
          %v9031 = vpop.f32.mrf.mxu0
          %v9032 = vadd.f32 %v8856, %v9031
          %v9033 = vpop.f32.mrf.mxu0
          %9034 = vmatprep.mubr.bf16.mxu0 %v8768
          %9035 = vmatmul.mubr.bf16.gmra.mxu0 %v8767
          %v9036 = vpop.f32.mrf.mxu0
          %v9037 = vadd.f32 %v8856, %v9036
          %v9038 = vpop.f32.mrf.mxu0
          %v9039 = vpop.f32.mrf.mxu0
          %v9040 = vadd.f32 %v8856, %v9039
          %v9041 = vpop.f32.mrf.mxu0
          %9042 = vmatprep.mubr.bf16.mxu0 %v8770
          %9043 = vmatmul.mubr.bf16.gmra.mxu0 %v8769
          %v9044 = vpop.f32.mrf.mxu0
          %v9045 = vadd.f32 %v8856, %v9044
          %v9046 = vpop.f32.mrf.mxu0
          %v9047 = vpop.f32.mrf.mxu0
          %v9048 = vadd.f32 %v8856, %v9047
          %v9049 = vpop.f32.mrf.mxu0
          %9050 = vmatprep.mubr.bf16.mxu0 %v8772
          %9051 = vmatmul.mubr.bf16.gmra.mxu0 %v8771
          %v9052 = vpop.f32.mrf.mxu0
          %v9053 = vadd.f32 %v8856, %v9052
          %v9054 = vpop.f32.mrf.mxu0
          %v9055 = vpop.f32.mrf.mxu0
          %v9056 = vadd.f32 %v8856, %v9055
          %v9057 = vpop.f32.mrf.mxu0
          %9058 = vmatprep.mubr.bf16.mxu0 %v8774
          %9059 = vmatmul.mubr.bf16.gmra.mxu0 %v8773
          %v9060 = vpop.f32.mrf.mxu0
          %v9061 = vadd.f32 %v8856, %v9060
          %v9062 = vpop.f32.mrf.mxu0
          %v9063 = vpop.f32.mrf.mxu0
          %v9064 = vadd.f32 %v8856, %v9063
          %v9065 = vpop.f32.mrf.mxu0
          %9066 = vmatprep.mubr.bf16.mxu0 %v8776
          %9067 = vmatmul.mubr.bf16.gmra.mxu0 %v8775
          %v9068 = vpop.f32.mrf.mxu0
          %v9069 = vadd.f32 %v8856, %v9068
          %v9070 = vpop.f32.mrf.mxu0
          %v9071 = vpop.f32.mrf.mxu0
          %v9072 = vadd.f32 %v8856, %v9071
          %v9073 = vpop.f32.mrf.mxu0
          %9074 = vmatprep.mubr.bf16.mxu0 %v8778
          %9075 = vmatmul.mubr.bf16.gmra.mxu0 %v8777
          %v9076 = vpop.f32.mrf.mxu0
          %v9077 = vadd.f32 %v8856, %v9076
          %v9078 = vpop.f32.mrf.mxu0
          %v9079 = vpop.f32.mrf.mxu0
          %v9080 = vadd.f32 %v8856, %v9079
          %v9081 = vpop.f32.mrf.mxu0
          %9082 = vmatprep.mubr.bf16.mxu0 %v8780
          %9083 = vmatmul.mubr.bf16.gmra.mxu0 %v8779
          %v9084 = vpop.f32.mrf.mxu0
          %v9085 = vadd.f32 %v8856, %v9084
          %v9086 = vpop.f32.mrf.mxu0
          %v9087 = vpop.f32.mrf.mxu0
          %v9088 = vadd.f32 %v8856, %v9087
          %v9089 = vpop.f32.mrf.mxu0
          %9090 = vmatprep.mubr.bf16.mxu0 %v8782
          %9091 = vmatmul.mubr.bf16.gmra.mxu0 %v8781
          %v9092 = vpop.f32.mrf.mxu0
          %v9093 = vadd.f32 %v8856, %v9092
          %v9094 = vpop.f32.mrf.mxu0
          %v9095 = vpop.f32.mrf.mxu0
          %v9096 = vadd.f32 %v8856, %v9095
          %v9097 = vpop.f32.mrf.mxu0
          %9098 = vmatprep.mubr.bf16.mxu0 %v8784
          %9099 = vmatmul.mubr.bf16.gmra.mxu0 %v8783
          %v9100 = vpop.f32.mrf.mxu0
          %v9101 = vadd.f32 %v8856, %v9100
          %v9102 = vpop.f32.mrf.mxu0
          %v9103 = vpop.f32.mrf.mxu0
          %v9104 = vadd.f32 %v8856, %v9103
          %v9105 = vpop.f32.mrf.mxu0
          %9106 = vmatprep.mubr.bf16.mxu0 %v8786
          %9107 = vmatmul.mubr.bf16.gmra.mxu0 %v8785
          %v9108 = vpop.f32.mrf.mxu0
          %v9109 = vadd.f32 %v8856, %v9108
          %v9110 = vpop.f32.mrf.mxu0
          %v9111 = vpop.f32.mrf.mxu0
          %v9112 = vadd.f32 %v8856, %v9111
          %v9113 = vpop.f32.mrf.mxu0
          %9114 = vmatprep.mubr.bf16.mxu0 %v8788
          %9115 = vmatmul.mubr.bf16.gmra.mxu0 %v8787
          %v9116 = vpop.f32.mrf.mxu0
          %v9117 = vadd.f32 %v8856, %v9116
          %v9118 = vpop.f32.mrf.mxu0
          %v9119 = vpop.f32.mrf.mxu0
          %v9120 = vadd.f32 %v8856, %v9119
          %v9121 = vpop.f32.mrf.mxu0
          %9122 = vmatprep.mubr.bf16.mxu0 %v8790
          %9123 = vmatmul.mubr.bf16.gmra.mxu0 %v8789
          %v9124 = vpop.f32.mrf.mxu0
          %v9125 = vadd.f32 %v8856, %v9124
          %v9126 = vpop.f32.mrf.mxu0
          %v9127 = vpop.f32.mrf.mxu0
          %v9128 = vadd.f32 %v8856, %v9127
          %v9129 = vpop.f32.mrf.mxu0
          %9130 = vmatprep.mubr.bf16.mxu0 %v8792
          %9131 = vmatmul.mubr.bf16.gmra.mxu0 %v8791
          %v9132 = vpop.f32.mrf.mxu0
          %v9133 = vadd.f32 %v8856, %v9132
          %v9134 = vpop.f32.mrf.mxu0
          %v9135 = vpop.f32.mrf.mxu0
          %v9136 = vadd.f32 %v8856, %v9135
          %v9137 = vpop.f32.mrf.mxu0
          %9138 = vmatprep.mubr.bf16.mxu0 %v8794
          %9139 = vmatmul.mubr.bf16.gmra.mxu0 %v8793
          %v9140 = vpop.f32.mrf.mxu0
          %v9141 = vadd.f32 %v8856, %v9140
          %v9142 = vpop.f32.mrf.mxu0
          %v9143 = vpop.f32.mrf.mxu0
          %v9144 = vadd.f32 %v8856, %v9143
          %v9145 = vpop.f32.mrf.mxu0
          %9146 = vmatprep.mubr.bf16.mxu0 %v8796
          %9147 = vmatmul.mubr.bf16.gmra.mxu0 %v8795
          %v9148 = vpop.f32.mrf.mxu0
          %v9149 = vadd.f32 %v8856, %v9148
          %v9150 = vpop.f32.mrf.mxu0
          %v9151 = vpop.f32.mrf.mxu0
          %v9152 = vadd.f32 %v8856, %v9151
          %v9153 = vpop.f32.mrf.mxu0
          %9154 = vmatprep.mubr.bf16.mxu0 %v8798
          %9155 = vmatmul.mubr.bf16.gmra.mxu0 %v8797
          %v9156 = vpop.f32.mrf.mxu0
          %v9157 = vadd.f32 %v8856, %v9156
          %v9158 = vpop.f32.mrf.mxu0
          %v9159 = vpop.f32.mrf.mxu0
          %v9160 = vadd.f32 %v8856, %v9159
          %v9161 = vpop.f32.mrf.mxu0
          %9162 = vmatprep.mubr.bf16.mxu0 %v8800
          %9163 = vmatmul.mubr.bf16.gmra.mxu0 %v8799
          %v9164 = vpop.f32.mrf.mxu0
          %v9165 = vadd.f32 %v8856, %v9164
          %v9166 = vpop.f32.mrf.mxu0
          %v9167 = vpop.f32.mrf.mxu0
          %v9168 = vadd.f32 %v8856, %v9167
          %v9169 = vpop.f32.mrf.mxu0
          %9170 = vmatprep.mubr.bf16.mxu0 %v8802
          %9171 = vmatmul.mubr.bf16.gmra.mxu0 %v8801
          %v9172 = vpop.f32.mrf.mxu0
          %v9173 = vadd.f32 %v8856, %v9172
          %v9174 = vpop.f32.mrf.mxu0
          %v9175 = vpop.f32.mrf.mxu0
          %v9176 = vadd.f32 %v8856, %v9175
          %v9177 = vpop.f32.mrf.mxu0
          %9178 = vmatprep.mubr.bf16.mxu0 %v8804
          %9179 = vmatmul.mubr.bf16.gmra.mxu0 %v8803
          %v9180 = vpop.f32.mrf.mxu0
          %v9181 = vadd.f32 %v8856, %v9180
          %v9182 = vpop.f32.mrf.mxu0
          %v9183 = vpop.f32.mrf.mxu0
          %v9184 = vadd.f32 %v8856, %v9183
          %v9185 = vpop.f32.mrf.mxu0
          %9186 = vmatprep.mubr.bf16.mxu0 %v8806
          %9187 = vmatmul.mubr.bf16.gmra.mxu0 %v8805
          %v9188 = vpop.f32.mrf.mxu0
          %v9189 = vadd.f32 %v8856, %v9188
          %v9190 = vpop.f32.mrf.mxu0
          %v9191 = vpop.f32.mrf.mxu0
          %v9192 = vadd.f32 %v8856, %v9191
          %v9193 = vpop.f32.mrf.mxu0
          %9194 = vmatprep.mubr.bf16.mxu0 %v8808
          %9195 = vmatmul.mubr.bf16.gmra.mxu0 %v8807
          %v9196 = vpop.f32.mrf.mxu0
          %v9197 = vadd.f32 %v8856, %v9196
          %v9198 = vpop.f32.mrf.mxu0
          %v9199 = vpop.f32.mrf.mxu0
          %v9200 = vadd.f32 %v8856, %v9199
          %v9201 = vpop.f32.mrf.mxu0
          %9202 = vmatprep.mubr.bf16.mxu0 %v8810
          %9203 = vmatmul.mubr.bf16.gmra.mxu0 %v8809
          %v9204 = vpop.f32.mrf.mxu0
          %v9205 = vadd.f32 %v8856, %v9204
          %v9206 = vpop.f32.mrf.mxu0
          %v9207 = vpop.f32.mrf.mxu0
          %v9208 = vadd.f32 %v8856, %v9207
          %v9209 = vpop.f32.mrf.mxu0
          %9210 = vmatprep.mubr.bf16.mxu0 %v8812
          %9211 = vmatmul.mubr.bf16.gmra.mxu0 %v8811
          %v9212 = vpop.f32.mrf.mxu0
          %v9213 = vadd.f32 %v8856, %v9212
          %v9214 = vpop.f32.mrf.mxu0
          %v9215 = vpop.f32.mrf.mxu0
          %v9216 = vadd.f32 %v8856, %v9215
          %v9217 = vpop.f32.mrf.mxu0
          %9218 = vmatprep.mubr.bf16.mxu0 %v8814
          %9219 = vmatmul.mubr.bf16.gmra.mxu0 %v8813
          %v9220 = vpop.f32.mrf.mxu0
          %v9221 = vadd.f32 %v8856, %v9220
          %v9222 = vpop.f32.mrf.mxu0
          %v9223 = vpop.f32.mrf.mxu0
          %v9224 = vadd.f32 %v8856, %v9223
          %v9225 = vpop.f32.mrf.mxu0
          %9226 = vmatprep.mubr.bf16.mxu0 %v8816
          %9227 = vmatmul.mubr.bf16.gmra.mxu0 %v8815
          %v9228 = vpop.f32.mrf.mxu0
          %v9229 = vadd.f32 %v8856, %v9228
          %v9230 = vpop.f32.mrf.mxu0
          %v9231 = vpop.f32.mrf.mxu0
          %v9232 = vadd.f32 %v8856, %v9231
          %v9233 = vpop.f32.mrf.mxu0
          %9234 = vmatprep.mubr.bf16.mxu0 %v8818
          %9235 = vmatmul.mubr.bf16.gmra.mxu0 %v8817
          %v9236 = vpop.f32.mrf.mxu0
          %v9237 = vadd.f32 %v8856, %v9236
          %v9238 = vpop.f32.mrf.mxu0
          %v9239 = vpop.f32.mrf.mxu0
          %v9240 = vadd.f32 %v8856, %v9239
          %v9241 = vpop.f32.mrf.mxu0
          %9242 = vdwg.mxu0
          %v9243 = vmax.f32 %v8989, 0.0
          %v9244 = vmax.f32 %v8992, 0.0
          %v9245 = vmax.f32 %v8997, 0.0
          %v9246 = vmax.f32 %v9000, 0.0
          %v9247 = vmax.f32 %v9005, 0.0
          %v9248 = vmax.f32 %v9008, 0.0
          %v9249 = vmax.f32 %v9013, 0.0
          %v9250 = vmax.f32 %v9016, 0.0
          %v9251 = vmax.f32 %v9021, 0.0
          %v9252 = vmax.f32 %v9024, 0.0
          %v9253 = vmax.f32 %v9029, 0.0
          %v9254 = vmax.f32 %v9032, 0.0
          %v9255 = vmax.f32 %v9037, 0.0
          %v9256 = vmax.f32 %v9040, 0.0
          %v9257 = vmax.f32 %v9045, 0.0
          %v9258 = vmax.f32 %v9048, 0.0
          %v9259 = vmax.f32 %v9053, 0.0
          %v9260 = vmax.f32 %v9056, 0.0
          %v9261 = vmax.f32 %v9061, 0.0
          %v9262 = vmax.f32 %v9064, 0.0
          %v9263 = vmax.f32 %v9069, 0.0
          %v9264 = vmax.f32 %v9072, 0.0
          %v9265 = vmax.f32 %v9077, 0.0
          %v9266 = vmax.f32 %v9080, 0.0
          %v9267 = vmax.f32 %v9085, 0.0
          %v9268 = vmax.f32 %v9088, 0.0
          %v9269 = vmax.f32 %v9093, 0.0
          %v9270 = vmax.f32 %v9096, 0.0
          %v9271 = vmax.f32 %v9101, 0.0
          %v9272 = vmax.f32 %v9104, 0.0
          %v9273 = vmax.f32 %v9109, 0.0
          %v9274 = vmax.f32 %v9112, 0.0
          %v9275 = vmax.f32 %v9117, 0.0
          %v9276 = vmax.f32 %v9120, 0.0
          %v9277 = vmax.f32 %v9125, 0.0
          %v9278 = vmax.f32 %v9128, 0.0
          %v9279 = vmax.f32 %v9133, 0.0
          %v9280 = vmax.f32 %v9136, 0.0
          %v9281 = vmax.f32 %v9141, 0.0
          %v9282 = vmax.f32 %v9144, 0.0
          %v9283 = vmax.f32 %v9149, 0.0
          %v9284 = vmax.f32 %v9152, 0.0
          %v9285 = vmax.f32 %v9157, 0.0
          %v9286 = vmax.f32 %v9160, 0.0
          %v9287 = vmax.f32 %v9165, 0.0
          %v9288 = vmax.f32 %v9168, 0.0
          %v9289 = vmax.f32 %v9173, 0.0
          %v9290 = vmax.f32 %v9176, 0.0
          %v9291 = vmax.f32 %v9181, 0.0
          %v9292 = vmax.f32 %v9184, 0.0
          %v9293 = vmax.f32 %v9189, 0.0
          %v9294 = vmax.f32 %v9192, 0.0
          %v9295 = vmax.f32 %v9197, 0.0
          %v9296 = vmax.f32 %v9200, 0.0
          %v9297 = vmax.f32 %v9205, 0.0
          %v9298 = vmax.f32 %v9208, 0.0
          %v9299 = vmax.f32 %v9213, 0.0
          %v9300 = vmax.f32 %v9216, 0.0
          %v9301 = vmax.f32 %v9221, 0.0
          %v9302 = vmax.f32 %v9224, 0.0
          %v9303 = vmax.f32 %v9229, 0.0
          %v9304 = vmax.f32 %v9232, 0.0
          %v9305 = vmax.f32 %v9237, 0.0
          %v9306 = vmax.f32 %v9240, 0.0
          %v9307 = vpack.c.bf16 %v9244, %v9243
          %v9308 = vpack.c.bf16 %v9246, %v9245
          %v9309 = vpack.c.bf16 %v9248, %v9247
          %v9310 = vpack.c.bf16 %v9250, %v9249
          %v9311 = vpack.c.bf16 %v9252, %v9251
          %v9312 = vpack.c.bf16 %v9254, %v9253
          %v9313 = vpack.c.bf16 %v9256, %v9255
          %v9314 = vpack.c.bf16 %v9258, %v9257
          %v9315 = vpack.c.bf16 %v9260, %v9259
          %v9316 = vpack.c.bf16 %v9262, %v9261
          %v9317 = vpack.c.bf16 %v9264, %v9263
          %v9318 = vpack.c.bf16 %v9266, %v9265
          %v9319 = vpack.c.bf16 %v9268, %v9267
          %v9320 = vpack.c.bf16 %v9270, %v9269
          %v9321 = vpack.c.bf16 %v9272, %v9271
          %v9322 = vpack.c.bf16 %v9274, %v9273
          %v9323 = vpack.c.bf16 %v9276, %v9275
          %v9324 = vpack.c.bf16 %v9278, %v9277
          %v9325 = vpack.c.bf16 %v9280, %v9279
          %v9326 = vpack.c.bf16 %v9282, %v9281
          %v9327 = vpack.c.bf16 %v9284, %v9283
          %v9328 = vpack.c.bf16 %v9286, %v9285
          %v9329 = vpack.c.bf16 %v9288, %v9287
          %v9330 = vpack.c.bf16 %v9290, %v9289
          %v9331 = vpack.c.bf16 %v9292, %v9291
          %v9332 = vpack.c.bf16 %v9294, %v9293
          %v9333 = vpack.c.bf16 %v9296, %v9295
          %v9334 = vpack.c.bf16 %v9298, %v9297
          %v9335 = vpack.c.bf16 %v9300, %v9299
          %v9336 = vpack.c.bf16 %v9302, %v9301
          %v9337 = vpack.c.bf16 %v9304, %v9303
          %v9338 = vpack.c.bf16 %v9306, %v9305
          %v9339 = vld [vmem:[#allocation11] sm:$0xf]
          %v9340 = vld [vmem:[#allocation11 + $0x4] sm:$0xf]
          %v9341 = vld [vmem:[#allocation11 + $0x8] sm:$0xf]
          %v9342 = vld [vmem:[#allocation11 + $0xc] sm:$0xf]
          %v9343 = vld [vmem:[#allocation11 + $0x10] sm:$0xf]
          %v9344 = vld [vmem:[#allocation11 + $0x14] sm:$0xf]
          %v9345 = vld [vmem:[#allocation11 + $0x18] sm:$0xf]
          %v9346 = vld [vmem:[#allocation11 + $0x1c] sm:$0xf]
          %v9347 = vld [vmem:[#allocation11 + $0x20] sm:$0xf]
          %v9348 = vld [vmem:[#allocation11 + $0x24] sm:$0xf]
          %v9349 = vld [vmem:[#allocation11 + $0x28] sm:$0xf]
          %v9350 = vld [vmem:[#allocation11 + $0x2c] sm:$0xf]
          %v9351 = vld [vmem:[#allocation11 + $0x30] sm:$0xf]
          %v9352 = vld [vmem:[#allocation11 + $0x34] sm:$0xf]
          %v9353 = vld [vmem:[#allocation11 + $0x38] sm:$0xf]
          %v9354 = vld [vmem:[#allocation11 + $0x3c] sm:$0xf]
          %v9355 = vld [vmem:[#allocation13] sm:$0x1]
          %v9357 = vlaneseq
          %v9358 = vshrl.u32 %v9357, 7
          %v9359 = vsub.s32 0, %v9358
          %v9360 = vrot.slane %v9355, %v9359
          %v9378 = vunpack.c.l.b16 %v9339
          %v9379 = vunpack.c.l.b16 %v9340
          %v9380 = vunpack.c.l.b16 %v9341
          %v9381 = vunpack.c.l.b16 %v9342
          %v9382 = vunpack.c.l.b16 %v9343
          %v9383 = vunpack.c.l.b16 %v9344
          %v9384 = vunpack.c.l.b16 %v9345
          %v9385 = vunpack.c.l.b16 %v9346
          %v9386 = vunpack.c.l.b16 %v9347
          %v9387 = vunpack.c.l.b16 %v9348
          %v9388 = vunpack.c.l.b16 %v9349
          %v9389 = vunpack.c.l.b16 %v9350
          %v9390 = vunpack.c.l.b16 %v9351
          %v9391 = vunpack.c.l.b16 %v9352
          %v9392 = vunpack.c.l.b16 %v9353
          %v9393 = vunpack.c.l.b16 %v9354
          %v9394 = vpack.c.b16 %v9379, %v9378
          %v9395 = vpack.c.b16 %v9381, %v9380
          %v9396 = vpack.c.b16 %v9383, %v9382
          %v9397 = vpack.c.b16 %v9385, %v9384
          %v9398 = vpack.c.b16 %v9387, %v9386
          %v9399 = vpack.c.b16 %v9389, %v9388
          %v9400 = vpack.c.b16 %v9391, %v9390
          %v9401 = vpack.c.b16 %v9393, %v9392
          %9410 = vmatprep.subr.bf16.mxu0 0
          %9411 = vmatpush1.bf16.msra.mxu0 %v9401
          %9412 = vmatprep.subr.bf16.mxu0 0
          %9413 = vmatpush1.bf16.msra.mxu0 %v9400
          %9414 = vmatprep.subr.bf16.mxu0 0
          %9415 = vmatpush1.bf16.msra.mxu0 %v9399
          %9416 = vmatprep.subr.bf16.mxu0 0
          %9417 = vmatpush1.bf16.msra.mxu0 %v9398
          %9418 = vmatprep.subr.bf16.mxu0 0
          %9419 = vmatpush1.bf16.msra.mxu0 %v9397
          %9420 = vmatprep.subr.bf16.mxu0 0
          %9421 = vmatpush1.bf16.msra.mxu0 %v9396
          %9422 = vmatprep.subr.bf16.mxu0 0
          %9423 = vmatpush1.bf16.msra.mxu0 %v9395
          %9424 = vmatprep.subr.bf16.mxu0 0
          %9425 = vmatpush1.bf16.msra.mxu0 %v9394
          %9426 = vmatprep.subr.bf16.mxu0 0
          %9427 = vmatpush2.bf16.msra.mxu0 0
          %9428 = vmatprep.subr.bf16.mxu0 0
          %9429 = vmatpush2.bf16.msra.mxu0 0
          %9430 = vmatprep.subr.bf16.mxu0 0
          %9431 = vmatpush2.bf16.msra.mxu0 0
          %9432 = vmatprep.subr.bf16.mxu0 0
          %9433 = vmatpush2.bf16.msra.mxu0 0
          %9434 = vmatprep.subr.bf16.mxu0 0
          %9435 = vmatpush2.bf16.msra.mxu0 0
          %9436 = vmatprep.subr.bf16.mxu0 0
          %9437 = vmatpush2.bf16.msra.mxu0 0
          %9438 = vmatprep.subr.bf16.mxu0 0
          %9439 = vmatpush2.bf16.msra.mxu0 0
          %9440 = vmatprep.subr.bf16.mxu0 0
          %9441 = vmatpush2.bf16.msra.mxu0 0
          %9442 = vmatprep.mubr.bf16.mxu0 0
          %9443 = vmatmul.mubr.bf16.gmra.mxu0 %v9307
          %v9444 = vpop.f32.mrf.mxu0
          %v9445 = vadd.f32 %v9360, %v9444
          %v9446 = vpop.f32.mrf.mxu0
          %v9447 = vpop.f32.mrf.mxu0
          %v9448 = vadd.f32 %v9360, %v9447
          %v9449 = vpop.f32.mrf.mxu0
          %9450 = vmatprep.mubr.bf16.mxu0 0
          %9451 = vmatmul.mubr.bf16.gmra.mxu0 %v9308
          %v9452 = vpop.f32.mrf.mxu0
          %v9453 = vadd.f32 %v9360, %v9452
          %v9454 = vpop.f32.mrf.mxu0
          %v9455 = vpop.f32.mrf.mxu0
          %v9456 = vadd.f32 %v9360, %v9455
          %v9457 = vpop.f32.mrf.mxu0
          %9458 = vmatprep.mubr.bf16.mxu0 0
          %9459 = vmatmul.mubr.bf16.gmra.mxu0 %v9309
          %v9460 = vpop.f32.mrf.mxu0
          %v9461 = vadd.f32 %v9360, %v9460
          %v9462 = vpop.f32.mrf.mxu0
          %v9463 = vpop.f32.mrf.mxu0
          %v9464 = vadd.f32 %v9360, %v9463
          %v9465 = vpop.f32.mrf.mxu0
          %9466 = vmatprep.mubr.bf16.mxu0 0
          %9467 = vmatmul.mubr.bf16.gmra.mxu0 %v9310
          %v9468 = vpop.f32.mrf.mxu0
          %v9469 = vadd.f32 %v9360, %v9468
          %v9470 = vpop.f32.mrf.mxu0
          %v9471 = vpop.f32.mrf.mxu0
          %v9472 = vadd.f32 %v9360, %v9471
          %v9473 = vpop.f32.mrf.mxu0
          %9474 = vmatprep.mubr.bf16.mxu0 0
          %9475 = vmatmul.mubr.bf16.gmra.mxu0 %v9311
          %v9476 = vpop.f32.mrf.mxu0
          %v9477 = vadd.f32 %v9360, %v9476
          %v9478 = vpop.f32.mrf.mxu0
          %v9479 = vpop.f32.mrf.mxu0
          %v9480 = vadd.f32 %v9360, %v9479
          %v9481 = vpop.f32.mrf.mxu0
          %9482 = vmatprep.mubr.bf16.mxu0 0
          %9483 = vmatmul.mubr.bf16.gmra.mxu0 %v9312
          %v9484 = vpop.f32.mrf.mxu0
          %v9485 = vadd.f32 %v9360, %v9484
          %v9486 = vpop.f32.mrf.mxu0
          %v9487 = vpop.f32.mrf.mxu0
          %v9488 = vadd.f32 %v9360, %v9487
          %v9489 = vpop.f32.mrf.mxu0
          %9490 = vmatprep.mubr.bf16.mxu0 0
          %9491 = vmatmul.mubr.bf16.gmra.mxu0 %v9313
          %v9492 = vpop.f32.mrf.mxu0
          %v9493 = vadd.f32 %v9360, %v9492
          %v9494 = vpop.f32.mrf.mxu0
          %v9495 = vpop.f32.mrf.mxu0
          %v9496 = vadd.f32 %v9360, %v9495
          %v9497 = vpop.f32.mrf.mxu0
          %9498 = vmatprep.mubr.bf16.mxu0 0
          %9499 = vmatmul.mubr.bf16.gmra.mxu0 %v9314
          %v9500 = vpop.f32.mrf.mxu0
          %v9501 = vadd.f32 %v9360, %v9500
          %v9502 = vpop.f32.mrf.mxu0
          %v9503 = vpop.f32.mrf.mxu0
          %v9504 = vadd.f32 %v9360, %v9503
          %v9505 = vpop.f32.mrf.mxu0
          %9506 = vmatprep.mubr.bf16.mxu0 0
          %9507 = vmatmul.mubr.bf16.gmra.mxu0 %v9315
          %v9508 = vpop.f32.mrf.mxu0
          %v9509 = vadd.f32 %v9360, %v9508
          %v9510 = vpop.f32.mrf.mxu0
          %v9511 = vpop.f32.mrf.mxu0
          %v9512 = vadd.f32 %v9360, %v9511
          %v9513 = vpop.f32.mrf.mxu0
          %9514 = vmatprep.mubr.bf16.mxu0 0
          %9515 = vmatmul.mubr.bf16.gmra.mxu0 %v9316
          %v9516 = vpop.f32.mrf.mxu0
          %v9517 = vadd.f32 %v9360, %v9516
          %v9518 = vpop.f32.mrf.mxu0
          %v9519 = vpop.f32.mrf.mxu0
          %v9520 = vadd.f32 %v9360, %v9519
          %v9521 = vpop.f32.mrf.mxu0
          %9522 = vmatprep.mubr.bf16.mxu0 0
          %9523 = vmatmul.mubr.bf16.gmra.mxu0 %v9317
          %v9524 = vpop.f32.mrf.mxu0
          %v9525 = vadd.f32 %v9360, %v9524
          %v9526 = vpop.f32.mrf.mxu0
          %v9527 = vpop.f32.mrf.mxu0
          %v9528 = vadd.f32 %v9360, %v9527
          %v9529 = vpop.f32.mrf.mxu0
          %9530 = vmatprep.mubr.bf16.mxu0 0
          %9531 = vmatmul.mubr.bf16.gmra.mxu0 %v9318
          %v9532 = vpop.f32.mrf.mxu0
          %v9533 = vadd.f32 %v9360, %v9532
          %v9534 = vpop.f32.mrf.mxu0
          %v9535 = vpop.f32.mrf.mxu0
          %v9536 = vadd.f32 %v9360, %v9535
          %v9537 = vpop.f32.mrf.mxu0
          %9538 = vmatprep.mubr.bf16.mxu0 0
          %9539 = vmatmul.mubr.bf16.gmra.mxu0 %v9319
          %v9540 = vpop.f32.mrf.mxu0
          %v9541 = vadd.f32 %v9360, %v9540
          %v9542 = vpop.f32.mrf.mxu0
          %v9543 = vpop.f32.mrf.mxu0
          %v9544 = vadd.f32 %v9360, %v9543
          %v9545 = vpop.f32.mrf.mxu0
          %9546 = vmatprep.mubr.bf16.mxu0 0
          %9547 = vmatmul.mubr.bf16.gmra.mxu0 %v9320
          %v9548 = vpop.f32.mrf.mxu0
          %v9549 = vadd.f32 %v9360, %v9548
          %v9550 = vpop.f32.mrf.mxu0
          %v9551 = vpop.f32.mrf.mxu0
          %v9552 = vadd.f32 %v9360, %v9551
          %v9553 = vpop.f32.mrf.mxu0
          %9554 = vmatprep.mubr.bf16.mxu0 0
          %9555 = vmatmul.mubr.bf16.gmra.mxu0 %v9321
          %v9556 = vpop.f32.mrf.mxu0
          %v9557 = vadd.f32 %v9360, %v9556
          %v9558 = vpop.f32.mrf.mxu0
          %v9559 = vpop.f32.mrf.mxu0
          %v9560 = vadd.f32 %v9360, %v9559
          %v9561 = vpop.f32.mrf.mxu0
          %9562 = vmatprep.mubr.bf16.mxu0 0
          %9563 = vmatmul.mubr.bf16.gmra.mxu0 %v9322
          %v9564 = vpop.f32.mrf.mxu0
          %v9565 = vadd.f32 %v9360, %v9564
          %v9566 = vpop.f32.mrf.mxu0
          %v9567 = vpop.f32.mrf.mxu0
          %v9568 = vadd.f32 %v9360, %v9567
          %v9569 = vpop.f32.mrf.mxu0
          %9570 = vmatprep.mubr.bf16.mxu0 0
          %9571 = vmatmul.mubr.bf16.gmra.mxu0 %v9323
          %v9572 = vpop.f32.mrf.mxu0
          %v9573 = vadd.f32 %v9360, %v9572
          %v9574 = vpop.f32.mrf.mxu0
          %v9575 = vpop.f32.mrf.mxu0
          %v9576 = vadd.f32 %v9360, %v9575
          %v9577 = vpop.f32.mrf.mxu0
          %9578 = vmatprep.mubr.bf16.mxu0 0
          %9579 = vmatmul.mubr.bf16.gmra.mxu0 %v9324
          %v9580 = vpop.f32.mrf.mxu0
          %v9581 = vadd.f32 %v9360, %v9580
          %v9582 = vpop.f32.mrf.mxu0
          %v9583 = vpop.f32.mrf.mxu0
          %v9584 = vadd.f32 %v9360, %v9583
          %v9585 = vpop.f32.mrf.mxu0
          %9586 = vmatprep.mubr.bf16.mxu0 0
          %9587 = vmatmul.mubr.bf16.gmra.mxu0 %v9325
          %v9588 = vpop.f32.mrf.mxu0
          %v9589 = vadd.f32 %v9360, %v9588
          %v9590 = vpop.f32.mrf.mxu0
          %v9591 = vpop.f32.mrf.mxu0
          %v9592 = vadd.f32 %v9360, %v9591
          %v9593 = vpop.f32.mrf.mxu0
          %9594 = vmatprep.mubr.bf16.mxu0 0
          %9595 = vmatmul.mubr.bf16.gmra.mxu0 %v9326
          %v9596 = vpop.f32.mrf.mxu0
          %v9597 = vadd.f32 %v9360, %v9596
          %v9598 = vpop.f32.mrf.mxu0
          %v9599 = vpop.f32.mrf.mxu0
          %v9600 = vadd.f32 %v9360, %v9599
          %v9601 = vpop.f32.mrf.mxu0
          %9602 = vmatprep.mubr.bf16.mxu0 0
          %9603 = vmatmul.mubr.bf16.gmra.mxu0 %v9327
          %v9604 = vpop.f32.mrf.mxu0
          %v9605 = vadd.f32 %v9360, %v9604
          %v9606 = vpop.f32.mrf.mxu0
          %v9607 = vpop.f32.mrf.mxu0
          %v9608 = vadd.f32 %v9360, %v9607
          %v9609 = vpop.f32.mrf.mxu0
          %9610 = vmatprep.mubr.bf16.mxu0 0
          %9611 = vmatmul.mubr.bf16.gmra.mxu0 %v9328
          %v9612 = vpop.f32.mrf.mxu0
          %v9613 = vadd.f32 %v9360, %v9612
          %v9614 = vpop.f32.mrf.mxu0
          %v9615 = vpop.f32.mrf.mxu0
          %v9616 = vadd.f32 %v9360, %v9615
          %v9617 = vpop.f32.mrf.mxu0
          %9618 = vmatprep.mubr.bf16.mxu0 0
          %9619 = vmatmul.mubr.bf16.gmra.mxu0 %v9329
          %v9620 = vpop.f32.mrf.mxu0
          %v9621 = vadd.f32 %v9360, %v9620
          %v9622 = vpop.f32.mrf.mxu0
          %v9623 = vpop.f32.mrf.mxu0
          %v9624 = vadd.f32 %v9360, %v9623
          %v9625 = vpop.f32.mrf.mxu0
          %9626 = vmatprep.mubr.bf16.mxu0 0
          %9627 = vmatmul.mubr.bf16.gmra.mxu0 %v9330
          %v9628 = vpop.f32.mrf.mxu0
          %v9629 = vadd.f32 %v9360, %v9628
          %v9630 = vpop.f32.mrf.mxu0
          %v9631 = vpop.f32.mrf.mxu0
          %v9632 = vadd.f32 %v9360, %v9631
          %v9633 = vpop.f32.mrf.mxu0
          %9634 = vmatprep.mubr.bf16.mxu0 0
          %9635 = vmatmul.mubr.bf16.gmra.mxu0 %v9331
          %v9636 = vpop.f32.mrf.mxu0
          %v9637 = vadd.f32 %v9360, %v9636
          %v9638 = vpop.f32.mrf.mxu0
          %v9639 = vpop.f32.mrf.mxu0
          %v9640 = vadd.f32 %v9360, %v9639
          %v9641 = vpop.f32.mrf.mxu0
          %9642 = vmatprep.mubr.bf16.mxu0 0
          %9643 = vmatmul.mubr.bf16.gmra.mxu0 %v9332
          %v9644 = vpop.f32.mrf.mxu0
          %v9645 = vadd.f32 %v9360, %v9644
          %v9646 = vpop.f32.mrf.mxu0
          %v9647 = vpop.f32.mrf.mxu0
          %v9648 = vadd.f32 %v9360, %v9647
          %v9649 = vpop.f32.mrf.mxu0
          %9650 = vmatprep.mubr.bf16.mxu0 0
          %9651 = vmatmul.mubr.bf16.gmra.mxu0 %v9333
          %v9652 = vpop.f32.mrf.mxu0
          %v9653 = vadd.f32 %v9360, %v9652
          %v9654 = vpop.f32.mrf.mxu0
          %v9655 = vpop.f32.mrf.mxu0
          %v9656 = vadd.f32 %v9360, %v9655
          %v9657 = vpop.f32.mrf.mxu0
          %9658 = vmatprep.mubr.bf16.mxu0 0
          %9659 = vmatmul.mubr.bf16.gmra.mxu0 %v9334
          %v9660 = vpop.f32.mrf.mxu0
          %v9661 = vadd.f32 %v9360, %v9660
          %v9662 = vpop.f32.mrf.mxu0
          %v9663 = vpop.f32.mrf.mxu0
          %v9664 = vadd.f32 %v9360, %v9663
          %v9665 = vpop.f32.mrf.mxu0
          %9666 = vmatprep.mubr.bf16.mxu0 0
          %9667 = vmatmul.mubr.bf16.gmra.mxu0 %v9335
          %v9668 = vpop.f32.mrf.mxu0
          %v9669 = vadd.f32 %v9360, %v9668
          %v9670 = vpop.f32.mrf.mxu0
          %v9671 = vpop.f32.mrf.mxu0
          %v9672 = vadd.f32 %v9360, %v9671
          %v9673 = vpop.f32.mrf.mxu0
          %9674 = vmatprep.mubr.bf16.mxu0 0
          %9675 = vmatmul.mubr.bf16.gmra.mxu0 %v9336
          %v9676 = vpop.f32.mrf.mxu0
          %v9677 = vadd.f32 %v9360, %v9676
          %v9678 = vpop.f32.mrf.mxu0
          %v9679 = vpop.f32.mrf.mxu0
          %v9680 = vadd.f32 %v9360, %v9679
          %v9681 = vpop.f32.mrf.mxu0
          %9682 = vmatprep.mubr.bf16.mxu0 0
          %9683 = vmatmul.mubr.bf16.gmra.mxu0 %v9337
          %v9684 = vpop.f32.mrf.mxu0
          %v9685 = vadd.f32 %v9360, %v9684
          %v9686 = vpop.f32.mrf.mxu0
          %v9687 = vpop.f32.mrf.mxu0
          %v9688 = vadd.f32 %v9360, %v9687
          %v9689 = vpop.f32.mrf.mxu0
          %9690 = vmatprep.mubr.bf16.mxu0 0
          %9691 = vmatmul.mubr.bf16.gmra.mxu0 %v9338
          %v9692 = vpop.f32.mrf.mxu0
          %v9693 = vadd.f32 %v9360, %v9692
          %v9694 = vpop.f32.mrf.mxu0
          %v9695 = vpop.f32.mrf.mxu0
          %v9696 = vadd.f32 %v9360, %v9695
          %v9697 = vpop.f32.mrf.mxu0
          %9698 = vdwg.mxu0
          %v9699 = vlaneseq
          %v9700 = vand.u32 %v9699, 127
          %vm9701 = vcmp.ge.s32.totalorder %v9700, 50
          %vm9702 = vcmp.lt.s32.totalorder %v9700, 100
          %vm9703 = vmand %vm9701, %vm9702
          %v9704 = vmax.f32 %v9445, 0.0
          %v9705 = vmax.f32 %v9448, 0.0
          %v9706 = vmax.f32 %v9453, 0.0
          %v9707 = vmax.f32 %v9456, 0.0
          %v9708 = vmax.f32 %v9461, 0.0
          %v9709 = vmax.f32 %v9464, 0.0
          %v9710 = vmax.f32 %v9469, 0.0
          %v9711 = vmax.f32 %v9472, 0.0
          %v9712 = vmax.f32 %v9477, 0.0
          %v9713 = vmax.f32 %v9480, 0.0
          %v9714 = vmax.f32 %v9485, 0.0
          %v9715 = vmax.f32 %v9488, 0.0
          %v9716 = vmax.f32 %v9493, 0.0
          %v9717 = vmax.f32 %v9496, 0.0
          %v9718 = vmax.f32 %v9501, 0.0
          %v9719 = vmax.f32 %v9504, 0.0
          %v9720 = vmax.f32 %v9509, 0.0
          %v9721 = vmax.f32 %v9512, 0.0
          %v9722 = vmax.f32 %v9517, 0.0
          %v9723 = vmax.f32 %v9520, 0.0
          %v9724 = vmax.f32 %v9525, 0.0
          %v9725 = vmax.f32 %v9528, 0.0
          %v9726 = vmax.f32 %v9533, 0.0
          %v9727 = vmax.f32 %v9536, 0.0
          %v9728 = vmax.f32 %v9541, 0.0
          %v9729 = vmax.f32 %v9544, 0.0
          %v9730 = vmax.f32 %v9549, 0.0
          %v9731 = vmax.f32 %v9552, 0.0
          %v9732 = vmax.f32 %v9557, 0.0
          %v9733 = vmax.f32 %v9560, 0.0
          %v9734 = vmax.f32 %v9565, 0.0
          %v9735 = vmax.f32 %v9568, 0.0
          %v9736 = vmax.f32 %v9573, 0.0
          %v9737 = vmax.f32 %v9576, 0.0
          %v9738 = vmax.f32 %v9581, 0.0
          %v9739 = vmax.f32 %v9584, 0.0
          %v9740 = vmax.f32 %v9589, 0.0
          %v9741 = vmax.f32 %v9592, 0.0
          %v9742 = vmax.f32 %v9597, 0.0
          %v9743 = vmax.f32 %v9600, 0.0
          %v9744 = vmax.f32 %v9605, 0.0
          %v9745 = vmax.f32 %v9608, 0.0
          %v9746 = vmax.f32 %v9613, 0.0
          %v9747 = vmax.f32 %v9616, 0.0
          %v9748 = vmax.f32 %v9621, 0.0
          %v9749 = vmax.f32 %v9624, 0.0
          %v9750 = vmax.f32 %v9629, 0.0
          %v9751 = vmax.f32 %v9632, 0.0
          %v9752 = vmax.f32 %v9637, 0.0
          %v9753 = vmax.f32 %v9640, 0.0
          %v9754 = vmax.f32 %v9645, 0.0
          %v9755 = vmax.f32 %v9648, 0.0
          %v9756 = vmax.f32 %v9653, 0.0
          %v9757 = vmax.f32 %v9656, 0.0
          %v9758 = vmax.f32 %v9661, 0.0
          %v9759 = vmax.f32 %v9664, 0.0
          %v9760 = vmax.f32 %v9669, 0.0
          %v9761 = vmax.f32 %v9672, 0.0
          %v9762 = vmax.f32 %v9677, 0.0
          %v9763 = vmax.f32 %v9680, 0.0
          %v9764 = vmax.f32 %v9685, 0.0
          %v9765 = vmax.f32 %v9688, 0.0
          %v9766 = vmax.f32 %v9693, 0.0
          %v9767 = vmax.f32 %v9696, 0.0
          %v9768 = vand.u32 2147483647, %v9445
          %v9769 = vand.u32 2147483647, %v9448
          %v9770 = vand.u32 2147483647, %v9453
          %v9771 = vand.u32 2147483647, %v9456
          %v9772 = vand.u32 2147483647, %v9461
          %v9773 = vand.u32 2147483647, %v9464
          %v9774 = vand.u32 2147483647, %v9469
          %v9775 = vand.u32 2147483647, %v9472
          %v9776 = vand.u32 2147483647, %v9477
          %v9777 = vand.u32 2147483647, %v9480
          %v9778 = vand.u32 2147483647, %v9485
          %v9779 = vand.u32 2147483647, %v9488
          %v9780 = vand.u32 2147483647, %v9493
          %v9781 = vand.u32 2147483647, %v9496
          %v9782 = vand.u32 2147483647, %v9501
          %v9783 = vand.u32 2147483647, %v9504
          %v9784 = vand.u32 2147483647, %v9509
          %v9785 = vand.u32 2147483647, %v9512
          %v9786 = vand.u32 2147483647, %v9517
          %v9787 = vand.u32 2147483647, %v9520
          %v9788 = vand.u32 2147483647, %v9525
          %v9789 = vand.u32 2147483647, %v9528
          %v9790 = vand.u32 2147483647, %v9533
          %v9791 = vand.u32 2147483647, %v9536
          %v9792 = vand.u32 2147483647, %v9541
          %v9793 = vand.u32 2147483647, %v9544
          %v9794 = vand.u32 2147483647, %v9549
          %v9795 = vand.u32 2147483647, %v9552
          %v9796 = vand.u32 2147483647, %v9557
          %v9797 = vand.u32 2147483647, %v9560
          %v9798 = vand.u32 2147483647, %v9565
          %v9799 = vand.u32 2147483647, %v9568
          %v9800 = vand.u32 2147483647, %v9573
          %v9801 = vand.u32 2147483647, %v9576
          %v9802 = vand.u32 2147483647, %v9581
          %v9803 = vand.u32 2147483647, %v9584
          %v9804 = vand.u32 2147483647, %v9589
          %v9805 = vand.u32 2147483647, %v9592
          %v9806 = vand.u32 2147483647, %v9597
          %v9807 = vand.u32 2147483647, %v9600
          %v9808 = vand.u32 2147483647, %v9605
          %v9809 = vand.u32 2147483647, %v9608
          %v9810 = vand.u32 2147483647, %v9613
          %v9811 = vand.u32 2147483647, %v9616
          %v9812 = vand.u32 2147483647, %v9621
          %v9813 = vand.u32 2147483647, %v9624
          %v9814 = vand.u32 2147483647, %v9629
          %v9815 = vand.u32 2147483647, %v9632
          %v9816 = vand.u32 2147483647, %v9637
          %v9817 = vand.u32 2147483647, %v9640
          %v9818 = vand.u32 2147483647, %v9645
          %v9819 = vand.u32 2147483647, %v9648
          %v9820 = vand.u32 2147483647, %v9653
          %v9821 = vand.u32 2147483647, %v9656
          %v9822 = vand.u32 2147483647, %v9661
          %v9823 = vand.u32 2147483647, %v9664
          %v9824 = vand.u32 2147483647, %v9669
          %v9825 = vand.u32 2147483647, %v9672
          %v9826 = vand.u32 2147483647, %v9677
          %v9827 = vand.u32 2147483647, %v9680
          %v9828 = vand.u32 2147483647, %v9685
          %v9829 = vand.u32 2147483647, %v9688
          %v9830 = vand.u32 2147483647, %v9693
          %v9831 = vand.u32 2147483647, %v9696
          %v9832 = vsub.f32 0.0, %v9768
          %v9833 = vsub.f32 0.0, %v9769
          %v9834 = vsub.f32 0.0, %v9770
          %v9835 = vsub.f32 0.0, %v9771
          %v9836 = vsub.f32 0.0, %v9772
          %v9837 = vsub.f32 0.0, %v9773
          %v9838 = vsub.f32 0.0, %v9774
          %v9839 = vsub.f32 0.0, %v9775
          %v9840 = vsub.f32 0.0, %v9776
          %v9841 = vsub.f32 0.0, %v9777
          %v9842 = vsub.f32 0.0, %v9778
          %v9843 = vsub.f32 0.0, %v9779
          %v9844 = vsub.f32 0.0, %v9780
          %v9845 = vsub.f32 0.0, %v9781
          %v9846 = vsub.f32 0.0, %v9782
          %v9847 = vsub.f32 0.0, %v9783
          %v9848 = vsub.f32 0.0, %v9784
          %v9849 = vsub.f32 0.0, %v9785
          %v9850 = vsub.f32 0.0, %v9786
          %v9851 = vsub.f32 0.0, %v9787
          %v9852 = vsub.f32 0.0, %v9788
          %v9853 = vsub.f32 0.0, %v9789
          %v9854 = vsub.f32 0.0, %v9790
          %v9855 = vsub.f32 0.0, %v9791
          %v9856 = vsub.f32 0.0, %v9792
          %v9857 = vsub.f32 0.0, %v9793
          %v9858 = vsub.f32 0.0, %v9794
          %v9859 = vsub.f32 0.0, %v9795
          %v9860 = vsub.f32 0.0, %v9796
          %v9861 = vsub.f32 0.0, %v9797
          %v9862 = vsub.f32 0.0, %v9798
          %v9863 = vsub.f32 0.0, %v9799
          %v9864 = vsub.f32 0.0, %v9800
          %v9865 = vsub.f32 0.0, %v9801
          %v9866 = vsub.f32 0.0, %v9802
          %v9867 = vsub.f32 0.0, %v9803
          %v9868 = vsub.f32 0.0, %v9804
          %v9869 = vsub.f32 0.0, %v9805
          %v9870 = vsub.f32 0.0, %v9806
          %v9871 = vsub.f32 0.0, %v9807
          %v9872 = vsub.f32 0.0, %v9808
          %v9873 = vsub.f32 0.0, %v9809
          %v9874 = vsub.f32 0.0, %v9810
          %v9875 = vsub.f32 0.0, %v9811
          %v9876 = vsub.f32 0.0, %v9812
          %v9877 = vsub.f32 0.0, %v9813
          %v9878 = vsub.f32 0.0, %v9814
          %v9879 = vsub.f32 0.0, %v9815
          %v9880 = vsub.f32 0.0, %v9816
          %v9881 = vsub.f32 0.0, %v9817
          %v9882 = vsub.f32 0.0, %v9818
          %v9883 = vsub.f32 0.0, %v9819
          %v9884 = vsub.f32 0.0, %v9820
          %v9885 = vsub.f32 0.0, %v9821
          %v9886 = vsub.f32 0.0, %v9822
          %v9887 = vsub.f32 0.0, %v9823
          %v9888 = vsub.f32 0.0, %v9824
          %v9889 = vsub.f32 0.0, %v9825
          %v9890 = vsub.f32 0.0, %v9826
          %v9891 = vsub.f32 0.0, %v9827
          %v9892 = vsub.f32 0.0, %v9828
          %v9893 = vsub.f32 0.0, %v9829
          %v9894 = vsub.f32 0.0, %v9830
          %v9895 = vsub.f32 0.0, %v9831
          %v9896 = vmul.f32 %v9832, 1.442695
          %v9897 = vpow.pop %v9896
          %v9898 = vmul.f32 %v9833, 1.442695
          %v9899 = vpow.pop %v9898
          %v9900 = vmul.f32 %v9834, 1.442695
          %v9901 = vpow.pop %v9900
          %v9902 = vmul.f32 %v9835, 1.442695
          %v9903 = vpow.pop %v9902
          %v9904 = vmul.f32 %v9836, 1.442695
          %v9905 = vpow.pop %v9904
          %v9906 = vmul.f32 %v9837, 1.442695
          %v9907 = vpow.pop %v9906
          %v9908 = vmul.f32 %v9838, 1.442695
          %v9909 = vpow.pop %v9908
          %v9910 = vmul.f32 %v9839, 1.442695
          %v9911 = vpow.pop %v9910
          %v9912 = vmul.f32 %v9840, 1.442695
          %v9913 = vpow.pop %v9912
          %v9914 = vmul.f32 %v9841, 1.442695
          %v9915 = vpow.pop %v9914
          %v9916 = vmul.f32 %v9842, 1.442695
          %v9917 = vpow.pop %v9916
          %v9918 = vmul.f32 %v9843, 1.442695
          %v9919 = vpow.pop %v9918
          %v9920 = vmul.f32 %v9844, 1.442695
          %v9921 = vpow.pop %v9920
          %v9922 = vmul.f32 %v9845, 1.442695
          %v9923 = vpow.pop %v9922
          %v9924 = vmul.f32 %v9846, 1.442695
          %v9925 = vpow.pop %v9924
          %v9926 = vmul.f32 %v9847, 1.442695
          %v9927 = vpow.pop %v9926
          %v9928 = vmul.f32 %v9848, 1.442695
          %v9929 = vpow.pop %v9928
          %v9930 = vmul.f32 %v9849, 1.442695
          %v9931 = vpow.pop %v9930
          %v9932 = vmul.f32 %v9850, 1.442695
          %v9933 = vpow.pop %v9932
          %v9934 = vmul.f32 %v9851, 1.442695
          %v9935 = vpow.pop %v9934
          %v9936 = vmul.f32 %v9852, 1.442695
          %v9937 = vpow.pop %v9936
          %v9938 = vmul.f32 %v9853, 1.442695
          %v9939 = vpow.pop %v9938
          %v9940 = vmul.f32 %v9854, 1.442695
          %v9941 = vpow.pop %v9940
          %v9942 = vmul.f32 %v9855, 1.442695
          %v9943 = vpow.pop %v9942
          %v9944 = vmul.f32 %v9856, 1.442695
          %v9945 = vpow.pop %v9944
          %v9946 = vmul.f32 %v9857, 1.442695
          %v9947 = vpow.pop %v9946
          %v9948 = vmul.f32 %v9858, 1.442695
          %v9949 = vpow.pop %v9948
          %v9950 = vmul.f32 %v9859, 1.442695
          %v9951 = vpow.pop %v9950
          %v9952 = vmul.f32 %v9860, 1.442695
          %v9953 = vpow.pop %v9952
          %v9954 = vmul.f32 %v9861, 1.442695
          %v9955 = vpow.pop %v9954
          %v9956 = vmul.f32 %v9862, 1.442695
          %v9957 = vpow.pop %v9956
          %v9958 = vmul.f32 %v9863, 1.442695
          %v9959 = vpow.pop %v9958
          %v9960 = vmul.f32 %v9864, 1.442695
          %v9961 = vpow.pop %v9960
          %v9962 = vmul.f32 %v9865, 1.442695
          %v9963 = vpow.pop %v9962
          %v9964 = vmul.f32 %v9866, 1.442695
          %v9965 = vpow.pop %v9964
          %v9966 = vmul.f32 %v9867, 1.442695
          %v9967 = vpow.pop %v9966
          %v9968 = vmul.f32 %v9868, 1.442695
          %v9969 = vpow.pop %v9968
          %v9970 = vmul.f32 %v9869, 1.442695
          %v9971 = vpow.pop %v9970
          %v9972 = vmul.f32 %v9870, 1.442695
          %v9973 = vpow.pop %v9972
          %v9974 = vmul.f32 %v9871, 1.442695
          %v9975 = vpow.pop %v9974
          %v9976 = vmul.f32 %v9872, 1.442695
          %v9977 = vpow.pop %v9976
          %v9978 = vmul.f32 %v9873, 1.442695
          %v9979 = vpow.pop %v9978
          %v9980 = vmul.f32 %v9874, 1.442695
          %v9981 = vpow.pop %v9980
          %v9982 = vmul.f32 %v9875, 1.442695
          %v9983 = vpow.pop %v9982
          %v9984 = vmul.f32 %v9876, 1.442695
          %v9985 = vpow.pop %v9984
          %v9986 = vmul.f32 %v9877, 1.442695
          %v9987 = vpow.pop %v9986
          %v9988 = vmul.f32 %v9878, 1.442695
          %v9989 = vpow.pop %v9988
          %v9990 = vmul.f32 %v9879, 1.442695
          %v9991 = vpow.pop %v9990
          %v9992 = vmul.f32 %v9880, 1.442695
          %v9993 = vpow.pop %v9992
          %v9994 = vmul.f32 %v9881, 1.442695
          %v9995 = vpow.pop %v9994
          %v9996 = vmul.f32 %v9882, 1.442695
          %v9997 = vpow.pop %v9996
          %v9998 = vmul.f32 %v9883, 1.442695
          %v9999 = vpow.pop %v9998
          %v10000 = vmul.f32 %v9884, 1.442695
          %v10001 = vpow.pop %v10000
          %v10002 = vmul.f32 %v9885, 1.442695
          %v10003 = vpow.pop %v10002
          %v10004 = vmul.f32 %v9886, 1.442695
          %v10005 = vpow.pop %v10004
          %v10006 = vmul.f32 %v9887, 1.442695
          %v10007 = vpow.pop %v10006
          %v10008 = vmul.f32 %v9888, 1.442695
          %v10009 = vpow.pop %v10008
          %v10010 = vmul.f32 %v9889, 1.442695
          %v10011 = vpow.pop %v10010
          %v10012 = vmul.f32 %v9890, 1.442695
          %v10013 = vpow.pop %v10012
          %v10014 = vmul.f32 %v9891, 1.442695
          %v10015 = vpow.pop %v10014
          %v10016 = vmul.f32 %v9892, 1.442695
          %v10017 = vpow.pop %v10016
          %v10018 = vmul.f32 %v9893, 1.442695
          %v10019 = vpow.pop %v10018
          %v10020 = vmul.f32 %v9894, 1.442695
          %v10021 = vpow.pop %v10020
          %v10022 = vmul.f32 %v9895, 1.442695
          %v10023 = vpow.pop %v10022
          %v10024 = vadd.f32 %v9897, 1.0
          %v10025 = vlog2.pop %v10024
          %v10026 = vmul.f32 %v10025, 0.6931472
          %v10027 = vmul.f32 -0.5, %v9897
          %v10028 = vadd.f32 %v10027, 1.0
          %v10029 = vmul.f32 %v10028, %v9897
          %v10030 = vand.u32 2147483647, %v9897
          %vm10031 = vcmp.lt.f32.partialorder %v10030, 0.0004427343
          %v10032 = vsel %vm10031, %v10029, %v10026
          %v10033 = vadd.f32 %v9899, 1.0
          %v10034 = vlog2.pop %v10033
          %v10035 = vmul.f32 %v10034, 0.6931472
          %v10036 = vmul.f32 -0.5, %v9899
          %v10037 = vadd.f32 %v10036, 1.0
          %v10038 = vmul.f32 %v10037, %v9899
          %v10039 = vand.u32 2147483647, %v9899
          %vm10040 = vcmp.lt.f32.partialorder %v10039, 0.0004427343
          %v10041 = vsel %vm10040, %v10038, %v10035
          %v10042 = vadd.f32 %v9901, 1.0
          %v10043 = vlog2.pop %v10042
          %v10044 = vmul.f32 %v10043, 0.6931472
          %v10045 = vmul.f32 -0.5, %v9901
          %v10046 = vadd.f32 %v10045, 1.0
          %v10047 = vmul.f32 %v10046, %v9901
          %v10048 = vand.u32 2147483647, %v9901
          %vm10049 = vcmp.lt.f32.partialorder %v10048, 0.0004427343
          %v10050 = vsel %vm10049, %v10047, %v10044
          %v10051 = vadd.f32 %v9903, 1.0
          %v10052 = vlog2.pop %v10051
          %v10053 = vmul.f32 %v10052, 0.6931472
          %v10054 = vmul.f32 -0.5, %v9903
          %v10055 = vadd.f32 %v10054, 1.0
          %v10056 = vmul.f32 %v10055, %v9903
          %v10057 = vand.u32 2147483647, %v9903
          %vm10058 = vcmp.lt.f32.partialorder %v10057, 0.0004427343
          %v10059 = vsel %vm10058, %v10056, %v10053
          %v10060 = vadd.f32 %v9905, 1.0
          %v10061 = vlog2.pop %v10060
          %v10062 = vmul.f32 %v10061, 0.6931472
          %v10063 = vmul.f32 -0.5, %v9905
          %v10064 = vadd.f32 %v10063, 1.0
          %v10065 = vmul.f32 %v10064, %v9905
          %v10066 = vand.u32 2147483647, %v9905
          %vm10067 = vcmp.lt.f32.partialorder %v10066, 0.0004427343
          %v10068 = vsel %vm10067, %v10065, %v10062
          %v10069 = vadd.f32 %v9907, 1.0
          %v10070 = vlog2.pop %v10069
          %v10071 = vmul.f32 %v10070, 0.6931472
          %v10072 = vmul.f32 -0.5, %v9907
          %v10073 = vadd.f32 %v10072, 1.0
          %v10074 = vmul.f32 %v10073, %v9907
          %v10075 = vand.u32 2147483647, %v9907
          %vm10076 = vcmp.lt.f32.partialorder %v10075, 0.0004427343
          %v10077 = vsel %vm10076, %v10074, %v10071
          %v10078 = vadd.f32 %v9909, 1.0
          %v10079 = vlog2.pop %v10078
          %v10080 = vmul.f32 %v10079, 0.6931472
          %v10081 = vmul.f32 -0.5, %v9909
          %v10082 = vadd.f32 %v10081, 1.0
          %v10083 = vmul.f32 %v10082, %v9909
          %v10084 = vand.u32 2147483647, %v9909
          %vm10085 = vcmp.lt.f32.partialorder %v10084, 0.0004427343
          %v10086 = vsel %vm10085, %v10083, %v10080
          %v10087 = vadd.f32 %v9911, 1.0
          %v10088 = vlog2.pop %v10087
          %v10089 = vmul.f32 %v10088, 0.6931472
          %v10090 = vmul.f32 -0.5, %v9911
          %v10091 = vadd.f32 %v10090, 1.0
          %v10092 = vmul.f32 %v10091, %v9911
          %v10093 = vand.u32 2147483647, %v9911
          %vm10094 = vcmp.lt.f32.partialorder %v10093, 0.0004427343
          %v10095 = vsel %vm10094, %v10092, %v10089
          %v10096 = vadd.f32 %v9913, 1.0
          %v10097 = vlog2.pop %v10096
          %v10098 = vmul.f32 %v10097, 0.6931472
          %v10099 = vmul.f32 -0.5, %v9913
          %v10100 = vadd.f32 %v10099, 1.0
          %v10101 = vmul.f32 %v10100, %v9913
          %v10102 = vand.u32 2147483647, %v9913
          %vm10103 = vcmp.lt.f32.partialorder %v10102, 0.0004427343
          %v10104 = vsel %vm10103, %v10101, %v10098
          %v10105 = vadd.f32 %v9915, 1.0
          %v10106 = vlog2.pop %v10105
          %v10107 = vmul.f32 %v10106, 0.6931472
          %v10108 = vmul.f32 -0.5, %v9915
          %v10109 = vadd.f32 %v10108, 1.0
          %v10110 = vmul.f32 %v10109, %v9915
          %v10111 = vand.u32 2147483647, %v9915
          %vm10112 = vcmp.lt.f32.partialorder %v10111, 0.0004427343
          %v10113 = vsel %vm10112, %v10110, %v10107
          %v10114 = vadd.f32 %v9917, 1.0
          %v10115 = vlog2.pop %v10114
          %v10116 = vmul.f32 %v10115, 0.6931472
          %v10117 = vmul.f32 -0.5, %v9917
          %v10118 = vadd.f32 %v10117, 1.0
          %v10119 = vmul.f32 %v10118, %v9917
          %v10120 = vand.u32 2147483647, %v9917
          %vm10121 = vcmp.lt.f32.partialorder %v10120, 0.0004427343
          %v10122 = vsel %vm10121, %v10119, %v10116
          %v10123 = vadd.f32 %v9919, 1.0
          %v10124 = vlog2.pop %v10123
          %v10125 = vmul.f32 %v10124, 0.6931472
          %v10126 = vmul.f32 -0.5, %v9919
          %v10127 = vadd.f32 %v10126, 1.0
          %v10128 = vmul.f32 %v10127, %v9919
          %v10129 = vand.u32 2147483647, %v9919
          %vm10130 = vcmp.lt.f32.partialorder %v10129, 0.0004427343
          %v10131 = vsel %vm10130, %v10128, %v10125
          %v10132 = vadd.f32 %v9921, 1.0
          %v10133 = vlog2.pop %v10132
          %v10134 = vmul.f32 %v10133, 0.6931472
          %v10135 = vmul.f32 -0.5, %v9921
          %v10136 = vadd.f32 %v10135, 1.0
          %v10137 = vmul.f32 %v10136, %v9921
          %v10138 = vand.u32 2147483647, %v9921
          %vm10139 = vcmp.lt.f32.partialorder %v10138, 0.0004427343
          %v10140 = vsel %vm10139, %v10137, %v10134
          %v10141 = vadd.f32 %v9923, 1.0
          %v10142 = vlog2.pop %v10141
          %v10143 = vmul.f32 %v10142, 0.6931472
          %v10144 = vmul.f32 -0.5, %v9923
          %v10145 = vadd.f32 %v10144, 1.0
          %v10146 = vmul.f32 %v10145, %v9923
          %v10147 = vand.u32 2147483647, %v9923
          %vm10148 = vcmp.lt.f32.partialorder %v10147, 0.0004427343
          %v10149 = vsel %vm10148, %v10146, %v10143
          %v10150 = vadd.f32 %v9925, 1.0
          %v10151 = vlog2.pop %v10150
          %v10152 = vmul.f32 %v10151, 0.6931472
          %v10153 = vmul.f32 -0.5, %v9925
          %v10154 = vadd.f32 %v10153, 1.0
          %v10155 = vmul.f32 %v10154, %v9925
          %v10156 = vand.u32 2147483647, %v9925
          %vm10157 = vcmp.lt.f32.partialorder %v10156, 0.0004427343
          %v10158 = vsel %vm10157, %v10155, %v10152
          %v10159 = vadd.f32 %v9927, 1.0
          %v10160 = vlog2.pop %v10159
          %v10161 = vmul.f32 %v10160, 0.6931472
          %v10162 = vmul.f32 -0.5, %v9927
          %v10163 = vadd.f32 %v10162, 1.0
          %v10164 = vmul.f32 %v10163, %v9927
          %v10165 = vand.u32 2147483647, %v9927
          %vm10166 = vcmp.lt.f32.partialorder %v10165, 0.0004427343
          %v10167 = vsel %vm10166, %v10164, %v10161
          %v10168 = vadd.f32 %v9929, 1.0
          %v10169 = vlog2.pop %v10168
          %v10170 = vmul.f32 %v10169, 0.6931472
          %v10171 = vmul.f32 -0.5, %v9929
          %v10172 = vadd.f32 %v10171, 1.0
          %v10173 = vmul.f32 %v10172, %v9929
          %v10174 = vand.u32 2147483647, %v9929
          %vm10175 = vcmp.lt.f32.partialorder %v10174, 0.0004427343
          %v10176 = vsel %vm10175, %v10173, %v10170
          %v10177 = vadd.f32 %v9931, 1.0
          %v10178 = vlog2.pop %v10177
          %v10179 = vmul.f32 %v10178, 0.6931472
          %v10180 = vmul.f32 -0.5, %v9931
          %v10181 = vadd.f32 %v10180, 1.0
          %v10182 = vmul.f32 %v10181, %v9931
          %v10183 = vand.u32 2147483647, %v9931
          %vm10184 = vcmp.lt.f32.partialorder %v10183, 0.0004427343
          %v10185 = vsel %vm10184, %v10182, %v10179
          %v10186 = vadd.f32 %v9933, 1.0
          %v10187 = vlog2.pop %v10186
          %v10188 = vmul.f32 %v10187, 0.6931472
          %v10189 = vmul.f32 -0.5, %v9933
          %v10190 = vadd.f32 %v10189, 1.0
          %v10191 = vmul.f32 %v10190, %v9933
          %v10192 = vand.u32 2147483647, %v9933
          %vm10193 = vcmp.lt.f32.partialorder %v10192, 0.0004427343
          %v10194 = vsel %vm10193, %v10191, %v10188
          %v10195 = vadd.f32 %v9935, 1.0
          %v10196 = vlog2.pop %v10195
          %v10197 = vmul.f32 %v10196, 0.6931472
          %v10198 = vmul.f32 -0.5, %v9935
          %v10199 = vadd.f32 %v10198, 1.0
          %v10200 = vmul.f32 %v10199, %v9935
          %v10201 = vand.u32 2147483647, %v9935
          %vm10202 = vcmp.lt.f32.partialorder %v10201, 0.0004427343
          %v10203 = vsel %vm10202, %v10200, %v10197
          %v10204 = vadd.f32 %v9937, 1.0
          %v10205 = vlog2.pop %v10204
          %v10206 = vmul.f32 %v10205, 0.6931472
          %v10207 = vmul.f32 -0.5, %v9937
          %v10208 = vadd.f32 %v10207, 1.0
          %v10209 = vmul.f32 %v10208, %v9937
          %v10210 = vand.u32 2147483647, %v9937
          %vm10211 = vcmp.lt.f32.partialorder %v10210, 0.0004427343
          %v10212 = vsel %vm10211, %v10209, %v10206
          %v10213 = vadd.f32 %v9939, 1.0
          %v10214 = vlog2.pop %v10213
          %v10215 = vmul.f32 %v10214, 0.6931472
          %v10216 = vmul.f32 -0.5, %v9939
          %v10217 = vadd.f32 %v10216, 1.0
          %v10218 = vmul.f32 %v10217, %v9939
          %v10219 = vand.u32 2147483647, %v9939
          %vm10220 = vcmp.lt.f32.partialorder %v10219, 0.0004427343
          %v10221 = vsel %vm10220, %v10218, %v10215
          %v10222 = vadd.f32 %v9941, 1.0
          %v10223 = vlog2.pop %v10222
          %v10224 = vmul.f32 %v10223, 0.6931472
          %v10225 = vmul.f32 -0.5, %v9941
          %v10226 = vadd.f32 %v10225, 1.0
          %v10227 = vmul.f32 %v10226, %v9941
          %v10228 = vand.u32 2147483647, %v9941
          %vm10229 = vcmp.lt.f32.partialorder %v10228, 0.0004427343
          %v10230 = vsel %vm10229, %v10227, %v10224
          %v10231 = vadd.f32 %v9943, 1.0
          %v10232 = vlog2.pop %v10231
          %v10233 = vmul.f32 %v10232, 0.6931472
          %v10234 = vmul.f32 -0.5, %v9943
          %v10235 = vadd.f32 %v10234, 1.0
          %v10236 = vmul.f32 %v10235, %v9943
          %v10237 = vand.u32 2147483647, %v9943
          %vm10238 = vcmp.lt.f32.partialorder %v10237, 0.0004427343
          %v10239 = vsel %vm10238, %v10236, %v10233
          %v10240 = vadd.f32 %v9945, 1.0
          %v10241 = vlog2.pop %v10240
          %v10242 = vmul.f32 %v10241, 0.6931472
          %v10243 = vmul.f32 -0.5, %v9945
          %v10244 = vadd.f32 %v10243, 1.0
          %v10245 = vmul.f32 %v10244, %v9945
          %v10246 = vand.u32 2147483647, %v9945
          %vm10247 = vcmp.lt.f32.partialorder %v10246, 0.0004427343
          %v10248 = vsel %vm10247, %v10245, %v10242
          %v10249 = vadd.f32 %v9947, 1.0
          %v10250 = vlog2.pop %v10249
          %v10251 = vmul.f32 %v10250, 0.6931472
          %v10252 = vmul.f32 -0.5, %v9947
          %v10253 = vadd.f32 %v10252, 1.0
          %v10254 = vmul.f32 %v10253, %v9947
          %v10255 = vand.u32 2147483647, %v9947
          %vm10256 = vcmp.lt.f32.partialorder %v10255, 0.0004427343
          %v10257 = vsel %vm10256, %v10254, %v10251
          %v10258 = vadd.f32 %v9949, 1.0
          %v10259 = vlog2.pop %v10258
          %v10260 = vmul.f32 %v10259, 0.6931472
          %v10261 = vmul.f32 -0.5, %v9949
          %v10262 = vadd.f32 %v10261, 1.0
          %v10263 = vmul.f32 %v10262, %v9949
          %v10264 = vand.u32 2147483647, %v9949
          %vm10265 = vcmp.lt.f32.partialorder %v10264, 0.0004427343
          %v10266 = vsel %vm10265, %v10263, %v10260
          %v10267 = vadd.f32 %v9951, 1.0
          %v10268 = vlog2.pop %v10267
          %v10269 = vmul.f32 %v10268, 0.6931472
          %v10270 = vmul.f32 -0.5, %v9951
          %v10271 = vadd.f32 %v10270, 1.0
          %v10272 = vmul.f32 %v10271, %v9951
          %v10273 = vand.u32 2147483647, %v9951
          %vm10274 = vcmp.lt.f32.partialorder %v10273, 0.0004427343
          %v10275 = vsel %vm10274, %v10272, %v10269
          %v10276 = vadd.f32 %v9953, 1.0
          %v10277 = vlog2.pop %v10276
          %v10278 = vmul.f32 %v10277, 0.6931472
          %v10279 = vmul.f32 -0.5, %v9953
          %v10280 = vadd.f32 %v10279, 1.0
          %v10281 = vmul.f32 %v10280, %v9953
          %v10282 = vand.u32 2147483647, %v9953
          %vm10283 = vcmp.lt.f32.partialorder %v10282, 0.0004427343
          %v10284 = vsel %vm10283, %v10281, %v10278
          %v10285 = vadd.f32 %v9955, 1.0
          %v10286 = vlog2.pop %v10285
          %v10287 = vmul.f32 %v10286, 0.6931472
          %v10288 = vmul.f32 -0.5, %v9955
          %v10289 = vadd.f32 %v10288, 1.0
          %v10290 = vmul.f32 %v10289, %v9955
          %v10291 = vand.u32 2147483647, %v9955
          %vm10292 = vcmp.lt.f32.partialorder %v10291, 0.0004427343
          %v10293 = vsel %vm10292, %v10290, %v10287
          %v10294 = vadd.f32 %v9957, 1.0
          %v10295 = vlog2.pop %v10294
          %v10296 = vmul.f32 %v10295, 0.6931472
          %v10297 = vmul.f32 -0.5, %v9957
          %v10298 = vadd.f32 %v10297, 1.0
          %v10299 = vmul.f32 %v10298, %v9957
          %v10300 = vand.u32 2147483647, %v9957
          %vm10301 = vcmp.lt.f32.partialorder %v10300, 0.0004427343
          %v10302 = vsel %vm10301, %v10299, %v10296
          %v10303 = vadd.f32 %v9959, 1.0
          %v10304 = vlog2.pop %v10303
          %v10305 = vmul.f32 %v10304, 0.6931472
          %v10306 = vmul.f32 -0.5, %v9959
          %v10307 = vadd.f32 %v10306, 1.0
          %v10308 = vmul.f32 %v10307, %v9959
          %v10309 = vand.u32 2147483647, %v9959
          %vm10310 = vcmp.lt.f32.partialorder %v10309, 0.0004427343
          %v10311 = vsel %vm10310, %v10308, %v10305
          %v10312 = vadd.f32 %v9961, 1.0
          %v10313 = vlog2.pop %v10312
          %v10314 = vmul.f32 %v10313, 0.6931472
          %v10315 = vmul.f32 -0.5, %v9961
          %v10316 = vadd.f32 %v10315, 1.0
          %v10317 = vmul.f32 %v10316, %v9961
          %v10318 = vand.u32 2147483647, %v9961
          %vm10319 = vcmp.lt.f32.partialorder %v10318, 0.0004427343
          %v10320 = vsel %vm10319, %v10317, %v10314
          %v10321 = vadd.f32 %v9963, 1.0
          %v10322 = vlog2.pop %v10321
          %v10323 = vmul.f32 %v10322, 0.6931472
          %v10324 = vmul.f32 -0.5, %v9963
          %v10325 = vadd.f32 %v10324, 1.0
          %v10326 = vmul.f32 %v10325, %v9963
          %v10327 = vand.u32 2147483647, %v9963
          %vm10328 = vcmp.lt.f32.partialorder %v10327, 0.0004427343
          %v10329 = vsel %vm10328, %v10326, %v10323
          %v10330 = vadd.f32 %v9965, 1.0
          %v10331 = vlog2.pop %v10330
          %v10332 = vmul.f32 %v10331, 0.6931472
          %v10333 = vmul.f32 -0.5, %v9965
          %v10334 = vadd.f32 %v10333, 1.0
          %v10335 = vmul.f32 %v10334, %v9965
          %v10336 = vand.u32 2147483647, %v9965
          %vm10337 = vcmp.lt.f32.partialorder %v10336, 0.0004427343
          %v10338 = vsel %vm10337, %v10335, %v10332
          %v10339 = vadd.f32 %v9967, 1.0
          %v10340 = vlog2.pop %v10339
          %v10341 = vmul.f32 %v10340, 0.6931472
          %v10342 = vmul.f32 -0.5, %v9967
          %v10343 = vadd.f32 %v10342, 1.0
          %v10344 = vmul.f32 %v10343, %v9967
          %v10345 = vand.u32 2147483647, %v9967
          %vm10346 = vcmp.lt.f32.partialorder %v10345, 0.0004427343
          %v10347 = vsel %vm10346, %v10344, %v10341
          %v10348 = vadd.f32 %v9969, 1.0
          %v10349 = vlog2.pop %v10348
          %v10350 = vmul.f32 %v10349, 0.6931472
          %v10351 = vmul.f32 -0.5, %v9969
          %v10352 = vadd.f32 %v10351, 1.0
          %v10353 = vmul.f32 %v10352, %v9969
          %v10354 = vand.u32 2147483647, %v9969
          %vm10355 = vcmp.lt.f32.partialorder %v10354, 0.0004427343
          %v10356 = vsel %vm10355, %v10353, %v10350
          %v10357 = vadd.f32 %v9971, 1.0
          %v10358 = vlog2.pop %v10357
          %v10359 = vmul.f32 %v10358, 0.6931472
          %v10360 = vmul.f32 -0.5, %v9971
          %v10361 = vadd.f32 %v10360, 1.0
          %v10362 = vmul.f32 %v10361, %v9971
          %v10363 = vand.u32 2147483647, %v9971
          %vm10364 = vcmp.lt.f32.partialorder %v10363, 0.0004427343
          %v10365 = vsel %vm10364, %v10362, %v10359
          %v10366 = vadd.f32 %v9973, 1.0
          %v10367 = vlog2.pop %v10366
          %v10368 = vmul.f32 %v10367, 0.6931472
          %v10369 = vmul.f32 -0.5, %v9973
          %v10370 = vadd.f32 %v10369, 1.0
          %v10371 = vmul.f32 %v10370, %v9973
          %v10372 = vand.u32 2147483647, %v9973
          %vm10373 = vcmp.lt.f32.partialorder %v10372, 0.0004427343
          %v10374 = vsel %vm10373, %v10371, %v10368
          %v10375 = vadd.f32 %v9975, 1.0
          %v10376 = vlog2.pop %v10375
          %v10377 = vmul.f32 %v10376, 0.6931472
          %v10378 = vmul.f32 -0.5, %v9975
          %v10379 = vadd.f32 %v10378, 1.0
          %v10380 = vmul.f32 %v10379, %v9975
          %v10381 = vand.u32 2147483647, %v9975
          %vm10382 = vcmp.lt.f32.partialorder %v10381, 0.0004427343
          %v10383 = vsel %vm10382, %v10380, %v10377
          %v10384 = vadd.f32 %v9977, 1.0
          %v10385 = vlog2.pop %v10384
          %v10386 = vmul.f32 %v10385, 0.6931472
          %v10387 = vmul.f32 -0.5, %v9977
          %v10388 = vadd.f32 %v10387, 1.0
          %v10389 = vmul.f32 %v10388, %v9977
          %v10390 = vand.u32 2147483647, %v9977
          %vm10391 = vcmp.lt.f32.partialorder %v10390, 0.0004427343
          %v10392 = vsel %vm10391, %v10389, %v10386
          %v10393 = vadd.f32 %v9979, 1.0
          %v10394 = vlog2.pop %v10393
          %v10395 = vmul.f32 %v10394, 0.6931472
          %v10396 = vmul.f32 -0.5, %v9979
          %v10397 = vadd.f32 %v10396, 1.0
          %v10398 = vmul.f32 %v10397, %v9979
          %v10399 = vand.u32 2147483647, %v9979
          %vm10400 = vcmp.lt.f32.partialorder %v10399, 0.0004427343
          %v10401 = vsel %vm10400, %v10398, %v10395
          %v10402 = vadd.f32 %v9981, 1.0
          %v10403 = vlog2.pop %v10402
          %v10404 = vmul.f32 %v10403, 0.6931472
          %v10405 = vmul.f32 -0.5, %v9981
          %v10406 = vadd.f32 %v10405, 1.0
          %v10407 = vmul.f32 %v10406, %v9981
          %v10408 = vand.u32 2147483647, %v9981
          %vm10409 = vcmp.lt.f32.partialorder %v10408, 0.0004427343
          %v10410 = vsel %vm10409, %v10407, %v10404
          %v10411 = vadd.f32 %v9983, 1.0
          %v10412 = vlog2.pop %v10411
          %v10413 = vmul.f32 %v10412, 0.6931472
          %v10414 = vmul.f32 -0.5, %v9983
          %v10415 = vadd.f32 %v10414, 1.0
          %v10416 = vmul.f32 %v10415, %v9983
          %v10417 = vand.u32 2147483647, %v9983
          %vm10418 = vcmp.lt.f32.partialorder %v10417, 0.0004427343
          %v10419 = vsel %vm10418, %v10416, %v10413
          %v10420 = vadd.f32 %v9985, 1.0
          %v10421 = vlog2.pop %v10420
          %v10422 = vmul.f32 %v10421, 0.6931472
          %v10423 = vmul.f32 -0.5, %v9985
          %v10424 = vadd.f32 %v10423, 1.0
          %v10425 = vmul.f32 %v10424, %v9985
          %v10426 = vand.u32 2147483647, %v9985
          %vm10427 = vcmp.lt.f32.partialorder %v10426, 0.0004427343
          %v10428 = vsel %vm10427, %v10425, %v10422
          %v10429 = vadd.f32 %v9987, 1.0
          %v10430 = vlog2.pop %v10429
          %v10431 = vmul.f32 %v10430, 0.6931472
          %v10432 = vmul.f32 -0.5, %v9987
          %v10433 = vadd.f32 %v10432, 1.0
          %v10434 = vmul.f32 %v10433, %v9987
          %v10435 = vand.u32 2147483647, %v9987
          %vm10436 = vcmp.lt.f32.partialorder %v10435, 0.0004427343
          %v10437 = vsel %vm10436, %v10434, %v10431
          %v10438 = vadd.f32 %v9989, 1.0
          %v10439 = vlog2.pop %v10438
          %v10440 = vmul.f32 %v10439, 0.6931472
          %v10441 = vmul.f32 -0.5, %v9989
          %v10442 = vadd.f32 %v10441, 1.0
          %v10443 = vmul.f32 %v10442, %v9989
          %v10444 = vand.u32 2147483647, %v9989
          %vm10445 = vcmp.lt.f32.partialorder %v10444, 0.0004427343
          %v10446 = vsel %vm10445, %v10443, %v10440
          %v10447 = vadd.f32 %v9991, 1.0
          %v10448 = vlog2.pop %v10447
          %v10449 = vmul.f32 %v10448, 0.6931472
          %v10450 = vmul.f32 -0.5, %v9991
          %v10451 = vadd.f32 %v10450, 1.0
          %v10452 = vmul.f32 %v10451, %v9991
          %v10453 = vand.u32 2147483647, %v9991
          %vm10454 = vcmp.lt.f32.partialorder %v10453, 0.0004427343
          %v10455 = vsel %vm10454, %v10452, %v10449
          %v10456 = vadd.f32 %v9993, 1.0
          %v10457 = vlog2.pop %v10456
          %v10458 = vmul.f32 %v10457, 0.6931472
          %v10459 = vmul.f32 -0.5, %v9993
          %v10460 = vadd.f32 %v10459, 1.0
          %v10461 = vmul.f32 %v10460, %v9993
          %v10462 = vand.u32 2147483647, %v9993
          %vm10463 = vcmp.lt.f32.partialorder %v10462, 0.0004427343
          %v10464 = vsel %vm10463, %v10461, %v10458
          %v10465 = vadd.f32 %v9995, 1.0
          %v10466 = vlog2.pop %v10465
          %v10467 = vmul.f32 %v10466, 0.6931472
          %v10468 = vmul.f32 -0.5, %v9995
          %v10469 = vadd.f32 %v10468, 1.0
          %v10470 = vmul.f32 %v10469, %v9995
          %v10471 = vand.u32 2147483647, %v9995
          %vm10472 = vcmp.lt.f32.partialorder %v10471, 0.0004427343
          %v10473 = vsel %vm10472, %v10470, %v10467
          %v10474 = vadd.f32 %v9997, 1.0
          %v10475 = vlog2.pop %v10474
          %v10476 = vmul.f32 %v10475, 0.6931472
          %v10477 = vmul.f32 -0.5, %v9997
          %v10478 = vadd.f32 %v10477, 1.0
          %v10479 = vmul.f32 %v10478, %v9997
          %v10480 = vand.u32 2147483647, %v9997
          %vm10481 = vcmp.lt.f32.partialorder %v10480, 0.0004427343
          %v10482 = vsel %vm10481, %v10479, %v10476
          %v10483 = vadd.f32 %v9999, 1.0
          %v10484 = vlog2.pop %v10483
          %v10485 = vmul.f32 %v10484, 0.6931472
          %v10486 = vmul.f32 -0.5, %v9999
          %v10487 = vadd.f32 %v10486, 1.0
          %v10488 = vmul.f32 %v10487, %v9999
          %v10489 = vand.u32 2147483647, %v9999
          %vm10490 = vcmp.lt.f32.partialorder %v10489, 0.0004427343
          %v10491 = vsel %vm10490, %v10488, %v10485
          %v10492 = vadd.f32 %v10001, 1.0
          %v10493 = vlog2.pop %v10492
          %v10494 = vmul.f32 %v10493, 0.6931472
          %v10495 = vmul.f32 -0.5, %v10001
          %v10496 = vadd.f32 %v10495, 1.0
          %v10497 = vmul.f32 %v10496, %v10001
          %v10498 = vand.u32 2147483647, %v10001
          %vm10499 = vcmp.lt.f32.partialorder %v10498, 0.0004427343
          %v10500 = vsel %vm10499, %v10497, %v10494
          %v10501 = vadd.f32 %v10003, 1.0
          %v10502 = vlog2.pop %v10501
          %v10503 = vmul.f32 %v10502, 0.6931472
          %v10504 = vmul.f32 -0.5, %v10003
          %v10505 = vadd.f32 %v10504, 1.0
          %v10506 = vmul.f32 %v10505, %v10003
          %v10507 = vand.u32 2147483647, %v10003
          %vm10508 = vcmp.lt.f32.partialorder %v10507, 0.0004427343
          %v10509 = vsel %vm10508, %v10506, %v10503
          %v10510 = vadd.f32 %v10005, 1.0
          %v10511 = vlog2.pop %v10510
          %v10512 = vmul.f32 %v10511, 0.6931472
          %v10513 = vmul.f32 -0.5, %v10005
          %v10514 = vadd.f32 %v10513, 1.0
          %v10515 = vmul.f32 %v10514, %v10005
          %v10516 = vand.u32 2147483647, %v10005
          %vm10517 = vcmp.lt.f32.partialorder %v10516, 0.0004427343
          %v10518 = vsel %vm10517, %v10515, %v10512
          %v10519 = vadd.f32 %v10007, 1.0
          %v10520 = vlog2.pop %v10519
          %v10521 = vmul.f32 %v10520, 0.6931472
          %v10522 = vmul.f32 -0.5, %v10007
          %v10523 = vadd.f32 %v10522, 1.0
          %v10524 = vmul.f32 %v10523, %v10007
          %v10525 = vand.u32 2147483647, %v10007
          %vm10526 = vcmp.lt.f32.partialorder %v10525, 0.0004427343
          %v10527 = vsel %vm10526, %v10524, %v10521
          %v10528 = vadd.f32 %v10009, 1.0
          %v10529 = vlog2.pop %v10528
          %v10530 = vmul.f32 %v10529, 0.6931472
          %v10531 = vmul.f32 -0.5, %v10009
          %v10532 = vadd.f32 %v10531, 1.0
          %v10533 = vmul.f32 %v10532, %v10009
          %v10534 = vand.u32 2147483647, %v10009
          %vm10535 = vcmp.lt.f32.partialorder %v10534, 0.0004427343
          %v10536 = vsel %vm10535, %v10533, %v10530
          %v10537 = vadd.f32 %v10011, 1.0
          %v10538 = vlog2.pop %v10537
          %v10539 = vmul.f32 %v10538, 0.6931472
          %v10540 = vmul.f32 -0.5, %v10011
          %v10541 = vadd.f32 %v10540, 1.0
          %v10542 = vmul.f32 %v10541, %v10011
          %v10543 = vand.u32 2147483647, %v10011
          %vm10544 = vcmp.lt.f32.partialorder %v10543, 0.0004427343
          %v10545 = vsel %vm10544, %v10542, %v10539
          %v10546 = vadd.f32 %v10013, 1.0
          %v10547 = vlog2.pop %v10546
          %v10548 = vmul.f32 %v10547, 0.6931472
          %v10549 = vmul.f32 -0.5, %v10013
          %v10550 = vadd.f32 %v10549, 1.0
          %v10551 = vmul.f32 %v10550, %v10013
          %v10552 = vand.u32 2147483647, %v10013
          %vm10553 = vcmp.lt.f32.partialorder %v10552, 0.0004427343
          %v10554 = vsel %vm10553, %v10551, %v10548
          %v10555 = vadd.f32 %v10015, 1.0
          %v10556 = vlog2.pop %v10555
          %v10557 = vmul.f32 %v10556, 0.6931472
          %v10558 = vmul.f32 -0.5, %v10015
          %v10559 = vadd.f32 %v10558, 1.0
          %v10560 = vmul.f32 %v10559, %v10015
          %v10561 = vand.u32 2147483647, %v10015
          %vm10562 = vcmp.lt.f32.partialorder %v10561, 0.0004427343
          %v10563 = vsel %vm10562, %v10560, %v10557
          %v10564 = vadd.f32 %v10017, 1.0
          %v10565 = vlog2.pop %v10564
          %v10566 = vmul.f32 %v10565, 0.6931472
          %v10567 = vmul.f32 -0.5, %v10017
          %v10568 = vadd.f32 %v10567, 1.0
          %v10569 = vmul.f32 %v10568, %v10017
          %v10570 = vand.u32 2147483647, %v10017
          %vm10571 = vcmp.lt.f32.partialorder %v10570, 0.0004427343
          %v10572 = vsel %vm10571, %v10569, %v10566
          %v10573 = vadd.f32 %v10019, 1.0
          %v10574 = vlog2.pop %v10573
          %v10575 = vmul.f32 %v10574, 0.6931472
          %v10576 = vmul.f32 -0.5, %v10019
          %v10577 = vadd.f32 %v10576, 1.0
          %v10578 = vmul.f32 %v10577, %v10019
          %v10579 = vand.u32 2147483647, %v10019
          %vm10580 = vcmp.lt.f32.partialorder %v10579, 0.0004427343
          %v10581 = vsel %vm10580, %v10578, %v10575
          %v10582 = vadd.f32 %v10021, 1.0
          %v10583 = vlog2.pop %v10582
          %v10584 = vmul.f32 %v10583, 0.6931472
          %v10585 = vmul.f32 -0.5, %v10021
          %v10586 = vadd.f32 %v10585, 1.0
          %v10587 = vmul.f32 %v10586, %v10021
          %v10588 = vand.u32 2147483647, %v10021
          %vm10589 = vcmp.lt.f32.partialorder %v10588, 0.0004427343
          %v10590 = vsel %vm10589, %v10587, %v10584
          %v10591 = vadd.f32 %v10023, 1.0
          %v10592 = vlog2.pop %v10591
          %v10593 = vmul.f32 %v10592, 0.6931472
          %v10594 = vmul.f32 -0.5, %v10023
          %v10595 = vadd.f32 %v10594, 1.0
          %v10596 = vmul.f32 %v10595, %v10023
          %v10597 = vand.u32 2147483647, %v10023
          %vm10598 = vcmp.lt.f32.partialorder %v10597, 0.0004427343
          %v10599 = vsel %vm10598, %v10596, %v10593
          %v10600 = vadd.f32 %v9704, %v10032
          %v10601 = vadd.f32 %v9705, %v10041
          %v10602 = vadd.f32 %v9706, %v10050
          %v10603 = vadd.f32 %v9707, %v10059
          %v10604 = vadd.f32 %v9708, %v10068
          %v10605 = vadd.f32 %v9709, %v10077
          %v10606 = vadd.f32 %v9710, %v10086
          %v10607 = vadd.f32 %v9711, %v10095
          %v10608 = vadd.f32 %v9712, %v10104
          %v10609 = vadd.f32 %v9713, %v10113
          %v10610 = vadd.f32 %v9714, %v10122
          %v10611 = vadd.f32 %v9715, %v10131
          %v10612 = vadd.f32 %v9716, %v10140
          %v10613 = vadd.f32 %v9717, %v10149
          %v10614 = vadd.f32 %v9718, %v10158
          %v10615 = vadd.f32 %v9719, %v10167
          %v10616 = vadd.f32 %v9720, %v10176
          %v10617 = vadd.f32 %v9721, %v10185
          %v10618 = vadd.f32 %v9722, %v10194
          %v10619 = vadd.f32 %v9723, %v10203
          %v10620 = vadd.f32 %v9724, %v10212
          %v10621 = vadd.f32 %v9725, %v10221
          %v10622 = vadd.f32 %v9726, %v10230
          %v10623 = vadd.f32 %v9727, %v10239
          %v10624 = vadd.f32 %v9728, %v10248
          %v10625 = vadd.f32 %v9729, %v10257
          %v10626 = vadd.f32 %v9730, %v10266
          %v10627 = vadd.f32 %v9731, %v10275
          %v10628 = vadd.f32 %v9732, %v10284
          %v10629 = vadd.f32 %v9733, %v10293
          %v10630 = vadd.f32 %v9734, %v10302
          %v10631 = vadd.f32 %v9735, %v10311
          %v10632 = vadd.f32 %v9736, %v10320
          %v10633 = vadd.f32 %v9737, %v10329
          %v10634 = vadd.f32 %v9738, %v10338
          %v10635 = vadd.f32 %v9739, %v10347
          %v10636 = vadd.f32 %v9740, %v10356
          %v10637 = vadd.f32 %v9741, %v10365
          %v10638 = vadd.f32 %v9742, %v10374
          %v10639 = vadd.f32 %v9743, %v10383
          %v10640 = vadd.f32 %v9744, %v10392
          %v10641 = vadd.f32 %v9745, %v10401
          %v10642 = vadd.f32 %v9746, %v10410
          %v10643 = vadd.f32 %v9747, %v10419
          %v10644 = vadd.f32 %v9748, %v10428
          %v10645 = vadd.f32 %v9749, %v10437
          %v10646 = vadd.f32 %v9750, %v10446
          %v10647 = vadd.f32 %v9751, %v10455
          %v10648 = vadd.f32 %v9752, %v10464
          %v10649 = vadd.f32 %v9753, %v10473
          %v10650 = vadd.f32 %v9754, %v10482
          %v10651 = vadd.f32 %v9755, %v10491
          %v10652 = vadd.f32 %v9756, %v10500
          %v10653 = vadd.f32 %v9757, %v10509
          %v10654 = vadd.f32 %v9758, %v10518
          %v10655 = vadd.f32 %v9759, %v10527
          %v10656 = vadd.f32 %v9760, %v10536
          %v10657 = vadd.f32 %v9761, %v10545
          %v10658 = vadd.f32 %v9762, %v10554
          %v10659 = vadd.f32 %v9763, %v10563
          %v10660 = vadd.f32 %v9764, %v10572
          %v10661 = vadd.f32 %v9765, %v10581
          %v10662 = vadd.f32 %v9766, %v10590
          %v10663 = vadd.f32 %v9767, %v10599
          %v10664 = vsel %vm9703, %v10600, %v9445
          %v10665 = vsel %vm9703, %v10601, %v9448
          %v10666 = vsel %vm9703, %v10602, %v9453
          %v10667 = vsel %vm9703, %v10603, %v9456
          %v10668 = vsel %vm9703, %v10604, %v9461
          %v10669 = vsel %vm9703, %v10605, %v9464
          %v10670 = vsel %vm9703, %v10606, %v9469
          %v10671 = vsel %vm9703, %v10607, %v9472
          %v10672 = vsel %vm9703, %v10608, %v9477
          %v10673 = vsel %vm9703, %v10609, %v9480
          %v10674 = vsel %vm9703, %v10610, %v9485
          %v10675 = vsel %vm9703, %v10611, %v9488
          %v10676 = vsel %vm9703, %v10612, %v9493
          %v10677 = vsel %vm9703, %v10613, %v9496
          %v10678 = vsel %vm9703, %v10614, %v9501
          %v10679 = vsel %vm9703, %v10615, %v9504
          %v10680 = vsel %vm9703, %v10616, %v9509
          %v10681 = vsel %vm9703, %v10617, %v9512
          %v10682 = vsel %vm9703, %v10618, %v9517
          %v10683 = vsel %vm9703, %v10619, %v9520
          %v10684 = vsel %vm9703, %v10620, %v9525
          %v10685 = vsel %vm9703, %v10621, %v9528
          %v10686 = vsel %vm9703, %v10622, %v9533
          %v10687 = vsel %vm9703, %v10623, %v9536
          %v10688 = vsel %vm9703, %v10624, %v9541
          %v10689 = vsel %vm9703, %v10625, %v9544
          %v10690 = vsel %vm9703, %v10626, %v9549
          %v10691 = vsel %vm9703, %v10627, %v9552
          %v10692 = vsel %vm9703, %v10628, %v9557
          %v10693 = vsel %vm9703, %v10629, %v9560
          %v10694 = vsel %vm9703, %v10630, %v9565
          %v10695 = vsel %vm9703, %v10631, %v9568
          %v10696 = vsel %vm9703, %v10632, %v9573
          %v10697 = vsel %vm9703, %v10633, %v9576
          %v10698 = vsel %vm9703, %v10634, %v9581
          %v10699 = vsel %vm9703, %v10635, %v9584
          %v10700 = vsel %vm9703, %v10636, %v9589
          %v10701 = vsel %vm9703, %v10637, %v9592
          %v10702 = vsel %vm9703, %v10638, %v9597
          %v10703 = vsel %vm9703, %v10639, %v9600
          %v10704 = vsel %vm9703, %v10640, %v9605
          %v10705 = vsel %vm9703, %v10641, %v9608
          %v10706 = vsel %vm9703, %v10642, %v9613
          %v10707 = vsel %vm9703, %v10643, %v9616
          %v10708 = vsel %vm9703, %v10644, %v9621
          %v10709 = vsel %vm9703, %v10645, %v9624
          %v10710 = vsel %vm9703, %v10646, %v9629
          %v10711 = vsel %vm9703, %v10647, %v9632
          %v10712 = vsel %vm9703, %v10648, %v9637
          %v10713 = vsel %vm9703, %v10649, %v9640
          %v10714 = vsel %vm9703, %v10650, %v9645
          %v10715 = vsel %vm9703, %v10651, %v9648
          %v10716 = vsel %vm9703, %v10652, %v9653
          %v10717 = vsel %vm9703, %v10653, %v9656
          %v10718 = vsel %vm9703, %v10654, %v9661
          %v10719 = vsel %vm9703, %v10655, %v9664
          %v10720 = vsel %vm9703, %v10656, %v9669
          %v10721 = vsel %vm9703, %v10657, %v9672
          %v10722 = vsel %vm9703, %v10658, %v9677
          %v10723 = vsel %vm9703, %v10659, %v9680
          %v10724 = vsel %vm9703, %v10660, %v9685
          %v10725 = vsel %vm9703, %v10661, %v9688
          %v10726 = vsel %vm9703, %v10662, %v9693
          %v10727 = vsel %vm9703, %v10663, %v9696
          %10728 = vst [vmem:[%s398] sm:$0xff] %v10664
          %10729 = vst [vmem:[%s398 + $0x8] sm:$0xff] %v10665
          %10730 = vst [vmem:[%s398 + $0x10] sm:$0xff] %v10666
          %10731 = vst [vmem:[%s398 + $0x18] sm:$0xff] %v10667
          %10732 = vst [vmem:[%s398 + $0x20] sm:$0xff] %v10668
          %10733 = vst [vmem:[%s398 + $0x28] sm:$0xff] %v10669
          %10734 = vst [vmem:[%s398 + $0x30] sm:$0xff] %v10670
          %10735 = vst [vmem:[%s398 + $0x38] sm:$0xff] %v10671
          %10736 = vst [vmem:[%s398 + $0x40] sm:$0xff] %v10672
          %10737 = vst [vmem:[%s398 + $0x48] sm:$0xff] %v10673
          %10738 = vst [vmem:[%s398 + $0x50] sm:$0xff] %v10674
          %10739 = vst [vmem:[%s398 + $0x58] sm:$0xff] %v10675
          %10740 = vst [vmem:[%s398 + $0x60] sm:$0xff] %v10676
          %10741 = vst [vmem:[%s398 + $0x68] sm:$0xff] %v10677
          %10742 = vst [vmem:[%s398 + $0x70] sm:$0xff] %v10678
          %10743 = vst [vmem:[%s398 + $0x78] sm:$0xff] %v10679
          %10744 = vst [vmem:[%s398 + $0x80] sm:$0xff] %v10680
          %10745 = vst [vmem:[%s398 + $0x88] sm:$0xff] %v10681
          %10746 = vst [vmem:[%s398 + $0x90] sm:$0xff] %v10682
          %10747 = vst [vmem:[%s398 + $0x98] sm:$0xff] %v10683
          %10748 = vst [vmem:[%s398 + $0xa0] sm:$0xff] %v10684
          %10749 = vst [vmem:[%s398 + $0xa8] sm:$0xff] %v10685
          %10750 = vst [vmem:[%s398 + $0xb0] sm:$0xff] %v10686
          %10751 = vst [vmem:[%s398 + $0xb8] sm:$0xff] %v10687
          %10752 = vst [vmem:[%s398 + $0xc0] sm:$0xff] %v10688
          %10753 = vst [vmem:[%s398 + $0xc8] sm:$0xff] %v10689
          %10754 = vst [vmem:[%s398 + $0xd0] sm:$0xff] %v10690
          %10755 = vst [vmem:[%s398 + $0xd8] sm:$0xff] %v10691
          %10756 = vst [vmem:[%s398 + $0xe0] sm:$0xff] %v10692
          %10757 = vst [vmem:[%s398 + $0xe8] sm:$0xff] %v10693
          %10758 = vst [vmem:[%s398 + $0xf0] sm:$0xff] %v10694
          %10759 = vst [vmem:[%s398 + $0xf8] sm:$0xff] %v10695
          %10760 = vst [vmem:[%s398 + $0x100] sm:$0xff] %v10696
          %10761 = vst [vmem:[%s398 + $0x108] sm:$0xff] %v10697
          %10762 = vst [vmem:[%s398 + $0x110] sm:$0xff] %v10698
          %10763 = vst [vmem:[%s398 + $0x118] sm:$0xff] %v10699
          %10764 = vst [vmem:[%s398 + $0x120] sm:$0xff] %v10700
          %10765 = vst [vmem:[%s398 + $0x128] sm:$0xff] %v10701
          %10766 = vst [vmem:[%s398 + $0x130] sm:$0xff] %v10702
          %10767 = vst [vmem:[%s398 + $0x138] sm:$0xff] %v10703
          %10768 = vst [vmem:[%s398 + $0x140] sm:$0xff] %v10704
          %10769 = vst [vmem:[%s398 + $0x148] sm:$0xff] %v10705
          %10770 = vst [vmem:[%s398 + $0x150] sm:$0xff] %v10706
          %10771 = vst [vmem:[%s398 + $0x158] sm:$0xff] %v10707
          %10772 = vst [vmem:[%s398 + $0x160] sm:$0xff] %v10708
          %10773 = vst [vmem:[%s398 + $0x168] sm:$0xff] %v10709
          %10774 = vst [vmem:[%s398 + $0x170] sm:$0xff] %v10710
          %10775 = vst [vmem:[%s398 + $0x178] sm:$0xff] %v10711
          %10776 = vst [vmem:[%s398 + $0x180] sm:$0xff] %v10712
          %10777 = vst [vmem:[%s398 + $0x188] sm:$0xff] %v10713
          %10778 = vst [vmem:[%s398 + $0x190] sm:$0xff] %v10714
          %10779 = vst [vmem:[%s398 + $0x198] sm:$0xff] %v10715
          %10780 = vst [vmem:[%s398 + $0x1a0] sm:$0xff] %v10716
          %10781 = vst [vmem:[%s398 + $0x1a8] sm:$0xff] %v10717
          %10782 = vst [vmem:[%s398 + $0x1b0] sm:$0xff] %v10718
          %10783 = vst [vmem:[%s398 + $0x1b8] sm:$0xff] %v10719
          %10784 = vst [vmem:[%s398 + $0x1c0] sm:$0xff] %v10720
          %10785 = vst [vmem:[%s398 + $0x1c8] sm:$0xff] %v10721
          %10786 = vst [vmem:[%s398 + $0x1d0] sm:$0xff] %v10722
          %10787 = vst [vmem:[%s398 + $0x1d8] sm:$0xff] %v10723
          %10788 = vst [vmem:[%s398 + $0x1e0] sm:$0xff] %v10724
          %10789 = vst [vmem:[%s398 + $0x1e8] sm:$0xff] %v10725
          %10790 = vst [vmem:[%s398 + $0x1f0] sm:$0xff] %v10726
          %10791 = vst [vmem:[%s398 + $0x1f8] sm:$0xff] %v10727
        $region84: #{infnet_forward.1} parent=47 // pred_fallthru
          _
        %s10792 = smul.u32 64, %s28
        %p10793 = scmp.lt.s32.totalorder %s10792, 127
        %s10794 = scalar_select %p10793, %s10792, 127
        %s10795 = smul.addr %s10794, 8
        %s10796 = scalar_lea.vmem %s7, %s10795
        // Predicated region
        $region85: #{infnet_forward.1} parent=47 // pred_check
          %p10797 = pneg %p208
        $region86: #{infnet_forward.1} parent=47 // pred_check_branch
          %10799 = sbr.rel (%p10797) target = $region88
        $region87: #{infnet_forward.1} parent=47 // pred_region
          %s10800 = smul.u32 64, %s28
        $region88: #{infnet_forward.1} parent=47 // pred_fallthru
          _
      $region48: #{infnet_forward.1} parent=5 // pred_fallthru
        _
      %p10801 = scmp.le.s32.totalorder 2, %s19
      // Predicated region
      $region89: #{infnet_forward.1} parent=5 // pred_check
        %p10802 = pneg %p10801
      $region90: #{infnet_forward.1} parent=5 // pred_check_branch
        %10804 = sbr.rel (%p10802) target = $region92
      $region91: #{infnet_forward.1} parent=5 // pred_region
        %s10805 = ssub.s32 %s19, 2
        // Predicated region
        $region93: #{infnet_forward.1} parent=91 // pred_check
          %p10806 = pneg %p214
        $region94: #{infnet_forward.1} parent=91 // pred_check_branch
          %10808 = sbr.rel (%p10806) target = $region96
        $region95: #{infnet_forward.1} parent=91 // pred_region
          %s10809 = smul.u32 64, %s30
          %p10810 = scmp.lt.s32.totalorder %s10809, 127
          %s10811 = scalar_select %p10810, %s10809, 127
          %s10812 = smul.addr %s10811, 8
          %s10813 = scalar_lea.vmem %s7, %s10812
        $region96: #{infnet_forward.1} parent=91 // pred_fallthru
          _
      $region92: #{infnet_forward.1} parent=5 // pred_fallthru
        _
    $region6: #{infnet_forward.1} parent=1 // loop_footer
      %s23 = sadd.s32 1, %s19
    $region7: #{infnet_forward.1} parent=1 // loop_footer_branch
      %18 = sbr.rel target = $region3
    $region8: #{infnet_forward.1} parent=1 // loop_exit
      _
    %10814 = vsyncpa [#allocation4], 1
    %s10815 = scalar_lea.sflag [#allocation4], 1
    %10816 = vsyncpa %s10815, 1
    %10817 = vsyncpa [#allocation6], 1
    %10818 = vsyncpa [#allocation9], 1
    %10819 = vsyncpa [#allocation12], 1

</llo_original>
